<compile_context>
chip_gen: v7x
topology: tpu7x:2x2x1
jax: 0.10.0
libtpu: 0.0.40
codegen_flags: <defaults>
</compile_context>

<pallas_src>
import jax
import jax.numpy as jnp
from jax.experimental import pallas as pl
from jax.experimental.pallas import tpu as pltpu

IN_FEATURES = 12288
H1, H2, OUT = 84, 50, 2


def mlp_kernel(x_ref, w1_ref, b1_ref, w2_ref, b2_ref, w3_ref, b3_ref, o_ref):
    # fc1 + relu
    h1 = jnp.dot(x_ref[...], w1_ref[...], preferred_element_type=jnp.float32)
    h1 = jnp.maximum(h1 + b1_ref[...], 0.0)
    # fc2 + relu
    h2 = jnp.dot(h1, w2_ref[...], preferred_element_type=jnp.float32)
    h2 = jnp.maximum(h2 + b2_ref[...], 0.0)
    # fc3 (no activation)
    o_ref[...] = jnp.dot(h2, w3_ref[...], preferred_element_type=jnp.float32) + b3_ref[...]


def _round_up(v, m):
    return ((v + m - 1) // m) * m


def _chip_config():
    """Pick batch-tile ceiling + scoped-VMEM limit per TPU generation."""
    try:
        kind = jax.devices()[0].device_kind.lower()
    except Exception:  # pragma: no cover - defensive only
        kind = ""
    if "7" in kind:
        # v7x: 64 MiB VMEM per TC, ~3.2 TB/s HBM. 320-row tile:
        # 2 x 15 MiB (x double-buffer) + ~13 MiB (padded w1 x2) ~= 43 MiB.
        return {"tm_max": 320, "vmem_limit": 56 << 20}
    if ("v6" in kind) or ("v5" in kind) or ("v4" in kind):
        # 128 MiB VMEM parts. 512-row tile:
        # 2 x 24 MiB (x) + ~13 MiB (weights) ~= 61 MiB, well under 96 MiB limit.
        return {"tm_max": 512, "vmem_limit": 96 << 20}
    # Unknown chip: conservative settings that fit any TPU with >= 64 MiB VMEM.
    return {"tm_max": 256, "vmem_limit": 48 << 20}


def simple_net_forward(x, params):
    """x: (N, 3, 64, 64) float32 (NCHW). Returns (N, 2) float32."""
    w1, b1, w2, b2, w3, b3 = params
    x2d = x.reshape(-1, IN_FEATURES)  # same as torch x.view(-1, 12288); no copy
    n = x2d.shape[0]

    cfg = _chip_config()
    # Sublane-aligned (8) batch tile, sized from cdiv(n, 2) so the grid has
    # >= 2 steps whenever n > 8 -> both TensorCores participate on v7x.
    tm = min(cfg["tm_max"], max(8, _round_up(pl.cdiv(n, 2), 8)))
    grid = (pl.cdiv(n, tm),)

    # weights/biases: full-array blocks with a constant index_map -> DMA'd
    # once and held resident in VMEM across all batch tiles.
    def resident(shape):
        return pl.BlockSpec(shape, lambda i: (0, 0))

    cost = pl.CostEstimate(
        flops=2 * n * (IN_FEATURES * H1 + H1 * H2 + H2 * OUT),
        transcendentals=0,
        bytes_accessed=4 * (n * IN_FEATURES + IN_FEATURES * H1 + H1 * H2
                            + H2 * OUT + H1 + H2 + OUT + n * OUT),
    )

    out = pl.pallas_call(
        mlp_kernel,
        out_shape=jax.ShapeDtypeStruct((n, OUT), jnp.float32),
        grid=grid,
        in_specs=[
            pl.BlockSpec((tm, IN_FEATURES), lambda i: (i, 0)),  # x tile (pipelined)
            resident((IN_FEATURES, H1)), resident((1, H1)),     # fc1
            resident((H1, H2)),          resident((1, H2)),     # fc2
            resident((H2, OUT)),         resident((1, OUT)),    # fc3
        ],
        out_specs=pl.BlockSpec((tm, OUT), lambda i: (i, 0)),
        compiler_params=pltpu.CompilerParams(
            dimension_semantics=("parallel",),      # shards batch tiles across TCs on v7x
            vmem_limit_bytes=cfg["vmem_limit"],     # explicit: v5e default scoped limit is 16 MiB
        ),
        cost_estimate=cost,
    )(x2d, w1, b1, w2, b2, w3, b3)
    return out


def init_params(key):
    """Deterministic init mirroring nn.Linear default (uniform +-1/sqrt(fan_in)).
    Weights stored as (in_features, out_features); biases as (1, out_features)."""
    ks = jax.random.split(key, 6)

    def lin(kw, kb, fan_in, fan_out):
        bound = 1.0 / jnp.sqrt(fan_in)
        w = jax.random.uniform(kw, (fan_in, fan_out), jnp.float32, -bound, bound)
        b = jax.random.uniform(kb, (1, fan_out), jnp.float32, -bound, bound)
        return w, b

    w1, b1 = lin(ks[0], ks[1], IN_FEATURES, H1)
    w2, b2 = lin(ks[2], ks[3], H1, H2)
    w3, b3 = lin(ks[4], ks[5], H2, OUT)
    return (w1, b1, w2, b2, w3, b3)


if __name__ == "__main__":
    key = jax.random.PRNGKey(0)
    kx, kp = jax.random.split(key)

    # batch=2, NCHW input: 3*64*64 = 12288 features per sample (module spec)
    x = jax.random.normal(kx, (2, 3, 64, 64), jnp.float32)
    params = init_params(kp)

    out = simple_net_forward(x, params)
    out = jax.block_until_ready(out)

    # cross-check against plain-JAX reference
    w1, b1, w2, b2, w3, b3 = params
    xf = x.reshape(-1, IN_FEATURES)
    ref = jnp.maximum(xf @ w1 + b1, 0.0)
    ref = jnp.maximum(ref @ w2 + b2, 0.0)
    ref = ref @ w3 + b3

    assert out.shape == (2, 2), out.shape
    assert jnp.allclose(out, ref, atol=1e-4, rtol=1e-4), "mismatch vs reference"
    print("KERNEL_OK")
</pallas_src>

<mosaic_0001>
module attributes {stable_mosaic.version = 11 : i64} {
  func.func @mlp_kernel(%arg0: i32, %arg1: memref<8x12288xf32, #tpu.memory_space<vmem>>, %arg2: memref<12288x84xf32, #tpu.memory_space<vmem>>, %arg3: memref<1x84xf32, #tpu.memory_space<vmem>>, %arg4: memref<84x50xf32, #tpu.memory_space<vmem>>, %arg5: memref<1x50xf32, #tpu.memory_space<vmem>>, %arg6: memref<50x2xf32, #tpu.memory_space<vmem>>, %arg7: memref<1x2xf32, #tpu.memory_space<vmem>>, %arg8: memref<8x2xf32, #tpu.memory_space<vmem>>) attributes {dimension_semantics = [#tpu.dimension_semantics<parallel>], iteration_bounds = array<i64: 1>, scalar_prefetch = 0 : i64, scratch_operands = 0 : i64, tpu.core_type = #tpu.core_type<tc>, window_params = [{transform_indices = @transform_0, window_bounds = array<i64: 8, 12288>}, {pipeline_mode = #tpu.pipeline_mode<synchronous>, transform_indices = @transform_1, window_bounds = array<i64: 12288, 84>}, {pipeline_mode = #tpu.pipeline_mode<synchronous>, transform_indices = @transform_2, window_bounds = array<i64: 1, 84>}, {pipeline_mode = #tpu.pipeline_mode<synchronous>, transform_indices = @transform_3, window_bounds = array<i64: 84, 50>}, {pipeline_mode = #tpu.pipeline_mode<synchronous>, transform_indices = @transform_4, window_bounds = array<i64: 1, 50>}, {pipeline_mode = #tpu.pipeline_mode<synchronous>, transform_indices = @transform_5, window_bounds = array<i64: 50, 2>}, {pipeline_mode = #tpu.pipeline_mode<synchronous>, transform_indices = @transform_6, window_bounds = array<i64: 1, 2>}, {transform_indices = @transform_7, window_bounds = array<i64: 8, 2>}]} {
    %c0 = arith.constant 0 : index
    %c0_0 = arith.constant 0 : index
    %0 = vector.load %arg1[%c0, %c0_0] : memref<8x12288xf32, #tpu.memory_space<vmem>>, vector<8x12288xf32>
    %c0_1 = arith.constant 0 : index
    %c0_2 = arith.constant 0 : index
    %1 = vector.load %arg2[%c0_1, %c0_2] : memref<12288x84xf32, #tpu.memory_space<vmem>>, vector<12288x84xf32>
    %cst = arith.constant dense<0.000000e+00> : vector<8x84xf32>
    %2 = tpu.matmul %0, %1, %cst {dimension_numbers = #tpu.dot_dimension_numbers<[1], [0], [0], [1], [0, 0, 1, 1], [], []>} : vector<8x12288xf32>, vector<12288x84xf32>, vector<8x84xf32> -> vector<8x84xf32>
    %c0_3 = arith.constant 0 : index
    %c0_4 = arith.constant 0 : index
    %3 = vector.load %arg3[%c0_3, %c0_4] : memref<1x84xf32, #tpu.memory_space<vmem>>, vector<1x84xf32>
    %4 = vector.broadcast %3 : vector<1x84xf32> to vector<8x84xf32>
    %5 = arith.addf %2, %4 : vector<8x84xf32>
    %cst_5 = arith.constant 0.000000e+00 : f32
    %6 = vector.broadcast %cst_5 : f32 to vector<8x84xf32>
    %7 = arith.maximumf %5, %6 : vector<8x84xf32>
    %c0_6 = arith.constant 0 : index
    %c0_7 = arith.constant 0 : index
    %8 = vector.load %arg4[%c0_6, %c0_7] : memref<84x50xf32, #tpu.memory_space<vmem>>, vector<84x50xf32>
    %cst_8 = arith.constant dense<0.000000e+00> : vector<8x50xf32>
    %9 = tpu.matmul %7, %8, %cst_8 {dimension_numbers = #tpu.dot_dimension_numbers<[1], [0], [0], [1], [0, 0, 1, 1], [], []>} : vector<8x84xf32>, vector<84x50xf32>, vector<8x50xf32> -> vector<8x50xf32>
    %c0_9 = arith.constant 0 : index
    %c0_10 = arith.constant 0 : index
    %10 = vector.load %arg5[%c0_9, %c0_10] : memref<1x50xf32, #tpu.memory_space<vmem>>, vector<1x50xf32>
    %11 = vector.broadcast %10 : vector<1x50xf32> to vector<8x50xf32>
    %12 = arith.addf %9, %11 : vector<8x50xf32>
    %cst_11 = arith.constant 0.000000e+00 : f32
    %13 = vector.broadcast %cst_11 : f32 to vector<8x50xf32>
    %14 = arith.maximumf %12, %13 : vector<8x50xf32>
    %c0_12 = arith.constant 0 : index
    %c0_13 = arith.constant 0 : index
    %15 = vector.load %arg6[%c0_12, %c0_13] : memref<50x2xf32, #tpu.memory_space<vmem>>, vector<50x2xf32>
    %cst_14 = arith.constant dense<0.000000e+00> : vector<8x2xf32>
    %16 = tpu.matmul %14, %15, %cst_14 {dimension_numbers = #tpu.dot_dimension_numbers<[1], [0], [0], [1], [0, 0, 1, 1], [], []>} : vector<8x50xf32>, vector<50x2xf32>, vector<8x2xf32> -> vector<8x2xf32>
    %c0_15 = arith.constant 0 : index
    %c0_16 = arith.constant 0 : index
    %17 = vector.load %arg7[%c0_15, %c0_16] : memref<1x2xf32, #tpu.memory_space<vmem>>, vector<1x2xf32>
    %18 = vector.broadcast %17 : vector<1x2xf32> to vector<8x2xf32>
    %19 = arith.addf %16, %18 : vector<8x2xf32>
    %c0_17 = arith.constant 0 : index
    %c0_18 = arith.constant 0 : index
    %20 = vector.load %arg8[%c0_17, %c0_18] : memref<8x2xf32, #tpu.memory_space<vmem>>, vector<8x2xf32>
    tpu.vector_store %arg8[%c0_17, %c0_18], %19 {strides = array<i32>} : memref<8x2xf32, #tpu.memory_space<vmem>>, vector<8x2xf32>,
    return
  }
  func.func @transform_0(%arg0: i32) -> (i32, i32) {
    %c0_i32 = arith.constant 0 : i32
    %c0_i32_0 = arith.constant 0 : i32
    return %arg0, %c0_i32 : i32, i32
  }
  func.func @transform_1(%arg0: i32) -> (i32, i32) {
    %c0_i32 = arith.constant 0 : i32
    %c0_i32_0 = arith.constant 0 : i32
    %c0_i32_1 = arith.constant 0 : i32
    return %c0_i32, %c0_i32_0 : i32, i32
  }
  func.func @transform_2(%arg0: i32) -> (i32, i32) {
    %c0_i32 = arith.constant 0 : i32
    %c0_i32_0 = arith.constant 0 : i32
    %c0_i32_1 = arith.constant 0 : i32
    return %c0_i32, %c0_i32_0 : i32, i32
  }
  func.func @transform_3(%arg0: i32) -> (i32, i32) {
    %c0_i32 = arith.constant 0 : i32
    %c0_i32_0 = arith.constant 0 : i32
    %c0_i32_1 = arith.constant 0 : i32
    return %c0_i32, %c0_i32_0 : i32, i32
  }
  func.func @transform_4(%arg0: i32) -> (i32, i32) {
    %c0_i32 = arith.constant 0 : i32
    %c0_i32_0 = arith.constant 0 : i32
    %c0_i32_1 = arith.constant 0 : i32
    return %c0_i32, %c0_i32_0 : i32, i32
  }
  func.func @transform_5(%arg0: i32) -> (i32, i32) {
    %c0_i32 = arith.constant 0 : i32
    %c0_i32_0 = arith.constant 0 : i32
    %c0_i32_1 = arith.constant 0 : i32
    return %c0_i32, %c0_i32_0 : i32, i32
  }
  func.func @transform_6(%arg0: i32) -> (i32, i32) {
    %c0_i32 = arith.constant 0 : i32
    %c0_i32_0 = arith.constant 0 : i32
    %c0_i32_1 = arith.constant 0 : i32
    return %c0_i32, %c0_i32_0 : i32, i32
  }
  func.func @transform_7(%arg0: i32) -> (i32, i32) {
    %c0_i32 = arith.constant 0 : i32
    %c0_i32_0 = arith.constant 0 : i32
    return %arg0, %c0_i32 : i32, i32
  }
}

</mosaic_0001>

<llo_original>
// kernel: tpu_custom_call.1
$region0: #{tpu_custom_call.1}
  #allocation0 [shape = 'u32[]', space=smem, size = 0x4, offset = 0x4, fixed_abs, tag = 'smem constant byte address 0x4 - core index']
  #allocation1 [shape = 'u32[144,128]{1,0:T(1,128)}', space=vmem, size = 0x12000, scoped, tag = 'internal scratch']
  %s0 = inlined_call_operand.vmem [shape: f32[2,12288], index: 0, kind: input, shape index: {}]
  %s1 = inlined_call_operand.vmem [shape: f32[12288,84], index: 1, kind: input, shape index: {}]
  %s2 = inlined_call_operand.vmem [shape: f32[1,84], index: 2, kind: input, shape index: {}]
  %s3 = inlined_call_operand.vmem [shape: f32[84,50], index: 3, kind: input, shape index: {}]
  %s4 = inlined_call_operand.vmem [shape: f32[1,50], index: 4, kind: input, shape index: {}]
  %s5 = inlined_call_operand.vmem [shape: f32[50,2], index: 5, kind: input, shape index: {}]
  %s6 = inlined_call_operand.vmem [shape: f32[1,2], index: 6, kind: input, shape index: {}]
  %s7 = inlined_call_operand.hbm [shape: f32[2,2], index: 7, kind: output, shape index: {}]
  %s8 = sld [smem:[#allocation0]]
  $region38: #{tpu_custom_call.1} parent=0
    _
  %s10 = ssub.s32 1, %s8
  %s11 = scalar_select 0, %s10, %s8
  $region1: #{tpu_custom_call.1} parent=0
    #allocation2 [shape = 'u8[4096]{0}', space=vmem, size = 0x1000, scoped, tag = 'output window, operand 0, single buffered']
    #allocation3 [shape = 's32[1]{0}', space=sflag, size = 0x4, scoped, tag = 'scoped memory for tpu_custom_call.1']
    %12 = vsyncpa [#allocation3], 0
    // Predicated region
    $region2: #{tpu_custom_call.1} parent=1 // pred_check
      _
    $region3: #{tpu_custom_call.1} parent=1 // pred_check_branch
      %14 = sbr.rel (0) target = $region5
    $region4: #{tpu_custom_call.1} parent=1 // pred_region
      _
    $region5: #{tpu_custom_call.1} parent=1 // pred_fallthru
      _
    // Predicated region
    $region6: #{tpu_custom_call.1} parent=1 // pred_check
      _
    $region7: #{tpu_custom_call.1} parent=1 // pred_check_branch
      %16 = sbr.rel (0) target = $region9
    $region8: #{tpu_custom_call.1} parent=1 // pred_region
      _
    $region9: #{tpu_custom_call.1} parent=1 // pred_fallthru
      _
    // Predicated region
    $region10: #{tpu_custom_call.1} parent=1 // pred_check
      _
    $region11: #{tpu_custom_call.1} parent=1 // pred_check_branch
      %18 = sbr.rel (0) target = $region13
    $region12: #{tpu_custom_call.1} parent=1 // pred_region
      _
    $region13: #{tpu_custom_call.1} parent=1 // pred_fallthru
      _
    // Predicated region
    $region14: #{tpu_custom_call.1} parent=1 // pred_check
      _
    $region15: #{tpu_custom_call.1} parent=1 // pred_check_branch
      %20 = sbr.rel (0) target = $region17
    $region16: #{tpu_custom_call.1} parent=1 // pred_region
      _
    $region17: #{tpu_custom_call.1} parent=1 // pred_fallthru
      _
    // Predicated region
    $region18: #{tpu_custom_call.1} parent=1 // pred_check
      _
    $region19: #{tpu_custom_call.1} parent=1 // pred_check_branch
      %22 = sbr.rel (0) target = $region21
    $region20: #{tpu_custom_call.1} parent=1 // pred_region
      _
    $region21: #{tpu_custom_call.1} parent=1 // pred_fallthru
      _
    // Predicated region
    $region22: #{tpu_custom_call.1} parent=1 // pred_check
      _
    $region23: #{tpu_custom_call.1} parent=1 // pred_check_branch
      %24 = sbr.rel (0) target = $region25
    $region24: #{tpu_custom_call.1} parent=1 // pred_region
      _
    $region25: #{tpu_custom_call.1} parent=1 // pred_fallthru
      _
    // Predicated region
    $region26: #{tpu_custom_call.1} parent=1 // pred_check
      _
    $region27: #{tpu_custom_call.1} parent=1 // pred_check_branch
      %26 = sbr.rel (0) target = $region29
    $region28: #{tpu_custom_call.1} parent=1 // pred_region
      _
    $region29: #{tpu_custom_call.1} parent=1 // pred_fallthru
      _
    %v27 = vld [vmem:[%s0] sm:$0xff]
    %v28 = vld [vmem:[%s0 + $0x8] sm:$0xff]
    %v29 = vld [vmem:[%s0 + $0x10] sm:$0xff]
    %v30 = vld [vmem:[%s0 + $0x18] sm:$0xff]
    %v31 = vld [vmem:[%s0 + $0x20] sm:$0xff]
    %v32 = vld [vmem:[%s0 + $0x28] sm:$0xff]
    %v33 = vld [vmem:[%s0 + $0x30] sm:$0xff]
    %v34 = vld [vmem:[%s0 + $0x38] sm:$0xff]
    %v35 = vld [vmem:[%s0 + $0x40] sm:$0xff]
    %v36 = vld [vmem:[%s0 + $0x48] sm:$0xff]
    %v37 = vld [vmem:[%s0 + $0x50] sm:$0xff]
    %v38 = vld [vmem:[%s0 + $0x58] sm:$0xff]
    %v39 = vld [vmem:[%s0 + $0x60] sm:$0xff]
    %v40 = vld [vmem:[%s0 + $0x68] sm:$0xff]
    %v41 = vld [vmem:[%s0 + $0x70] sm:$0xff]
    %v42 = vld [vmem:[%s0 + $0x78] sm:$0xff]
    %v43 = vld [vmem:[%s0 + $0x80] sm:$0xff]
    %v44 = vld [vmem:[%s0 + $0x88] sm:$0xff]
    %v45 = vld [vmem:[%s0 + $0x90] sm:$0xff]
    %v46 = vld [vmem:[%s0 + $0x98] sm:$0xff]
    %v47 = vld [vmem:[%s0 + $0xa0] sm:$0xff]
    %v48 = vld [vmem:[%s0 + $0xa8] sm:$0xff]
    %v49 = vld [vmem:[%s0 + $0xb0] sm:$0xff]
    %v50 = vld [vmem:[%s0 + $0xb8] sm:$0xff]
    %v51 = vld [vmem:[%s0 + $0xc0] sm:$0xff]
    %v52 = vld [vmem:[%s0 + $0xc8] sm:$0xff]
    %v53 = vld [vmem:[%s0 + $0xd0] sm:$0xff]
    %v54 = vld [vmem:[%s0 + $0xd8] sm:$0xff]
    %v55 = vld [vmem:[%s0 + $0xe0] sm:$0xff]
    %v56 = vld [vmem:[%s0 + $0xe8] sm:$0xff]
    %v57 = vld [vmem:[%s0 + $0xf0] sm:$0xff]
    %v58 = vld [vmem:[%s0 + $0xf8] sm:$0xff]
    %v59 = vld [vmem:[%s0 + $0x100] sm:$0xff]
    %v60 = vld [vmem:[%s0 + $0x108] sm:$0xff]
    %v61 = vld [vmem:[%s0 + $0x110] sm:$0xff]
    %v62 = vld [vmem:[%s0 + $0x118] sm:$0xff]
    %v63 = vld [vmem:[%s0 + $0x120] sm:$0xff]
    %v64 = vld [vmem:[%s0 + $0x128] sm:$0xff]
    %v65 = vld [vmem:[%s0 + $0x130] sm:$0xff]
    %v66 = vld [vmem:[%s0 + $0x138] sm:$0xff]
    %v67 = vld [vmem:[%s0 + $0x140] sm:$0xff]
    %v68 = vld [vmem:[%s0 + $0x148] sm:$0xff]
    %v69 = vld [vmem:[%s0 + $0x150] sm:$0xff]
    %v70 = vld [vmem:[%s0 + $0x158] sm:$0xff]
    %v71 = vld [vmem:[%s0 + $0x160] sm:$0xff]
    %v72 = vld [vmem:[%s0 + $0x168] sm:$0xff]
    %v73 = vld [vmem:[%s0 + $0x170] sm:$0xff]
    %v74 = vld [vmem:[%s0 + $0x178] sm:$0xff]
    %v75 = vld [vmem:[%s0 + $0x180] sm:$0xff]
    %v76 = vld [vmem:[%s0 + $0x188] sm:$0xff]
    %v77 = vld [vmem:[%s0 + $0x190] sm:$0xff]
    %v78 = vld [vmem:[%s0 + $0x198] sm:$0xff]
    %v79 = vld [vmem:[%s0 + $0x1a0] sm:$0xff]
    %v80 = vld [vmem:[%s0 + $0x1a8] sm:$0xff]
    %v81 = vld [vmem:[%s0 + $0x1b0] sm:$0xff]
    %v82 = vld [vmem:[%s0 + $0x1b8] sm:$0xff]
    %v83 = vld [vmem:[%s0 + $0x1c0] sm:$0xff]
    %v84 = vld [vmem:[%s0 + $0x1c8] sm:$0xff]
    %v85 = vld [vmem:[%s0 + $0x1d0] sm:$0xff]
    %v86 = vld [vmem:[%s0 + $0x1d8] sm:$0xff]
    %v87 = vld [vmem:[%s0 + $0x1e0] sm:$0xff]
    %v88 = vld [vmem:[%s0 + $0x1e8] sm:$0xff]
    %v89 = vld [vmem:[%s0 + $0x1f0] sm:$0xff]
    %v90 = vld [vmem:[%s0 + $0x1f8] sm:$0xff]
    %v91 = vld [vmem:[%s0 + $0x200] sm:$0xff]
    %v92 = vld [vmem:[%s0 + $0x208] sm:$0xff]
    %v93 = vld [vmem:[%s0 + $0x210] sm:$0xff]
    %v94 = vld [vmem:[%s0 + $0x218] sm:$0xff]
    %v95 = vld [vmem:[%s0 + $0x220] sm:$0xff]
    %v96 = vld [vmem:[%s0 + $0x228] sm:$0xff]
    %v97 = vld [vmem:[%s0 + $0x230] sm:$0xff]
    %v98 = vld [vmem:[%s0 + $0x238] sm:$0xff]
    %v99 = vld [vmem:[%s0 + $0x240] sm:$0xff]
    %v100 = vld [vmem:[%s0 + $0x248] sm:$0xff]
    %v101 = vld [vmem:[%s0 + $0x250] sm:$0xff]
    %v102 = vld [vmem:[%s0 + $0x258] sm:$0xff]
    %v103 = vld [vmem:[%s0 + $0x260] sm:$0xff]
    %v104 = vld [vmem:[%s0 + $0x268] sm:$0xff]
    %v105 = vld [vmem:[%s0 + $0x270] sm:$0xff]
    %v106 = vld [vmem:[%s0 + $0x278] sm:$0xff]
    %v107 = vld [vmem:[%s0 + $0x280] sm:$0xff]
    %v108 = vld [vmem:[%s0 + $0x288] sm:$0xff]
    %v109 = vld [vmem:[%s0 + $0x290] sm:$0xff]
    %v110 = vld [vmem:[%s0 + $0x298] sm:$0xff]
    %v111 = vld [vmem:[%s0 + $0x2a0] sm:$0xff]
    %v112 = vld [vmem:[%s0 + $0x2a8] sm:$0xff]
    %v113 = vld [vmem:[%s0 + $0x2b0] sm:$0xff]
    %v114 = vld [vmem:[%s0 + $0x2b8] sm:$0xff]
    %v115 = vld [vmem:[%s0 + $0x2c0] sm:$0xff]
    %v116 = vld [vmem:[%s0 + $0x2c8] sm:$0xff]
    %v117 = vld [vmem:[%s0 + $0x2d0] sm:$0xff]
    %v118 = vld [vmem:[%s0 + $0x2d8] sm:$0xff]
    %v119 = vld [vmem:[%s0 + $0x2e0] sm:$0xff]
    %v120 = vld [vmem:[%s0 + $0x2e8] sm:$0xff]
    %v121 = vld [vmem:[%s0 + $0x2f0] sm:$0xff]
    %v122 = vld [vmem:[%s0 + $0x2f8] sm:$0xff]
    %v123 = vld [vmem:[%s1] sm:$0xff]
    %v124 = vld [vmem:[%s1 + $0x8] sm:$0xff]
    %v125 = vld [vmem:[%s1 + $0x10] sm:$0xff]
    %v126 = vld [vmem:[%s1 + $0x18] sm:$0xff]
    %v127 = vld [vmem:[%s1 + $0x20] sm:$0xff]
    %v128 = vld [vmem:[%s1 + $0x28] sm:$0xff]
    %v129 = vld [vmem:[%s1 + $0x30] sm:$0xff]
    %v130 = vld [vmem:[%s1 + $0x38] sm:$0xff]
    %v131 = vld [vmem:[%s1 + $0x40] sm:$0xff]
    %v132 = vld [vmem:[%s1 + $0x48] sm:$0xff]
    %v133 = vld [vmem:[%s1 + $0x50] sm:$0xff]
    %v134 = vld [vmem:[%s1 + $0x58] sm:$0xff]
    %v135 = vld [vmem:[%s1 + $0x60] sm:$0xff]
    %v136 = vld [vmem:[%s1 + $0x68] sm:$0xff]
    %v137 = vld [vmem:[%s1 + $0x70] sm:$0xff]
    %v138 = vld [vmem:[%s1 + $0x78] sm:$0xff]
    %v139 = vld [vmem:[%s1 + $0x80] sm:$0xff]
    %v140 = vld [vmem:[%s1 + $0x88] sm:$0xff]
    %v141 = vld [vmem:[%s1 + $0x90] sm:$0xff]
    %v142 = vld [vmem:[%s1 + $0x98] sm:$0xff]
    %v143 = vld [vmem:[%s1 + $0xa0] sm:$0xff]
    %v144 = vld [vmem:[%s1 + $0xa8] sm:$0xff]
    %v145 = vld [vmem:[%s1 + $0xb0] sm:$0xff]
    %v146 = vld [vmem:[%s1 + $0xb8] sm:$0xff]
    %v147 = vld [vmem:[%s1 + $0xc0] sm:$0xff]
    %v148 = vld [vmem:[%s1 + $0xc8] sm:$0xff]
    %v149 = vld [vmem:[%s1 + $0xd0] sm:$0xff]
    %v150 = vld [vmem:[%s1 + $0xd8] sm:$0xff]
    %v151 = vld [vmem:[%s1 + $0xe0] sm:$0xff]
    %v152 = vld [vmem:[%s1 + $0xe8] sm:$0xff]
    %v153 = vld [vmem:[%s1 + $0xf0] sm:$0xff]
    %v154 = vld [vmem:[%s1 + $0xf8] sm:$0xff]
    %v155 = vld [vmem:[%s1 + $0x100] sm:$0xff]
    %v156 = vld [vmem:[%s1 + $0x108] sm:$0xff]
    %v157 = vld [vmem:[%s1 + $0x110] sm:$0xff]
    %v158 = vld [vmem:[%s1 + $0x118] sm:$0xff]
    %v159 = vld [vmem:[%s1 + $0x120] sm:$0xff]
    %v160 = vld [vmem:[%s1 + $0x128] sm:$0xff]
    %v161 = vld [vmem:[%s1 + $0x130] sm:$0xff]
    %v162 = vld [vmem:[%s1 + $0x138] sm:$0xff]
    %v163 = vld [vmem:[%s1 + $0x140] sm:$0xff]
    %v164 = vld [vmem:[%s1 + $0x148] sm:$0xff]
    %v165 = vld [vmem:[%s1 + $0x150] sm:$0xff]
    %v166 = vld [vmem:[%s1 + $0x158] sm:$0xff]
    %v167 = vld [vmem:[%s1 + $0x160] sm:$0xff]
    %v168 = vld [vmem:[%s1 + $0x168] sm:$0xff]
    %v169 = vld [vmem:[%s1 + $0x170] sm:$0xff]
    %v170 = vld [vmem:[%s1 + $0x178] sm:$0xff]
    %v171 = vld [vmem:[%s1 + $0x180] sm:$0xff]
    %v172 = vld [vmem:[%s1 + $0x188] sm:$0xff]
    %v173 = vld [vmem:[%s1 + $0x190] sm:$0xff]
    %v174 = vld [vmem:[%s1 + $0x198] sm:$0xff]
    %v175 = vld [vmem:[%s1 + $0x1a0] sm:$0xff]
    %v176 = vld [vmem:[%s1 + $0x1a8] sm:$0xff]
    %v177 = vld [vmem:[%s1 + $0x1b0] sm:$0xff]
    %v178 = vld [vmem:[%s1 + $0x1b8] sm:$0xff]
    %v179 = vld [vmem:[%s1 + $0x1c0] sm:$0xff]
    %v180 = vld [vmem:[%s1 + $0x1c8] sm:$0xff]
    %v181 = vld [vmem:[%s1 + $0x1d0] sm:$0xff]
    %v182 = vld [vmem:[%s1 + $0x1d8] sm:$0xff]
    %v183 = vld [vmem:[%s1 + $0x1e0] sm:$0xff]
    %v184 = vld [vmem:[%s1 + $0x1e8] sm:$0xff]
    %v185 = vld [vmem:[%s1 + $0x1f0] sm:$0xff]
    %v186 = vld [vmem:[%s1 + $0x1f8] sm:$0xff]
    %v187 = vld [vmem:[%s1 + $0x200] sm:$0xff]
    %v188 = vld [vmem:[%s1 + $0x208] sm:$0xff]
    %v189 = vld [vmem:[%s1 + $0x210] sm:$0xff]
    %v190 = vld [vmem:[%s1 + $0x218] sm:$0xff]
    %v191 = vld [vmem:[%s1 + $0x220] sm:$0xff]
    %v192 = vld [vmem:[%s1 + $0x228] sm:$0xff]
    %v193 = vld [vmem:[%s1 + $0x230] sm:$0xff]
    %v194 = vld [vmem:[%s1 + $0x238] sm:$0xff]
    %v195 = vld [vmem:[%s1 + $0x240] sm:$0xff]
    %v196 = vld [vmem:[%s1 + $0x248] sm:$0xff]
    %v197 = vld [vmem:[%s1 + $0x250] sm:$0xff]
    %v198 = vld [vmem:[%s1 + $0x258] sm:$0xff]
    %v199 = vld [vmem:[%s1 + $0x260] sm:$0xff]
    %v200 = vld [vmem:[%s1 + $0x268] sm:$0xff]
    %v201 = vld [vmem:[%s1 + $0x270] sm:$0xff]
    %v202 = vld [vmem:[%s1 + $0x278] sm:$0xff]
    %v203 = vld [vmem:[%s1 + $0x280] sm:$0xff]
    %v204 = vld [vmem:[%s1 + $0x288] sm:$0xff]
    %v205 = vld [vmem:[%s1 + $0x290] sm:$0xff]
    %v206 = vld [vmem:[%s1 + $0x298] sm:$0xff]
    %v207 = vld [vmem:[%s1 + $0x2a0] sm:$0xff]
    %v208 = vld [vmem:[%s1 + $0x2a8] sm:$0xff]
    %v209 = vld [vmem:[%s1 + $0x2b0] sm:$0xff]
    %v210 = vld [vmem:[%s1 + $0x2b8] sm:$0xff]
    %v211 = vld [vmem:[%s1 + $0x2c0] sm:$0xff]
    %v212 = vld [vmem:[%s1 + $0x2c8] sm:$0xff]
    %v213 = vld [vmem:[%s1 + $0x2d0] sm:$0xff]
    %v214 = vld [vmem:[%s1 + $0x2d8] sm:$0xff]
    %v215 = vld [vmem:[%s1 + $0x2e0] sm:$0xff]
    %v216 = vld [vmem:[%s1 + $0x2e8] sm:$0xff]
    %v217 = vld [vmem:[%s1 + $0x2f0] sm:$0xff]
    %v218 = vld [vmem:[%s1 + $0x2f8] sm:$0xff]
    %v219 = vld [vmem:[%s1 + $0x300] sm:$0xff]
    %v220 = vld [vmem:[%s1 + $0x308] sm:$0xff]
    %v221 = vld [vmem:[%s1 + $0x310] sm:$0xff]
    %v222 = vld [vmem:[%s1 + $0x318] sm:$0xff]
    %v223 = vld [vmem:[%s1 + $0x320] sm:$0xff]
    %v224 = vld [vmem:[%s1 + $0x328] sm:$0xff]
    %v225 = vld [vmem:[%s1 + $0x330] sm:$0xff]
    %v226 = vld [vmem:[%s1 + $0x338] sm:$0xff]
    %v227 = vld [vmem:[%s1 + $0x340] sm:$0xff]
    %v228 = vld [vmem:[%s1 + $0x348] sm:$0xff]
    %v229 = vld [vmem:[%s1 + $0x350] sm:$0xff]
    %v230 = vld [vmem:[%s1 + $0x358] sm:$0xff]
    %v231 = vld [vmem:[%s1 + $0x360] sm:$0xff]
    %v232 = vld [vmem:[%s1 + $0x368] sm:$0xff]
    %v233 = vld [vmem:[%s1 + $0x370] sm:$0xff]
    %v234 = vld [vmem:[%s1 + $0x378] sm:$0xff]
    %v235 = vld [vmem:[%s1 + $0x380] sm:$0xff]
    %v236 = vld [vmem:[%s1 + $0x388] sm:$0xff]
    %v237 = vld [vmem:[%s1 + $0x390] sm:$0xff]
    %v238 = vld [vmem:[%s1 + $0x398] sm:$0xff]
    %v239 = vld [vmem:[%s1 + $0x3a0] sm:$0xff]
    %v240 = vld [vmem:[%s1 + $0x3a8] sm:$0xff]
    %v241 = vld [vmem:[%s1 + $0x3b0] sm:$0xff]
    %v242 = vld [vmem:[%s1 + $0x3b8] sm:$0xff]
    %v243 = vld [vmem:[%s1 + $0x3c0] sm:$0xff]
    %v244 = vld [vmem:[%s1 + $0x3c8] sm:$0xff]
    %v245 = vld [vmem:[%s1 + $0x3d0] sm:$0xff]
    %v246 = vld [vmem:[%s1 + $0x3d8] sm:$0xff]
    %v247 = vld [vmem:[%s1 + $0x3e0] sm:$0xff]
    %v248 = vld [vmem:[%s1 + $0x3e8] sm:$0xff]
    %v249 = vld [vmem:[%s1 + $0x3f0] sm:$0xff]
    %v250 = vld [vmem:[%s1 + $0x3f8] sm:$0xff]
    %v251 = vld [vmem:[%s1 + $0x400] sm:$0xff]
    %v252 = vld [vmem:[%s1 + $0x408] sm:$0xff]
    %v253 = vld [vmem:[%s1 + $0x410] sm:$0xff]
    %v254 = vld [vmem:[%s1 + $0x418] sm:$0xff]
    %v255 = vld [vmem:[%s1 + $0x420] sm:$0xff]
    %v256 = vld [vmem:[%s1 + $0x428] sm:$0xff]
    %v257 = vld [vmem:[%s1 + $0x430] sm:$0xff]
    %v258 = vld [vmem:[%s1 + $0x438] sm:$0xff]
    %v259 = vld [vmem:[%s1 + $0x440] sm:$0xff]
    %v260 = vld [vmem:[%s1 + $0x448] sm:$0xff]
    %v261 = vld [vmem:[%s1 + $0x450] sm:$0xff]
    %v262 = vld [vmem:[%s1 + $0x458] sm:$0xff]
    %v263 = vld [vmem:[%s1 + $0x460] sm:$0xff]
    %v264 = vld [vmem:[%s1 + $0x468] sm:$0xff]
    %v265 = vld [vmem:[%s1 + $0x470] sm:$0xff]
    %v266 = vld [vmem:[%s1 + $0x478] sm:$0xff]
    %v267 = vld [vmem:[%s1 + $0x480] sm:$0xff]
    %v268 = vld [vmem:[%s1 + $0x488] sm:$0xff]
    %v269 = vld [vmem:[%s1 + $0x490] sm:$0xff]
    %v270 = vld [vmem:[%s1 + $0x498] sm:$0xff]
    %v271 = vld [vmem:[%s1 + $0x4a0] sm:$0xff]
    %v272 = vld [vmem:[%s1 + $0x4a8] sm:$0xff]
    %v273 = vld [vmem:[%s1 + $0x4b0] sm:$0xff]
    %v274 = vld [vmem:[%s1 + $0x4b8] sm:$0xff]
    %v275 = vld [vmem:[%s1 + $0x4c0] sm:$0xff]
    %v276 = vld [vmem:[%s1 + $0x4c8] sm:$0xff]
    %v277 = vld [vmem:[%s1 + $0x4d0] sm:$0xff]
    %v278 = vld [vmem:[%s1 + $0x4d8] sm:$0xff]
    %v279 = vld [vmem:[%s1 + $0x4e0] sm:$0xff]
    %v280 = vld [vmem:[%s1 + $0x4e8] sm:$0xff]
    %v281 = vld [vmem:[%s1 + $0x4f0] sm:$0xff]
    %v282 = vld [vmem:[%s1 + $0x4f8] sm:$0xff]
    %v283 = vld [vmem:[%s1 + $0x500] sm:$0xff]
    %v284 = vld [vmem:[%s1 + $0x508] sm:$0xff]
    %v285 = vld [vmem:[%s1 + $0x510] sm:$0xff]
    %v286 = vld [vmem:[%s1 + $0x518] sm:$0xff]
    %v287 = vld [vmem:[%s1 + $0x520] sm:$0xff]
    %v288 = vld [vmem:[%s1 + $0x528] sm:$0xff]
    %v289 = vld [vmem:[%s1 + $0x530] sm:$0xff]
    %v290 = vld [vmem:[%s1 + $0x538] sm:$0xff]
    %v291 = vld [vmem:[%s1 + $0x540] sm:$0xff]
    %v292 = vld [vmem:[%s1 + $0x548] sm:$0xff]
    %v293 = vld [vmem:[%s1 + $0x550] sm:$0xff]
    %v294 = vld [vmem:[%s1 + $0x558] sm:$0xff]
    %v295 = vld [vmem:[%s1 + $0x560] sm:$0xff]
    %v296 = vld [vmem:[%s1 + $0x568] sm:$0xff]
    %v297 = vld [vmem:[%s1 + $0x570] sm:$0xff]
    %v298 = vld [vmem:[%s1 + $0x578] sm:$0xff]
    %v299 = vld [vmem:[%s1 + $0x580] sm:$0xff]
    %v300 = vld [vmem:[%s1 + $0x588] sm:$0xff]
    %v301 = vld [vmem:[%s1 + $0x590] sm:$0xff]
    %v302 = vld [vmem:[%s1 + $0x598] sm:$0xff]
    %v303 = vld [vmem:[%s1 + $0x5a0] sm:$0xff]
    %v304 = vld [vmem:[%s1 + $0x5a8] sm:$0xff]
    %v305 = vld [vmem:[%s1 + $0x5b0] sm:$0xff]
    %v306 = vld [vmem:[%s1 + $0x5b8] sm:$0xff]
    %v307 = vld [vmem:[%s1 + $0x5c0] sm:$0xff]
    %v308 = vld [vmem:[%s1 + $0x5c8] sm:$0xff]
    %v309 = vld [vmem:[%s1 + $0x5d0] sm:$0xff]
    %v310 = vld [vmem:[%s1 + $0x5d8] sm:$0xff]
    %v311 = vld [vmem:[%s1 + $0x5e0] sm:$0xff]
    %v312 = vld [vmem:[%s1 + $0x5e8] sm:$0xff]
    %v313 = vld [vmem:[%s1 + $0x5f0] sm:$0xff]
    %v314 = vld [vmem:[%s1 + $0x5f8] sm:$0xff]
    %v315 = vld [vmem:[%s1 + $0x600] sm:$0xff]
    %v316 = vld [vmem:[%s1 + $0x608] sm:$0xff]
    %v317 = vld [vmem:[%s1 + $0x610] sm:$0xff]
    %v318 = vld [vmem:[%s1 + $0x618] sm:$0xff]
    %v319 = vld [vmem:[%s1 + $0x620] sm:$0xff]
    %v320 = vld [vmem:[%s1 + $0x628] sm:$0xff]
    %v321 = vld [vmem:[%s1 + $0x630] sm:$0xff]
    %v322 = vld [vmem:[%s1 + $0x638] sm:$0xff]
    %v323 = vld [vmem:[%s1 + $0x640] sm:$0xff]
    %v324 = vld [vmem:[%s1 + $0x648] sm:$0xff]
    %v325 = vld [vmem:[%s1 + $0x650] sm:$0xff]
    %v326 = vld [vmem:[%s1 + $0x658] sm:$0xff]
    %v327 = vld [vmem:[%s1 + $0x660] sm:$0xff]
    %v328 = vld [vmem:[%s1 + $0x668] sm:$0xff]
    %v329 = vld [vmem:[%s1 + $0x670] sm:$0xff]
    %v330 = vld [vmem:[%s1 + $0x678] sm:$0xff]
    %v331 = vld [vmem:[%s1 + $0x680] sm:$0xff]
    %v332 = vld [vmem:[%s1 + $0x688] sm:$0xff]
    %v333 = vld [vmem:[%s1 + $0x690] sm:$0xff]
    %v334 = vld [vmem:[%s1 + $0x698] sm:$0xff]
    %v335 = vld [vmem:[%s1 + $0x6a0] sm:$0xff]
    %v336 = vld [vmem:[%s1 + $0x6a8] sm:$0xff]
    %v337 = vld [vmem:[%s1 + $0x6b0] sm:$0xff]
    %v338 = vld [vmem:[%s1 + $0x6b8] sm:$0xff]
    %v339 = vld [vmem:[%s1 + $0x6c0] sm:$0xff]
    %v340 = vld [vmem:[%s1 + $0x6c8] sm:$0xff]
    %v341 = vld [vmem:[%s1 + $0x6d0] sm:$0xff]
    %v342 = vld [vmem:[%s1 + $0x6d8] sm:$0xff]
    %v343 = vld [vmem:[%s1 + $0x6e0] sm:$0xff]
    %v344 = vld [vmem:[%s1 + $0x6e8] sm:$0xff]
    %v345 = vld [vmem:[%s1 + $0x6f0] sm:$0xff]
    %v346 = vld [vmem:[%s1 + $0x6f8] sm:$0xff]
    %v347 = vld [vmem:[%s1 + $0x700] sm:$0xff]
    %v348 = vld [vmem:[%s1 + $0x708] sm:$0xff]
    %v349 = vld [vmem:[%s1 + $0x710] sm:$0xff]
    %v350 = vld [vmem:[%s1 + $0x718] sm:$0xff]
    %v351 = vld [vmem:[%s1 + $0x720] sm:$0xff]
    %v352 = vld [vmem:[%s1 + $0x728] sm:$0xff]
    %v353 = vld [vmem:[%s1 + $0x730] sm:$0xff]
    %v354 = vld [vmem:[%s1 + $0x738] sm:$0xff]
    %v355 = vld [vmem:[%s1 + $0x740] sm:$0xff]
    %v356 = vld [vmem:[%s1 + $0x748] sm:$0xff]
    %v357 = vld [vmem:[%s1 + $0x750] sm:$0xff]
    %v358 = vld [vmem:[%s1 + $0x758] sm:$0xff]
    %v359 = vld [vmem:[%s1 + $0x760] sm:$0xff]
    %v360 = vld [vmem:[%s1 + $0x768] sm:$0xff]
    %v361 = vld [vmem:[%s1 + $0x770] sm:$0xff]
    %v362 = vld [vmem:[%s1 + $0x778] sm:$0xff]
    %v363 = vld [vmem:[%s1 + $0x780] sm:$0xff]
    %v364 = vld [vmem:[%s1 + $0x788] sm:$0xff]
    %v365 = vld [vmem:[%s1 + $0x790] sm:$0xff]
    %v366 = vld [vmem:[%s1 + $0x798] sm:$0xff]
    %v367 = vld [vmem:[%s1 + $0x7a0] sm:$0xff]
    %v368 = vld [vmem:[%s1 + $0x7a8] sm:$0xff]
    %v369 = vld [vmem:[%s1 + $0x7b0] sm:$0xff]
    %v370 = vld [vmem:[%s1 + $0x7b8] sm:$0xff]
    %v371 = vld [vmem:[%s1 + $0x7c0] sm:$0xff]
    %v372 = vld [vmem:[%s1 + $0x7c8] sm:$0xff]
    %v373 = vld [vmem:[%s1 + $0x7d0] sm:$0xff]
    %v374 = vld [vmem:[%s1 + $0x7d8] sm:$0xff]
    %v375 = vld [vmem:[%s1 + $0x7e0] sm:$0xff]
    %v376 = vld [vmem:[%s1 + $0x7e8] sm:$0xff]
    %v377 = vld [vmem:[%s1 + $0x7f0] sm:$0xff]
    %v378 = vld [vmem:[%s1 + $0x7f8] sm:$0xff]
    %v379 = vld [vmem:[%s1 + $0x800] sm:$0xff]
    %v380 = vld [vmem:[%s1 + $0x808] sm:$0xff]
    %v381 = vld [vmem:[%s1 + $0x810] sm:$0xff]
    %v382 = vld [vmem:[%s1 + $0x818] sm:$0xff]
    %v383 = vld [vmem:[%s1 + $0x820] sm:$0xff]
    %v384 = vld [vmem:[%s1 + $0x828] sm:$0xff]
    %v385 = vld [vmem:[%s1 + $0x830] sm:$0xff]
    %v386 = vld [vmem:[%s1 + $0x838] sm:$0xff]
    %v387 = vld [vmem:[%s1 + $0x840] sm:$0xff]
    %v388 = vld [vmem:[%s1 + $0x848] sm:$0xff]
    %v389 = vld [vmem:[%s1 + $0x850] sm:$0xff]
    %v390 = vld [vmem:[%s1 + $0x858] sm:$0xff]
    %v391 = vld [vmem:[%s1 + $0x860] sm:$0xff]
    %v392 = vld [vmem:[%s1 + $0x868] sm:$0xff]
    %v393 = vld [vmem:[%s1 + $0x870] sm:$0xff]
    %v394 = vld [vmem:[%s1 + $0x878] sm:$0xff]
    %v395 = vld [vmem:[%s1 + $0x880] sm:$0xff]
    %v396 = vld [vmem:[%s1 + $0x888] sm:$0xff]
    %v397 = vld [vmem:[%s1 + $0x890] sm:$0xff]
    %v398 = vld [vmem:[%s1 + $0x898] sm:$0xff]
    %v399 = vld [vmem:[%s1 + $0x8a0] sm:$0xff]
    %v400 = vld [vmem:[%s1 + $0x8a8] sm:$0xff]
    %v401 = vld [vmem:[%s1 + $0x8b0] sm:$0xff]
    %v402 = vld [vmem:[%s1 + $0x8b8] sm:$0xff]
    %v403 = vld [vmem:[%s1 + $0x8c0] sm:$0xff]
    %v404 = vld [vmem:[%s1 + $0x8c8] sm:$0xff]
    %v405 = vld [vmem:[%s1 + $0x8d0] sm:$0xff]
    %v406 = vld [vmem:[%s1 + $0x8d8] sm:$0xff]
    %v407 = vld [vmem:[%s1 + $0x8e0] sm:$0xff]
    %v408 = vld [vmem:[%s1 + $0x8e8] sm:$0xff]
    %v409 = vld [vmem:[%s1 + $0x8f0] sm:$0xff]
    %v410 = vld [vmem:[%s1 + $0x8f8] sm:$0xff]
    %v411 = vld [vmem:[%s1 + $0x900] sm:$0xff]
    %v412 = vld [vmem:[%s1 + $0x908] sm:$0xff]
    %v413 = vld [vmem:[%s1 + $0x910] sm:$0xff]
    %v414 = vld [vmem:[%s1 + $0x918] sm:$0xff]
    %v415 = vld [vmem:[%s1 + $0x920] sm:$0xff]
    %v416 = vld [vmem:[%s1 + $0x928] sm:$0xff]
    %v417 = vld [vmem:[%s1 + $0x930] sm:$0xff]
    %v418 = vld [vmem:[%s1 + $0x938] sm:$0xff]
    %v419 = vld [vmem:[%s1 + $0x940] sm:$0xff]
    %v420 = vld [vmem:[%s1 + $0x948] sm:$0xff]
    %v421 = vld [vmem:[%s1 + $0x950] sm:$0xff]
    %v422 = vld [vmem:[%s1 + $0x958] sm:$0xff]
    %v423 = vld [vmem:[%s1 + $0x960] sm:$0xff]
    %v424 = vld [vmem:[%s1 + $0x968] sm:$0xff]
    %v425 = vld [vmem:[%s1 + $0x970] sm:$0xff]
    %v426 = vld [vmem:[%s1 + $0x978] sm:$0xff]
    %v427 = vld [vmem:[%s1 + $0x980] sm:$0xff]
    %v428 = vld [vmem:[%s1 + $0x988] sm:$0xff]
    %v429 = vld [vmem:[%s1 + $0x990] sm:$0xff]
    %v430 = vld [vmem:[%s1 + $0x998] sm:$0xff]
    %v431 = vld [vmem:[%s1 + $0x9a0] sm:$0xff]
    %v432 = vld [vmem:[%s1 + $0x9a8] sm:$0xff]
    %v433 = vld [vmem:[%s1 + $0x9b0] sm:$0xff]
    %v434 = vld [vmem:[%s1 + $0x9b8] sm:$0xff]
    %v435 = vld [vmem:[%s1 + $0x9c0] sm:$0xff]
    %v436 = vld [vmem:[%s1 + $0x9c8] sm:$0xff]
    %v437 = vld [vmem:[%s1 + $0x9d0] sm:$0xff]
    %v438 = vld [vmem:[%s1 + $0x9d8] sm:$0xff]
    %v439 = vld [vmem:[%s1 + $0x9e0] sm:$0xff]
    %v440 = vld [vmem:[%s1 + $0x9e8] sm:$0xff]
    %v441 = vld [vmem:[%s1 + $0x9f0] sm:$0xff]
    %v442 = vld [vmem:[%s1 + $0x9f8] sm:$0xff]
    %v443 = vld [vmem:[%s1 + $0xa00] sm:$0xff]
    %v444 = vld [vmem:[%s1 + $0xa08] sm:$0xff]
    %v445 = vld [vmem:[%s1 + $0xa10] sm:$0xff]
    %v446 = vld [vmem:[%s1 + $0xa18] sm:$0xff]
    %v447 = vld [vmem:[%s1 + $0xa20] sm:$0xff]
    %v448 = vld [vmem:[%s1 + $0xa28] sm:$0xff]
    %v449 = vld [vmem:[%s1 + $0xa30] sm:$0xff]
    %v450 = vld [vmem:[%s1 + $0xa38] sm:$0xff]
    %v451 = vld [vmem:[%s1 + $0xa40] sm:$0xff]
    %v452 = vld [vmem:[%s1 + $0xa48] sm:$0xff]
    %v453 = vld [vmem:[%s1 + $0xa50] sm:$0xff]
    %v454 = vld [vmem:[%s1 + $0xa58] sm:$0xff]
    %v455 = vld [vmem:[%s1 + $0xa60] sm:$0xff]
    %v456 = vld [vmem:[%s1 + $0xa68] sm:$0xff]
    %v457 = vld [vmem:[%s1 + $0xa70] sm:$0xff]
    %v458 = vld [vmem:[%s1 + $0xa78] sm:$0xff]
    %v459 = vld [vmem:[%s1 + $0xa80] sm:$0xff]
    %v460 = vld [vmem:[%s1 + $0xa88] sm:$0xff]
    %v461 = vld [vmem:[%s1 + $0xa90] sm:$0xff]
    %v462 = vld [vmem:[%s1 + $0xa98] sm:$0xff]
    %v463 = vld [vmem:[%s1 + $0xaa0] sm:$0xff]
    %v464 = vld [vmem:[%s1 + $0xaa8] sm:$0xff]
    %v465 = vld [vmem:[%s1 + $0xab0] sm:$0xff]
    %v466 = vld [vmem:[%s1 + $0xab8] sm:$0xff]
    %v467 = vld [vmem:[%s1 + $0xac0] sm:$0xff]
    %v468 = vld [vmem:[%s1 + $0xac8] sm:$0xff]
    %v469 = vld [vmem:[%s1 + $0xad0] sm:$0xff]
    %v470 = vld [vmem:[%s1 + $0xad8] sm:$0xff]
    %v471 = vld [vmem:[%s1 + $0xae0] sm:$0xff]
    %v472 = vld [vmem:[%s1 + $0xae8] sm:$0xff]
    %v473 = vld [vmem:[%s1 + $0xaf0] sm:$0xff]
    %v474 = vld [vmem:[%s1 + $0xaf8] sm:$0xff]
    %v475 = vld [vmem:[%s1 + $0xb00] sm:$0xff]
    %v476 = vld [vmem:[%s1 + $0xb08] sm:$0xff]
    %v477 = vld [vmem:[%s1 + $0xb10] sm:$0xff]
    %v478 = vld [vmem:[%s1 + $0xb18] sm:$0xff]
    %v479 = vld [vmem:[%s1 + $0xb20] sm:$0xff]
    %v480 = vld [vmem:[%s1 + $0xb28] sm:$0xff]
    %v481 = vld [vmem:[%s1 + $0xb30] sm:$0xff]
    %v482 = vld [vmem:[%s1 + $0xb38] sm:$0xff]
    %v483 = vld [vmem:[%s1 + $0xb40] sm:$0xff]
    %v484 = vld [vmem:[%s1 + $0xb48] sm:$0xff]
    %v485 = vld [vmem:[%s1 + $0xb50] sm:$0xff]
    %v486 = vld [vmem:[%s1 + $0xb58] sm:$0xff]
    %v487 = vld [vmem:[%s1 + $0xb60] sm:$0xff]
    %v488 = vld [vmem:[%s1 + $0xb68] sm:$0xff]
    %v489 = vld [vmem:[%s1 + $0xb70] sm:$0xff]
    %v490 = vld [vmem:[%s1 + $0xb78] sm:$0xff]
    %v491 = vld [vmem:[%s1 + $0xb80] sm:$0xff]
    %v492 = vld [vmem:[%s1 + $0xb88] sm:$0xff]
    %v493 = vld [vmem:[%s1 + $0xb90] sm:$0xff]
    %v494 = vld [vmem:[%s1 + $0xb98] sm:$0xff]
    %v495 = vld [vmem:[%s1 + $0xba0] sm:$0xff]
    %v496 = vld [vmem:[%s1 + $0xba8] sm:$0xff]
    %v497 = vld [vmem:[%s1 + $0xbb0] sm:$0xff]
    %v498 = vld [vmem:[%s1 + $0xbb8] sm:$0xff]
    %v499 = vld [vmem:[%s1 + $0xbc0] sm:$0xff]
    %v500 = vld [vmem:[%s1 + $0xbc8] sm:$0xff]
    %v501 = vld [vmem:[%s1 + $0xbd0] sm:$0xff]
    %v502 = vld [vmem:[%s1 + $0xbd8] sm:$0xff]
    %v503 = vld [vmem:[%s1 + $0xbe0] sm:$0xff]
    %v504 = vld [vmem:[%s1 + $0xbe8] sm:$0xff]
    %v505 = vld [vmem:[%s1 + $0xbf0] sm:$0xff]
    %v506 = vld [vmem:[%s1 + $0xbf8] sm:$0xff]
    %v507 = vld [vmem:[%s1 + $0xc00] sm:$0xff]
    %v508 = vld [vmem:[%s1 + $0xc08] sm:$0xff]
    %v509 = vld [vmem:[%s1 + $0xc10] sm:$0xff]
    %v510 = vld [vmem:[%s1 + $0xc18] sm:$0xff]
    %v511 = vld [vmem:[%s1 + $0xc20] sm:$0xff]
    %v512 = vld [vmem:[%s1 + $0xc28] sm:$0xff]
    %v513 = vld [vmem:[%s1 + $0xc30] sm:$0xff]
    %v514 = vld [vmem:[%s1 + $0xc38] sm:$0xff]
    %v515 = vld [vmem:[%s1 + $0xc40] sm:$0xff]
    %v516 = vld [vmem:[%s1 + $0xc48] sm:$0xff]
    %v517 = vld [vmem:[%s1 + $0xc50] sm:$0xff]
    %v518 = vld [vmem:[%s1 + $0xc58] sm:$0xff]
    %v519 = vld [vmem:[%s1 + $0xc60] sm:$0xff]
    %v520 = vld [vmem:[%s1 + $0xc68] sm:$0xff]
    %v521 = vld [vmem:[%s1 + $0xc70] sm:$0xff]
    %v522 = vld [vmem:[%s1 + $0xc78] sm:$0xff]
    %v523 = vld [vmem:[%s1 + $0xc80] sm:$0xff]
    %v524 = vld [vmem:[%s1 + $0xc88] sm:$0xff]
    %v525 = vld [vmem:[%s1 + $0xc90] sm:$0xff]
    %v526 = vld [vmem:[%s1 + $0xc98] sm:$0xff]
    %v527 = vld [vmem:[%s1 + $0xca0] sm:$0xff]
    %v528 = vld [vmem:[%s1 + $0xca8] sm:$0xff]
    %v529 = vld [vmem:[%s1 + $0xcb0] sm:$0xff]
    %v530 = vld [vmem:[%s1 + $0xcb8] sm:$0xff]
    %v531 = vld [vmem:[%s1 + $0xcc0] sm:$0xff]
    %v532 = vld [vmem:[%s1 + $0xcc8] sm:$0xff]
    %v533 = vld [vmem:[%s1 + $0xcd0] sm:$0xff]
    %v534 = vld [vmem:[%s1 + $0xcd8] sm:$0xff]
    %v535 = vld [vmem:[%s1 + $0xce0] sm:$0xff]
    %v536 = vld [vmem:[%s1 + $0xce8] sm:$0xff]
    %v537 = vld [vmem:[%s1 + $0xcf0] sm:$0xff]
    %v538 = vld [vmem:[%s1 + $0xcf8] sm:$0xff]
    %v539 = vld [vmem:[%s1 + $0xd00] sm:$0xff]
    %v540 = vld [vmem:[%s1 + $0xd08] sm:$0xff]
    %v541 = vld [vmem:[%s1 + $0xd10] sm:$0xff]
    %v542 = vld [vmem:[%s1 + $0xd18] sm:$0xff]
    %v543 = vld [vmem:[%s1 + $0xd20] sm:$0xff]
    %v544 = vld [vmem:[%s1 + $0xd28] sm:$0xff]
    %v545 = vld [vmem:[%s1 + $0xd30] sm:$0xff]
    %v546 = vld [vmem:[%s1 + $0xd38] sm:$0xff]
    %v547 = vld [vmem:[%s1 + $0xd40] sm:$0xff]
    %v548 = vld [vmem:[%s1 + $0xd48] sm:$0xff]
    %v549 = vld [vmem:[%s1 + $0xd50] sm:$0xff]
    %v550 = vld [vmem:[%s1 + $0xd58] sm:$0xff]
    %v551 = vld [vmem:[%s1 + $0xd60] sm:$0xff]
    %v552 = vld [vmem:[%s1 + $0xd68] sm:$0xff]
    %v553 = vld [vmem:[%s1 + $0xd70] sm:$0xff]
    %v554 = vld [vmem:[%s1 + $0xd78] sm:$0xff]
    %v555 = vld [vmem:[%s1 + $0xd80] sm:$0xff]
    %v556 = vld [vmem:[%s1 + $0xd88] sm:$0xff]
    %v557 = vld [vmem:[%s1 + $0xd90] sm:$0xff]
    %v558 = vld [vmem:[%s1 + $0xd98] sm:$0xff]
    %v559 = vld [vmem:[%s1 + $0xda0] sm:$0xff]
    %v560 = vld [vmem:[%s1 + $0xda8] sm:$0xff]
    %v561 = vld [vmem:[%s1 + $0xdb0] sm:$0xff]
    %v562 = vld [vmem:[%s1 + $0xdb8] sm:$0xff]
    %v563 = vld [vmem:[%s1 + $0xdc0] sm:$0xff]
    %v564 = vld [vmem:[%s1 + $0xdc8] sm:$0xff]
    %v565 = vld [vmem:[%s1 + $0xdd0] sm:$0xff]
    %v566 = vld [vmem:[%s1 + $0xdd8] sm:$0xff]
    %v567 = vld [vmem:[%s1 + $0xde0] sm:$0xff]
    %v568 = vld [vmem:[%s1 + $0xde8] sm:$0xff]
    %v569 = vld [vmem:[%s1 + $0xdf0] sm:$0xff]
    %v570 = vld [vmem:[%s1 + $0xdf8] sm:$0xff]
    %v571 = vld [vmem:[%s1 + $0xe00] sm:$0xff]
    %v572 = vld [vmem:[%s1 + $0xe08] sm:$0xff]
    %v573 = vld [vmem:[%s1 + $0xe10] sm:$0xff]
    %v574 = vld [vmem:[%s1 + $0xe18] sm:$0xff]
    %v575 = vld [vmem:[%s1 + $0xe20] sm:$0xff]
    %v576 = vld [vmem:[%s1 + $0xe28] sm:$0xff]
    %v577 = vld [vmem:[%s1 + $0xe30] sm:$0xff]
    %v578 = vld [vmem:[%s1 + $0xe38] sm:$0xff]
    %v579 = vld [vmem:[%s1 + $0xe40] sm:$0xff]
    %v580 = vld [vmem:[%s1 + $0xe48] sm:$0xff]
    %v581 = vld [vmem:[%s1 + $0xe50] sm:$0xff]
    %v582 = vld [vmem:[%s1 + $0xe58] sm:$0xff]
    %v583 = vld [vmem:[%s1 + $0xe60] sm:$0xff]
    %v584 = vld [vmem:[%s1 + $0xe68] sm:$0xff]
    %v585 = vld [vmem:[%s1 + $0xe70] sm:$0xff]
    %v586 = vld [vmem:[%s1 + $0xe78] sm:$0xff]
    %v587 = vld [vmem:[%s1 + $0xe80] sm:$0xff]
    %v588 = vld [vmem:[%s1 + $0xe88] sm:$0xff]
    %v589 = vld [vmem:[%s1 + $0xe90] sm:$0xff]
    %v590 = vld [vmem:[%s1 + $0xe98] sm:$0xff]
    %v591 = vld [vmem:[%s1 + $0xea0] sm:$0xff]
    %v592 = vld [vmem:[%s1 + $0xea8] sm:$0xff]
    %v593 = vld [vmem:[%s1 + $0xeb0] sm:$0xff]
    %v594 = vld [vmem:[%s1 + $0xeb8] sm:$0xff]
    %v595 = vld [vmem:[%s1 + $0xec0] sm:$0xff]
    %v596 = vld [vmem:[%s1 + $0xec8] sm:$0xff]
    %v597 = vld [vmem:[%s1 + $0xed0] sm:$0xff]
    %v598 = vld [vmem:[%s1 + $0xed8] sm:$0xff]
    %v599 = vld [vmem:[%s1 + $0xee0] sm:$0xff]
    %v600 = vld [vmem:[%s1 + $0xee8] sm:$0xff]
    %v601 = vld [vmem:[%s1 + $0xef0] sm:$0xff]
    %v602 = vld [vmem:[%s1 + $0xef8] sm:$0xff]
    %v603 = vld [vmem:[%s1 + $0xf00] sm:$0xff]
    %v604 = vld [vmem:[%s1 + $0xf08] sm:$0xff]
    %v605 = vld [vmem:[%s1 + $0xf10] sm:$0xff]
    %v606 = vld [vmem:[%s1 + $0xf18] sm:$0xff]
    %v607 = vld [vmem:[%s1 + $0xf20] sm:$0xff]
    %v608 = vld [vmem:[%s1 + $0xf28] sm:$0xff]
    %v609 = vld [vmem:[%s1 + $0xf30] sm:$0xff]
    %v610 = vld [vmem:[%s1 + $0xf38] sm:$0xff]
    %v611 = vld [vmem:[%s1 + $0xf40] sm:$0xff]
    %v612 = vld [vmem:[%s1 + $0xf48] sm:$0xff]
    %v613 = vld [vmem:[%s1 + $0xf50] sm:$0xff]
    %v614 = vld [vmem:[%s1 + $0xf58] sm:$0xff]
    %v615 = vld [vmem:[%s1 + $0xf60] sm:$0xff]
    %v616 = vld [vmem:[%s1 + $0xf68] sm:$0xff]
    %v617 = vld [vmem:[%s1 + $0xf70] sm:$0xff]
    %v618 = vld [vmem:[%s1 + $0xf78] sm:$0xff]
    %v619 = vld [vmem:[%s1 + $0xf80] sm:$0xff]
    %v620 = vld [vmem:[%s1 + $0xf88] sm:$0xff]
    %v621 = vld [vmem:[%s1 + $0xf90] sm:$0xff]
    %v622 = vld [vmem:[%s1 + $0xf98] sm:$0xff]
    %v623 = vld [vmem:[%s1 + $0xfa0] sm:$0xff]
    %v624 = vld [vmem:[%s1 + $0xfa8] sm:$0xff]
    %v625 = vld [vmem:[%s1 + $0xfb0] sm:$0xff]
    %v626 = vld [vmem:[%s1 + $0xfb8] sm:$0xff]
    %v627 = vld [vmem:[%s1 + $0xfc0] sm:$0xff]
    %v628 = vld [vmem:[%s1 + $0xfc8] sm:$0xff]
    %v629 = vld [vmem:[%s1 + $0xfd0] sm:$0xff]
    %v630 = vld [vmem:[%s1 + $0xfd8] sm:$0xff]
    %v631 = vld [vmem:[%s1 + $0xfe0] sm:$0xff]
    %v632 = vld [vmem:[%s1 + $0xfe8] sm:$0xff]
    %v633 = vld [vmem:[%s1 + $0xff0] sm:$0xff]
    %v634 = vld [vmem:[%s1 + $0xff8] sm:$0xff]
    %v635 = vld [vmem:[%s1 + $0x1000] sm:$0xff]
    %v636 = vld [vmem:[%s1 + $0x1008] sm:$0xff]
    %v637 = vld [vmem:[%s1 + $0x1010] sm:$0xff]
    %v638 = vld [vmem:[%s1 + $0x1018] sm:$0xff]
    %v639 = vld [vmem:[%s1 + $0x1020] sm:$0xff]
    %v640 = vld [vmem:[%s1 + $0x1028] sm:$0xff]
    %v641 = vld [vmem:[%s1 + $0x1030] sm:$0xff]
    %v642 = vld [vmem:[%s1 + $0x1038] sm:$0xff]
    %v643 = vld [vmem:[%s1 + $0x1040] sm:$0xff]
    %v644 = vld [vmem:[%s1 + $0x1048] sm:$0xff]
    %v645 = vld [vmem:[%s1 + $0x1050] sm:$0xff]
    %v646 = vld [vmem:[%s1 + $0x1058] sm:$0xff]
    %v647 = vld [vmem:[%s1 + $0x1060] sm:$0xff]
    %v648 = vld [vmem:[%s1 + $0x1068] sm:$0xff]
    %v649 = vld [vmem:[%s1 + $0x1070] sm:$0xff]
    %v650 = vld [vmem:[%s1 + $0x1078] sm:$0xff]
    %v651 = vld [vmem:[%s1 + $0x1080] sm:$0xff]
    %v652 = vld [vmem:[%s1 + $0x1088] sm:$0xff]
    %v653 = vld [vmem:[%s1 + $0x1090] sm:$0xff]
    %v654 = vld [vmem:[%s1 + $0x1098] sm:$0xff]
    %v655 = vld [vmem:[%s1 + $0x10a0] sm:$0xff]
    %v656 = vld [vmem:[%s1 + $0x10a8] sm:$0xff]
    %v657 = vld [vmem:[%s1 + $0x10b0] sm:$0xff]
    %v658 = vld [vmem:[%s1 + $0x10b8] sm:$0xff]
    %v659 = vld [vmem:[%s1 + $0x10c0] sm:$0xff]
    %v660 = vld [vmem:[%s1 + $0x10c8] sm:$0xff]
    %v661 = vld [vmem:[%s1 + $0x10d0] sm:$0xff]
    %v662 = vld [vmem:[%s1 + $0x10d8] sm:$0xff]
    %v663 = vld [vmem:[%s1 + $0x10e0] sm:$0xff]
    %v664 = vld [vmem:[%s1 + $0x10e8] sm:$0xff]
    %v665 = vld [vmem:[%s1 + $0x10f0] sm:$0xff]
    %v666 = vld [vmem:[%s1 + $0x10f8] sm:$0xff]
    %v667 = vld [vmem:[%s1 + $0x1100] sm:$0xff]
    %v668 = vld [vmem:[%s1 + $0x1108] sm:$0xff]
    %v669 = vld [vmem:[%s1 + $0x1110] sm:$0xff]
    %v670 = vld [vmem:[%s1 + $0x1118] sm:$0xff]
    %v671 = vld [vmem:[%s1 + $0x1120] sm:$0xff]
    %v672 = vld [vmem:[%s1 + $0x1128] sm:$0xff]
    %v673 = vld [vmem:[%s1 + $0x1130] sm:$0xff]
    %v674 = vld [vmem:[%s1 + $0x1138] sm:$0xff]
    %v675 = vld [vmem:[%s1 + $0x1140] sm:$0xff]
    %v676 = vld [vmem:[%s1 + $0x1148] sm:$0xff]
    %v677 = vld [vmem:[%s1 + $0x1150] sm:$0xff]
    %v678 = vld [vmem:[%s1 + $0x1158] sm:$0xff]
    %v679 = vld [vmem:[%s1 + $0x1160] sm:$0xff]
    %v680 = vld [vmem:[%s1 + $0x1168] sm:$0xff]
    %v681 = vld [vmem:[%s1 + $0x1170] sm:$0xff]
    %v682 = vld [vmem:[%s1 + $0x1178] sm:$0xff]
    %v683 = vld [vmem:[%s1 + $0x1180] sm:$0xff]
    %v684 = vld [vmem:[%s1 + $0x1188] sm:$0xff]
    %v685 = vld [vmem:[%s1 + $0x1190] sm:$0xff]
    %v686 = vld [vmem:[%s1 + $0x1198] sm:$0xff]
    %v687 = vld [vmem:[%s1 + $0x11a0] sm:$0xff]
    %v688 = vld [vmem:[%s1 + $0x11a8] sm:$0xff]
    %v689 = vld [vmem:[%s1 + $0x11b0] sm:$0xff]
    %v690 = vld [vmem:[%s1 + $0x11b8] sm:$0xff]
    %v691 = vld [vmem:[%s1 + $0x11c0] sm:$0xff]
    %v692 = vld [vmem:[%s1 + $0x11c8] sm:$0xff]
    %v693 = vld [vmem:[%s1 + $0x11d0] sm:$0xff]
    %v694 = vld [vmem:[%s1 + $0x11d8] sm:$0xff]
    %v695 = vld [vmem:[%s1 + $0x11e0] sm:$0xff]
    %v696 = vld [vmem:[%s1 + $0x11e8] sm:$0xff]
    %v697 = vld [vmem:[%s1 + $0x11f0] sm:$0xff]
    %v698 = vld [vmem:[%s1 + $0x11f8] sm:$0xff]
    %v699 = vld [vmem:[%s1 + $0x1200] sm:$0xff]
    %v700 = vld [vmem:[%s1 + $0x1208] sm:$0xff]
    %v701 = vld [vmem:[%s1 + $0x1210] sm:$0xff]
    %v702 = vld [vmem:[%s1 + $0x1218] sm:$0xff]
    %v703 = vld [vmem:[%s1 + $0x1220] sm:$0xff]
    %v704 = vld [vmem:[%s1 + $0x1228] sm:$0xff]
    %v705 = vld [vmem:[%s1 + $0x1230] sm:$0xff]
    %v706 = vld [vmem:[%s1 + $0x1238] sm:$0xff]
    %v707 = vld [vmem:[%s1 + $0x1240] sm:$0xff]
    %v708 = vld [vmem:[%s1 + $0x1248] sm:$0xff]
    %v709 = vld [vmem:[%s1 + $0x1250] sm:$0xff]
    %v710 = vld [vmem:[%s1 + $0x1258] sm:$0xff]
    %v711 = vld [vmem:[%s1 + $0x1260] sm:$0xff]
    %v712 = vld [vmem:[%s1 + $0x1268] sm:$0xff]
    %v713 = vld [vmem:[%s1 + $0x1270] sm:$0xff]
    %v714 = vld [vmem:[%s1 + $0x1278] sm:$0xff]
    %v715 = vld [vmem:[%s1 + $0x1280] sm:$0xff]
    %v716 = vld [vmem:[%s1 + $0x1288] sm:$0xff]
    %v717 = vld [vmem:[%s1 + $0x1290] sm:$0xff]
    %v718 = vld [vmem:[%s1 + $0x1298] sm:$0xff]
    %v719 = vld [vmem:[%s1 + $0x12a0] sm:$0xff]
    %v720 = vld [vmem:[%s1 + $0x12a8] sm:$0xff]
    %v721 = vld [vmem:[%s1 + $0x12b0] sm:$0xff]
    %v722 = vld [vmem:[%s1 + $0x12b8] sm:$0xff]
    %v723 = vld [vmem:[%s1 + $0x12c0] sm:$0xff]
    %v724 = vld [vmem:[%s1 + $0x12c8] sm:$0xff]
    %v725 = vld [vmem:[%s1 + $0x12d0] sm:$0xff]
    %v726 = vld [vmem:[%s1 + $0x12d8] sm:$0xff]
    %v727 = vld [vmem:[%s1 + $0x12e0] sm:$0xff]
    %v728 = vld [vmem:[%s1 + $0x12e8] sm:$0xff]
    %v729 = vld [vmem:[%s1 + $0x12f0] sm:$0xff]
    %v730 = vld [vmem:[%s1 + $0x12f8] sm:$0xff]
    %v731 = vld [vmem:[%s1 + $0x1300] sm:$0xff]
    %v732 = vld [vmem:[%s1 + $0x1308] sm:$0xff]
    %v733 = vld [vmem:[%s1 + $0x1310] sm:$0xff]
    %v734 = vld [vmem:[%s1 + $0x1318] sm:$0xff]
    %v735 = vld [vmem:[%s1 + $0x1320] sm:$0xff]
    %v736 = vld [vmem:[%s1 + $0x1328] sm:$0xff]
    %v737 = vld [vmem:[%s1 + $0x1330] sm:$0xff]
    %v738 = vld [vmem:[%s1 + $0x1338] sm:$0xff]
    %v739 = vld [vmem:[%s1 + $0x1340] sm:$0xff]
    %v740 = vld [vmem:[%s1 + $0x1348] sm:$0xff]
    %v741 = vld [vmem:[%s1 + $0x1350] sm:$0xff]
    %v742 = vld [vmem:[%s1 + $0x1358] sm:$0xff]
    %v743 = vld [vmem:[%s1 + $0x1360] sm:$0xff]
    %v744 = vld [vmem:[%s1 + $0x1368] sm:$0xff]
    %v745 = vld [vmem:[%s1 + $0x1370] sm:$0xff]
    %v746 = vld [vmem:[%s1 + $0x1378] sm:$0xff]
    %v747 = vld [vmem:[%s1 + $0x1380] sm:$0xff]
    %v748 = vld [vmem:[%s1 + $0x1388] sm:$0xff]
    %v749 = vld [vmem:[%s1 + $0x1390] sm:$0xff]
    %v750 = vld [vmem:[%s1 + $0x1398] sm:$0xff]
    %v751 = vld [vmem:[%s1 + $0x13a0] sm:$0xff]
    %v752 = vld [vmem:[%s1 + $0x13a8] sm:$0xff]
    %v753 = vld [vmem:[%s1 + $0x13b0] sm:$0xff]
    %v754 = vld [vmem:[%s1 + $0x13b8] sm:$0xff]
    %v755 = vld [vmem:[%s1 + $0x13c0] sm:$0xff]
    %v756 = vld [vmem:[%s1 + $0x13c8] sm:$0xff]
    %v757 = vld [vmem:[%s1 + $0x13d0] sm:$0xff]
    %v758 = vld [vmem:[%s1 + $0x13d8] sm:$0xff]
    %v759 = vld [vmem:[%s1 + $0x13e0] sm:$0xff]
    %v760 = vld [vmem:[%s1 + $0x13e8] sm:$0xff]
    %v761 = vld [vmem:[%s1 + $0x13f0] sm:$0xff]
    %v762 = vld [vmem:[%s1 + $0x13f8] sm:$0xff]
    %v763 = vld [vmem:[%s1 + $0x1400] sm:$0xff]
    %v764 = vld [vmem:[%s1 + $0x1408] sm:$0xff]
    %v765 = vld [vmem:[%s1 + $0x1410] sm:$0xff]
    %v766 = vld [vmem:[%s1 + $0x1418] sm:$0xff]
    %v767 = vld [vmem:[%s1 + $0x1420] sm:$0xff]
    %v768 = vld [vmem:[%s1 + $0x1428] sm:$0xff]
    %v769 = vld [vmem:[%s1 + $0x1430] sm:$0xff]
    %v770 = vld [vmem:[%s1 + $0x1438] sm:$0xff]
    %v771 = vld [vmem:[%s1 + $0x1440] sm:$0xff]
    %v772 = vld [vmem:[%s1 + $0x1448] sm:$0xff]
    %v773 = vld [vmem:[%s1 + $0x1450] sm:$0xff]
    %v774 = vld [vmem:[%s1 + $0x1458] sm:$0xff]
    %v775 = vld [vmem:[%s1 + $0x1460] sm:$0xff]
    %v776 = vld [vmem:[%s1 + $0x1468] sm:$0xff]
    %v777 = vld [vmem:[%s1 + $0x1470] sm:$0xff]
    %v778 = vld [vmem:[%s1 + $0x1478] sm:$0xff]
    %v779 = vld [vmem:[%s1 + $0x1480] sm:$0xff]
    %v780 = vld [vmem:[%s1 + $0x1488] sm:$0xff]
    %v781 = vld [vmem:[%s1 + $0x1490] sm:$0xff]
    %v782 = vld [vmem:[%s1 + $0x1498] sm:$0xff]
    %v783 = vld [vmem:[%s1 + $0x14a0] sm:$0xff]
    %v784 = vld [vmem:[%s1 + $0x14a8] sm:$0xff]
    %v785 = vld [vmem:[%s1 + $0x14b0] sm:$0xff]
    %v786 = vld [vmem:[%s1 + $0x14b8] sm:$0xff]
    %v787 = vld [vmem:[%s1 + $0x14c0] sm:$0xff]
    %v788 = vld [vmem:[%s1 + $0x14c8] sm:$0xff]
    %v789 = vld [vmem:[%s1 + $0x14d0] sm:$0xff]
    %v790 = vld [vmem:[%s1 + $0x14d8] sm:$0xff]
    %v791 = vld [vmem:[%s1 + $0x14e0] sm:$0xff]
    %v792 = vld [vmem:[%s1 + $0x14e8] sm:$0xff]
    %v793 = vld [vmem:[%s1 + $0x14f0] sm:$0xff]
    %v794 = vld [vmem:[%s1 + $0x14f8] sm:$0xff]
    %v795 = vld [vmem:[%s1 + $0x1500] sm:$0xff]
    %v796 = vld [vmem:[%s1 + $0x1508] sm:$0xff]
    %v797 = vld [vmem:[%s1 + $0x1510] sm:$0xff]
    %v798 = vld [vmem:[%s1 + $0x1518] sm:$0xff]
    %v799 = vld [vmem:[%s1 + $0x1520] sm:$0xff]
    %v800 = vld [vmem:[%s1 + $0x1528] sm:$0xff]
    %v801 = vld [vmem:[%s1 + $0x1530] sm:$0xff]
    %v802 = vld [vmem:[%s1 + $0x1538] sm:$0xff]
    %v803 = vld [vmem:[%s1 + $0x1540] sm:$0xff]
    %v804 = vld [vmem:[%s1 + $0x1548] sm:$0xff]
    %v805 = vld [vmem:[%s1 + $0x1550] sm:$0xff]
    %v806 = vld [vmem:[%s1 + $0x1558] sm:$0xff]
    %v807 = vld [vmem:[%s1 + $0x1560] sm:$0xff]
    %v808 = vld [vmem:[%s1 + $0x1568] sm:$0xff]
    %v809 = vld [vmem:[%s1 + $0x1570] sm:$0xff]
    %v810 = vld [vmem:[%s1 + $0x1578] sm:$0xff]
    %v811 = vld [vmem:[%s1 + $0x1580] sm:$0xff]
    %v812 = vld [vmem:[%s1 + $0x1588] sm:$0xff]
    %v813 = vld [vmem:[%s1 + $0x1590] sm:$0xff]
    %v814 = vld [vmem:[%s1 + $0x1598] sm:$0xff]
    %v815 = vld [vmem:[%s1 + $0x15a0] sm:$0xff]
    %v816 = vld [vmem:[%s1 + $0x15a8] sm:$0xff]
    %v817 = vld [vmem:[%s1 + $0x15b0] sm:$0xff]
    %v818 = vld [vmem:[%s1 + $0x15b8] sm:$0xff]
    %v819 = vld [vmem:[%s1 + $0x15c0] sm:$0xff]
    %v820 = vld [vmem:[%s1 + $0x15c8] sm:$0xff]
    %v821 = vld [vmem:[%s1 + $0x15d0] sm:$0xff]
    %v822 = vld [vmem:[%s1 + $0x15d8] sm:$0xff]
    %v823 = vld [vmem:[%s1 + $0x15e0] sm:$0xff]
    %v824 = vld [vmem:[%s1 + $0x15e8] sm:$0xff]
    %v825 = vld [vmem:[%s1 + $0x15f0] sm:$0xff]
    %v826 = vld [vmem:[%s1 + $0x15f8] sm:$0xff]
    %v827 = vld [vmem:[%s1 + $0x1600] sm:$0xff]
    %v828 = vld [vmem:[%s1 + $0x1608] sm:$0xff]
    %v829 = vld [vmem:[%s1 + $0x1610] sm:$0xff]
    %v830 = vld [vmem:[%s1 + $0x1618] sm:$0xff]
    %v831 = vld [vmem:[%s1 + $0x1620] sm:$0xff]
    %v832 = vld [vmem:[%s1 + $0x1628] sm:$0xff]
    %v833 = vld [vmem:[%s1 + $0x1630] sm:$0xff]
    %v834 = vld [vmem:[%s1 + $0x1638] sm:$0xff]
    %v835 = vld [vmem:[%s1 + $0x1640] sm:$0xff]
    %v836 = vld [vmem:[%s1 + $0x1648] sm:$0xff]
    %v837 = vld [vmem:[%s1 + $0x1650] sm:$0xff]
    %v838 = vld [vmem:[%s1 + $0x1658] sm:$0xff]
    %v839 = vld [vmem:[%s1 + $0x1660] sm:$0xff]
    %v840 = vld [vmem:[%s1 + $0x1668] sm:$0xff]
    %v841 = vld [vmem:[%s1 + $0x1670] sm:$0xff]
    %v842 = vld [vmem:[%s1 + $0x1678] sm:$0xff]
    %v843 = vld [vmem:[%s1 + $0x1680] sm:$0xff]
    %v844 = vld [vmem:[%s1 + $0x1688] sm:$0xff]
    %v845 = vld [vmem:[%s1 + $0x1690] sm:$0xff]
    %v846 = vld [vmem:[%s1 + $0x1698] sm:$0xff]
    %v847 = vld [vmem:[%s1 + $0x16a0] sm:$0xff]
    %v848 = vld [vmem:[%s1 + $0x16a8] sm:$0xff]
    %v849 = vld [vmem:[%s1 + $0x16b0] sm:$0xff]
    %v850 = vld [vmem:[%s1 + $0x16b8] sm:$0xff]
    %v851 = vld [vmem:[%s1 + $0x16c0] sm:$0xff]
    %v852 = vld [vmem:[%s1 + $0x16c8] sm:$0xff]
    %v853 = vld [vmem:[%s1 + $0x16d0] sm:$0xff]
    %v854 = vld [vmem:[%s1 + $0x16d8] sm:$0xff]
    %v855 = vld [vmem:[%s1 + $0x16e0] sm:$0xff]
    %v856 = vld [vmem:[%s1 + $0x16e8] sm:$0xff]
    %v857 = vld [vmem:[%s1 + $0x16f0] sm:$0xff]
    %v858 = vld [vmem:[%s1 + $0x16f8] sm:$0xff]
    %v859 = vld [vmem:[%s1 + $0x1700] sm:$0xff]
    %v860 = vld [vmem:[%s1 + $0x1708] sm:$0xff]
    %v861 = vld [vmem:[%s1 + $0x1710] sm:$0xff]
    %v862 = vld [vmem:[%s1 + $0x1718] sm:$0xff]
    %v863 = vld [vmem:[%s1 + $0x1720] sm:$0xff]
    %v864 = vld [vmem:[%s1 + $0x1728] sm:$0xff]
    %v865 = vld [vmem:[%s1 + $0x1730] sm:$0xff]
    %v866 = vld [vmem:[%s1 + $0x1738] sm:$0xff]
    %v867 = vld [vmem:[%s1 + $0x1740] sm:$0xff]
    %v868 = vld [vmem:[%s1 + $0x1748] sm:$0xff]
    %v869 = vld [vmem:[%s1 + $0x1750] sm:$0xff]
    %v870 = vld [vmem:[%s1 + $0x1758] sm:$0xff]
    %v871 = vld [vmem:[%s1 + $0x1760] sm:$0xff]
    %v872 = vld [vmem:[%s1 + $0x1768] sm:$0xff]
    %v873 = vld [vmem:[%s1 + $0x1770] sm:$0xff]
    %v874 = vld [vmem:[%s1 + $0x1778] sm:$0xff]
    %v875 = vld [vmem:[%s1 + $0x1780] sm:$0xff]
    %v876 = vld [vmem:[%s1 + $0x1788] sm:$0xff]
    %v877 = vld [vmem:[%s1 + $0x1790] sm:$0xff]
    %v878 = vld [vmem:[%s1 + $0x1798] sm:$0xff]
    %v879 = vld [vmem:[%s1 + $0x17a0] sm:$0xff]
    %v880 = vld [vmem:[%s1 + $0x17a8] sm:$0xff]
    %v881 = vld [vmem:[%s1 + $0x17b0] sm:$0xff]
    %v882 = vld [vmem:[%s1 + $0x17b8] sm:$0xff]
    %v883 = vld [vmem:[%s1 + $0x17c0] sm:$0xff]
    %v884 = vld [vmem:[%s1 + $0x17c8] sm:$0xff]
    %v885 = vld [vmem:[%s1 + $0x17d0] sm:$0xff]
    %v886 = vld [vmem:[%s1 + $0x17d8] sm:$0xff]
    %v887 = vld [vmem:[%s1 + $0x17e0] sm:$0xff]
    %v888 = vld [vmem:[%s1 + $0x17e8] sm:$0xff]
    %v889 = vld [vmem:[%s1 + $0x17f0] sm:$0xff]
    %v890 = vld [vmem:[%s1 + $0x17f8] sm:$0xff]
    %v891 = vld [vmem:[%s1 + $0x1800] sm:$0xff]
    %v892 = vld [vmem:[%s1 + $0x1808] sm:$0xff]
    %v893 = vld [vmem:[%s1 + $0x1810] sm:$0xff]
    %v894 = vld [vmem:[%s1 + $0x1818] sm:$0xff]
    %v895 = vld [vmem:[%s1 + $0x1820] sm:$0xff]
    %v896 = vld [vmem:[%s1 + $0x1828] sm:$0xff]
    %v897 = vld [vmem:[%s1 + $0x1830] sm:$0xff]
    %v898 = vld [vmem:[%s1 + $0x1838] sm:$0xff]
    %v899 = vld [vmem:[%s1 + $0x1840] sm:$0xff]
    %v900 = vld [vmem:[%s1 + $0x1848] sm:$0xff]
    %v901 = vld [vmem:[%s1 + $0x1850] sm:$0xff]
    %v902 = vld [vmem:[%s1 + $0x1858] sm:$0xff]
    %v903 = vld [vmem:[%s1 + $0x1860] sm:$0xff]
    %v904 = vld [vmem:[%s1 + $0x1868] sm:$0xff]
    %v905 = vld [vmem:[%s1 + $0x1870] sm:$0xff]
    %v906 = vld [vmem:[%s1 + $0x1878] sm:$0xff]
    %v907 = vld [vmem:[%s1 + $0x1880] sm:$0xff]
    %v908 = vld [vmem:[%s1 + $0x1888] sm:$0xff]
    %v909 = vld [vmem:[%s1 + $0x1890] sm:$0xff]
    %v910 = vld [vmem:[%s1 + $0x1898] sm:$0xff]
    %v911 = vld [vmem:[%s1 + $0x18a0] sm:$0xff]
    %v912 = vld [vmem:[%s1 + $0x18a8] sm:$0xff]
    %v913 = vld [vmem:[%s1 + $0x18b0] sm:$0xff]
    %v914 = vld [vmem:[%s1 + $0x18b8] sm:$0xff]
    %v915 = vld [vmem:[%s1 + $0x18c0] sm:$0xff]
    %v916 = vld [vmem:[%s1 + $0x18c8] sm:$0xff]
    %v917 = vld [vmem:[%s1 + $0x18d0] sm:$0xff]
    %v918 = vld [vmem:[%s1 + $0x18d8] sm:$0xff]
    %v919 = vld [vmem:[%s1 + $0x18e0] sm:$0xff]
    %v920 = vld [vmem:[%s1 + $0x18e8] sm:$0xff]
    %v921 = vld [vmem:[%s1 + $0x18f0] sm:$0xff]
    %v922 = vld [vmem:[%s1 + $0x18f8] sm:$0xff]
    %v923 = vld [vmem:[%s1 + $0x1900] sm:$0xff]
    %v924 = vld [vmem:[%s1 + $0x1908] sm:$0xff]
    %v925 = vld [vmem:[%s1 + $0x1910] sm:$0xff]
    %v926 = vld [vmem:[%s1 + $0x1918] sm:$0xff]
    %v927 = vld [vmem:[%s1 + $0x1920] sm:$0xff]
    %v928 = vld [vmem:[%s1 + $0x1928] sm:$0xff]
    %v929 = vld [vmem:[%s1 + $0x1930] sm:$0xff]
    %v930 = vld [vmem:[%s1 + $0x1938] sm:$0xff]
    %v931 = vld [vmem:[%s1 + $0x1940] sm:$0xff]
    %v932 = vld [vmem:[%s1 + $0x1948] sm:$0xff]
    %v933 = vld [vmem:[%s1 + $0x1950] sm:$0xff]
    %v934 = vld [vmem:[%s1 + $0x1958] sm:$0xff]
    %v935 = vld [vmem:[%s1 + $0x1960] sm:$0xff]
    %v936 = vld [vmem:[%s1 + $0x1968] sm:$0xff]
    %v937 = vld [vmem:[%s1 + $0x1970] sm:$0xff]
    %v938 = vld [vmem:[%s1 + $0x1978] sm:$0xff]
    %v939 = vld [vmem:[%s1 + $0x1980] sm:$0xff]
    %v940 = vld [vmem:[%s1 + $0x1988] sm:$0xff]
    %v941 = vld [vmem:[%s1 + $0x1990] sm:$0xff]
    %v942 = vld [vmem:[%s1 + $0x1998] sm:$0xff]
    %v943 = vld [vmem:[%s1 + $0x19a0] sm:$0xff]
    %v944 = vld [vmem:[%s1 + $0x19a8] sm:$0xff]
    %v945 = vld [vmem:[%s1 + $0x19b0] sm:$0xff]
    %v946 = vld [vmem:[%s1 + $0x19b8] sm:$0xff]
    %v947 = vld [vmem:[%s1 + $0x19c0] sm:$0xff]
    %v948 = vld [vmem:[%s1 + $0x19c8] sm:$0xff]
    %v949 = vld [vmem:[%s1 + $0x19d0] sm:$0xff]
    %v950 = vld [vmem:[%s1 + $0x19d8] sm:$0xff]
    %v951 = vld [vmem:[%s1 + $0x19e0] sm:$0xff]
    %v952 = vld [vmem:[%s1 + $0x19e8] sm:$0xff]
    %v953 = vld [vmem:[%s1 + $0x19f0] sm:$0xff]
    %v954 = vld [vmem:[%s1 + $0x19f8] sm:$0xff]
    %v955 = vld [vmem:[%s1 + $0x1a00] sm:$0xff]
    %v956 = vld [vmem:[%s1 + $0x1a08] sm:$0xff]
    %v957 = vld [vmem:[%s1 + $0x1a10] sm:$0xff]
    %v958 = vld [vmem:[%s1 + $0x1a18] sm:$0xff]
    %v959 = vld [vmem:[%s1 + $0x1a20] sm:$0xff]
    %v960 = vld [vmem:[%s1 + $0x1a28] sm:$0xff]
    %v961 = vld [vmem:[%s1 + $0x1a30] sm:$0xff]
    %v962 = vld [vmem:[%s1 + $0x1a38] sm:$0xff]
    %v963 = vld [vmem:[%s1 + $0x1a40] sm:$0xff]
    %v964 = vld [vmem:[%s1 + $0x1a48] sm:$0xff]
    %v965 = vld [vmem:[%s1 + $0x1a50] sm:$0xff]
    %v966 = vld [vmem:[%s1 + $0x1a58] sm:$0xff]
    %v967 = vld [vmem:[%s1 + $0x1a60] sm:$0xff]
    %v968 = vld [vmem:[%s1 + $0x1a68] sm:$0xff]
    %v969 = vld [vmem:[%s1 + $0x1a70] sm:$0xff]
    %v970 = vld [vmem:[%s1 + $0x1a78] sm:$0xff]
    %v971 = vld [vmem:[%s1 + $0x1a80] sm:$0xff]
    %v972 = vld [vmem:[%s1 + $0x1a88] sm:$0xff]
    %v973 = vld [vmem:[%s1 + $0x1a90] sm:$0xff]
    %v974 = vld [vmem:[%s1 + $0x1a98] sm:$0xff]
    %v975 = vld [vmem:[%s1 + $0x1aa0] sm:$0xff]
    %v976 = vld [vmem:[%s1 + $0x1aa8] sm:$0xff]
    %v977 = vld [vmem:[%s1 + $0x1ab0] sm:$0xff]
    %v978 = vld [vmem:[%s1 + $0x1ab8] sm:$0xff]
    %v979 = vld [vmem:[%s1 + $0x1ac0] sm:$0xff]
    %v980 = vld [vmem:[%s1 + $0x1ac8] sm:$0xff]
    %v981 = vld [vmem:[%s1 + $0x1ad0] sm:$0xff]
    %v982 = vld [vmem:[%s1 + $0x1ad8] sm:$0xff]
    %v983 = vld [vmem:[%s1 + $0x1ae0] sm:$0xff]
    %v984 = vld [vmem:[%s1 + $0x1ae8] sm:$0xff]
    %v985 = vld [vmem:[%s1 + $0x1af0] sm:$0xff]
    %v986 = vld [vmem:[%s1 + $0x1af8] sm:$0xff]
    %v987 = vld [vmem:[%s1 + $0x1b00] sm:$0xff]
    %v988 = vld [vmem:[%s1 + $0x1b08] sm:$0xff]
    %v989 = vld [vmem:[%s1 + $0x1b10] sm:$0xff]
    %v990 = vld [vmem:[%s1 + $0x1b18] sm:$0xff]
    %v991 = vld [vmem:[%s1 + $0x1b20] sm:$0xff]
    %v992 = vld [vmem:[%s1 + $0x1b28] sm:$0xff]
    %v993 = vld [vmem:[%s1 + $0x1b30] sm:$0xff]
    %v994 = vld [vmem:[%s1 + $0x1b38] sm:$0xff]
    %v995 = vld [vmem:[%s1 + $0x1b40] sm:$0xff]
    %v996 = vld [vmem:[%s1 + $0x1b48] sm:$0xff]
    %v997 = vld [vmem:[%s1 + $0x1b50] sm:$0xff]
    %v998 = vld [vmem:[%s1 + $0x1b58] sm:$0xff]
    %v999 = vld [vmem:[%s1 + $0x1b60] sm:$0xff]
    %v1000 = vld [vmem:[%s1 + $0x1b68] sm:$0xff]
    %v1001 = vld [vmem:[%s1 + $0x1b70] sm:$0xff]
    %v1002 = vld [vmem:[%s1 + $0x1b78] sm:$0xff]
    %v1003 = vld [vmem:[%s1 + $0x1b80] sm:$0xff]
    %v1004 = vld [vmem:[%s1 + $0x1b88] sm:$0xff]
    %v1005 = vld [vmem:[%s1 + $0x1b90] sm:$0xff]
    %v1006 = vld [vmem:[%s1 + $0x1b98] sm:$0xff]
    %v1007 = vld [vmem:[%s1 + $0x1ba0] sm:$0xff]
    %v1008 = vld [vmem:[%s1 + $0x1ba8] sm:$0xff]
    %v1009 = vld [vmem:[%s1 + $0x1bb0] sm:$0xff]
    %v1010 = vld [vmem:[%s1 + $0x1bb8] sm:$0xff]
    %v1011 = vld [vmem:[%s1 + $0x1bc0] sm:$0xff]
    %v1012 = vld [vmem:[%s1 + $0x1bc8] sm:$0xff]
    %v1013 = vld [vmem:[%s1 + $0x1bd0] sm:$0xff]
    %v1014 = vld [vmem:[%s1 + $0x1bd8] sm:$0xff]
    %v1015 = vld [vmem:[%s1 + $0x1be0] sm:$0xff]
    %v1016 = vld [vmem:[%s1 + $0x1be8] sm:$0xff]
    %v1017 = vld [vmem:[%s1 + $0x1bf0] sm:$0xff]
    %v1018 = vld [vmem:[%s1 + $0x1bf8] sm:$0xff]
    %v1019 = vld [vmem:[%s1 + $0x1c00] sm:$0xff]
    %v1020 = vld [vmem:[%s1 + $0x1c08] sm:$0xff]
    %v1021 = vld [vmem:[%s1 + $0x1c10] sm:$0xff]
    %v1022 = vld [vmem:[%s1 + $0x1c18] sm:$0xff]
    %v1023 = vld [vmem:[%s1 + $0x1c20] sm:$0xff]
    %v1024 = vld [vmem:[%s1 + $0x1c28] sm:$0xff]
    %v1025 = vld [vmem:[%s1 + $0x1c30] sm:$0xff]
    %v1026 = vld [vmem:[%s1 + $0x1c38] sm:$0xff]
    %v1027 = vld [vmem:[%s1 + $0x1c40] sm:$0xff]
    %v1028 = vld [vmem:[%s1 + $0x1c48] sm:$0xff]
    %v1029 = vld [vmem:[%s1 + $0x1c50] sm:$0xff]
    %v1030 = vld [vmem:[%s1 + $0x1c58] sm:$0xff]
    %v1031 = vld [vmem:[%s1 + $0x1c60] sm:$0xff]
    %v1032 = vld [vmem:[%s1 + $0x1c68] sm:$0xff]
    %v1033 = vld [vmem:[%s1 + $0x1c70] sm:$0xff]
    %v1034 = vld [vmem:[%s1 + $0x1c78] sm:$0xff]
    %v1035 = vld [vmem:[%s1 + $0x1c80] sm:$0xff]
    %v1036 = vld [vmem:[%s1 + $0x1c88] sm:$0xff]
    %v1037 = vld [vmem:[%s1 + $0x1c90] sm:$0xff]
    %v1038 = vld [vmem:[%s1 + $0x1c98] sm:$0xff]
    %v1039 = vld [vmem:[%s1 + $0x1ca0] sm:$0xff]
    %v1040 = vld [vmem:[%s1 + $0x1ca8] sm:$0xff]
    %v1041 = vld [vmem:[%s1 + $0x1cb0] sm:$0xff]
    %v1042 = vld [vmem:[%s1 + $0x1cb8] sm:$0xff]
    %v1043 = vld [vmem:[%s1 + $0x1cc0] sm:$0xff]
    %v1044 = vld [vmem:[%s1 + $0x1cc8] sm:$0xff]
    %v1045 = vld [vmem:[%s1 + $0x1cd0] sm:$0xff]
    %v1046 = vld [vmem:[%s1 + $0x1cd8] sm:$0xff]
    %v1047 = vld [vmem:[%s1 + $0x1ce0] sm:$0xff]
    %v1048 = vld [vmem:[%s1 + $0x1ce8] sm:$0xff]
    %v1049 = vld [vmem:[%s1 + $0x1cf0] sm:$0xff]
    %v1050 = vld [vmem:[%s1 + $0x1cf8] sm:$0xff]
    %v1051 = vld [vmem:[%s1 + $0x1d00] sm:$0xff]
    %v1052 = vld [vmem:[%s1 + $0x1d08] sm:$0xff]
    %v1053 = vld [vmem:[%s1 + $0x1d10] sm:$0xff]
    %v1054 = vld [vmem:[%s1 + $0x1d18] sm:$0xff]
    %v1055 = vld [vmem:[%s1 + $0x1d20] sm:$0xff]
    %v1056 = vld [vmem:[%s1 + $0x1d28] sm:$0xff]
    %v1057 = vld [vmem:[%s1 + $0x1d30] sm:$0xff]
    %v1058 = vld [vmem:[%s1 + $0x1d38] sm:$0xff]
    %v1059 = vld [vmem:[%s1 + $0x1d40] sm:$0xff]
    %v1060 = vld [vmem:[%s1 + $0x1d48] sm:$0xff]
    %v1061 = vld [vmem:[%s1 + $0x1d50] sm:$0xff]
    %v1062 = vld [vmem:[%s1 + $0x1d58] sm:$0xff]
    %v1063 = vld [vmem:[%s1 + $0x1d60] sm:$0xff]
    %v1064 = vld [vmem:[%s1 + $0x1d68] sm:$0xff]
    %v1065 = vld [vmem:[%s1 + $0x1d70] sm:$0xff]
    %v1066 = vld [vmem:[%s1 + $0x1d78] sm:$0xff]
    %v1067 = vld [vmem:[%s1 + $0x1d80] sm:$0xff]
    %v1068 = vld [vmem:[%s1 + $0x1d88] sm:$0xff]
    %v1069 = vld [vmem:[%s1 + $0x1d90] sm:$0xff]
    %v1070 = vld [vmem:[%s1 + $0x1d98] sm:$0xff]
    %v1071 = vld [vmem:[%s1 + $0x1da0] sm:$0xff]
    %v1072 = vld [vmem:[%s1 + $0x1da8] sm:$0xff]
    %v1073 = vld [vmem:[%s1 + $0x1db0] sm:$0xff]
    %v1074 = vld [vmem:[%s1 + $0x1db8] sm:$0xff]
    %v1075 = vld [vmem:[%s1 + $0x1dc0] sm:$0xff]
    %v1076 = vld [vmem:[%s1 + $0x1dc8] sm:$0xff]
    %v1077 = vld [vmem:[%s1 + $0x1dd0] sm:$0xff]
    %v1078 = vld [vmem:[%s1 + $0x1dd8] sm:$0xff]
    %v1079 = vld [vmem:[%s1 + $0x1de0] sm:$0xff]
    %v1080 = vld [vmem:[%s1 + $0x1de8] sm:$0xff]
    %v1081 = vld [vmem:[%s1 + $0x1df0] sm:$0xff]
    %v1082 = vld [vmem:[%s1 + $0x1df8] sm:$0xff]
    %v1083 = vld [vmem:[%s1 + $0x1e00] sm:$0xff]
    %v1084 = vld [vmem:[%s1 + $0x1e08] sm:$0xff]
    %v1085 = vld [vmem:[%s1 + $0x1e10] sm:$0xff]
    %v1086 = vld [vmem:[%s1 + $0x1e18] sm:$0xff]
    %v1087 = vld [vmem:[%s1 + $0x1e20] sm:$0xff]
    %v1088 = vld [vmem:[%s1 + $0x1e28] sm:$0xff]
    %v1089 = vld [vmem:[%s1 + $0x1e30] sm:$0xff]
    %v1090 = vld [vmem:[%s1 + $0x1e38] sm:$0xff]
    %v1091 = vld [vmem:[%s1 + $0x1e40] sm:$0xff]
    %v1092 = vld [vmem:[%s1 + $0x1e48] sm:$0xff]
    %v1093 = vld [vmem:[%s1 + $0x1e50] sm:$0xff]
    %v1094 = vld [vmem:[%s1 + $0x1e58] sm:$0xff]
    %v1095 = vld [vmem:[%s1 + $0x1e60] sm:$0xff]
    %v1096 = vld [vmem:[%s1 + $0x1e68] sm:$0xff]
    %v1097 = vld [vmem:[%s1 + $0x1e70] sm:$0xff]
    %v1098 = vld [vmem:[%s1 + $0x1e78] sm:$0xff]
    %v1099 = vld [vmem:[%s1 + $0x1e80] sm:$0xff]
    %v1100 = vld [vmem:[%s1 + $0x1e88] sm:$0xff]
    %v1101 = vld [vmem:[%s1 + $0x1e90] sm:$0xff]
    %v1102 = vld [vmem:[%s1 + $0x1e98] sm:$0xff]
    %v1103 = vld [vmem:[%s1 + $0x1ea0] sm:$0xff]
    %v1104 = vld [vmem:[%s1 + $0x1ea8] sm:$0xff]
    %v1105 = vld [vmem:[%s1 + $0x1eb0] sm:$0xff]
    %v1106 = vld [vmem:[%s1 + $0x1eb8] sm:$0xff]
    %v1107 = vld [vmem:[%s1 + $0x1ec0] sm:$0xff]
    %v1108 = vld [vmem:[%s1 + $0x1ec8] sm:$0xff]
    %v1109 = vld [vmem:[%s1 + $0x1ed0] sm:$0xff]
    %v1110 = vld [vmem:[%s1 + $0x1ed8] sm:$0xff]
    %v1111 = vld [vmem:[%s1 + $0x1ee0] sm:$0xff]
    %v1112 = vld [vmem:[%s1 + $0x1ee8] sm:$0xff]
    %v1113 = vld [vmem:[%s1 + $0x1ef0] sm:$0xff]
    %v1114 = vld [vmem:[%s1 + $0x1ef8] sm:$0xff]
    %v1115 = vld [vmem:[%s1 + $0x1f00] sm:$0xff]
    %v1116 = vld [vmem:[%s1 + $0x1f08] sm:$0xff]
    %v1117 = vld [vmem:[%s1 + $0x1f10] sm:$0xff]
    %v1118 = vld [vmem:[%s1 + $0x1f18] sm:$0xff]
    %v1119 = vld [vmem:[%s1 + $0x1f20] sm:$0xff]
    %v1120 = vld [vmem:[%s1 + $0x1f28] sm:$0xff]
    %v1121 = vld [vmem:[%s1 + $0x1f30] sm:$0xff]
    %v1122 = vld [vmem:[%s1 + $0x1f38] sm:$0xff]
    %v1123 = vld [vmem:[%s1 + $0x1f40] sm:$0xff]
    %v1124 = vld [vmem:[%s1 + $0x1f48] sm:$0xff]
    %v1125 = vld [vmem:[%s1 + $0x1f50] sm:$0xff]
    %v1126 = vld [vmem:[%s1 + $0x1f58] sm:$0xff]
    %v1127 = vld [vmem:[%s1 + $0x1f60] sm:$0xff]
    %v1128 = vld [vmem:[%s1 + $0x1f68] sm:$0xff]
    %v1129 = vld [vmem:[%s1 + $0x1f70] sm:$0xff]
    %v1130 = vld [vmem:[%s1 + $0x1f78] sm:$0xff]
    %v1131 = vld [vmem:[%s1 + $0x1f80] sm:$0xff]
    %v1132 = vld [vmem:[%s1 + $0x1f88] sm:$0xff]
    %v1133 = vld [vmem:[%s1 + $0x1f90] sm:$0xff]
    %v1134 = vld [vmem:[%s1 + $0x1f98] sm:$0xff]
    %v1135 = vld [vmem:[%s1 + $0x1fa0] sm:$0xff]
    %v1136 = vld [vmem:[%s1 + $0x1fa8] sm:$0xff]
    %v1137 = vld [vmem:[%s1 + $0x1fb0] sm:$0xff]
    %v1138 = vld [vmem:[%s1 + $0x1fb8] sm:$0xff]
    %v1139 = vld [vmem:[%s1 + $0x1fc0] sm:$0xff]
    %v1140 = vld [vmem:[%s1 + $0x1fc8] sm:$0xff]
    %v1141 = vld [vmem:[%s1 + $0x1fd0] sm:$0xff]
    %v1142 = vld [vmem:[%s1 + $0x1fd8] sm:$0xff]
    %v1143 = vld [vmem:[%s1 + $0x1fe0] sm:$0xff]
    %v1144 = vld [vmem:[%s1 + $0x1fe8] sm:$0xff]
    %v1145 = vld [vmem:[%s1 + $0x1ff0] sm:$0xff]
    %v1146 = vld [vmem:[%s1 + $0x1ff8] sm:$0xff]
    %v1147 = vld [vmem:[%s1 + $0x2000] sm:$0xff]
    %v1148 = vld [vmem:[%s1 + $0x2008] sm:$0xff]
    %v1149 = vld [vmem:[%s1 + $0x2010] sm:$0xff]
    %v1150 = vld [vmem:[%s1 + $0x2018] sm:$0xff]
    %v1151 = vld [vmem:[%s1 + $0x2020] sm:$0xff]
    %v1152 = vld [vmem:[%s1 + $0x2028] sm:$0xff]
    %v1153 = vld [vmem:[%s1 + $0x2030] sm:$0xff]
    %v1154 = vld [vmem:[%s1 + $0x2038] sm:$0xff]
    %v1155 = vld [vmem:[%s1 + $0x2040] sm:$0xff]
    %v1156 = vld [vmem:[%s1 + $0x2048] sm:$0xff]
    %v1157 = vld [vmem:[%s1 + $0x2050] sm:$0xff]
    %v1158 = vld [vmem:[%s1 + $0x2058] sm:$0xff]
    %v1159 = vld [vmem:[%s1 + $0x2060] sm:$0xff]
    %v1160 = vld [vmem:[%s1 + $0x2068] sm:$0xff]
    %v1161 = vld [vmem:[%s1 + $0x2070] sm:$0xff]
    %v1162 = vld [vmem:[%s1 + $0x2078] sm:$0xff]
    %v1163 = vld [vmem:[%s1 + $0x2080] sm:$0xff]
    %v1164 = vld [vmem:[%s1 + $0x2088] sm:$0xff]
    %v1165 = vld [vmem:[%s1 + $0x2090] sm:$0xff]
    %v1166 = vld [vmem:[%s1 + $0x2098] sm:$0xff]
    %v1167 = vld [vmem:[%s1 + $0x20a0] sm:$0xff]
    %v1168 = vld [vmem:[%s1 + $0x20a8] sm:$0xff]
    %v1169 = vld [vmem:[%s1 + $0x20b0] sm:$0xff]
    %v1170 = vld [vmem:[%s1 + $0x20b8] sm:$0xff]
    %v1171 = vld [vmem:[%s1 + $0x20c0] sm:$0xff]
    %v1172 = vld [vmem:[%s1 + $0x20c8] sm:$0xff]
    %v1173 = vld [vmem:[%s1 + $0x20d0] sm:$0xff]
    %v1174 = vld [vmem:[%s1 + $0x20d8] sm:$0xff]
    %v1175 = vld [vmem:[%s1 + $0x20e0] sm:$0xff]
    %v1176 = vld [vmem:[%s1 + $0x20e8] sm:$0xff]
    %v1177 = vld [vmem:[%s1 + $0x20f0] sm:$0xff]
    %v1178 = vld [vmem:[%s1 + $0x20f8] sm:$0xff]
    %v1179 = vld [vmem:[%s1 + $0x2100] sm:$0xff]
    %v1180 = vld [vmem:[%s1 + $0x2108] sm:$0xff]
    %v1181 = vld [vmem:[%s1 + $0x2110] sm:$0xff]
    %v1182 = vld [vmem:[%s1 + $0x2118] sm:$0xff]
    %v1183 = vld [vmem:[%s1 + $0x2120] sm:$0xff]
    %v1184 = vld [vmem:[%s1 + $0x2128] sm:$0xff]
    %v1185 = vld [vmem:[%s1 + $0x2130] sm:$0xff]
    %v1186 = vld [vmem:[%s1 + $0x2138] sm:$0xff]
    %v1187 = vld [vmem:[%s1 + $0x2140] sm:$0xff]
    %v1188 = vld [vmem:[%s1 + $0x2148] sm:$0xff]
    %v1189 = vld [vmem:[%s1 + $0x2150] sm:$0xff]
    %v1190 = vld [vmem:[%s1 + $0x2158] sm:$0xff]
    %v1191 = vld [vmem:[%s1 + $0x2160] sm:$0xff]
    %v1192 = vld [vmem:[%s1 + $0x2168] sm:$0xff]
    %v1193 = vld [vmem:[%s1 + $0x2170] sm:$0xff]
    %v1194 = vld [vmem:[%s1 + $0x2178] sm:$0xff]
    %v1195 = vld [vmem:[%s1 + $0x2180] sm:$0xff]
    %v1196 = vld [vmem:[%s1 + $0x2188] sm:$0xff]
    %v1197 = vld [vmem:[%s1 + $0x2190] sm:$0xff]
    %v1198 = vld [vmem:[%s1 + $0x2198] sm:$0xff]
    %v1199 = vld [vmem:[%s1 + $0x21a0] sm:$0xff]
    %v1200 = vld [vmem:[%s1 + $0x21a8] sm:$0xff]
    %v1201 = vld [vmem:[%s1 + $0x21b0] sm:$0xff]
    %v1202 = vld [vmem:[%s1 + $0x21b8] sm:$0xff]
    %v1203 = vld [vmem:[%s1 + $0x21c0] sm:$0xff]
    %v1204 = vld [vmem:[%s1 + $0x21c8] sm:$0xff]
    %v1205 = vld [vmem:[%s1 + $0x21d0] sm:$0xff]
    %v1206 = vld [vmem:[%s1 + $0x21d8] sm:$0xff]
    %v1207 = vld [vmem:[%s1 + $0x21e0] sm:$0xff]
    %v1208 = vld [vmem:[%s1 + $0x21e8] sm:$0xff]
    %v1209 = vld [vmem:[%s1 + $0x21f0] sm:$0xff]
    %v1210 = vld [vmem:[%s1 + $0x21f8] sm:$0xff]
    %v1211 = vld [vmem:[%s1 + $0x2200] sm:$0xff]
    %v1212 = vld [vmem:[%s1 + $0x2208] sm:$0xff]
    %v1213 = vld [vmem:[%s1 + $0x2210] sm:$0xff]
    %v1214 = vld [vmem:[%s1 + $0x2218] sm:$0xff]
    %v1215 = vld [vmem:[%s1 + $0x2220] sm:$0xff]
    %v1216 = vld [vmem:[%s1 + $0x2228] sm:$0xff]
    %v1217 = vld [vmem:[%s1 + $0x2230] sm:$0xff]
    %v1218 = vld [vmem:[%s1 + $0x2238] sm:$0xff]
    %v1219 = vld [vmem:[%s1 + $0x2240] sm:$0xff]
    %v1220 = vld [vmem:[%s1 + $0x2248] sm:$0xff]
    %v1221 = vld [vmem:[%s1 + $0x2250] sm:$0xff]
    %v1222 = vld [vmem:[%s1 + $0x2258] sm:$0xff]
    %v1223 = vld [vmem:[%s1 + $0x2260] sm:$0xff]
    %v1224 = vld [vmem:[%s1 + $0x2268] sm:$0xff]
    %v1225 = vld [vmem:[%s1 + $0x2270] sm:$0xff]
    %v1226 = vld [vmem:[%s1 + $0x2278] sm:$0xff]
    %v1227 = vld [vmem:[%s1 + $0x2280] sm:$0xff]
    %v1228 = vld [vmem:[%s1 + $0x2288] sm:$0xff]
    %v1229 = vld [vmem:[%s1 + $0x2290] sm:$0xff]
    %v1230 = vld [vmem:[%s1 + $0x2298] sm:$0xff]
    %v1231 = vld [vmem:[%s1 + $0x22a0] sm:$0xff]
    %v1232 = vld [vmem:[%s1 + $0x22a8] sm:$0xff]
    %v1233 = vld [vmem:[%s1 + $0x22b0] sm:$0xff]
    %v1234 = vld [vmem:[%s1 + $0x22b8] sm:$0xff]
    %v1235 = vld [vmem:[%s1 + $0x22c0] sm:$0xff]
    %v1236 = vld [vmem:[%s1 + $0x22c8] sm:$0xff]
    %v1237 = vld [vmem:[%s1 + $0x22d0] sm:$0xff]
    %v1238 = vld [vmem:[%s1 + $0x22d8] sm:$0xff]
    %v1239 = vld [vmem:[%s1 + $0x22e0] sm:$0xff]
    %v1240 = vld [vmem:[%s1 + $0x22e8] sm:$0xff]
    %v1241 = vld [vmem:[%s1 + $0x22f0] sm:$0xff]
    %v1242 = vld [vmem:[%s1 + $0x22f8] sm:$0xff]
    %v1243 = vld [vmem:[%s1 + $0x2300] sm:$0xff]
    %v1244 = vld [vmem:[%s1 + $0x2308] sm:$0xff]
    %v1245 = vld [vmem:[%s1 + $0x2310] sm:$0xff]
    %v1246 = vld [vmem:[%s1 + $0x2318] sm:$0xff]
    %v1247 = vld [vmem:[%s1 + $0x2320] sm:$0xff]
    %v1248 = vld [vmem:[%s1 + $0x2328] sm:$0xff]
    %v1249 = vld [vmem:[%s1 + $0x2330] sm:$0xff]
    %v1250 = vld [vmem:[%s1 + $0x2338] sm:$0xff]
    %v1251 = vld [vmem:[%s1 + $0x2340] sm:$0xff]
    %v1252 = vld [vmem:[%s1 + $0x2348] sm:$0xff]
    %v1253 = vld [vmem:[%s1 + $0x2350] sm:$0xff]
    %v1254 = vld [vmem:[%s1 + $0x2358] sm:$0xff]
    %v1255 = vld [vmem:[%s1 + $0x2360] sm:$0xff]
    %v1256 = vld [vmem:[%s1 + $0x2368] sm:$0xff]
    %v1257 = vld [vmem:[%s1 + $0x2370] sm:$0xff]
    %v1258 = vld [vmem:[%s1 + $0x2378] sm:$0xff]
    %v1259 = vld [vmem:[%s1 + $0x2380] sm:$0xff]
    %v1260 = vld [vmem:[%s1 + $0x2388] sm:$0xff]
    %v1261 = vld [vmem:[%s1 + $0x2390] sm:$0xff]
    %v1262 = vld [vmem:[%s1 + $0x2398] sm:$0xff]
    %v1263 = vld [vmem:[%s1 + $0x23a0] sm:$0xff]
    %v1264 = vld [vmem:[%s1 + $0x23a8] sm:$0xff]
    %v1265 = vld [vmem:[%s1 + $0x23b0] sm:$0xff]
    %v1266 = vld [vmem:[%s1 + $0x23b8] sm:$0xff]
    %v1267 = vld [vmem:[%s1 + $0x23c0] sm:$0xff]
    %v1268 = vld [vmem:[%s1 + $0x23c8] sm:$0xff]
    %v1269 = vld [vmem:[%s1 + $0x23d0] sm:$0xff]
    %v1270 = vld [vmem:[%s1 + $0x23d8] sm:$0xff]
    %v1271 = vld [vmem:[%s1 + $0x23e0] sm:$0xff]
    %v1272 = vld [vmem:[%s1 + $0x23e8] sm:$0xff]
    %v1273 = vld [vmem:[%s1 + $0x23f0] sm:$0xff]
    %v1274 = vld [vmem:[%s1 + $0x23f8] sm:$0xff]
    %v1275 = vld [vmem:[%s1 + $0x2400] sm:$0xff]
    %v1276 = vld [vmem:[%s1 + $0x2408] sm:$0xff]
    %v1277 = vld [vmem:[%s1 + $0x2410] sm:$0xff]
    %v1278 = vld [vmem:[%s1 + $0x2418] sm:$0xff]
    %v1279 = vld [vmem:[%s1 + $0x2420] sm:$0xff]
    %v1280 = vld [vmem:[%s1 + $0x2428] sm:$0xff]
    %v1281 = vld [vmem:[%s1 + $0x2430] sm:$0xff]
    %v1282 = vld [vmem:[%s1 + $0x2438] sm:$0xff]
    %v1283 = vld [vmem:[%s1 + $0x2440] sm:$0xff]
    %v1284 = vld [vmem:[%s1 + $0x2448] sm:$0xff]
    %v1285 = vld [vmem:[%s1 + $0x2450] sm:$0xff]
    %v1286 = vld [vmem:[%s1 + $0x2458] sm:$0xff]
    %v1287 = vld [vmem:[%s1 + $0x2460] sm:$0xff]
    %v1288 = vld [vmem:[%s1 + $0x2468] sm:$0xff]
    %v1289 = vld [vmem:[%s1 + $0x2470] sm:$0xff]
    %v1290 = vld [vmem:[%s1 + $0x2478] sm:$0xff]
    %v1291 = vld [vmem:[%s1 + $0x2480] sm:$0xff]
    %v1292 = vld [vmem:[%s1 + $0x2488] sm:$0xff]
    %v1293 = vld [vmem:[%s1 + $0x2490] sm:$0xff]
    %v1294 = vld [vmem:[%s1 + $0x2498] sm:$0xff]
    %v1295 = vld [vmem:[%s1 + $0x24a0] sm:$0xff]
    %v1296 = vld [vmem:[%s1 + $0x24a8] sm:$0xff]
    %v1297 = vld [vmem:[%s1 + $0x24b0] sm:$0xff]
    %v1298 = vld [vmem:[%s1 + $0x24b8] sm:$0xff]
    %v1299 = vld [vmem:[%s1 + $0x24c0] sm:$0xff]
    %v1300 = vld [vmem:[%s1 + $0x24c8] sm:$0xff]
    %v1301 = vld [vmem:[%s1 + $0x24d0] sm:$0xff]
    %v1302 = vld [vmem:[%s1 + $0x24d8] sm:$0xff]
    %v1303 = vld [vmem:[%s1 + $0x24e0] sm:$0xff]
    %v1304 = vld [vmem:[%s1 + $0x24e8] sm:$0xff]
    %v1305 = vld [vmem:[%s1 + $0x24f0] sm:$0xff]
    %v1306 = vld [vmem:[%s1 + $0x24f8] sm:$0xff]
    %v1307 = vld [vmem:[%s1 + $0x2500] sm:$0xff]
    %v1308 = vld [vmem:[%s1 + $0x2508] sm:$0xff]
    %v1309 = vld [vmem:[%s1 + $0x2510] sm:$0xff]
    %v1310 = vld [vmem:[%s1 + $0x2518] sm:$0xff]
    %v1311 = vld [vmem:[%s1 + $0x2520] sm:$0xff]
    %v1312 = vld [vmem:[%s1 + $0x2528] sm:$0xff]
    %v1313 = vld [vmem:[%s1 + $0x2530] sm:$0xff]
    %v1314 = vld [vmem:[%s1 + $0x2538] sm:$0xff]
    %v1315 = vld [vmem:[%s1 + $0x2540] sm:$0xff]
    %v1316 = vld [vmem:[%s1 + $0x2548] sm:$0xff]
    %v1317 = vld [vmem:[%s1 + $0x2550] sm:$0xff]
    %v1318 = vld [vmem:[%s1 + $0x2558] sm:$0xff]
    %v1319 = vld [vmem:[%s1 + $0x2560] sm:$0xff]
    %v1320 = vld [vmem:[%s1 + $0x2568] sm:$0xff]
    %v1321 = vld [vmem:[%s1 + $0x2570] sm:$0xff]
    %v1322 = vld [vmem:[%s1 + $0x2578] sm:$0xff]
    %v1323 = vld [vmem:[%s1 + $0x2580] sm:$0xff]
    %v1324 = vld [vmem:[%s1 + $0x2588] sm:$0xff]
    %v1325 = vld [vmem:[%s1 + $0x2590] sm:$0xff]
    %v1326 = vld [vmem:[%s1 + $0x2598] sm:$0xff]
    %v1327 = vld [vmem:[%s1 + $0x25a0] sm:$0xff]
    %v1328 = vld [vmem:[%s1 + $0x25a8] sm:$0xff]
    %v1329 = vld [vmem:[%s1 + $0x25b0] sm:$0xff]
    %v1330 = vld [vmem:[%s1 + $0x25b8] sm:$0xff]
    %v1331 = vld [vmem:[%s1 + $0x25c0] sm:$0xff]
    %v1332 = vld [vmem:[%s1 + $0x25c8] sm:$0xff]
    %v1333 = vld [vmem:[%s1 + $0x25d0] sm:$0xff]
    %v1334 = vld [vmem:[%s1 + $0x25d8] sm:$0xff]
    %v1335 = vld [vmem:[%s1 + $0x25e0] sm:$0xff]
    %v1336 = vld [vmem:[%s1 + $0x25e8] sm:$0xff]
    %v1337 = vld [vmem:[%s1 + $0x25f0] sm:$0xff]
    %v1338 = vld [vmem:[%s1 + $0x25f8] sm:$0xff]
    %v1339 = vld [vmem:[%s1 + $0x2600] sm:$0xff]
    %v1340 = vld [vmem:[%s1 + $0x2608] sm:$0xff]
    %v1341 = vld [vmem:[%s1 + $0x2610] sm:$0xff]
    %v1342 = vld [vmem:[%s1 + $0x2618] sm:$0xff]
    %v1343 = vld [vmem:[%s1 + $0x2620] sm:$0xff]
    %v1344 = vld [vmem:[%s1 + $0x2628] sm:$0xff]
    %v1345 = vld [vmem:[%s1 + $0x2630] sm:$0xff]
    %v1346 = vld [vmem:[%s1 + $0x2638] sm:$0xff]
    %v1347 = vld [vmem:[%s1 + $0x2640] sm:$0xff]
    %v1348 = vld [vmem:[%s1 + $0x2648] sm:$0xff]
    %v1349 = vld [vmem:[%s1 + $0x2650] sm:$0xff]
    %v1350 = vld [vmem:[%s1 + $0x2658] sm:$0xff]
    %v1351 = vld [vmem:[%s1 + $0x2660] sm:$0xff]
    %v1352 = vld [vmem:[%s1 + $0x2668] sm:$0xff]
    %v1353 = vld [vmem:[%s1 + $0x2670] sm:$0xff]
    %v1354 = vld [vmem:[%s1 + $0x2678] sm:$0xff]
    %v1355 = vld [vmem:[%s1 + $0x2680] sm:$0xff]
    %v1356 = vld [vmem:[%s1 + $0x2688] sm:$0xff]
    %v1357 = vld [vmem:[%s1 + $0x2690] sm:$0xff]
    %v1358 = vld [vmem:[%s1 + $0x2698] sm:$0xff]
    %v1359 = vld [vmem:[%s1 + $0x26a0] sm:$0xff]
    %v1360 = vld [vmem:[%s1 + $0x26a8] sm:$0xff]
    %v1361 = vld [vmem:[%s1 + $0x26b0] sm:$0xff]
    %v1362 = vld [vmem:[%s1 + $0x26b8] sm:$0xff]
    %v1363 = vld [vmem:[%s1 + $0x26c0] sm:$0xff]
    %v1364 = vld [vmem:[%s1 + $0x26c8] sm:$0xff]
    %v1365 = vld [vmem:[%s1 + $0x26d0] sm:$0xff]
    %v1366 = vld [vmem:[%s1 + $0x26d8] sm:$0xff]
    %v1367 = vld [vmem:[%s1 + $0x26e0] sm:$0xff]
    %v1368 = vld [vmem:[%s1 + $0x26e8] sm:$0xff]
    %v1369 = vld [vmem:[%s1 + $0x26f0] sm:$0xff]
    %v1370 = vld [vmem:[%s1 + $0x26f8] sm:$0xff]
    %v1371 = vld [vmem:[%s1 + $0x2700] sm:$0xff]
    %v1372 = vld [vmem:[%s1 + $0x2708] sm:$0xff]
    %v1373 = vld [vmem:[%s1 + $0x2710] sm:$0xff]
    %v1374 = vld [vmem:[%s1 + $0x2718] sm:$0xff]
    %v1375 = vld [vmem:[%s1 + $0x2720] sm:$0xff]
    %v1376 = vld [vmem:[%s1 + $0x2728] sm:$0xff]
    %v1377 = vld [vmem:[%s1 + $0x2730] sm:$0xff]
    %v1378 = vld [vmem:[%s1 + $0x2738] sm:$0xff]
    %v1379 = vld [vmem:[%s1 + $0x2740] sm:$0xff]
    %v1380 = vld [vmem:[%s1 + $0x2748] sm:$0xff]
    %v1381 = vld [vmem:[%s1 + $0x2750] sm:$0xff]
    %v1382 = vld [vmem:[%s1 + $0x2758] sm:$0xff]
    %v1383 = vld [vmem:[%s1 + $0x2760] sm:$0xff]
    %v1384 = vld [vmem:[%s1 + $0x2768] sm:$0xff]
    %v1385 = vld [vmem:[%s1 + $0x2770] sm:$0xff]
    %v1386 = vld [vmem:[%s1 + $0x2778] sm:$0xff]
    %v1387 = vld [vmem:[%s1 + $0x2780] sm:$0xff]
    %v1388 = vld [vmem:[%s1 + $0x2788] sm:$0xff]
    %v1389 = vld [vmem:[%s1 + $0x2790] sm:$0xff]
    %v1390 = vld [vmem:[%s1 + $0x2798] sm:$0xff]
    %v1391 = vld [vmem:[%s1 + $0x27a0] sm:$0xff]
    %v1392 = vld [vmem:[%s1 + $0x27a8] sm:$0xff]
    %v1393 = vld [vmem:[%s1 + $0x27b0] sm:$0xff]
    %v1394 = vld [vmem:[%s1 + $0x27b8] sm:$0xff]
    %v1395 = vld [vmem:[%s1 + $0x27c0] sm:$0xff]
    %v1396 = vld [vmem:[%s1 + $0x27c8] sm:$0xff]
    %v1397 = vld [vmem:[%s1 + $0x27d0] sm:$0xff]
    %v1398 = vld [vmem:[%s1 + $0x27d8] sm:$0xff]
    %v1399 = vld [vmem:[%s1 + $0x27e0] sm:$0xff]
    %v1400 = vld [vmem:[%s1 + $0x27e8] sm:$0xff]
    %v1401 = vld [vmem:[%s1 + $0x27f0] sm:$0xff]
    %v1402 = vld [vmem:[%s1 + $0x27f8] sm:$0xff]
    %v1403 = vld [vmem:[%s1 + $0x2800] sm:$0xff]
    %v1404 = vld [vmem:[%s1 + $0x2808] sm:$0xff]
    %v1405 = vld [vmem:[%s1 + $0x2810] sm:$0xff]
    %v1406 = vld [vmem:[%s1 + $0x2818] sm:$0xff]
    %v1407 = vld [vmem:[%s1 + $0x2820] sm:$0xff]
    %v1408 = vld [vmem:[%s1 + $0x2828] sm:$0xff]
    %v1409 = vld [vmem:[%s1 + $0x2830] sm:$0xff]
    %v1410 = vld [vmem:[%s1 + $0x2838] sm:$0xff]
    %v1411 = vld [vmem:[%s1 + $0x2840] sm:$0xff]
    %v1412 = vld [vmem:[%s1 + $0x2848] sm:$0xff]
    %v1413 = vld [vmem:[%s1 + $0x2850] sm:$0xff]
    %v1414 = vld [vmem:[%s1 + $0x2858] sm:$0xff]
    %v1415 = vld [vmem:[%s1 + $0x2860] sm:$0xff]
    %v1416 = vld [vmem:[%s1 + $0x2868] sm:$0xff]
    %v1417 = vld [vmem:[%s1 + $0x2870] sm:$0xff]
    %v1418 = vld [vmem:[%s1 + $0x2878] sm:$0xff]
    %v1419 = vld [vmem:[%s1 + $0x2880] sm:$0xff]
    %v1420 = vld [vmem:[%s1 + $0x2888] sm:$0xff]
    %v1421 = vld [vmem:[%s1 + $0x2890] sm:$0xff]
    %v1422 = vld [vmem:[%s1 + $0x2898] sm:$0xff]
    %v1423 = vld [vmem:[%s1 + $0x28a0] sm:$0xff]
    %v1424 = vld [vmem:[%s1 + $0x28a8] sm:$0xff]
    %v1425 = vld [vmem:[%s1 + $0x28b0] sm:$0xff]
    %v1426 = vld [vmem:[%s1 + $0x28b8] sm:$0xff]
    %v1427 = vld [vmem:[%s1 + $0x28c0] sm:$0xff]
    %v1428 = vld [vmem:[%s1 + $0x28c8] sm:$0xff]
    %v1429 = vld [vmem:[%s1 + $0x28d0] sm:$0xff]
    %v1430 = vld [vmem:[%s1 + $0x28d8] sm:$0xff]
    %v1431 = vld [vmem:[%s1 + $0x28e0] sm:$0xff]
    %v1432 = vld [vmem:[%s1 + $0x28e8] sm:$0xff]
    %v1433 = vld [vmem:[%s1 + $0x28f0] sm:$0xff]
    %v1434 = vld [vmem:[%s1 + $0x28f8] sm:$0xff]
    %v1435 = vld [vmem:[%s1 + $0x2900] sm:$0xff]
    %v1436 = vld [vmem:[%s1 + $0x2908] sm:$0xff]
    %v1437 = vld [vmem:[%s1 + $0x2910] sm:$0xff]
    %v1438 = vld [vmem:[%s1 + $0x2918] sm:$0xff]
    %v1439 = vld [vmem:[%s1 + $0x2920] sm:$0xff]
    %v1440 = vld [vmem:[%s1 + $0x2928] sm:$0xff]
    %v1441 = vld [vmem:[%s1 + $0x2930] sm:$0xff]
    %v1442 = vld [vmem:[%s1 + $0x2938] sm:$0xff]
    %v1443 = vld [vmem:[%s1 + $0x2940] sm:$0xff]
    %v1444 = vld [vmem:[%s1 + $0x2948] sm:$0xff]
    %v1445 = vld [vmem:[%s1 + $0x2950] sm:$0xff]
    %v1446 = vld [vmem:[%s1 + $0x2958] sm:$0xff]
    %v1447 = vld [vmem:[%s1 + $0x2960] sm:$0xff]
    %v1448 = vld [vmem:[%s1 + $0x2968] sm:$0xff]
    %v1449 = vld [vmem:[%s1 + $0x2970] sm:$0xff]
    %v1450 = vld [vmem:[%s1 + $0x2978] sm:$0xff]
    %v1451 = vld [vmem:[%s1 + $0x2980] sm:$0xff]
    %v1452 = vld [vmem:[%s1 + $0x2988] sm:$0xff]
    %v1453 = vld [vmem:[%s1 + $0x2990] sm:$0xff]
    %v1454 = vld [vmem:[%s1 + $0x2998] sm:$0xff]
    %v1455 = vld [vmem:[%s1 + $0x29a0] sm:$0xff]
    %v1456 = vld [vmem:[%s1 + $0x29a8] sm:$0xff]
    %v1457 = vld [vmem:[%s1 + $0x29b0] sm:$0xff]
    %v1458 = vld [vmem:[%s1 + $0x29b8] sm:$0xff]
    %v1459 = vld [vmem:[%s1 + $0x29c0] sm:$0xff]
    %v1460 = vld [vmem:[%s1 + $0x29c8] sm:$0xff]
    %v1461 = vld [vmem:[%s1 + $0x29d0] sm:$0xff]
    %v1462 = vld [vmem:[%s1 + $0x29d8] sm:$0xff]
    %v1463 = vld [vmem:[%s1 + $0x29e0] sm:$0xff]
    %v1464 = vld [vmem:[%s1 + $0x29e8] sm:$0xff]
    %v1465 = vld [vmem:[%s1 + $0x29f0] sm:$0xff]
    %v1466 = vld [vmem:[%s1 + $0x29f8] sm:$0xff]
    %v1467 = vld [vmem:[%s1 + $0x2a00] sm:$0xff]
    %v1468 = vld [vmem:[%s1 + $0x2a08] sm:$0xff]
    %v1469 = vld [vmem:[%s1 + $0x2a10] sm:$0xff]
    %v1470 = vld [vmem:[%s1 + $0x2a18] sm:$0xff]
    %v1471 = vld [vmem:[%s1 + $0x2a20] sm:$0xff]
    %v1472 = vld [vmem:[%s1 + $0x2a28] sm:$0xff]
    %v1473 = vld [vmem:[%s1 + $0x2a30] sm:$0xff]
    %v1474 = vld [vmem:[%s1 + $0x2a38] sm:$0xff]
    %v1475 = vld [vmem:[%s1 + $0x2a40] sm:$0xff]
    %v1476 = vld [vmem:[%s1 + $0x2a48] sm:$0xff]
    %v1477 = vld [vmem:[%s1 + $0x2a50] sm:$0xff]
    %v1478 = vld [vmem:[%s1 + $0x2a58] sm:$0xff]
    %v1479 = vld [vmem:[%s1 + $0x2a60] sm:$0xff]
    %v1480 = vld [vmem:[%s1 + $0x2a68] sm:$0xff]
    %v1481 = vld [vmem:[%s1 + $0x2a70] sm:$0xff]
    %v1482 = vld [vmem:[%s1 + $0x2a78] sm:$0xff]
    %v1483 = vld [vmem:[%s1 + $0x2a80] sm:$0xff]
    %v1484 = vld [vmem:[%s1 + $0x2a88] sm:$0xff]
    %v1485 = vld [vmem:[%s1 + $0x2a90] sm:$0xff]
    %v1486 = vld [vmem:[%s1 + $0x2a98] sm:$0xff]
    %v1487 = vld [vmem:[%s1 + $0x2aa0] sm:$0xff]
    %v1488 = vld [vmem:[%s1 + $0x2aa8] sm:$0xff]
    %v1489 = vld [vmem:[%s1 + $0x2ab0] sm:$0xff]
    %v1490 = vld [vmem:[%s1 + $0x2ab8] sm:$0xff]
    %v1491 = vld [vmem:[%s1 + $0x2ac0] sm:$0xff]
    %v1492 = vld [vmem:[%s1 + $0x2ac8] sm:$0xff]
    %v1493 = vld [vmem:[%s1 + $0x2ad0] sm:$0xff]
    %v1494 = vld [vmem:[%s1 + $0x2ad8] sm:$0xff]
    %v1495 = vld [vmem:[%s1 + $0x2ae0] sm:$0xff]
    %v1496 = vld [vmem:[%s1 + $0x2ae8] sm:$0xff]
    %v1497 = vld [vmem:[%s1 + $0x2af0] sm:$0xff]
    %v1498 = vld [vmem:[%s1 + $0x2af8] sm:$0xff]
    %v1499 = vld [vmem:[%s1 + $0x2b00] sm:$0xff]
    %v1500 = vld [vmem:[%s1 + $0x2b08] sm:$0xff]
    %v1501 = vld [vmem:[%s1 + $0x2b10] sm:$0xff]
    %v1502 = vld [vmem:[%s1 + $0x2b18] sm:$0xff]
    %v1503 = vld [vmem:[%s1 + $0x2b20] sm:$0xff]
    %v1504 = vld [vmem:[%s1 + $0x2b28] sm:$0xff]
    %v1505 = vld [vmem:[%s1 + $0x2b30] sm:$0xff]
    %v1506 = vld [vmem:[%s1 + $0x2b38] sm:$0xff]
    %v1507 = vld [vmem:[%s1 + $0x2b40] sm:$0xff]
    %v1508 = vld [vmem:[%s1 + $0x2b48] sm:$0xff]
    %v1509 = vld [vmem:[%s1 + $0x2b50] sm:$0xff]
    %v1510 = vld [vmem:[%s1 + $0x2b58] sm:$0xff]
    %v1511 = vld [vmem:[%s1 + $0x2b60] sm:$0xff]
    %v1512 = vld [vmem:[%s1 + $0x2b68] sm:$0xff]
    %v1513 = vld [vmem:[%s1 + $0x2b70] sm:$0xff]
    %v1514 = vld [vmem:[%s1 + $0x2b78] sm:$0xff]
    %v1515 = vld [vmem:[%s1 + $0x2b80] sm:$0xff]
    %v1516 = vld [vmem:[%s1 + $0x2b88] sm:$0xff]
    %v1517 = vld [vmem:[%s1 + $0x2b90] sm:$0xff]
    %v1518 = vld [vmem:[%s1 + $0x2b98] sm:$0xff]
    %v1519 = vld [vmem:[%s1 + $0x2ba0] sm:$0xff]
    %v1520 = vld [vmem:[%s1 + $0x2ba8] sm:$0xff]
    %v1521 = vld [vmem:[%s1 + $0x2bb0] sm:$0xff]
    %v1522 = vld [vmem:[%s1 + $0x2bb8] sm:$0xff]
    %v1523 = vld [vmem:[%s1 + $0x2bc0] sm:$0xff]
    %v1524 = vld [vmem:[%s1 + $0x2bc8] sm:$0xff]
    %v1525 = vld [vmem:[%s1 + $0x2bd0] sm:$0xff]
    %v1526 = vld [vmem:[%s1 + $0x2bd8] sm:$0xff]
    %v1527 = vld [vmem:[%s1 + $0x2be0] sm:$0xff]
    %v1528 = vld [vmem:[%s1 + $0x2be8] sm:$0xff]
    %v1529 = vld [vmem:[%s1 + $0x2bf0] sm:$0xff]
    %v1530 = vld [vmem:[%s1 + $0x2bf8] sm:$0xff]
    %v1531 = vld [vmem:[%s1 + $0x2c00] sm:$0xff]
    %v1532 = vld [vmem:[%s1 + $0x2c08] sm:$0xff]
    %v1533 = vld [vmem:[%s1 + $0x2c10] sm:$0xff]
    %v1534 = vld [vmem:[%s1 + $0x2c18] sm:$0xff]
    %v1535 = vld [vmem:[%s1 + $0x2c20] sm:$0xff]
    %v1536 = vld [vmem:[%s1 + $0x2c28] sm:$0xff]
    %v1537 = vld [vmem:[%s1 + $0x2c30] sm:$0xff]
    %v1538 = vld [vmem:[%s1 + $0x2c38] sm:$0xff]
    %v1539 = vld [vmem:[%s1 + $0x2c40] sm:$0xff]
    %v1540 = vld [vmem:[%s1 + $0x2c48] sm:$0xff]
    %v1541 = vld [vmem:[%s1 + $0x2c50] sm:$0xff]
    %v1542 = vld [vmem:[%s1 + $0x2c58] sm:$0xff]
    %v1543 = vld [vmem:[%s1 + $0x2c60] sm:$0xff]
    %v1544 = vld [vmem:[%s1 + $0x2c68] sm:$0xff]
    %v1545 = vld [vmem:[%s1 + $0x2c70] sm:$0xff]
    %v1546 = vld [vmem:[%s1 + $0x2c78] sm:$0xff]
    %v1547 = vld [vmem:[%s1 + $0x2c80] sm:$0xff]
    %v1548 = vld [vmem:[%s1 + $0x2c88] sm:$0xff]
    %v1549 = vld [vmem:[%s1 + $0x2c90] sm:$0xff]
    %v1550 = vld [vmem:[%s1 + $0x2c98] sm:$0xff]
    %v1551 = vld [vmem:[%s1 + $0x2ca0] sm:$0xff]
    %v1552 = vld [vmem:[%s1 + $0x2ca8] sm:$0xff]
    %v1553 = vld [vmem:[%s1 + $0x2cb0] sm:$0xff]
    %v1554 = vld [vmem:[%s1 + $0x2cb8] sm:$0xff]
    %v1555 = vld [vmem:[%s1 + $0x2cc0] sm:$0xff]
    %v1556 = vld [vmem:[%s1 + $0x2cc8] sm:$0xff]
    %v1557 = vld [vmem:[%s1 + $0x2cd0] sm:$0xff]
    %v1558 = vld [vmem:[%s1 + $0x2cd8] sm:$0xff]
    %v1559 = vld [vmem:[%s1 + $0x2ce0] sm:$0xff]
    %v1560 = vld [vmem:[%s1 + $0x2ce8] sm:$0xff]
    %v1561 = vld [vmem:[%s1 + $0x2cf0] sm:$0xff]
    %v1562 = vld [vmem:[%s1 + $0x2cf8] sm:$0xff]
    %v1563 = vld [vmem:[%s1 + $0x2d00] sm:$0xff]
    %v1564 = vld [vmem:[%s1 + $0x2d08] sm:$0xff]
    %v1565 = vld [vmem:[%s1 + $0x2d10] sm:$0xff]
    %v1566 = vld [vmem:[%s1 + $0x2d18] sm:$0xff]
    %v1567 = vld [vmem:[%s1 + $0x2d20] sm:$0xff]
    %v1568 = vld [vmem:[%s1 + $0x2d28] sm:$0xff]
    %v1569 = vld [vmem:[%s1 + $0x2d30] sm:$0xff]
    %v1570 = vld [vmem:[%s1 + $0x2d38] sm:$0xff]
    %v1571 = vld [vmem:[%s1 + $0x2d40] sm:$0xff]
    %v1572 = vld [vmem:[%s1 + $0x2d48] sm:$0xff]
    %v1573 = vld [vmem:[%s1 + $0x2d50] sm:$0xff]
    %v1574 = vld [vmem:[%s1 + $0x2d58] sm:$0xff]
    %v1575 = vld [vmem:[%s1 + $0x2d60] sm:$0xff]
    %v1576 = vld [vmem:[%s1 + $0x2d68] sm:$0xff]
    %v1577 = vld [vmem:[%s1 + $0x2d70] sm:$0xff]
    %v1578 = vld [vmem:[%s1 + $0x2d78] sm:$0xff]
    %v1579 = vld [vmem:[%s1 + $0x2d80] sm:$0xff]
    %v1580 = vld [vmem:[%s1 + $0x2d88] sm:$0xff]
    %v1581 = vld [vmem:[%s1 + $0x2d90] sm:$0xff]
    %v1582 = vld [vmem:[%s1 + $0x2d98] sm:$0xff]
    %v1583 = vld [vmem:[%s1 + $0x2da0] sm:$0xff]
    %v1584 = vld [vmem:[%s1 + $0x2da8] sm:$0xff]
    %v1585 = vld [vmem:[%s1 + $0x2db0] sm:$0xff]
    %v1586 = vld [vmem:[%s1 + $0x2db8] sm:$0xff]
    %v1587 = vld [vmem:[%s1 + $0x2dc0] sm:$0xff]
    %v1588 = vld [vmem:[%s1 + $0x2dc8] sm:$0xff]
    %v1589 = vld [vmem:[%s1 + $0x2dd0] sm:$0xff]
    %v1590 = vld [vmem:[%s1 + $0x2dd8] sm:$0xff]
    %v1591 = vld [vmem:[%s1 + $0x2de0] sm:$0xff]
    %v1592 = vld [vmem:[%s1 + $0x2de8] sm:$0xff]
    %v1593 = vld [vmem:[%s1 + $0x2df0] sm:$0xff]
    %v1594 = vld [vmem:[%s1 + $0x2df8] sm:$0xff]
    %v1595 = vld [vmem:[%s1 + $0x2e00] sm:$0xff]
    %v1596 = vld [vmem:[%s1 + $0x2e08] sm:$0xff]
    %v1597 = vld [vmem:[%s1 + $0x2e10] sm:$0xff]
    %v1598 = vld [vmem:[%s1 + $0x2e18] sm:$0xff]
    %v1599 = vld [vmem:[%s1 + $0x2e20] sm:$0xff]
    %v1600 = vld [vmem:[%s1 + $0x2e28] sm:$0xff]
    %v1601 = vld [vmem:[%s1 + $0x2e30] sm:$0xff]
    %v1602 = vld [vmem:[%s1 + $0x2e38] sm:$0xff]
    %v1603 = vld [vmem:[%s1 + $0x2e40] sm:$0xff]
    %v1604 = vld [vmem:[%s1 + $0x2e48] sm:$0xff]
    %v1605 = vld [vmem:[%s1 + $0x2e50] sm:$0xff]
    %v1606 = vld [vmem:[%s1 + $0x2e58] sm:$0xff]
    %v1607 = vld [vmem:[%s1 + $0x2e60] sm:$0xff]
    %v1608 = vld [vmem:[%s1 + $0x2e68] sm:$0xff]
    %v1609 = vld [vmem:[%s1 + $0x2e70] sm:$0xff]
    %v1610 = vld [vmem:[%s1 + $0x2e78] sm:$0xff]
    %v1611 = vld [vmem:[%s1 + $0x2e80] sm:$0xff]
    %v1612 = vld [vmem:[%s1 + $0x2e88] sm:$0xff]
    %v1613 = vld [vmem:[%s1 + $0x2e90] sm:$0xff]
    %v1614 = vld [vmem:[%s1 + $0x2e98] sm:$0xff]
    %v1615 = vld [vmem:[%s1 + $0x2ea0] sm:$0xff]
    %v1616 = vld [vmem:[%s1 + $0x2ea8] sm:$0xff]
    %v1617 = vld [vmem:[%s1 + $0x2eb0] sm:$0xff]
    %v1618 = vld [vmem:[%s1 + $0x2eb8] sm:$0xff]
    %v1619 = vld [vmem:[%s1 + $0x2ec0] sm:$0xff]
    %v1620 = vld [vmem:[%s1 + $0x2ec8] sm:$0xff]
    %v1621 = vld [vmem:[%s1 + $0x2ed0] sm:$0xff]
    %v1622 = vld [vmem:[%s1 + $0x2ed8] sm:$0xff]
    %v1623 = vld [vmem:[%s1 + $0x2ee0] sm:$0xff]
    %v1624 = vld [vmem:[%s1 + $0x2ee8] sm:$0xff]
    %v1625 = vld [vmem:[%s1 + $0x2ef0] sm:$0xff]
    %v1626 = vld [vmem:[%s1 + $0x2ef8] sm:$0xff]
    %v1627 = vld [vmem:[%s1 + $0x2f00] sm:$0xff]
    %v1628 = vld [vmem:[%s1 + $0x2f08] sm:$0xff]
    %v1629 = vld [vmem:[%s1 + $0x2f10] sm:$0xff]
    %v1630 = vld [vmem:[%s1 + $0x2f18] sm:$0xff]
    %v1631 = vld [vmem:[%s1 + $0x2f20] sm:$0xff]
    %v1632 = vld [vmem:[%s1 + $0x2f28] sm:$0xff]
    %v1633 = vld [vmem:[%s1 + $0x2f30] sm:$0xff]
    %v1634 = vld [vmem:[%s1 + $0x2f38] sm:$0xff]
    %v1635 = vld [vmem:[%s1 + $0x2f40] sm:$0xff]
    %v1636 = vld [vmem:[%s1 + $0x2f48] sm:$0xff]
    %v1637 = vld [vmem:[%s1 + $0x2f50] sm:$0xff]
    %v1638 = vld [vmem:[%s1 + $0x2f58] sm:$0xff]
    %v1639 = vld [vmem:[%s1 + $0x2f60] sm:$0xff]
    %v1640 = vld [vmem:[%s1 + $0x2f68] sm:$0xff]
    %v1641 = vld [vmem:[%s1 + $0x2f70] sm:$0xff]
    %v1642 = vld [vmem:[%s1 + $0x2f78] sm:$0xff]
    %v1643 = vld [vmem:[%s1 + $0x2f80] sm:$0xff]
    %v1644 = vld [vmem:[%s1 + $0x2f88] sm:$0xff]
    %v1645 = vld [vmem:[%s1 + $0x2f90] sm:$0xff]
    %v1646 = vld [vmem:[%s1 + $0x2f98] sm:$0xff]
    %v1647 = vld [vmem:[%s1 + $0x2fa0] sm:$0xff]
    %v1648 = vld [vmem:[%s1 + $0x2fa8] sm:$0xff]
    %v1649 = vld [vmem:[%s1 + $0x2fb0] sm:$0xff]
    %v1650 = vld [vmem:[%s1 + $0x2fb8] sm:$0xff]
    %v1651 = vld [vmem:[%s1 + $0x2fc0] sm:$0xff]
    %v1652 = vld [vmem:[%s1 + $0x2fc8] sm:$0xff]
    %v1653 = vld [vmem:[%s1 + $0x2fd0] sm:$0xff]
    %v1654 = vld [vmem:[%s1 + $0x2fd8] sm:$0xff]
    %v1655 = vld [vmem:[%s1 + $0x2fe0] sm:$0xff]
    %v1656 = vld [vmem:[%s1 + $0x2fe8] sm:$0xff]
    %v1657 = vld [vmem:[%s1 + $0x2ff0] sm:$0xff]
    %v1658 = vld [vmem:[%s1 + $0x2ff8] sm:$0xff]
    %v1659 = vld [vmem:[%s2] sm:$0x1]
    %v1661 = vlaneseq
    %v1662 = vshrl.u32 %v1661, 7
    %v1663 = vsub.s32 0, %v1662
    %v1664 = vrot.slane %v1659, %v1663
    %v1762 = vcombine.low %v27, %v51
    %v1763 = vcombine.high %v27, %v51
    %v1764 = vcombine.low %v75, %v99
    %v1765 = vcombine.high %v75, %v99
    %v1767 = vunpack.c.l.s4 1983009808
    %v1768 = vunpack.c.0.s8 %v1767
    %v1769 = vlaneseq
    %v1770 = vshrl.u32 %v1769, 7
    %v1771 = vsub.s32 %v1768, %v1770
    %v1772 = vrot.slane %v1762, %v1771
    %v1774 = vunpack.c.l.s4 1983009808
    %v1775 = vunpack.c.0.s8 %v1774
    %v1776 = vlaneseq
    %v1777 = vshrl.u32 %v1776, 7
    %v1778 = vsub.s32 %v1775, %v1777
    %v1779 = vrot.slane %v1763, %v1778
    %v1781 = vunpack.c.l.s4 1983009808
    %v1782 = vunpack.c.0.s8 %v1781
    %v1783 = vlaneseq
    %v1784 = vshrl.u32 %v1783, 7
    %v1785 = vsub.s32 %v1782, %v1784
    %v1786 = vrot.slane %v1764, %v1785
    %v1788 = vunpack.c.l.s4 1983009808
    %v1789 = vunpack.c.0.s8 %v1788
    %v1790 = vlaneseq
    %v1791 = vshrl.u32 %v1790, 7
    %v1792 = vsub.s32 %v1789, %v1791
    %v1793 = vrot.slane %v1765, %v1792
    %v1794 = vcombine.low %v1772, %v1786
    %v1795 = vcombine.high %v1772, %v1786
    %v1796 = vcombine.low %v1779, %v1793
    %v1797 = vcombine.high %v1779, %v1793
    %v1798 = vcombine.low %v28, %v52
    %v1799 = vcombine.high %v28, %v52
    %v1800 = vcombine.low %v76, %v100
    %v1801 = vcombine.high %v76, %v100
    %v1803 = vunpack.c.l.s4 1983009808
    %v1804 = vunpack.c.0.s8 %v1803
    %v1805 = vlaneseq
    %v1806 = vshrl.u32 %v1805, 7
    %v1807 = vsub.s32 %v1804, %v1806
    %v1808 = vrot.slane %v1798, %v1807
    %v1810 = vunpack.c.l.s4 1983009808
    %v1811 = vunpack.c.0.s8 %v1810
    %v1812 = vlaneseq
    %v1813 = vshrl.u32 %v1812, 7
    %v1814 = vsub.s32 %v1811, %v1813
    %v1815 = vrot.slane %v1799, %v1814
    %v1817 = vunpack.c.l.s4 1983009808
    %v1818 = vunpack.c.0.s8 %v1817
    %v1819 = vlaneseq
    %v1820 = vshrl.u32 %v1819, 7
    %v1821 = vsub.s32 %v1818, %v1820
    %v1822 = vrot.slane %v1800, %v1821
    %v1824 = vunpack.c.l.s4 1983009808
    %v1825 = vunpack.c.0.s8 %v1824
    %v1826 = vlaneseq
    %v1827 = vshrl.u32 %v1826, 7
    %v1828 = vsub.s32 %v1825, %v1827
    %v1829 = vrot.slane %v1801, %v1828
    %v1830 = vcombine.low %v1808, %v1822
    %v1831 = vcombine.high %v1808, %v1822
    %v1832 = vcombine.low %v1815, %v1829
    %v1833 = vcombine.high %v1815, %v1829
    %v1834 = vcombine.low %v29, %v53
    %v1835 = vcombine.high %v29, %v53
    %v1836 = vcombine.low %v77, %v101
    %v1837 = vcombine.high %v77, %v101
    %v1839 = vunpack.c.l.s4 1983009808
    %v1840 = vunpack.c.0.s8 %v1839
    %v1841 = vlaneseq
    %v1842 = vshrl.u32 %v1841, 7
    %v1843 = vsub.s32 %v1840, %v1842
    %v1844 = vrot.slane %v1834, %v1843
    %v1846 = vunpack.c.l.s4 1983009808
    %v1847 = vunpack.c.0.s8 %v1846
    %v1848 = vlaneseq
    %v1849 = vshrl.u32 %v1848, 7
    %v1850 = vsub.s32 %v1847, %v1849
    %v1851 = vrot.slane %v1835, %v1850
    %v1853 = vunpack.c.l.s4 1983009808
    %v1854 = vunpack.c.0.s8 %v1853
    %v1855 = vlaneseq
    %v1856 = vshrl.u32 %v1855, 7
    %v1857 = vsub.s32 %v1854, %v1856
    %v1858 = vrot.slane %v1836, %v1857
    %v1860 = vunpack.c.l.s4 1983009808
    %v1861 = vunpack.c.0.s8 %v1860
    %v1862 = vlaneseq
    %v1863 = vshrl.u32 %v1862, 7
    %v1864 = vsub.s32 %v1861, %v1863
    %v1865 = vrot.slane %v1837, %v1864
    %v1866 = vcombine.low %v1844, %v1858
    %v1867 = vcombine.high %v1844, %v1858
    %v1868 = vcombine.low %v1851, %v1865
    %v1869 = vcombine.high %v1851, %v1865
    %v1870 = vcombine.low %v30, %v54
    %v1871 = vcombine.high %v30, %v54
    %v1872 = vcombine.low %v78, %v102
    %v1873 = vcombine.high %v78, %v102
    %v1875 = vunpack.c.l.s4 1983009808
    %v1876 = vunpack.c.0.s8 %v1875
    %v1877 = vlaneseq
    %v1878 = vshrl.u32 %v1877, 7
    %v1879 = vsub.s32 %v1876, %v1878
    %v1880 = vrot.slane %v1870, %v1879
    %v1882 = vunpack.c.l.s4 1983009808
    %v1883 = vunpack.c.0.s8 %v1882
    %v1884 = vlaneseq
    %v1885 = vshrl.u32 %v1884, 7
    %v1886 = vsub.s32 %v1883, %v1885
    %v1887 = vrot.slane %v1871, %v1886
    %v1889 = vunpack.c.l.s4 1983009808
    %v1890 = vunpack.c.0.s8 %v1889
    %v1891 = vlaneseq
    %v1892 = vshrl.u32 %v1891, 7
    %v1893 = vsub.s32 %v1890, %v1892
    %v1894 = vrot.slane %v1872, %v1893
    %v1896 = vunpack.c.l.s4 1983009808
    %v1897 = vunpack.c.0.s8 %v1896
    %v1898 = vlaneseq
    %v1899 = vshrl.u32 %v1898, 7
    %v1900 = vsub.s32 %v1897, %v1899
    %v1901 = vrot.slane %v1873, %v1900
    %v1902 = vcombine.low %v1880, %v1894
    %v1903 = vcombine.high %v1880, %v1894
    %v1904 = vcombine.low %v1887, %v1901
    %v1905 = vcombine.high %v1887, %v1901
    %v1906 = vcombine.low %v31, %v55
    %v1907 = vcombine.high %v31, %v55
    %v1908 = vcombine.low %v79, %v103
    %v1909 = vcombine.high %v79, %v103
    %v1911 = vunpack.c.l.s4 1983009808
    %v1912 = vunpack.c.0.s8 %v1911
    %v1913 = vlaneseq
    %v1914 = vshrl.u32 %v1913, 7
    %v1915 = vsub.s32 %v1912, %v1914
    %v1916 = vrot.slane %v1906, %v1915
    %v1918 = vunpack.c.l.s4 1983009808
    %v1919 = vunpack.c.0.s8 %v1918
    %v1920 = vlaneseq
    %v1921 = vshrl.u32 %v1920, 7
    %v1922 = vsub.s32 %v1919, %v1921
    %v1923 = vrot.slane %v1907, %v1922
    %v1925 = vunpack.c.l.s4 1983009808
    %v1926 = vunpack.c.0.s8 %v1925
    %v1927 = vlaneseq
    %v1928 = vshrl.u32 %v1927, 7
    %v1929 = vsub.s32 %v1926, %v1928
    %v1930 = vrot.slane %v1908, %v1929
    %v1932 = vunpack.c.l.s4 1983009808
    %v1933 = vunpack.c.0.s8 %v1932
    %v1934 = vlaneseq
    %v1935 = vshrl.u32 %v1934, 7
    %v1936 = vsub.s32 %v1933, %v1935
    %v1937 = vrot.slane %v1909, %v1936
    %v1938 = vcombine.low %v1916, %v1930
    %v1939 = vcombine.high %v1916, %v1930
    %v1940 = vcombine.low %v1923, %v1937
    %v1941 = vcombine.high %v1923, %v1937
    %v1942 = vcombine.low %v32, %v56
    %v1943 = vcombine.high %v32, %v56
    %v1944 = vcombine.low %v80, %v104
    %v1945 = vcombine.high %v80, %v104
    %v1947 = vunpack.c.l.s4 1983009808
    %v1948 = vunpack.c.0.s8 %v1947
    %v1949 = vlaneseq
    %v1950 = vshrl.u32 %v1949, 7
    %v1951 = vsub.s32 %v1948, %v1950
    %v1952 = vrot.slane %v1942, %v1951
    %v1954 = vunpack.c.l.s4 1983009808
    %v1955 = vunpack.c.0.s8 %v1954
    %v1956 = vlaneseq
    %v1957 = vshrl.u32 %v1956, 7
    %v1958 = vsub.s32 %v1955, %v1957
    %v1959 = vrot.slane %v1943, %v1958
    %v1961 = vunpack.c.l.s4 1983009808
    %v1962 = vunpack.c.0.s8 %v1961
    %v1963 = vlaneseq
    %v1964 = vshrl.u32 %v1963, 7
    %v1965 = vsub.s32 %v1962, %v1964
    %v1966 = vrot.slane %v1944, %v1965
    %v1968 = vunpack.c.l.s4 1983009808
    %v1969 = vunpack.c.0.s8 %v1968
    %v1970 = vlaneseq
    %v1971 = vshrl.u32 %v1970, 7
    %v1972 = vsub.s32 %v1969, %v1971
    %v1973 = vrot.slane %v1945, %v1972
    %v1974 = vcombine.low %v1952, %v1966
    %v1975 = vcombine.high %v1952, %v1966
    %v1976 = vcombine.low %v1959, %v1973
    %v1977 = vcombine.high %v1959, %v1973
    %v1978 = vcombine.low %v33, %v57
    %v1979 = vcombine.high %v33, %v57
    %v1980 = vcombine.low %v81, %v105
    %v1981 = vcombine.high %v81, %v105
    %v1983 = vunpack.c.l.s4 1983009808
    %v1984 = vunpack.c.0.s8 %v1983
    %v1985 = vlaneseq
    %v1986 = vshrl.u32 %v1985, 7
    %v1987 = vsub.s32 %v1984, %v1986
    %v1988 = vrot.slane %v1978, %v1987
    %v1990 = vunpack.c.l.s4 1983009808
    %v1991 = vunpack.c.0.s8 %v1990
    %v1992 = vlaneseq
    %v1993 = vshrl.u32 %v1992, 7
    %v1994 = vsub.s32 %v1991, %v1993
    %v1995 = vrot.slane %v1979, %v1994
    %v1997 = vunpack.c.l.s4 1983009808
    %v1998 = vunpack.c.0.s8 %v1997
    %v1999 = vlaneseq
    %v2000 = vshrl.u32 %v1999, 7
    %v2001 = vsub.s32 %v1998, %v2000
    %v2002 = vrot.slane %v1980, %v2001
    %v2004 = vunpack.c.l.s4 1983009808
    %v2005 = vunpack.c.0.s8 %v2004
    %v2006 = vlaneseq
    %v2007 = vshrl.u32 %v2006, 7
    %v2008 = vsub.s32 %v2005, %v2007
    %v2009 = vrot.slane %v1981, %v2008
    %v2010 = vcombine.low %v1988, %v2002
    %v2011 = vcombine.high %v1988, %v2002
    %v2012 = vcombine.low %v1995, %v2009
    %v2013 = vcombine.high %v1995, %v2009
    %v2014 = vcombine.low %v34, %v58
    %v2015 = vcombine.high %v34, %v58
    %v2016 = vcombine.low %v82, %v106
    %v2017 = vcombine.high %v82, %v106
    %v2019 = vunpack.c.l.s4 1983009808
    %v2020 = vunpack.c.0.s8 %v2019
    %v2021 = vlaneseq
    %v2022 = vshrl.u32 %v2021, 7
    %v2023 = vsub.s32 %v2020, %v2022
    %v2024 = vrot.slane %v2014, %v2023
    %v2026 = vunpack.c.l.s4 1983009808
    %v2027 = vunpack.c.0.s8 %v2026
    %v2028 = vlaneseq
    %v2029 = vshrl.u32 %v2028, 7
    %v2030 = vsub.s32 %v2027, %v2029
    %v2031 = vrot.slane %v2015, %v2030
    %v2033 = vunpack.c.l.s4 1983009808
    %v2034 = vunpack.c.0.s8 %v2033
    %v2035 = vlaneseq
    %v2036 = vshrl.u32 %v2035, 7
    %v2037 = vsub.s32 %v2034, %v2036
    %v2038 = vrot.slane %v2016, %v2037
    %v2040 = vunpack.c.l.s4 1983009808
    %v2041 = vunpack.c.0.s8 %v2040
    %v2042 = vlaneseq
    %v2043 = vshrl.u32 %v2042, 7
    %v2044 = vsub.s32 %v2041, %v2043
    %v2045 = vrot.slane %v2017, %v2044
    %v2046 = vcombine.low %v2024, %v2038
    %v2047 = vcombine.high %v2024, %v2038
    %v2048 = vcombine.low %v2031, %v2045
    %v2049 = vcombine.high %v2031, %v2045
    %v2050 = vcombine.low %v35, %v59
    %v2051 = vcombine.high %v35, %v59
    %v2052 = vcombine.low %v83, %v107
    %v2053 = vcombine.high %v83, %v107
    %v2055 = vunpack.c.l.s4 1983009808
    %v2056 = vunpack.c.0.s8 %v2055
    %v2057 = vlaneseq
    %v2058 = vshrl.u32 %v2057, 7
    %v2059 = vsub.s32 %v2056, %v2058
    %v2060 = vrot.slane %v2050, %v2059
    %v2062 = vunpack.c.l.s4 1983009808
    %v2063 = vunpack.c.0.s8 %v2062
    %v2064 = vlaneseq
    %v2065 = vshrl.u32 %v2064, 7
    %v2066 = vsub.s32 %v2063, %v2065
    %v2067 = vrot.slane %v2051, %v2066
    %v2069 = vunpack.c.l.s4 1983009808
    %v2070 = vunpack.c.0.s8 %v2069
    %v2071 = vlaneseq
    %v2072 = vshrl.u32 %v2071, 7
    %v2073 = vsub.s32 %v2070, %v2072
    %v2074 = vrot.slane %v2052, %v2073
    %v2076 = vunpack.c.l.s4 1983009808
    %v2077 = vunpack.c.0.s8 %v2076
    %v2078 = vlaneseq
    %v2079 = vshrl.u32 %v2078, 7
    %v2080 = vsub.s32 %v2077, %v2079
    %v2081 = vrot.slane %v2053, %v2080
    %v2082 = vcombine.low %v2060, %v2074
    %v2083 = vcombine.high %v2060, %v2074
    %v2084 = vcombine.low %v2067, %v2081
    %v2085 = vcombine.high %v2067, %v2081
    %v2086 = vcombine.low %v36, %v60
    %v2087 = vcombine.high %v36, %v60
    %v2088 = vcombine.low %v84, %v108
    %v2089 = vcombine.high %v84, %v108
    %v2091 = vunpack.c.l.s4 1983009808
    %v2092 = vunpack.c.0.s8 %v2091
    %v2093 = vlaneseq
    %v2094 = vshrl.u32 %v2093, 7
    %v2095 = vsub.s32 %v2092, %v2094
    %v2096 = vrot.slane %v2086, %v2095
    %v2098 = vunpack.c.l.s4 1983009808
    %v2099 = vunpack.c.0.s8 %v2098
    %v2100 = vlaneseq
    %v2101 = vshrl.u32 %v2100, 7
    %v2102 = vsub.s32 %v2099, %v2101
    %v2103 = vrot.slane %v2087, %v2102
    %v2105 = vunpack.c.l.s4 1983009808
    %v2106 = vunpack.c.0.s8 %v2105
    %v2107 = vlaneseq
    %v2108 = vshrl.u32 %v2107, 7
    %v2109 = vsub.s32 %v2106, %v2108
    %v2110 = vrot.slane %v2088, %v2109
    %v2112 = vunpack.c.l.s4 1983009808
    %v2113 = vunpack.c.0.s8 %v2112
    %v2114 = vlaneseq
    %v2115 = vshrl.u32 %v2114, 7
    %v2116 = vsub.s32 %v2113, %v2115
    %v2117 = vrot.slane %v2089, %v2116
    %v2118 = vcombine.low %v2096, %v2110
    %v2119 = vcombine.high %v2096, %v2110
    %v2120 = vcombine.low %v2103, %v2117
    %v2121 = vcombine.high %v2103, %v2117
    %v2122 = vcombine.low %v37, %v61
    %v2123 = vcombine.high %v37, %v61
    %v2124 = vcombine.low %v85, %v109
    %v2125 = vcombine.high %v85, %v109
    %v2127 = vunpack.c.l.s4 1983009808
    %v2128 = vunpack.c.0.s8 %v2127
    %v2129 = vlaneseq
    %v2130 = vshrl.u32 %v2129, 7
    %v2131 = vsub.s32 %v2128, %v2130
    %v2132 = vrot.slane %v2122, %v2131
    %v2134 = vunpack.c.l.s4 1983009808
    %v2135 = vunpack.c.0.s8 %v2134
    %v2136 = vlaneseq
    %v2137 = vshrl.u32 %v2136, 7
    %v2138 = vsub.s32 %v2135, %v2137
    %v2139 = vrot.slane %v2123, %v2138
    %v2141 = vunpack.c.l.s4 1983009808
    %v2142 = vunpack.c.0.s8 %v2141
    %v2143 = vlaneseq
    %v2144 = vshrl.u32 %v2143, 7
    %v2145 = vsub.s32 %v2142, %v2144
    %v2146 = vrot.slane %v2124, %v2145
    %v2148 = vunpack.c.l.s4 1983009808
    %v2149 = vunpack.c.0.s8 %v2148
    %v2150 = vlaneseq
    %v2151 = vshrl.u32 %v2150, 7
    %v2152 = vsub.s32 %v2149, %v2151
    %v2153 = vrot.slane %v2125, %v2152
    %v2154 = vcombine.low %v2132, %v2146
    %v2155 = vcombine.high %v2132, %v2146
    %v2156 = vcombine.low %v2139, %v2153
    %v2157 = vcombine.high %v2139, %v2153
    %v2158 = vcombine.low %v38, %v62
    %v2159 = vcombine.high %v38, %v62
    %v2160 = vcombine.low %v86, %v110
    %v2161 = vcombine.high %v86, %v110
    %v2163 = vunpack.c.l.s4 1983009808
    %v2164 = vunpack.c.0.s8 %v2163
    %v2165 = vlaneseq
    %v2166 = vshrl.u32 %v2165, 7
    %v2167 = vsub.s32 %v2164, %v2166
    %v2168 = vrot.slane %v2158, %v2167
    %v2170 = vunpack.c.l.s4 1983009808
    %v2171 = vunpack.c.0.s8 %v2170
    %v2172 = vlaneseq
    %v2173 = vshrl.u32 %v2172, 7
    %v2174 = vsub.s32 %v2171, %v2173
    %v2175 = vrot.slane %v2159, %v2174
    %v2177 = vunpack.c.l.s4 1983009808
    %v2178 = vunpack.c.0.s8 %v2177
    %v2179 = vlaneseq
    %v2180 = vshrl.u32 %v2179, 7
    %v2181 = vsub.s32 %v2178, %v2180
    %v2182 = vrot.slane %v2160, %v2181
    %v2184 = vunpack.c.l.s4 1983009808
    %v2185 = vunpack.c.0.s8 %v2184
    %v2186 = vlaneseq
    %v2187 = vshrl.u32 %v2186, 7
    %v2188 = vsub.s32 %v2185, %v2187
    %v2189 = vrot.slane %v2161, %v2188
    %v2190 = vcombine.low %v2168, %v2182
    %v2191 = vcombine.high %v2168, %v2182
    %v2192 = vcombine.low %v2175, %v2189
    %v2193 = vcombine.high %v2175, %v2189
    %v2194 = vcombine.low %v39, %v63
    %v2195 = vcombine.high %v39, %v63
    %v2196 = vcombine.low %v87, %v111
    %v2197 = vcombine.high %v87, %v111
    %v2199 = vunpack.c.l.s4 1983009808
    %v2200 = vunpack.c.0.s8 %v2199
    %v2201 = vlaneseq
    %v2202 = vshrl.u32 %v2201, 7
    %v2203 = vsub.s32 %v2200, %v2202
    %v2204 = vrot.slane %v2194, %v2203
    %v2206 = vunpack.c.l.s4 1983009808
    %v2207 = vunpack.c.0.s8 %v2206
    %v2208 = vlaneseq
    %v2209 = vshrl.u32 %v2208, 7
    %v2210 = vsub.s32 %v2207, %v2209
    %v2211 = vrot.slane %v2195, %v2210
    %v2213 = vunpack.c.l.s4 1983009808
    %v2214 = vunpack.c.0.s8 %v2213
    %v2215 = vlaneseq
    %v2216 = vshrl.u32 %v2215, 7
    %v2217 = vsub.s32 %v2214, %v2216
    %v2218 = vrot.slane %v2196, %v2217
    %v2220 = vunpack.c.l.s4 1983009808
    %v2221 = vunpack.c.0.s8 %v2220
    %v2222 = vlaneseq
    %v2223 = vshrl.u32 %v2222, 7
    %v2224 = vsub.s32 %v2221, %v2223
    %v2225 = vrot.slane %v2197, %v2224
    %v2226 = vcombine.low %v2204, %v2218
    %v2227 = vcombine.high %v2204, %v2218
    %v2228 = vcombine.low %v2211, %v2225
    %v2229 = vcombine.high %v2211, %v2225
    %v2230 = vcombine.low %v40, %v64
    %v2231 = vcombine.high %v40, %v64
    %v2232 = vcombine.low %v88, %v112
    %v2233 = vcombine.high %v88, %v112
    %v2235 = vunpack.c.l.s4 1983009808
    %v2236 = vunpack.c.0.s8 %v2235
    %v2237 = vlaneseq
    %v2238 = vshrl.u32 %v2237, 7
    %v2239 = vsub.s32 %v2236, %v2238
    %v2240 = vrot.slane %v2230, %v2239
    %v2242 = vunpack.c.l.s4 1983009808
    %v2243 = vunpack.c.0.s8 %v2242
    %v2244 = vlaneseq
    %v2245 = vshrl.u32 %v2244, 7
    %v2246 = vsub.s32 %v2243, %v2245
    %v2247 = vrot.slane %v2231, %v2246
    %v2249 = vunpack.c.l.s4 1983009808
    %v2250 = vunpack.c.0.s8 %v2249
    %v2251 = vlaneseq
    %v2252 = vshrl.u32 %v2251, 7
    %v2253 = vsub.s32 %v2250, %v2252
    %v2254 = vrot.slane %v2232, %v2253
    %v2256 = vunpack.c.l.s4 1983009808
    %v2257 = vunpack.c.0.s8 %v2256
    %v2258 = vlaneseq
    %v2259 = vshrl.u32 %v2258, 7
    %v2260 = vsub.s32 %v2257, %v2259
    %v2261 = vrot.slane %v2233, %v2260
    %v2262 = vcombine.low %v2240, %v2254
    %v2263 = vcombine.high %v2240, %v2254
    %v2264 = vcombine.low %v2247, %v2261
    %v2265 = vcombine.high %v2247, %v2261
    %v2266 = vcombine.low %v41, %v65
    %v2267 = vcombine.high %v41, %v65
    %v2268 = vcombine.low %v89, %v113
    %v2269 = vcombine.high %v89, %v113
    %v2271 = vunpack.c.l.s4 1983009808
    %v2272 = vunpack.c.0.s8 %v2271
    %v2273 = vlaneseq
    %v2274 = vshrl.u32 %v2273, 7
    %v2275 = vsub.s32 %v2272, %v2274
    %v2276 = vrot.slane %v2266, %v2275
    %v2278 = vunpack.c.l.s4 1983009808
    %v2279 = vunpack.c.0.s8 %v2278
    %v2280 = vlaneseq
    %v2281 = vshrl.u32 %v2280, 7
    %v2282 = vsub.s32 %v2279, %v2281
    %v2283 = vrot.slane %v2267, %v2282
    %v2285 = vunpack.c.l.s4 1983009808
    %v2286 = vunpack.c.0.s8 %v2285
    %v2287 = vlaneseq
    %v2288 = vshrl.u32 %v2287, 7
    %v2289 = vsub.s32 %v2286, %v2288
    %v2290 = vrot.slane %v2268, %v2289
    %v2292 = vunpack.c.l.s4 1983009808
    %v2293 = vunpack.c.0.s8 %v2292
    %v2294 = vlaneseq
    %v2295 = vshrl.u32 %v2294, 7
    %v2296 = vsub.s32 %v2293, %v2295
    %v2297 = vrot.slane %v2269, %v2296
    %v2298 = vcombine.low %v2276, %v2290
    %v2299 = vcombine.high %v2276, %v2290
    %v2300 = vcombine.low %v2283, %v2297
    %v2301 = vcombine.high %v2283, %v2297
    %v2302 = vcombine.low %v42, %v66
    %v2303 = vcombine.high %v42, %v66
    %v2304 = vcombine.low %v90, %v114
    %v2305 = vcombine.high %v90, %v114
    %v2307 = vunpack.c.l.s4 1983009808
    %v2308 = vunpack.c.0.s8 %v2307
    %v2309 = vlaneseq
    %v2310 = vshrl.u32 %v2309, 7
    %v2311 = vsub.s32 %v2308, %v2310
    %v2312 = vrot.slane %v2302, %v2311
    %v2314 = vunpack.c.l.s4 1983009808
    %v2315 = vunpack.c.0.s8 %v2314
    %v2316 = vlaneseq
    %v2317 = vshrl.u32 %v2316, 7
    %v2318 = vsub.s32 %v2315, %v2317
    %v2319 = vrot.slane %v2303, %v2318
    %v2321 = vunpack.c.l.s4 1983009808
    %v2322 = vunpack.c.0.s8 %v2321
    %v2323 = vlaneseq
    %v2324 = vshrl.u32 %v2323, 7
    %v2325 = vsub.s32 %v2322, %v2324
    %v2326 = vrot.slane %v2304, %v2325
    %v2328 = vunpack.c.l.s4 1983009808
    %v2329 = vunpack.c.0.s8 %v2328
    %v2330 = vlaneseq
    %v2331 = vshrl.u32 %v2330, 7
    %v2332 = vsub.s32 %v2329, %v2331
    %v2333 = vrot.slane %v2305, %v2332
    %v2334 = vcombine.low %v2312, %v2326
    %v2335 = vcombine.high %v2312, %v2326
    %v2336 = vcombine.low %v2319, %v2333
    %v2337 = vcombine.high %v2319, %v2333
    %v2338 = vcombine.low %v43, %v67
    %v2339 = vcombine.high %v43, %v67
    %v2340 = vcombine.low %v91, %v115
    %v2341 = vcombine.high %v91, %v115
    %v2343 = vunpack.c.l.s4 1983009808
    %v2344 = vunpack.c.0.s8 %v2343
    %v2345 = vlaneseq
    %v2346 = vshrl.u32 %v2345, 7
    %v2347 = vsub.s32 %v2344, %v2346
    %v2348 = vrot.slane %v2338, %v2347
    %v2350 = vunpack.c.l.s4 1983009808
    %v2351 = vunpack.c.0.s8 %v2350
    %v2352 = vlaneseq
    %v2353 = vshrl.u32 %v2352, 7
    %v2354 = vsub.s32 %v2351, %v2353
    %v2355 = vrot.slane %v2339, %v2354
    %v2357 = vunpack.c.l.s4 1983009808
    %v2358 = vunpack.c.0.s8 %v2357
    %v2359 = vlaneseq
    %v2360 = vshrl.u32 %v2359, 7
    %v2361 = vsub.s32 %v2358, %v2360
    %v2362 = vrot.slane %v2340, %v2361
    %v2364 = vunpack.c.l.s4 1983009808
    %v2365 = vunpack.c.0.s8 %v2364
    %v2366 = vlaneseq
    %v2367 = vshrl.u32 %v2366, 7
    %v2368 = vsub.s32 %v2365, %v2367
    %v2369 = vrot.slane %v2341, %v2368
    %v2370 = vcombine.low %v2348, %v2362
    %v2371 = vcombine.high %v2348, %v2362
    %v2372 = vcombine.low %v2355, %v2369
    %v2373 = vcombine.high %v2355, %v2369
    %v2374 = vcombine.low %v44, %v68
    %v2375 = vcombine.high %v44, %v68
    %v2376 = vcombine.low %v92, %v116
    %v2377 = vcombine.high %v92, %v116
    %v2379 = vunpack.c.l.s4 1983009808
    %v2380 = vunpack.c.0.s8 %v2379
    %v2381 = vlaneseq
    %v2382 = vshrl.u32 %v2381, 7
    %v2383 = vsub.s32 %v2380, %v2382
    %v2384 = vrot.slane %v2374, %v2383
    %v2386 = vunpack.c.l.s4 1983009808
    %v2387 = vunpack.c.0.s8 %v2386
    %v2388 = vlaneseq
    %v2389 = vshrl.u32 %v2388, 7
    %v2390 = vsub.s32 %v2387, %v2389
    %v2391 = vrot.slane %v2375, %v2390
    %v2393 = vunpack.c.l.s4 1983009808
    %v2394 = vunpack.c.0.s8 %v2393
    %v2395 = vlaneseq
    %v2396 = vshrl.u32 %v2395, 7
    %v2397 = vsub.s32 %v2394, %v2396
    %v2398 = vrot.slane %v2376, %v2397
    %v2400 = vunpack.c.l.s4 1983009808
    %v2401 = vunpack.c.0.s8 %v2400
    %v2402 = vlaneseq
    %v2403 = vshrl.u32 %v2402, 7
    %v2404 = vsub.s32 %v2401, %v2403
    %v2405 = vrot.slane %v2377, %v2404
    %v2406 = vcombine.low %v2384, %v2398
    %v2407 = vcombine.high %v2384, %v2398
    %v2408 = vcombine.low %v2391, %v2405
    %v2409 = vcombine.high %v2391, %v2405
    %v2410 = vcombine.low %v45, %v69
    %v2411 = vcombine.high %v45, %v69
    %v2412 = vcombine.low %v93, %v117
    %v2413 = vcombine.high %v93, %v117
    %v2415 = vunpack.c.l.s4 1983009808
    %v2416 = vunpack.c.0.s8 %v2415
    %v2417 = vlaneseq
    %v2418 = vshrl.u32 %v2417, 7
    %v2419 = vsub.s32 %v2416, %v2418
    %v2420 = vrot.slane %v2410, %v2419
    %v2422 = vunpack.c.l.s4 1983009808
    %v2423 = vunpack.c.0.s8 %v2422
    %v2424 = vlaneseq
    %v2425 = vshrl.u32 %v2424, 7
    %v2426 = vsub.s32 %v2423, %v2425
    %v2427 = vrot.slane %v2411, %v2426
    %v2429 = vunpack.c.l.s4 1983009808
    %v2430 = vunpack.c.0.s8 %v2429
    %v2431 = vlaneseq
    %v2432 = vshrl.u32 %v2431, 7
    %v2433 = vsub.s32 %v2430, %v2432
    %v2434 = vrot.slane %v2412, %v2433
    %v2436 = vunpack.c.l.s4 1983009808
    %v2437 = vunpack.c.0.s8 %v2436
    %v2438 = vlaneseq
    %v2439 = vshrl.u32 %v2438, 7
    %v2440 = vsub.s32 %v2437, %v2439
    %v2441 = vrot.slane %v2413, %v2440
    %v2442 = vcombine.low %v2420, %v2434
    %v2443 = vcombine.high %v2420, %v2434
    %v2444 = vcombine.low %v2427, %v2441
    %v2445 = vcombine.high %v2427, %v2441
    %v2446 = vcombine.low %v46, %v70
    %v2447 = vcombine.high %v46, %v70
    %v2448 = vcombine.low %v94, %v118
    %v2449 = vcombine.high %v94, %v118
    %v2451 = vunpack.c.l.s4 1983009808
    %v2452 = vunpack.c.0.s8 %v2451
    %v2453 = vlaneseq
    %v2454 = vshrl.u32 %v2453, 7
    %v2455 = vsub.s32 %v2452, %v2454
    %v2456 = vrot.slane %v2446, %v2455
    %v2458 = vunpack.c.l.s4 1983009808
    %v2459 = vunpack.c.0.s8 %v2458
    %v2460 = vlaneseq
    %v2461 = vshrl.u32 %v2460, 7
    %v2462 = vsub.s32 %v2459, %v2461
    %v2463 = vrot.slane %v2447, %v2462
    %v2465 = vunpack.c.l.s4 1983009808
    %v2466 = vunpack.c.0.s8 %v2465
    %v2467 = vlaneseq
    %v2468 = vshrl.u32 %v2467, 7
    %v2469 = vsub.s32 %v2466, %v2468
    %v2470 = vrot.slane %v2448, %v2469
    %v2472 = vunpack.c.l.s4 1983009808
    %v2473 = vunpack.c.0.s8 %v2472
    %v2474 = vlaneseq
    %v2475 = vshrl.u32 %v2474, 7
    %v2476 = vsub.s32 %v2473, %v2475
    %v2477 = vrot.slane %v2449, %v2476
    %v2478 = vcombine.low %v2456, %v2470
    %v2479 = vcombine.high %v2456, %v2470
    %v2480 = vcombine.low %v2463, %v2477
    %v2481 = vcombine.high %v2463, %v2477
    %v2482 = vcombine.low %v47, %v71
    %v2483 = vcombine.high %v47, %v71
    %v2484 = vcombine.low %v95, %v119
    %v2485 = vcombine.high %v95, %v119
    %v2487 = vunpack.c.l.s4 1983009808
    %v2488 = vunpack.c.0.s8 %v2487
    %v2489 = vlaneseq
    %v2490 = vshrl.u32 %v2489, 7
    %v2491 = vsub.s32 %v2488, %v2490
    %v2492 = vrot.slane %v2482, %v2491
    %v2494 = vunpack.c.l.s4 1983009808
    %v2495 = vunpack.c.0.s8 %v2494
    %v2496 = vlaneseq
    %v2497 = vshrl.u32 %v2496, 7
    %v2498 = vsub.s32 %v2495, %v2497
    %v2499 = vrot.slane %v2483, %v2498
    %v2501 = vunpack.c.l.s4 1983009808
    %v2502 = vunpack.c.0.s8 %v2501
    %v2503 = vlaneseq
    %v2504 = vshrl.u32 %v2503, 7
    %v2505 = vsub.s32 %v2502, %v2504
    %v2506 = vrot.slane %v2484, %v2505
    %v2508 = vunpack.c.l.s4 1983009808
    %v2509 = vunpack.c.0.s8 %v2508
    %v2510 = vlaneseq
    %v2511 = vshrl.u32 %v2510, 7
    %v2512 = vsub.s32 %v2509, %v2511
    %v2513 = vrot.slane %v2485, %v2512
    %v2514 = vcombine.low %v2492, %v2506
    %v2515 = vcombine.high %v2492, %v2506
    %v2516 = vcombine.low %v2499, %v2513
    %v2517 = vcombine.high %v2499, %v2513
    %v2518 = vcombine.low %v48, %v72
    %v2519 = vcombine.high %v48, %v72
    %v2520 = vcombine.low %v96, %v120
    %v2521 = vcombine.high %v96, %v120
    %v2523 = vunpack.c.l.s4 1983009808
    %v2524 = vunpack.c.0.s8 %v2523
    %v2525 = vlaneseq
    %v2526 = vshrl.u32 %v2525, 7
    %v2527 = vsub.s32 %v2524, %v2526
    %v2528 = vrot.slane %v2518, %v2527
    %v2530 = vunpack.c.l.s4 1983009808
    %v2531 = vunpack.c.0.s8 %v2530
    %v2532 = vlaneseq
    %v2533 = vshrl.u32 %v2532, 7
    %v2534 = vsub.s32 %v2531, %v2533
    %v2535 = vrot.slane %v2519, %v2534
    %v2537 = vunpack.c.l.s4 1983009808
    %v2538 = vunpack.c.0.s8 %v2537
    %v2539 = vlaneseq
    %v2540 = vshrl.u32 %v2539, 7
    %v2541 = vsub.s32 %v2538, %v2540
    %v2542 = vrot.slane %v2520, %v2541
    %v2544 = vunpack.c.l.s4 1983009808
    %v2545 = vunpack.c.0.s8 %v2544
    %v2546 = vlaneseq
    %v2547 = vshrl.u32 %v2546, 7
    %v2548 = vsub.s32 %v2545, %v2547
    %v2549 = vrot.slane %v2521, %v2548
    %v2550 = vcombine.low %v2528, %v2542
    %v2551 = vcombine.high %v2528, %v2542
    %v2552 = vcombine.low %v2535, %v2549
    %v2553 = vcombine.high %v2535, %v2549
    %v2554 = vcombine.low %v49, %v73
    %v2555 = vcombine.high %v49, %v73
    %v2556 = vcombine.low %v97, %v121
    %v2557 = vcombine.high %v97, %v121
    %v2559 = vunpack.c.l.s4 1983009808
    %v2560 = vunpack.c.0.s8 %v2559
    %v2561 = vlaneseq
    %v2562 = vshrl.u32 %v2561, 7
    %v2563 = vsub.s32 %v2560, %v2562
    %v2564 = vrot.slane %v2554, %v2563
    %v2566 = vunpack.c.l.s4 1983009808
    %v2567 = vunpack.c.0.s8 %v2566
    %v2568 = vlaneseq
    %v2569 = vshrl.u32 %v2568, 7
    %v2570 = vsub.s32 %v2567, %v2569
    %v2571 = vrot.slane %v2555, %v2570
    %v2573 = vunpack.c.l.s4 1983009808
    %v2574 = vunpack.c.0.s8 %v2573
    %v2575 = vlaneseq
    %v2576 = vshrl.u32 %v2575, 7
    %v2577 = vsub.s32 %v2574, %v2576
    %v2578 = vrot.slane %v2556, %v2577
    %v2580 = vunpack.c.l.s4 1983009808
    %v2581 = vunpack.c.0.s8 %v2580
    %v2582 = vlaneseq
    %v2583 = vshrl.u32 %v2582, 7
    %v2584 = vsub.s32 %v2581, %v2583
    %v2585 = vrot.slane %v2557, %v2584
    %v2586 = vcombine.low %v2564, %v2578
    %v2587 = vcombine.high %v2564, %v2578
    %v2588 = vcombine.low %v2571, %v2585
    %v2589 = vcombine.high %v2571, %v2585
    %v2590 = vcombine.low %v50, %v74
    %v2591 = vcombine.high %v50, %v74
    %v2592 = vcombine.low %v98, %v122
    %v2593 = vcombine.high %v98, %v122
    %v2595 = vunpack.c.l.s4 1983009808
    %v2596 = vunpack.c.0.s8 %v2595
    %v2597 = vlaneseq
    %v2598 = vshrl.u32 %v2597, 7
    %v2599 = vsub.s32 %v2596, %v2598
    %v2600 = vrot.slane %v2590, %v2599
    %v2602 = vunpack.c.l.s4 1983009808
    %v2603 = vunpack.c.0.s8 %v2602
    %v2604 = vlaneseq
    %v2605 = vshrl.u32 %v2604, 7
    %v2606 = vsub.s32 %v2603, %v2605
    %v2607 = vrot.slane %v2591, %v2606
    %v2609 = vunpack.c.l.s4 1983009808
    %v2610 = vunpack.c.0.s8 %v2609
    %v2611 = vlaneseq
    %v2612 = vshrl.u32 %v2611, 7
    %v2613 = vsub.s32 %v2610, %v2612
    %v2614 = vrot.slane %v2592, %v2613
    %v2616 = vunpack.c.l.s4 1983009808
    %v2617 = vunpack.c.0.s8 %v2616
    %v2618 = vlaneseq
    %v2619 = vshrl.u32 %v2618, 7
    %v2620 = vsub.s32 %v2617, %v2619
    %v2621 = vrot.slane %v2593, %v2620
    %v2622 = vcombine.low %v2600, %v2614
    %v2623 = vcombine.high %v2600, %v2614
    %v2624 = vcombine.low %v2607, %v2621
    %v2625 = vcombine.high %v2607, %v2621
    %2722 = vmatprep.subr.mxu0 0.0
    %2723 = vmatpush1.msra.mxu0 %v123
    %2724 = vmatprep.subr.mxu0 0.0
    %2725 = vmatpush1.msra.mxu0 %v124
    %2726 = vmatprep.subr.mxu0 0.0
    %2727 = vmatpush1.msra.mxu0 %v125
    %2728 = vmatprep.subr.mxu0 0.0
    %2729 = vmatpush1.msra.mxu0 %v126
    %2730 = vmatprep.subr.mxu0 0.0
    %2731 = vmatpush1.msra.mxu0 %v127
    %2732 = vmatprep.subr.mxu0 0.0
    %2733 = vmatpush1.msra.mxu0 %v128
    %2734 = vmatprep.subr.mxu0 0.0
    %2735 = vmatpush1.msra.mxu0 %v129
    %2736 = vmatprep.subr.mxu0 0.0
    %2737 = vmatpush1.msra.mxu0 %v130
    %2738 = vmatprep.subr.mxu0 0.0
    %2739 = vmatpush1.msra.mxu0 %v131
    %2740 = vmatprep.subr.mxu0 0.0
    %2741 = vmatpush1.msra.mxu0 %v132
    %2742 = vmatprep.subr.mxu0 0.0
    %2743 = vmatpush1.msra.mxu0 %v133
    %2744 = vmatprep.subr.mxu0 0.0
    %2745 = vmatpush1.msra.mxu0 %v134
    %2746 = vmatprep.subr.mxu0 0.0
    %2747 = vmatpush1.msra.mxu0 %v135
    %2748 = vmatprep.subr.mxu0 0.0
    %2749 = vmatpush1.msra.mxu0 %v136
    %2750 = vmatprep.subr.mxu0 0.0
    %2751 = vmatpush1.msra.mxu0 %v137
    %2752 = vmatprep.subr.mxu0 0.0
    %2753 = vmatpush1.msra.mxu0 %v138
    %2754 = vmatprep.subr.mxu0 0.0
    %2755 = vmatpush1.msra.mxu0 %v139
    %2756 = vmatprep.subr.mxu0 0.0
    %2757 = vmatpush1.msra.mxu0 %v140
    %2758 = vmatprep.subr.mxu0 0.0
    %2759 = vmatpush1.msra.mxu0 %v141
    %2760 = vmatprep.subr.mxu0 0.0
    %2761 = vmatpush1.msra.mxu0 %v142
    %2762 = vmatprep.subr.mxu0 0.0
    %2763 = vmatpush1.msra.mxu0 %v143
    %2764 = vmatprep.subr.mxu0 0.0
    %2765 = vmatpush1.msra.mxu0 %v144
    %2766 = vmatprep.subr.mxu0 0.0
    %2767 = vmatpush1.msra.mxu0 %v145
    %2768 = vmatprep.subr.mxu0 0.0
    %2769 = vmatpush1.msra.mxu0 %v146
    %2770 = vmatprep.subr.mxu0 0.0
    %2771 = vmatpush1.msra.mxu0 %v147
    %2772 = vmatprep.subr.mxu0 0.0
    %2773 = vmatpush1.msra.mxu0 %v148
    %2774 = vmatprep.subr.mxu0 0.0
    %2775 = vmatpush1.msra.mxu0 %v149
    %2776 = vmatprep.subr.mxu0 0.0
    %2777 = vmatpush1.msra.mxu0 %v150
    %2778 = vmatprep.subr.mxu0 0.0
    %2779 = vmatpush1.msra.mxu0 %v151
    %2780 = vmatprep.subr.mxu0 0.0
    %2781 = vmatpush1.msra.mxu0 %v152
    %2782 = vmatprep.subr.mxu0 0.0
    %2783 = vmatpush1.msra.mxu0 %v153
    %2784 = vmatprep.subr.mxu0 0.0
    %2785 = vmatpush1.msra.mxu0 %v154
    %2786 = vmatprep.mubr.f32.mxu0 %v1795
    %2787 = vmatmul.mubr.f32.gmra.mrb[0].mxu0 %v1794
    %v2788 = vpop.f32.mrb[0].mxu0
    %v2789 = vadd.f32 %v1664, %v2788
    %v2790 = vpop.f32.mrb[0].mxu0
    %2791 = vdwg.mxu0
    %2792 = vmatprep.subr.mxu0 0.0
    %2793 = vmatpush1.msra.mxu0 %v155
    %2794 = vmatprep.subr.mxu0 0.0
    %2795 = vmatpush1.msra.mxu0 %v156
    %2796 = vmatprep.subr.mxu0 0.0
    %2797 = vmatpush1.msra.mxu0 %v157
    %2798 = vmatprep.subr.mxu0 0.0
    %2799 = vmatpush1.msra.mxu0 %v158
    %2800 = vmatprep.subr.mxu0 0.0
    %2801 = vmatpush1.msra.mxu0 %v159
    %2802 = vmatprep.subr.mxu0 0.0
    %2803 = vmatpush1.msra.mxu0 %v160
    %2804 = vmatprep.subr.mxu0 0.0
    %2805 = vmatpush1.msra.mxu0 %v161
    %2806 = vmatprep.subr.mxu0 0.0
    %2807 = vmatpush1.msra.mxu0 %v162
    %2808 = vmatprep.subr.mxu0 0.0
    %2809 = vmatpush1.msra.mxu0 %v163
    %2810 = vmatprep.subr.mxu0 0.0
    %2811 = vmatpush1.msra.mxu0 %v164
    %2812 = vmatprep.subr.mxu0 0.0
    %2813 = vmatpush1.msra.mxu0 %v165
    %2814 = vmatprep.subr.mxu0 0.0
    %2815 = vmatpush1.msra.mxu0 %v166
    %2816 = vmatprep.subr.mxu0 0.0
    %2817 = vmatpush1.msra.mxu0 %v167
    %2818 = vmatprep.subr.mxu0 0.0
    %2819 = vmatpush1.msra.mxu0 %v168
    %2820 = vmatprep.subr.mxu0 0.0
    %2821 = vmatpush1.msra.mxu0 %v169
    %2822 = vmatprep.subr.mxu0 0.0
    %2823 = vmatpush1.msra.mxu0 %v170
    %2824 = vmatprep.subr.mxu0 0.0
    %2825 = vmatpush1.msra.mxu0 %v171
    %2826 = vmatprep.subr.mxu0 0.0
    %2827 = vmatpush1.msra.mxu0 %v172
    %2828 = vmatprep.subr.mxu0 0.0
    %2829 = vmatpush1.msra.mxu0 %v173
    %2830 = vmatprep.subr.mxu0 0.0
    %2831 = vmatpush1.msra.mxu0 %v174
    %2832 = vmatprep.subr.mxu0 0.0
    %2833 = vmatpush1.msra.mxu0 %v175
    %2834 = vmatprep.subr.mxu0 0.0
    %2835 = vmatpush1.msra.mxu0 %v176
    %2836 = vmatprep.subr.mxu0 0.0
    %2837 = vmatpush1.msra.mxu0 %v177
    %2838 = vmatprep.subr.mxu0 0.0
    %2839 = vmatpush1.msra.mxu0 %v178
    %2840 = vmatprep.subr.mxu0 0.0
    %2841 = vmatpush1.msra.mxu0 %v179
    %2842 = vmatprep.subr.mxu0 0.0
    %2843 = vmatpush1.msra.mxu0 %v180
    %2844 = vmatprep.subr.mxu0 0.0
    %2845 = vmatpush1.msra.mxu0 %v181
    %2846 = vmatprep.subr.mxu0 0.0
    %2847 = vmatpush1.msra.mxu0 %v182
    %2848 = vmatprep.subr.mxu0 0.0
    %2849 = vmatpush1.msra.mxu0 %v183
    %2850 = vmatprep.subr.mxu0 0.0
    %2851 = vmatpush1.msra.mxu0 %v184
    %2852 = vmatprep.subr.mxu0 0.0
    %2853 = vmatpush1.msra.mxu0 %v185
    %2854 = vmatprep.subr.mxu0 0.0
    %2855 = vmatpush1.msra.mxu0 %v186
    %2856 = vmatprep.mubr.f32.mxu0 %v1797
    %2857 = vmatmul.mubr.f32.gmra.mrb[0].mxu0 %v1796
    %v2858 = vpop.f32.mrb[0].mxu0
    %v2859 = vadd.f32 %v2789, %v2858
    %v2860 = vpop.f32.mrb[0].mxu0
    %2861 = vdwg.mxu0
    %2862 = vmatprep.subr.mxu0 0.0
    %2863 = vmatpush1.msra.mxu0 %v187
    %2864 = vmatprep.subr.mxu0 0.0
    %2865 = vmatpush1.msra.mxu0 %v188
    %2866 = vmatprep.subr.mxu0 0.0
    %2867 = vmatpush1.msra.mxu0 %v189
    %2868 = vmatprep.subr.mxu0 0.0
    %2869 = vmatpush1.msra.mxu0 %v190
    %2870 = vmatprep.subr.mxu0 0.0
    %2871 = vmatpush1.msra.mxu0 %v191
    %2872 = vmatprep.subr.mxu0 0.0
    %2873 = vmatpush1.msra.mxu0 %v192
    %2874 = vmatprep.subr.mxu0 0.0
    %2875 = vmatpush1.msra.mxu0 %v193
    %2876 = vmatprep.subr.mxu0 0.0
    %2877 = vmatpush1.msra.mxu0 %v194
    %2878 = vmatprep.subr.mxu0 0.0
    %2879 = vmatpush1.msra.mxu0 %v195
    %2880 = vmatprep.subr.mxu0 0.0
    %2881 = vmatpush1.msra.mxu0 %v196
    %2882 = vmatprep.subr.mxu0 0.0
    %2883 = vmatpush1.msra.mxu0 %v197
    %2884 = vmatprep.subr.mxu0 0.0
    %2885 = vmatpush1.msra.mxu0 %v198
    %2886 = vmatprep.subr.mxu0 0.0
    %2887 = vmatpush1.msra.mxu0 %v199
    %2888 = vmatprep.subr.mxu0 0.0
    %2889 = vmatpush1.msra.mxu0 %v200
    %2890 = vmatprep.subr.mxu0 0.0
    %2891 = vmatpush1.msra.mxu0 %v201
    %2892 = vmatprep.subr.mxu0 0.0
    %2893 = vmatpush1.msra.mxu0 %v202
    %2894 = vmatprep.subr.mxu0 0.0
    %2895 = vmatpush1.msra.mxu0 %v203
    %2896 = vmatprep.subr.mxu0 0.0
    %2897 = vmatpush1.msra.mxu0 %v204
    %2898 = vmatprep.subr.mxu0 0.0
    %2899 = vmatpush1.msra.mxu0 %v205
    %2900 = vmatprep.subr.mxu0 0.0
    %2901 = vmatpush1.msra.mxu0 %v206
    %2902 = vmatprep.subr.mxu0 0.0
    %2903 = vmatpush1.msra.mxu0 %v207
    %2904 = vmatprep.subr.mxu0 0.0
    %2905 = vmatpush1.msra.mxu0 %v208
    %2906 = vmatprep.subr.mxu0 0.0
    %2907 = vmatpush1.msra.mxu0 %v209
    %2908 = vmatprep.subr.mxu0 0.0
    %2909 = vmatpush1.msra.mxu0 %v210
    %2910 = vmatprep.subr.mxu0 0.0
    %2911 = vmatpush1.msra.mxu0 %v211
    %2912 = vmatprep.subr.mxu0 0.0
    %2913 = vmatpush1.msra.mxu0 %v212
    %2914 = vmatprep.subr.mxu0 0.0
    %2915 = vmatpush1.msra.mxu0 %v213
    %2916 = vmatprep.subr.mxu0 0.0
    %2917 = vmatpush1.msra.mxu0 %v214
    %2918 = vmatprep.subr.mxu0 0.0
    %2919 = vmatpush1.msra.mxu0 %v215
    %2920 = vmatprep.subr.mxu0 0.0
    %2921 = vmatpush1.msra.mxu0 %v216
    %2922 = vmatprep.subr.mxu0 0.0
    %2923 = vmatpush1.msra.mxu0 %v217
    %2924 = vmatprep.subr.mxu0 0.0
    %2925 = vmatpush1.msra.mxu0 %v218
    %2926 = vmatprep.mubr.f32.mxu0 %v1831
    %2927 = vmatmul.mubr.f32.gmra.mrb[0].mxu0 %v1830
    %v2928 = vpop.f32.mrb[0].mxu0
    %v2929 = vadd.f32 %v2859, %v2928
    %v2930 = vpop.f32.mrb[0].mxu0
    %2931 = vdwg.mxu0
    %2932 = vmatprep.subr.mxu0 0.0
    %2933 = vmatpush1.msra.mxu0 %v219
    %2934 = vmatprep.subr.mxu0 0.0
    %2935 = vmatpush1.msra.mxu0 %v220
    %2936 = vmatprep.subr.mxu0 0.0
    %2937 = vmatpush1.msra.mxu0 %v221
    %2938 = vmatprep.subr.mxu0 0.0
    %2939 = vmatpush1.msra.mxu0 %v222
    %2940 = vmatprep.subr.mxu0 0.0
    %2941 = vmatpush1.msra.mxu0 %v223
    %2942 = vmatprep.subr.mxu0 0.0
    %2943 = vmatpush1.msra.mxu0 %v224
    %2944 = vmatprep.subr.mxu0 0.0
    %2945 = vmatpush1.msra.mxu0 %v225
    %2946 = vmatprep.subr.mxu0 0.0
    %2947 = vmatpush1.msra.mxu0 %v226
    %2948 = vmatprep.subr.mxu0 0.0
    %2949 = vmatpush1.msra.mxu0 %v227
    %2950 = vmatprep.subr.mxu0 0.0
    %2951 = vmatpush1.msra.mxu0 %v228
    %2952 = vmatprep.subr.mxu0 0.0
    %2953 = vmatpush1.msra.mxu0 %v229
    %2954 = vmatprep.subr.mxu0 0.0
    %2955 = vmatpush1.msra.mxu0 %v230
    %2956 = vmatprep.subr.mxu0 0.0
    %2957 = vmatpush1.msra.mxu0 %v231
    %2958 = vmatprep.subr.mxu0 0.0
    %2959 = vmatpush1.msra.mxu0 %v232
    %2960 = vmatprep.subr.mxu0 0.0
    %2961 = vmatpush1.msra.mxu0 %v233
    %2962 = vmatprep.subr.mxu0 0.0
    %2963 = vmatpush1.msra.mxu0 %v234
    %2964 = vmatprep.subr.mxu0 0.0
    %2965 = vmatpush1.msra.mxu0 %v235
    %2966 = vmatprep.subr.mxu0 0.0
    %2967 = vmatpush1.msra.mxu0 %v236
    %2968 = vmatprep.subr.mxu0 0.0
    %2969 = vmatpush1.msra.mxu0 %v237
    %2970 = vmatprep.subr.mxu0 0.0
    %2971 = vmatpush1.msra.mxu0 %v238
    %2972 = vmatprep.subr.mxu0 0.0
    %2973 = vmatpush1.msra.mxu0 %v239
    %2974 = vmatprep.subr.mxu0 0.0
    %2975 = vmatpush1.msra.mxu0 %v240
    %2976 = vmatprep.subr.mxu0 0.0
    %2977 = vmatpush1.msra.mxu0 %v241
    %2978 = vmatprep.subr.mxu0 0.0
    %2979 = vmatpush1.msra.mxu0 %v242
    %2980 = vmatprep.subr.mxu0 0.0
    %2981 = vmatpush1.msra.mxu0 %v243
    %2982 = vmatprep.subr.mxu0 0.0
    %2983 = vmatpush1.msra.mxu0 %v244
    %2984 = vmatprep.subr.mxu0 0.0
    %2985 = vmatpush1.msra.mxu0 %v245
    %2986 = vmatprep.subr.mxu0 0.0
    %2987 = vmatpush1.msra.mxu0 %v246
    %2988 = vmatprep.subr.mxu0 0.0
    %2989 = vmatpush1.msra.mxu0 %v247
    %2990 = vmatprep.subr.mxu0 0.0
    %2991 = vmatpush1.msra.mxu0 %v248
    %2992 = vmatprep.subr.mxu0 0.0
    %2993 = vmatpush1.msra.mxu0 %v249
    %2994 = vmatprep.subr.mxu0 0.0
    %2995 = vmatpush1.msra.mxu0 %v250
    %2996 = vmatprep.mubr.f32.mxu0 %v1833
    %2997 = vmatmul.mubr.f32.gmra.mrb[0].mxu0 %v1832
    %v2998 = vpop.f32.mrb[0].mxu0
    %v2999 = vadd.f32 %v2929, %v2998
    %v3000 = vpop.f32.mrb[0].mxu0
    %3001 = vdwg.mxu0
    %3002 = vmatprep.subr.mxu0 0.0
    %3003 = vmatpush1.msra.mxu0 %v251
    %3004 = vmatprep.subr.mxu0 0.0
    %3005 = vmatpush1.msra.mxu0 %v252
    %3006 = vmatprep.subr.mxu0 0.0
    %3007 = vmatpush1.msra.mxu0 %v253
    %3008 = vmatprep.subr.mxu0 0.0
    %3009 = vmatpush1.msra.mxu0 %v254
    %3010 = vmatprep.subr.mxu0 0.0
    %3011 = vmatpush1.msra.mxu0 %v255
    %3012 = vmatprep.subr.mxu0 0.0
    %3013 = vmatpush1.msra.mxu0 %v256
    %3014 = vmatprep.subr.mxu0 0.0
    %3015 = vmatpush1.msra.mxu0 %v257
    %3016 = vmatprep.subr.mxu0 0.0
    %3017 = vmatpush1.msra.mxu0 %v258
    %3018 = vmatprep.subr.mxu0 0.0
    %3019 = vmatpush1.msra.mxu0 %v259
    %3020 = vmatprep.subr.mxu0 0.0
    %3021 = vmatpush1.msra.mxu0 %v260
    %3022 = vmatprep.subr.mxu0 0.0
    %3023 = vmatpush1.msra.mxu0 %v261
    %3024 = vmatprep.subr.mxu0 0.0
    %3025 = vmatpush1.msra.mxu0 %v262
    %3026 = vmatprep.subr.mxu0 0.0
    %3027 = vmatpush1.msra.mxu0 %v263
    %3028 = vmatprep.subr.mxu0 0.0
    %3029 = vmatpush1.msra.mxu0 %v264
    %3030 = vmatprep.subr.mxu0 0.0
    %3031 = vmatpush1.msra.mxu0 %v265
    %3032 = vmatprep.subr.mxu0 0.0
    %3033 = vmatpush1.msra.mxu0 %v266
    %3034 = vmatprep.subr.mxu0 0.0
    %3035 = vmatpush1.msra.mxu0 %v267
    %3036 = vmatprep.subr.mxu0 0.0
    %3037 = vmatpush1.msra.mxu0 %v268
    %3038 = vmatprep.subr.mxu0 0.0
    %3039 = vmatpush1.msra.mxu0 %v269
    %3040 = vmatprep.subr.mxu0 0.0
    %3041 = vmatpush1.msra.mxu0 %v270
    %3042 = vmatprep.subr.mxu0 0.0
    %3043 = vmatpush1.msra.mxu0 %v271
    %3044 = vmatprep.subr.mxu0 0.0
    %3045 = vmatpush1.msra.mxu0 %v272
    %3046 = vmatprep.subr.mxu0 0.0
    %3047 = vmatpush1.msra.mxu0 %v273
    %3048 = vmatprep.subr.mxu0 0.0
    %3049 = vmatpush1.msra.mxu0 %v274
    %3050 = vmatprep.subr.mxu0 0.0
    %3051 = vmatpush1.msra.mxu0 %v275
    %3052 = vmatprep.subr.mxu0 0.0
    %3053 = vmatpush1.msra.mxu0 %v276
    %3054 = vmatprep.subr.mxu0 0.0
    %3055 = vmatpush1.msra.mxu0 %v277
    %3056 = vmatprep.subr.mxu0 0.0
    %3057 = vmatpush1.msra.mxu0 %v278
    %3058 = vmatprep.subr.mxu0 0.0
    %3059 = vmatpush1.msra.mxu0 %v279
    %3060 = vmatprep.subr.mxu0 0.0
    %3061 = vmatpush1.msra.mxu0 %v280
    %3062 = vmatprep.subr.mxu0 0.0
    %3063 = vmatpush1.msra.mxu0 %v281
    %3064 = vmatprep.subr.mxu0 0.0
    %3065 = vmatpush1.msra.mxu0 %v282
    %3066 = vmatprep.mubr.f32.mxu0 %v1867
    %3067 = vmatmul.mubr.f32.gmra.mrb[0].mxu0 %v1866
    %v3068 = vpop.f32.mrb[0].mxu0
    %v3069 = vadd.f32 %v2999, %v3068
    %v3070 = vpop.f32.mrb[0].mxu0
    %3071 = vdwg.mxu0
    %3072 = vmatprep.subr.mxu0 0.0
    %3073 = vmatpush1.msra.mxu0 %v283
    %3074 = vmatprep.subr.mxu0 0.0
    %3075 = vmatpush1.msra.mxu0 %v284
    %3076 = vmatprep.subr.mxu0 0.0
    %3077 = vmatpush1.msra.mxu0 %v285
    %3078 = vmatprep.subr.mxu0 0.0
    %3079 = vmatpush1.msra.mxu0 %v286
    %3080 = vmatprep.subr.mxu0 0.0
    %3081 = vmatpush1.msra.mxu0 %v287
    %3082 = vmatprep.subr.mxu0 0.0
    %3083 = vmatpush1.msra.mxu0 %v288
    %3084 = vmatprep.subr.mxu0 0.0
    %3085 = vmatpush1.msra.mxu0 %v289
    %3086 = vmatprep.subr.mxu0 0.0
    %3087 = vmatpush1.msra.mxu0 %v290
    %3088 = vmatprep.subr.mxu0 0.0
    %3089 = vmatpush1.msra.mxu0 %v291
    %3090 = vmatprep.subr.mxu0 0.0
    %3091 = vmatpush1.msra.mxu0 %v292
    %3092 = vmatprep.subr.mxu0 0.0
    %3093 = vmatpush1.msra.mxu0 %v293
    %3094 = vmatprep.subr.mxu0 0.0
    %3095 = vmatpush1.msra.mxu0 %v294
    %3096 = vmatprep.subr.mxu0 0.0
    %3097 = vmatpush1.msra.mxu0 %v295
    %3098 = vmatprep.subr.mxu0 0.0
    %3099 = vmatpush1.msra.mxu0 %v296
    %3100 = vmatprep.subr.mxu0 0.0
    %3101 = vmatpush1.msra.mxu0 %v297
    %3102 = vmatprep.subr.mxu0 0.0
    %3103 = vmatpush1.msra.mxu0 %v298
    %3104 = vmatprep.subr.mxu0 0.0
    %3105 = vmatpush1.msra.mxu0 %v299
    %3106 = vmatprep.subr.mxu0 0.0
    %3107 = vmatpush1.msra.mxu0 %v300
    %3108 = vmatprep.subr.mxu0 0.0
    %3109 = vmatpush1.msra.mxu0 %v301
    %3110 = vmatprep.subr.mxu0 0.0
    %3111 = vmatpush1.msra.mxu0 %v302
    %3112 = vmatprep.subr.mxu0 0.0
    %3113 = vmatpush1.msra.mxu0 %v303
    %3114 = vmatprep.subr.mxu0 0.0
    %3115 = vmatpush1.msra.mxu0 %v304
    %3116 = vmatprep.subr.mxu0 0.0
    %3117 = vmatpush1.msra.mxu0 %v305
    %3118 = vmatprep.subr.mxu0 0.0
    %3119 = vmatpush1.msra.mxu0 %v306
    %3120 = vmatprep.subr.mxu0 0.0
    %3121 = vmatpush1.msra.mxu0 %v307
    %3122 = vmatprep.subr.mxu0 0.0
    %3123 = vmatpush1.msra.mxu0 %v308
    %3124 = vmatprep.subr.mxu0 0.0
    %3125 = vmatpush1.msra.mxu0 %v309
    %3126 = vmatprep.subr.mxu0 0.0
    %3127 = vmatpush1.msra.mxu0 %v310
    %3128 = vmatprep.subr.mxu0 0.0
    %3129 = vmatpush1.msra.mxu0 %v311
    %3130 = vmatprep.subr.mxu0 0.0
    %3131 = vmatpush1.msra.mxu0 %v312
    %3132 = vmatprep.subr.mxu0 0.0
    %3133 = vmatpush1.msra.mxu0 %v313
    %3134 = vmatprep.subr.mxu0 0.0
    %3135 = vmatpush1.msra.mxu0 %v314
    %3136 = vmatprep.mubr.f32.mxu0 %v1869
    %3137 = vmatmul.mubr.f32.gmra.mrb[0].mxu0 %v1868
    %v3138 = vpop.f32.mrb[0].mxu0
    %v3139 = vadd.f32 %v3069, %v3138
    %v3140 = vpop.f32.mrb[0].mxu0
    %3141 = vdwg.mxu0
    %3142 = vmatprep.subr.mxu0 0.0
    %3143 = vmatpush1.msra.mxu0 %v315
    %3144 = vmatprep.subr.mxu0 0.0
    %3145 = vmatpush1.msra.mxu0 %v316
    %3146 = vmatprep.subr.mxu0 0.0
    %3147 = vmatpush1.msra.mxu0 %v317
    %3148 = vmatprep.subr.mxu0 0.0
    %3149 = vmatpush1.msra.mxu0 %v318
    %3150 = vmatprep.subr.mxu0 0.0
    %3151 = vmatpush1.msra.mxu0 %v319
    %3152 = vmatprep.subr.mxu0 0.0
    %3153 = vmatpush1.msra.mxu0 %v320
    %3154 = vmatprep.subr.mxu0 0.0
    %3155 = vmatpush1.msra.mxu0 %v321
    %3156 = vmatprep.subr.mxu0 0.0
    %3157 = vmatpush1.msra.mxu0 %v322
    %3158 = vmatprep.subr.mxu0 0.0
    %3159 = vmatpush1.msra.mxu0 %v323
    %3160 = vmatprep.subr.mxu0 0.0
    %3161 = vmatpush1.msra.mxu0 %v324
    %3162 = vmatprep.subr.mxu0 0.0
    %3163 = vmatpush1.msra.mxu0 %v325
    %3164 = vmatprep.subr.mxu0 0.0
    %3165 = vmatpush1.msra.mxu0 %v326
    %3166 = vmatprep.subr.mxu0 0.0
    %3167 = vmatpush1.msra.mxu0 %v327
    %3168 = vmatprep.subr.mxu0 0.0
    %3169 = vmatpush1.msra.mxu0 %v328
    %3170 = vmatprep.subr.mxu0 0.0
    %3171 = vmatpush1.msra.mxu0 %v329
    %3172 = vmatprep.subr.mxu0 0.0
    %3173 = vmatpush1.msra.mxu0 %v330
    %3174 = vmatprep.subr.mxu0 0.0
    %3175 = vmatpush1.msra.mxu0 %v331
    %3176 = vmatprep.subr.mxu0 0.0
    %3177 = vmatpush1.msra.mxu0 %v332
    %3178 = vmatprep.subr.mxu0 0.0
    %3179 = vmatpush1.msra.mxu0 %v333
    %3180 = vmatprep.subr.mxu0 0.0
    %3181 = vmatpush1.msra.mxu0 %v334
    %3182 = vmatprep.subr.mxu0 0.0
    %3183 = vmatpush1.msra.mxu0 %v335
    %3184 = vmatprep.subr.mxu0 0.0
    %3185 = vmatpush1.msra.mxu0 %v336
    %3186 = vmatprep.subr.mxu0 0.0
    %3187 = vmatpush1.msra.mxu0 %v337
    %3188 = vmatprep.subr.mxu0 0.0
    %3189 = vmatpush1.msra.mxu0 %v338
    %3190 = vmatprep.subr.mxu0 0.0
    %3191 = vmatpush1.msra.mxu0 %v339
    %3192 = vmatprep.subr.mxu0 0.0
    %3193 = vmatpush1.msra.mxu0 %v340
    %3194 = vmatprep.subr.mxu0 0.0
    %3195 = vmatpush1.msra.mxu0 %v341
    %3196 = vmatprep.subr.mxu0 0.0
    %3197 = vmatpush1.msra.mxu0 %v342
    %3198 = vmatprep.subr.mxu0 0.0
    %3199 = vmatpush1.msra.mxu0 %v343
    %3200 = vmatprep.subr.mxu0 0.0
    %3201 = vmatpush1.msra.mxu0 %v344
    %3202 = vmatprep.subr.mxu0 0.0
    %3203 = vmatpush1.msra.mxu0 %v345
    %3204 = vmatprep.subr.mxu0 0.0
    %3205 = vmatpush1.msra.mxu0 %v346
    %3206 = vmatprep.mubr.f32.mxu0 %v1903
    %3207 = vmatmul.mubr.f32.gmra.mrb[0].mxu0 %v1902
    %v3208 = vpop.f32.mrb[0].mxu0
    %v3209 = vadd.f32 %v3139, %v3208
    %v3210 = vpop.f32.mrb[0].mxu0
    %3211 = vdwg.mxu0
    %3212 = vmatprep.subr.mxu0 0.0
    %3213 = vmatpush1.msra.mxu0 %v347
    %3214 = vmatprep.subr.mxu0 0.0
    %3215 = vmatpush1.msra.mxu0 %v348
    %3216 = vmatprep.subr.mxu0 0.0
    %3217 = vmatpush1.msra.mxu0 %v349
    %3218 = vmatprep.subr.mxu0 0.0
    %3219 = vmatpush1.msra.mxu0 %v350
    %3220 = vmatprep.subr.mxu0 0.0
    %3221 = vmatpush1.msra.mxu0 %v351
    %3222 = vmatprep.subr.mxu0 0.0
    %3223 = vmatpush1.msra.mxu0 %v352
    %3224 = vmatprep.subr.mxu0 0.0
    %3225 = vmatpush1.msra.mxu0 %v353
    %3226 = vmatprep.subr.mxu0 0.0
    %3227 = vmatpush1.msra.mxu0 %v354
    %3228 = vmatprep.subr.mxu0 0.0
    %3229 = vmatpush1.msra.mxu0 %v355
    %3230 = vmatprep.subr.mxu0 0.0
    %3231 = vmatpush1.msra.mxu0 %v356
    %3232 = vmatprep.subr.mxu0 0.0
    %3233 = vmatpush1.msra.mxu0 %v357
    %3234 = vmatprep.subr.mxu0 0.0
    %3235 = vmatpush1.msra.mxu0 %v358
    %3236 = vmatprep.subr.mxu0 0.0
    %3237 = vmatpush1.msra.mxu0 %v359
    %3238 = vmatprep.subr.mxu0 0.0
    %3239 = vmatpush1.msra.mxu0 %v360
    %3240 = vmatprep.subr.mxu0 0.0
    %3241 = vmatpush1.msra.mxu0 %v361
    %3242 = vmatprep.subr.mxu0 0.0
    %3243 = vmatpush1.msra.mxu0 %v362
    %3244 = vmatprep.subr.mxu0 0.0
    %3245 = vmatpush1.msra.mxu0 %v363
    %3246 = vmatprep.subr.mxu0 0.0
    %3247 = vmatpush1.msra.mxu0 %v364
    %3248 = vmatprep.subr.mxu0 0.0
    %3249 = vmatpush1.msra.mxu0 %v365
    %3250 = vmatprep.subr.mxu0 0.0
    %3251 = vmatpush1.msra.mxu0 %v366
    %3252 = vmatprep.subr.mxu0 0.0
    %3253 = vmatpush1.msra.mxu0 %v367
    %3254 = vmatprep.subr.mxu0 0.0
    %3255 = vmatpush1.msra.mxu0 %v368
    %3256 = vmatprep.subr.mxu0 0.0
    %3257 = vmatpush1.msra.mxu0 %v369
    %3258 = vmatprep.subr.mxu0 0.0
    %3259 = vmatpush1.msra.mxu0 %v370
    %3260 = vmatprep.subr.mxu0 0.0
    %3261 = vmatpush1.msra.mxu0 %v371
    %3262 = vmatprep.subr.mxu0 0.0
    %3263 = vmatpush1.msra.mxu0 %v372
    %3264 = vmatprep.subr.mxu0 0.0
    %3265 = vmatpush1.msra.mxu0 %v373
    %3266 = vmatprep.subr.mxu0 0.0
    %3267 = vmatpush1.msra.mxu0 %v374
    %3268 = vmatprep.subr.mxu0 0.0
    %3269 = vmatpush1.msra.mxu0 %v375
    %3270 = vmatprep.subr.mxu0 0.0
    %3271 = vmatpush1.msra.mxu0 %v376
    %3272 = vmatprep.subr.mxu0 0.0
    %3273 = vmatpush1.msra.mxu0 %v377
    %3274 = vmatprep.subr.mxu0 0.0
    %3275 = vmatpush1.msra.mxu0 %v378
    %3276 = vmatprep.mubr.f32.mxu0 %v1905
    %3277 = vmatmul.mubr.f32.gmra.mrb[0].mxu0 %v1904
    %v3278 = vpop.f32.mrb[0].mxu0
    %v3279 = vadd.f32 %v3209, %v3278
    %v3280 = vpop.f32.mrb[0].mxu0
    %3281 = vdwg.mxu0
    %3282 = vmatprep.subr.mxu0 0.0
    %3283 = vmatpush1.msra.mxu0 %v379
    %3284 = vmatprep.subr.mxu0 0.0
    %3285 = vmatpush1.msra.mxu0 %v380
    %3286 = vmatprep.subr.mxu0 0.0
    %3287 = vmatpush1.msra.mxu0 %v381
    %3288 = vmatprep.subr.mxu0 0.0
    %3289 = vmatpush1.msra.mxu0 %v382
    %3290 = vmatprep.subr.mxu0 0.0
    %3291 = vmatpush1.msra.mxu0 %v383
    %3292 = vmatprep.subr.mxu0 0.0
    %3293 = vmatpush1.msra.mxu0 %v384
    %3294 = vmatprep.subr.mxu0 0.0
    %3295 = vmatpush1.msra.mxu0 %v385
    %3296 = vmatprep.subr.mxu0 0.0
    %3297 = vmatpush1.msra.mxu0 %v386
    %3298 = vmatprep.subr.mxu0 0.0
    %3299 = vmatpush1.msra.mxu0 %v387
    %3300 = vmatprep.subr.mxu0 0.0
    %3301 = vmatpush1.msra.mxu0 %v388
    %3302 = vmatprep.subr.mxu0 0.0
    %3303 = vmatpush1.msra.mxu0 %v389
    %3304 = vmatprep.subr.mxu0 0.0
    %3305 = vmatpush1.msra.mxu0 %v390
    %3306 = vmatprep.subr.mxu0 0.0
    %3307 = vmatpush1.msra.mxu0 %v391
    %3308 = vmatprep.subr.mxu0 0.0
    %3309 = vmatpush1.msra.mxu0 %v392
    %3310 = vmatprep.subr.mxu0 0.0
    %3311 = vmatpush1.msra.mxu0 %v393
    %3312 = vmatprep.subr.mxu0 0.0
    %3313 = vmatpush1.msra.mxu0 %v394
    %3314 = vmatprep.subr.mxu0 0.0
    %3315 = vmatpush1.msra.mxu0 %v395
    %3316 = vmatprep.subr.mxu0 0.0
    %3317 = vmatpush1.msra.mxu0 %v396
    %3318 = vmatprep.subr.mxu0 0.0
    %3319 = vmatpush1.msra.mxu0 %v397
    %3320 = vmatprep.subr.mxu0 0.0
    %3321 = vmatpush1.msra.mxu0 %v398
    %3322 = vmatprep.subr.mxu0 0.0
    %3323 = vmatpush1.msra.mxu0 %v399
    %3324 = vmatprep.subr.mxu0 0.0
    %3325 = vmatpush1.msra.mxu0 %v400
    %3326 = vmatprep.subr.mxu0 0.0
    %3327 = vmatpush1.msra.mxu0 %v401
    %3328 = vmatprep.subr.mxu0 0.0
    %3329 = vmatpush1.msra.mxu0 %v402
    %3330 = vmatprep.subr.mxu0 0.0
    %3331 = vmatpush1.msra.mxu0 %v403
    %3332 = vmatprep.subr.mxu0 0.0
    %3333 = vmatpush1.msra.mxu0 %v404
    %3334 = vmatprep.subr.mxu0 0.0
    %3335 = vmatpush1.msra.mxu0 %v405
    %3336 = vmatprep.subr.mxu0 0.0
    %3337 = vmatpush1.msra.mxu0 %v406
    %3338 = vmatprep.subr.mxu0 0.0
    %3339 = vmatpush1.msra.mxu0 %v407
    %3340 = vmatprep.subr.mxu0 0.0
    %3341 = vmatpush1.msra.mxu0 %v408
    %3342 = vmatprep.subr.mxu0 0.0
    %3343 = vmatpush1.msra.mxu0 %v409
    %3344 = vmatprep.subr.mxu0 0.0
    %3345 = vmatpush1.msra.mxu0 %v410
    %3346 = vmatprep.mubr.f32.mxu0 %v1939
    %3347 = vmatmul.mubr.f32.gmra.mrb[0].mxu0 %v1938
    %v3348 = vpop.f32.mrb[0].mxu0
    %v3349 = vadd.f32 %v3279, %v3348
    %v3350 = vpop.f32.mrb[0].mxu0
    %3351 = vdwg.mxu0
    %3352 = vmatprep.subr.mxu0 0.0
    %3353 = vmatpush1.msra.mxu0 %v411
    %3354 = vmatprep.subr.mxu0 0.0
    %3355 = vmatpush1.msra.mxu0 %v412
    %3356 = vmatprep.subr.mxu0 0.0
    %3357 = vmatpush1.msra.mxu0 %v413
    %3358 = vmatprep.subr.mxu0 0.0
    %3359 = vmatpush1.msra.mxu0 %v414
    %3360 = vmatprep.subr.mxu0 0.0
    %3361 = vmatpush1.msra.mxu0 %v415
    %3362 = vmatprep.subr.mxu0 0.0
    %3363 = vmatpush1.msra.mxu0 %v416
    %3364 = vmatprep.subr.mxu0 0.0
    %3365 = vmatpush1.msra.mxu0 %v417
    %3366 = vmatprep.subr.mxu0 0.0
    %3367 = vmatpush1.msra.mxu0 %v418
    %3368 = vmatprep.subr.mxu0 0.0
    %3369 = vmatpush1.msra.mxu0 %v419
    %3370 = vmatprep.subr.mxu0 0.0
    %3371 = vmatpush1.msra.mxu0 %v420
    %3372 = vmatprep.subr.mxu0 0.0
    %3373 = vmatpush1.msra.mxu0 %v421
    %3374 = vmatprep.subr.mxu0 0.0
    %3375 = vmatpush1.msra.mxu0 %v422
    %3376 = vmatprep.subr.mxu0 0.0
    %3377 = vmatpush1.msra.mxu0 %v423
    %3378 = vmatprep.subr.mxu0 0.0
    %3379 = vmatpush1.msra.mxu0 %v424
    %3380 = vmatprep.subr.mxu0 0.0
    %3381 = vmatpush1.msra.mxu0 %v425
    %3382 = vmatprep.subr.mxu0 0.0
    %3383 = vmatpush1.msra.mxu0 %v426
    %3384 = vmatprep.subr.mxu0 0.0
    %3385 = vmatpush1.msra.mxu0 %v427
    %3386 = vmatprep.subr.mxu0 0.0
    %3387 = vmatpush1.msra.mxu0 %v428
    %3388 = vmatprep.subr.mxu0 0.0
    %3389 = vmatpush1.msra.mxu0 %v429
    %3390 = vmatprep.subr.mxu0 0.0
    %3391 = vmatpush1.msra.mxu0 %v430
    %3392 = vmatprep.subr.mxu0 0.0
    %3393 = vmatpush1.msra.mxu0 %v431
    %3394 = vmatprep.subr.mxu0 0.0
    %3395 = vmatpush1.msra.mxu0 %v432
    %3396 = vmatprep.subr.mxu0 0.0
    %3397 = vmatpush1.msra.mxu0 %v433
    %3398 = vmatprep.subr.mxu0 0.0
    %3399 = vmatpush1.msra.mxu0 %v434
    %3400 = vmatprep.subr.mxu0 0.0
    %3401 = vmatpush1.msra.mxu0 %v435
    %3402 = vmatprep.subr.mxu0 0.0
    %3403 = vmatpush1.msra.mxu0 %v436
    %3404 = vmatprep.subr.mxu0 0.0
    %3405 = vmatpush1.msra.mxu0 %v437
    %3406 = vmatprep.subr.mxu0 0.0
    %3407 = vmatpush1.msra.mxu0 %v438
    %3408 = vmatprep.subr.mxu0 0.0
    %3409 = vmatpush1.msra.mxu0 %v439
    %3410 = vmatprep.subr.mxu0 0.0
    %3411 = vmatpush1.msra.mxu0 %v440
    %3412 = vmatprep.subr.mxu0 0.0
    %3413 = vmatpush1.msra.mxu0 %v441
    %3414 = vmatprep.subr.mxu0 0.0
    %3415 = vmatpush1.msra.mxu0 %v442
    %3416 = vmatprep.mubr.f32.mxu0 %v1941
    %3417 = vmatmul.mubr.f32.gmra.mrb[0].mxu0 %v1940
    %v3418 = vpop.f32.mrb[0].mxu0
    %v3419 = vadd.f32 %v3349, %v3418
    %v3420 = vpop.f32.mrb[0].mxu0
    %3421 = vdwg.mxu0
    %3422 = vmatprep.subr.mxu0 0.0
    %3423 = vmatpush1.msra.mxu0 %v443
    %3424 = vmatprep.subr.mxu0 0.0
    %3425 = vmatpush1.msra.mxu0 %v444
    %3426 = vmatprep.subr.mxu0 0.0
    %3427 = vmatpush1.msra.mxu0 %v445
    %3428 = vmatprep.subr.mxu0 0.0
    %3429 = vmatpush1.msra.mxu0 %v446
    %3430 = vmatprep.subr.mxu0 0.0
    %3431 = vmatpush1.msra.mxu0 %v447
    %3432 = vmatprep.subr.mxu0 0.0
    %3433 = vmatpush1.msra.mxu0 %v448
    %3434 = vmatprep.subr.mxu0 0.0
    %3435 = vmatpush1.msra.mxu0 %v449
    %3436 = vmatprep.subr.mxu0 0.0
    %3437 = vmatpush1.msra.mxu0 %v450
    %3438 = vmatprep.subr.mxu0 0.0
    %3439 = vmatpush1.msra.mxu0 %v451
    %3440 = vmatprep.subr.mxu0 0.0
    %3441 = vmatpush1.msra.mxu0 %v452
    %3442 = vmatprep.subr.mxu0 0.0
    %3443 = vmatpush1.msra.mxu0 %v453
    %3444 = vmatprep.subr.mxu0 0.0
    %3445 = vmatpush1.msra.mxu0 %v454
    %3446 = vmatprep.subr.mxu0 0.0
    %3447 = vmatpush1.msra.mxu0 %v455
    %3448 = vmatprep.subr.mxu0 0.0
    %3449 = vmatpush1.msra.mxu0 %v456
    %3450 = vmatprep.subr.mxu0 0.0
    %3451 = vmatpush1.msra.mxu0 %v457
    %3452 = vmatprep.subr.mxu0 0.0
    %3453 = vmatpush1.msra.mxu0 %v458
    %3454 = vmatprep.subr.mxu0 0.0
    %3455 = vmatpush1.msra.mxu0 %v459
    %3456 = vmatprep.subr.mxu0 0.0
    %3457 = vmatpush1.msra.mxu0 %v460
    %3458 = vmatprep.subr.mxu0 0.0
    %3459 = vmatpush1.msra.mxu0 %v461
    %3460 = vmatprep.subr.mxu0 0.0
    %3461 = vmatpush1.msra.mxu0 %v462
    %3462 = vmatprep.subr.mxu0 0.0
    %3463 = vmatpush1.msra.mxu0 %v463
    %3464 = vmatprep.subr.mxu0 0.0
    %3465 = vmatpush1.msra.mxu0 %v464
    %3466 = vmatprep.subr.mxu0 0.0
    %3467 = vmatpush1.msra.mxu0 %v465
    %3468 = vmatprep.subr.mxu0 0.0
    %3469 = vmatpush1.msra.mxu0 %v466
    %3470 = vmatprep.subr.mxu0 0.0
    %3471 = vmatpush1.msra.mxu0 %v467
    %3472 = vmatprep.subr.mxu0 0.0
    %3473 = vmatpush1.msra.mxu0 %v468
    %3474 = vmatprep.subr.mxu0 0.0
    %3475 = vmatpush1.msra.mxu0 %v469
    %3476 = vmatprep.subr.mxu0 0.0
    %3477 = vmatpush1.msra.mxu0 %v470
    %3478 = vmatprep.subr.mxu0 0.0
    %3479 = vmatpush1.msra.mxu0 %v471
    %3480 = vmatprep.subr.mxu0 0.0
    %3481 = vmatpush1.msra.mxu0 %v472
    %3482 = vmatprep.subr.mxu0 0.0
    %3483 = vmatpush1.msra.mxu0 %v473
    %3484 = vmatprep.subr.mxu0 0.0
    %3485 = vmatpush1.msra.mxu0 %v474
    %3486 = vmatprep.mubr.f32.mxu0 %v1975
    %3487 = vmatmul.mubr.f32.gmra.mrb[0].mxu0 %v1974
    %v3488 = vpop.f32.mrb[0].mxu0
    %v3489 = vadd.f32 %v3419, %v3488
    %v3490 = vpop.f32.mrb[0].mxu0
    %3491 = vdwg.mxu0
    %3492 = vmatprep.subr.mxu0 0.0
    %3493 = vmatpush1.msra.mxu0 %v475
    %3494 = vmatprep.subr.mxu0 0.0
    %3495 = vmatpush1.msra.mxu0 %v476
    %3496 = vmatprep.subr.mxu0 0.0
    %3497 = vmatpush1.msra.mxu0 %v477
    %3498 = vmatprep.subr.mxu0 0.0
    %3499 = vmatpush1.msra.mxu0 %v478
    %3500 = vmatprep.subr.mxu0 0.0
    %3501 = vmatpush1.msra.mxu0 %v479
    %3502 = vmatprep.subr.mxu0 0.0
    %3503 = vmatpush1.msra.mxu0 %v480
    %3504 = vmatprep.subr.mxu0 0.0
    %3505 = vmatpush1.msra.mxu0 %v481
    %3506 = vmatprep.subr.mxu0 0.0
    %3507 = vmatpush1.msra.mxu0 %v482
    %3508 = vmatprep.subr.mxu0 0.0
    %3509 = vmatpush1.msra.mxu0 %v483
    %3510 = vmatprep.subr.mxu0 0.0
    %3511 = vmatpush1.msra.mxu0 %v484
    %3512 = vmatprep.subr.mxu0 0.0
    %3513 = vmatpush1.msra.mxu0 %v485
    %3514 = vmatprep.subr.mxu0 0.0
    %3515 = vmatpush1.msra.mxu0 %v486
    %3516 = vmatprep.subr.mxu0 0.0
    %3517 = vmatpush1.msra.mxu0 %v487
    %3518 = vmatprep.subr.mxu0 0.0
    %3519 = vmatpush1.msra.mxu0 %v488
    %3520 = vmatprep.subr.mxu0 0.0
    %3521 = vmatpush1.msra.mxu0 %v489
    %3522 = vmatprep.subr.mxu0 0.0
    %3523 = vmatpush1.msra.mxu0 %v490
    %3524 = vmatprep.subr.mxu0 0.0
    %3525 = vmatpush1.msra.mxu0 %v491
    %3526 = vmatprep.subr.mxu0 0.0
    %3527 = vmatpush1.msra.mxu0 %v492
    %3528 = vmatprep.subr.mxu0 0.0
    %3529 = vmatpush1.msra.mxu0 %v493
    %3530 = vmatprep.subr.mxu0 0.0
    %3531 = vmatpush1.msra.mxu0 %v494
    %3532 = vmatprep.subr.mxu0 0.0
    %3533 = vmatpush1.msra.mxu0 %v495
    %3534 = vmatprep.subr.mxu0 0.0
    %3535 = vmatpush1.msra.mxu0 %v496
    %3536 = vmatprep.subr.mxu0 0.0
    %3537 = vmatpush1.msra.mxu0 %v497
    %3538 = vmatprep.subr.mxu0 0.0
    %3539 = vmatpush1.msra.mxu0 %v498
    %3540 = vmatprep.subr.mxu0 0.0
    %3541 = vmatpush1.msra.mxu0 %v499
    %3542 = vmatprep.subr.mxu0 0.0
    %3543 = vmatpush1.msra.mxu0 %v500
    %3544 = vmatprep.subr.mxu0 0.0
    %3545 = vmatpush1.msra.mxu0 %v501
    %3546 = vmatprep.subr.mxu0 0.0
    %3547 = vmatpush1.msra.mxu0 %v502
    %3548 = vmatprep.subr.mxu0 0.0
    %3549 = vmatpush1.msra.mxu0 %v503
    %3550 = vmatprep.subr.mxu0 0.0
    %3551 = vmatpush1.msra.mxu0 %v504
    %3552 = vmatprep.subr.mxu0 0.0
    %3553 = vmatpush1.msra.mxu0 %v505
    %3554 = vmatprep.subr.mxu0 0.0
    %3555 = vmatpush1.msra.mxu0 %v506
    %3556 = vmatprep.mubr.f32.mxu0 %v1977
    %3557 = vmatmul.mubr.f32.gmra.mrb[0].mxu0 %v1976
    %v3558 = vpop.f32.mrb[0].mxu0
    %v3559 = vadd.f32 %v3489, %v3558
    %v3560 = vpop.f32.mrb[0].mxu0
    %3561 = vdwg.mxu0
    %3562 = vmatprep.subr.mxu0 0.0
    %3563 = vmatpush1.msra.mxu0 %v507
    %3564 = vmatprep.subr.mxu0 0.0
    %3565 = vmatpush1.msra.mxu0 %v508
    %3566 = vmatprep.subr.mxu0 0.0
    %3567 = vmatpush1.msra.mxu0 %v509
    %3568 = vmatprep.subr.mxu0 0.0
    %3569 = vmatpush1.msra.mxu0 %v510
    %3570 = vmatprep.subr.mxu0 0.0
    %3571 = vmatpush1.msra.mxu0 %v511
    %3572 = vmatprep.subr.mxu0 0.0
    %3573 = vmatpush1.msra.mxu0 %v512
    %3574 = vmatprep.subr.mxu0 0.0
    %3575 = vmatpush1.msra.mxu0 %v513
    %3576 = vmatprep.subr.mxu0 0.0
    %3577 = vmatpush1.msra.mxu0 %v514
    %3578 = vmatprep.subr.mxu0 0.0
    %3579 = vmatpush1.msra.mxu0 %v515
    %3580 = vmatprep.subr.mxu0 0.0
    %3581 = vmatpush1.msra.mxu0 %v516
    %3582 = vmatprep.subr.mxu0 0.0
    %3583 = vmatpush1.msra.mxu0 %v517
    %3584 = vmatprep.subr.mxu0 0.0
    %3585 = vmatpush1.msra.mxu0 %v518
    %3586 = vmatprep.subr.mxu0 0.0
    %3587 = vmatpush1.msra.mxu0 %v519
    %3588 = vmatprep.subr.mxu0 0.0
    %3589 = vmatpush1.msra.mxu0 %v520
    %3590 = vmatprep.subr.mxu0 0.0
    %3591 = vmatpush1.msra.mxu0 %v521
    %3592 = vmatprep.subr.mxu0 0.0
    %3593 = vmatpush1.msra.mxu0 %v522
    %3594 = vmatprep.subr.mxu0 0.0
    %3595 = vmatpush1.msra.mxu0 %v523
    %3596 = vmatprep.subr.mxu0 0.0
    %3597 = vmatpush1.msra.mxu0 %v524
    %3598 = vmatprep.subr.mxu0 0.0
    %3599 = vmatpush1.msra.mxu0 %v525
    %3600 = vmatprep.subr.mxu0 0.0
    %3601 = vmatpush1.msra.mxu0 %v526
    %3602 = vmatprep.subr.mxu0 0.0
    %3603 = vmatpush1.msra.mxu0 %v527
    %3604 = vmatprep.subr.mxu0 0.0
    %3605 = vmatpush1.msra.mxu0 %v528
    %3606 = vmatprep.subr.mxu0 0.0
    %3607 = vmatpush1.msra.mxu0 %v529
    %3608 = vmatprep.subr.mxu0 0.0
    %3609 = vmatpush1.msra.mxu0 %v530
    %3610 = vmatprep.subr.mxu0 0.0
    %3611 = vmatpush1.msra.mxu0 %v531
    %3612 = vmatprep.subr.mxu0 0.0
    %3613 = vmatpush1.msra.mxu0 %v532
    %3614 = vmatprep.subr.mxu0 0.0
    %3615 = vmatpush1.msra.mxu0 %v533
    %3616 = vmatprep.subr.mxu0 0.0
    %3617 = vmatpush1.msra.mxu0 %v534
    %3618 = vmatprep.subr.mxu0 0.0
    %3619 = vmatpush1.msra.mxu0 %v535
    %3620 = vmatprep.subr.mxu0 0.0
    %3621 = vmatpush1.msra.mxu0 %v536
    %3622 = vmatprep.subr.mxu0 0.0
    %3623 = vmatpush1.msra.mxu0 %v537
    %3624 = vmatprep.subr.mxu0 0.0
    %3625 = vmatpush1.msra.mxu0 %v538
    %3626 = vmatprep.mubr.f32.mxu0 %v2011
    %3627 = vmatmul.mubr.f32.gmra.mrb[0].mxu0 %v2010
    %v3628 = vpop.f32.mrb[0].mxu0
    %v3629 = vadd.f32 %v3559, %v3628
    %v3630 = vpop.f32.mrb[0].mxu0
    %3631 = vdwg.mxu0
    %3632 = vmatprep.subr.mxu0 0.0
    %3633 = vmatpush1.msra.mxu0 %v539
    %3634 = vmatprep.subr.mxu0 0.0
    %3635 = vmatpush1.msra.mxu0 %v540
    %3636 = vmatprep.subr.mxu0 0.0
    %3637 = vmatpush1.msra.mxu0 %v541
    %3638 = vmatprep.subr.mxu0 0.0
    %3639 = vmatpush1.msra.mxu0 %v542
    %3640 = vmatprep.subr.mxu0 0.0
    %3641 = vmatpush1.msra.mxu0 %v543
    %3642 = vmatprep.subr.mxu0 0.0
    %3643 = vmatpush1.msra.mxu0 %v544
    %3644 = vmatprep.subr.mxu0 0.0
    %3645 = vmatpush1.msra.mxu0 %v545
    %3646 = vmatprep.subr.mxu0 0.0
    %3647 = vmatpush1.msra.mxu0 %v546
    %3648 = vmatprep.subr.mxu0 0.0
    %3649 = vmatpush1.msra.mxu0 %v547
    %3650 = vmatprep.subr.mxu0 0.0
    %3651 = vmatpush1.msra.mxu0 %v548
    %3652 = vmatprep.subr.mxu0 0.0
    %3653 = vmatpush1.msra.mxu0 %v549
    %3654 = vmatprep.subr.mxu0 0.0
    %3655 = vmatpush1.msra.mxu0 %v550
    %3656 = vmatprep.subr.mxu0 0.0
    %3657 = vmatpush1.msra.mxu0 %v551
    %3658 = vmatprep.subr.mxu0 0.0
    %3659 = vmatpush1.msra.mxu0 %v552
    %3660 = vmatprep.subr.mxu0 0.0
    %3661 = vmatpush1.msra.mxu0 %v553
    %3662 = vmatprep.subr.mxu0 0.0
    %3663 = vmatpush1.msra.mxu0 %v554
    %3664 = vmatprep.subr.mxu0 0.0
    %3665 = vmatpush1.msra.mxu0 %v555
    %3666 = vmatprep.subr.mxu0 0.0
    %3667 = vmatpush1.msra.mxu0 %v556
    %3668 = vmatprep.subr.mxu0 0.0
    %3669 = vmatpush1.msra.mxu0 %v557
    %3670 = vmatprep.subr.mxu0 0.0
    %3671 = vmatpush1.msra.mxu0 %v558
    %3672 = vmatprep.subr.mxu0 0.0
    %3673 = vmatpush1.msra.mxu0 %v559
    %3674 = vmatprep.subr.mxu0 0.0
    %3675 = vmatpush1.msra.mxu0 %v560
    %3676 = vmatprep.subr.mxu0 0.0
    %3677 = vmatpush1.msra.mxu0 %v561
    %3678 = vmatprep.subr.mxu0 0.0
    %3679 = vmatpush1.msra.mxu0 %v562
    %3680 = vmatprep.subr.mxu0 0.0
    %3681 = vmatpush1.msra.mxu0 %v563
    %3682 = vmatprep.subr.mxu0 0.0
    %3683 = vmatpush1.msra.mxu0 %v564
    %3684 = vmatprep.subr.mxu0 0.0
    %3685 = vmatpush1.msra.mxu0 %v565
    %3686 = vmatprep.subr.mxu0 0.0
    %3687 = vmatpush1.msra.mxu0 %v566
    %3688 = vmatprep.subr.mxu0 0.0
    %3689 = vmatpush1.msra.mxu0 %v567
    %3690 = vmatprep.subr.mxu0 0.0
    %3691 = vmatpush1.msra.mxu0 %v568
    %3692 = vmatprep.subr.mxu0 0.0
    %3693 = vmatpush1.msra.mxu0 %v569
    %3694 = vmatprep.subr.mxu0 0.0
    %3695 = vmatpush1.msra.mxu0 %v570
    %3696 = vmatprep.mubr.f32.mxu0 %v2013
    %3697 = vmatmul.mubr.f32.gmra.mrb[0].mxu0 %v2012
    %v3698 = vpop.f32.mrb[0].mxu0
    %v3699 = vadd.f32 %v3629, %v3698
    %v3700 = vpop.f32.mrb[0].mxu0
    %3701 = vdwg.mxu0
    %3702 = vmatprep.subr.mxu0 0.0
    %3703 = vmatpush1.msra.mxu0 %v571
    %3704 = vmatprep.subr.mxu0 0.0
    %3705 = vmatpush1.msra.mxu0 %v572
    %3706 = vmatprep.subr.mxu0 0.0
    %3707 = vmatpush1.msra.mxu0 %v573
    %3708 = vmatprep.subr.mxu0 0.0
    %3709 = vmatpush1.msra.mxu0 %v574
    %3710 = vmatprep.subr.mxu0 0.0
    %3711 = vmatpush1.msra.mxu0 %v575
    %3712 = vmatprep.subr.mxu0 0.0
    %3713 = vmatpush1.msra.mxu0 %v576
    %3714 = vmatprep.subr.mxu0 0.0
    %3715 = vmatpush1.msra.mxu0 %v577
    %3716 = vmatprep.subr.mxu0 0.0
    %3717 = vmatpush1.msra.mxu0 %v578
    %3718 = vmatprep.subr.mxu0 0.0
    %3719 = vmatpush1.msra.mxu0 %v579
    %3720 = vmatprep.subr.mxu0 0.0
    %3721 = vmatpush1.msra.mxu0 %v580
    %3722 = vmatprep.subr.mxu0 0.0
    %3723 = vmatpush1.msra.mxu0 %v581
    %3724 = vmatprep.subr.mxu0 0.0
    %3725 = vmatpush1.msra.mxu0 %v582
    %3726 = vmatprep.subr.mxu0 0.0
    %3727 = vmatpush1.msra.mxu0 %v583
    %3728 = vmatprep.subr.mxu0 0.0
    %3729 = vmatpush1.msra.mxu0 %v584
    %3730 = vmatprep.subr.mxu0 0.0
    %3731 = vmatpush1.msra.mxu0 %v585
    %3732 = vmatprep.subr.mxu0 0.0
    %3733 = vmatpush1.msra.mxu0 %v586
    %3734 = vmatprep.subr.mxu0 0.0
    %3735 = vmatpush1.msra.mxu0 %v587
    %3736 = vmatprep.subr.mxu0 0.0
    %3737 = vmatpush1.msra.mxu0 %v588
    %3738 = vmatprep.subr.mxu0 0.0
    %3739 = vmatpush1.msra.mxu0 %v589
    %3740 = vmatprep.subr.mxu0 0.0
    %3741 = vmatpush1.msra.mxu0 %v590
    %3742 = vmatprep.subr.mxu0 0.0
    %3743 = vmatpush1.msra.mxu0 %v591
    %3744 = vmatprep.subr.mxu0 0.0
    %3745 = vmatpush1.msra.mxu0 %v592
    %3746 = vmatprep.subr.mxu0 0.0
    %3747 = vmatpush1.msra.mxu0 %v593
    %3748 = vmatprep.subr.mxu0 0.0
    %3749 = vmatpush1.msra.mxu0 %v594
    %3750 = vmatprep.subr.mxu0 0.0
    %3751 = vmatpush1.msra.mxu0 %v595
    %3752 = vmatprep.subr.mxu0 0.0
    %3753 = vmatpush1.msra.mxu0 %v596
    %3754 = vmatprep.subr.mxu0 0.0
    %3755 = vmatpush1.msra.mxu0 %v597
    %3756 = vmatprep.subr.mxu0 0.0
    %3757 = vmatpush1.msra.mxu0 %v598
    %3758 = vmatprep.subr.mxu0 0.0
    %3759 = vmatpush1.msra.mxu0 %v599
    %3760 = vmatprep.subr.mxu0 0.0
    %3761 = vmatpush1.msra.mxu0 %v600
    %3762 = vmatprep.subr.mxu0 0.0
    %3763 = vmatpush1.msra.mxu0 %v601
    %3764 = vmatprep.subr.mxu0 0.0
    %3765 = vmatpush1.msra.mxu0 %v602
    %3766 = vmatprep.mubr.f32.mxu0 %v2047
    %3767 = vmatmul.mubr.f32.gmra.mrb[0].mxu0 %v2046
    %v3768 = vpop.f32.mrb[0].mxu0
    %v3769 = vadd.f32 %v3699, %v3768
    %v3770 = vpop.f32.mrb[0].mxu0
    %3771 = vdwg.mxu0
    %3772 = vmatprep.subr.mxu0 0.0
    %3773 = vmatpush1.msra.mxu0 %v603
    %3774 = vmatprep.subr.mxu0 0.0
    %3775 = vmatpush1.msra.mxu0 %v604
    %3776 = vmatprep.subr.mxu0 0.0
    %3777 = vmatpush1.msra.mxu0 %v605
    %3778 = vmatprep.subr.mxu0 0.0
    %3779 = vmatpush1.msra.mxu0 %v606
    %3780 = vmatprep.subr.mxu0 0.0
    %3781 = vmatpush1.msra.mxu0 %v607
    %3782 = vmatprep.subr.mxu0 0.0
    %3783 = vmatpush1.msra.mxu0 %v608
    %3784 = vmatprep.subr.mxu0 0.0
    %3785 = vmatpush1.msra.mxu0 %v609
    %3786 = vmatprep.subr.mxu0 0.0
    %3787 = vmatpush1.msra.mxu0 %v610
    %3788 = vmatprep.subr.mxu0 0.0
    %3789 = vmatpush1.msra.mxu0 %v611
    %3790 = vmatprep.subr.mxu0 0.0
    %3791 = vmatpush1.msra.mxu0 %v612
    %3792 = vmatprep.subr.mxu0 0.0
    %3793 = vmatpush1.msra.mxu0 %v613
    %3794 = vmatprep.subr.mxu0 0.0
    %3795 = vmatpush1.msra.mxu0 %v614
    %3796 = vmatprep.subr.mxu0 0.0
    %3797 = vmatpush1.msra.mxu0 %v615
    %3798 = vmatprep.subr.mxu0 0.0
    %3799 = vmatpush1.msra.mxu0 %v616
    %3800 = vmatprep.subr.mxu0 0.0
    %3801 = vmatpush1.msra.mxu0 %v617
    %3802 = vmatprep.subr.mxu0 0.0
    %3803 = vmatpush1.msra.mxu0 %v618
    %3804 = vmatprep.subr.mxu0 0.0
    %3805 = vmatpush1.msra.mxu0 %v619
    %3806 = vmatprep.subr.mxu0 0.0
    %3807 = vmatpush1.msra.mxu0 %v620
    %3808 = vmatprep.subr.mxu0 0.0
    %3809 = vmatpush1.msra.mxu0 %v621
    %3810 = vmatprep.subr.mxu0 0.0
    %3811 = vmatpush1.msra.mxu0 %v622
    %3812 = vmatprep.subr.mxu0 0.0
    %3813 = vmatpush1.msra.mxu0 %v623
    %3814 = vmatprep.subr.mxu0 0.0
    %3815 = vmatpush1.msra.mxu0 %v624
    %3816 = vmatprep.subr.mxu0 0.0
    %3817 = vmatpush1.msra.mxu0 %v625
    %3818 = vmatprep.subr.mxu0 0.0
    %3819 = vmatpush1.msra.mxu0 %v626
    %3820 = vmatprep.subr.mxu0 0.0
    %3821 = vmatpush1.msra.mxu0 %v627
    %3822 = vmatprep.subr.mxu0 0.0
    %3823 = vmatpush1.msra.mxu0 %v628
    %3824 = vmatprep.subr.mxu0 0.0
    %3825 = vmatpush1.msra.mxu0 %v629
    %3826 = vmatprep.subr.mxu0 0.0
    %3827 = vmatpush1.msra.mxu0 %v630
    %3828 = vmatprep.subr.mxu0 0.0
    %3829 = vmatpush1.msra.mxu0 %v631
    %3830 = vmatprep.subr.mxu0 0.0
    %3831 = vmatpush1.msra.mxu0 %v632
    %3832 = vmatprep.subr.mxu0 0.0
    %3833 = vmatpush1.msra.mxu0 %v633
    %3834 = vmatprep.subr.mxu0 0.0
    %3835 = vmatpush1.msra.mxu0 %v634
    %3836 = vmatprep.mubr.f32.mxu0 %v2049
    %3837 = vmatmul.mubr.f32.gmra.mrb[0].mxu0 %v2048
    %v3838 = vpop.f32.mrb[0].mxu0
    %v3839 = vadd.f32 %v3769, %v3838
    %v3840 = vpop.f32.mrb[0].mxu0
    %3841 = vdwg.mxu0
    %3842 = vmatprep.subr.mxu0 0.0
    %3843 = vmatpush1.msra.mxu0 %v635
    %3844 = vmatprep.subr.mxu0 0.0
    %3845 = vmatpush1.msra.mxu0 %v636
    %3846 = vmatprep.subr.mxu0 0.0
    %3847 = vmatpush1.msra.mxu0 %v637
    %3848 = vmatprep.subr.mxu0 0.0
    %3849 = vmatpush1.msra.mxu0 %v638
    %3850 = vmatprep.subr.mxu0 0.0
    %3851 = vmatpush1.msra.mxu0 %v639
    %3852 = vmatprep.subr.mxu0 0.0
    %3853 = vmatpush1.msra.mxu0 %v640
    %3854 = vmatprep.subr.mxu0 0.0
    %3855 = vmatpush1.msra.mxu0 %v641
    %3856 = vmatprep.subr.mxu0 0.0
    %3857 = vmatpush1.msra.mxu0 %v642
    %3858 = vmatprep.subr.mxu0 0.0
    %3859 = vmatpush1.msra.mxu0 %v643
    %3860 = vmatprep.subr.mxu0 0.0
    %3861 = vmatpush1.msra.mxu0 %v644
    %3862 = vmatprep.subr.mxu0 0.0
    %3863 = vmatpush1.msra.mxu0 %v645
    %3864 = vmatprep.subr.mxu0 0.0
    %3865 = vmatpush1.msra.mxu0 %v646
    %3866 = vmatprep.subr.mxu0 0.0
    %3867 = vmatpush1.msra.mxu0 %v647
    %3868 = vmatprep.subr.mxu0 0.0
    %3869 = vmatpush1.msra.mxu0 %v648
    %3870 = vmatprep.subr.mxu0 0.0
    %3871 = vmatpush1.msra.mxu0 %v649
    %3872 = vmatprep.subr.mxu0 0.0
    %3873 = vmatpush1.msra.mxu0 %v650
    %3874 = vmatprep.subr.mxu0 0.0
    %3875 = vmatpush1.msra.mxu0 %v651
    %3876 = vmatprep.subr.mxu0 0.0
    %3877 = vmatpush1.msra.mxu0 %v652
    %3878 = vmatprep.subr.mxu0 0.0
    %3879 = vmatpush1.msra.mxu0 %v653
    %3880 = vmatprep.subr.mxu0 0.0
    %3881 = vmatpush1.msra.mxu0 %v654
    %3882 = vmatprep.subr.mxu0 0.0
    %3883 = vmatpush1.msra.mxu0 %v655
    %3884 = vmatprep.subr.mxu0 0.0
    %3885 = vmatpush1.msra.mxu0 %v656
    %3886 = vmatprep.subr.mxu0 0.0
    %3887 = vmatpush1.msra.mxu0 %v657
    %3888 = vmatprep.subr.mxu0 0.0
    %3889 = vmatpush1.msra.mxu0 %v658
    %3890 = vmatprep.subr.mxu0 0.0
    %3891 = vmatpush1.msra.mxu0 %v659
    %3892 = vmatprep.subr.mxu0 0.0
    %3893 = vmatpush1.msra.mxu0 %v660
    %3894 = vmatprep.subr.mxu0 0.0
    %3895 = vmatpush1.msra.mxu0 %v661
    %3896 = vmatprep.subr.mxu0 0.0
    %3897 = vmatpush1.msra.mxu0 %v662
    %3898 = vmatprep.subr.mxu0 0.0
    %3899 = vmatpush1.msra.mxu0 %v663
    %3900 = vmatprep.subr.mxu0 0.0
    %3901 = vmatpush1.msra.mxu0 %v664
    %3902 = vmatprep.subr.mxu0 0.0
    %3903 = vmatpush1.msra.mxu0 %v665
    %3904 = vmatprep.subr.mxu0 0.0
    %3905 = vmatpush1.msra.mxu0 %v666
    %3906 = vmatprep.mubr.f32.mxu0 %v2083
    %3907 = vmatmul.mubr.f32.gmra.mrb[0].mxu0 %v2082
    %v3908 = vpop.f32.mrb[0].mxu0
    %v3909 = vadd.f32 %v3839, %v3908
    %v3910 = vpop.f32.mrb[0].mxu0
    %3911 = vdwg.mxu0
    %3912 = vmatprep.subr.mxu0 0.0
    %3913 = vmatpush1.msra.mxu0 %v667
    %3914 = vmatprep.subr.mxu0 0.0
    %3915 = vmatpush1.msra.mxu0 %v668
    %3916 = vmatprep.subr.mxu0 0.0
    %3917 = vmatpush1.msra.mxu0 %v669
    %3918 = vmatprep.subr.mxu0 0.0
    %3919 = vmatpush1.msra.mxu0 %v670
    %3920 = vmatprep.subr.mxu0 0.0
    %3921 = vmatpush1.msra.mxu0 %v671
    %3922 = vmatprep.subr.mxu0 0.0
    %3923 = vmatpush1.msra.mxu0 %v672
    %3924 = vmatprep.subr.mxu0 0.0
    %3925 = vmatpush1.msra.mxu0 %v673
    %3926 = vmatprep.subr.mxu0 0.0
    %3927 = vmatpush1.msra.mxu0 %v674
    %3928 = vmatprep.subr.mxu0 0.0
    %3929 = vmatpush1.msra.mxu0 %v675
    %3930 = vmatprep.subr.mxu0 0.0
    %3931 = vmatpush1.msra.mxu0 %v676
    %3932 = vmatprep.subr.mxu0 0.0
    %3933 = vmatpush1.msra.mxu0 %v677
    %3934 = vmatprep.subr.mxu0 0.0
    %3935 = vmatpush1.msra.mxu0 %v678
    %3936 = vmatprep.subr.mxu0 0.0
    %3937 = vmatpush1.msra.mxu0 %v679
    %3938 = vmatprep.subr.mxu0 0.0
    %3939 = vmatpush1.msra.mxu0 %v680
    %3940 = vmatprep.subr.mxu0 0.0
    %3941 = vmatpush1.msra.mxu0 %v681
    %3942 = vmatprep.subr.mxu0 0.0
    %3943 = vmatpush1.msra.mxu0 %v682
    %3944 = vmatprep.subr.mxu0 0.0
    %3945 = vmatpush1.msra.mxu0 %v683
    %3946 = vmatprep.subr.mxu0 0.0
    %3947 = vmatpush1.msra.mxu0 %v684
    %3948 = vmatprep.subr.mxu0 0.0
    %3949 = vmatpush1.msra.mxu0 %v685
    %3950 = vmatprep.subr.mxu0 0.0
    %3951 = vmatpush1.msra.mxu0 %v686
    %3952 = vmatprep.subr.mxu0 0.0
    %3953 = vmatpush1.msra.mxu0 %v687
    %3954 = vmatprep.subr.mxu0 0.0
    %3955 = vmatpush1.msra.mxu0 %v688
    %3956 = vmatprep.subr.mxu0 0.0
    %3957 = vmatpush1.msra.mxu0 %v689
    %3958 = vmatprep.subr.mxu0 0.0
    %3959 = vmatpush1.msra.mxu0 %v690
    %3960 = vmatprep.subr.mxu0 0.0
    %3961 = vmatpush1.msra.mxu0 %v691
    %3962 = vmatprep.subr.mxu0 0.0
    %3963 = vmatpush1.msra.mxu0 %v692
    %3964 = vmatprep.subr.mxu0 0.0
    %3965 = vmatpush1.msra.mxu0 %v693
    %3966 = vmatprep.subr.mxu0 0.0
    %3967 = vmatpush1.msra.mxu0 %v694
    %3968 = vmatprep.subr.mxu0 0.0
    %3969 = vmatpush1.msra.mxu0 %v695
    %3970 = vmatprep.subr.mxu0 0.0
    %3971 = vmatpush1.msra.mxu0 %v696
    %3972 = vmatprep.subr.mxu0 0.0
    %3973 = vmatpush1.msra.mxu0 %v697
    %3974 = vmatprep.subr.mxu0 0.0
    %3975 = vmatpush1.msra.mxu0 %v698
    %3976 = vmatprep.mubr.f32.mxu0 %v2085
    %3977 = vmatmul.mubr.f32.gmra.mrb[0].mxu0 %v2084
    %v3978 = vpop.f32.mrb[0].mxu0
    %v3979 = vadd.f32 %v3909, %v3978
    %v3980 = vpop.f32.mrb[0].mxu0
    %3981 = vdwg.mxu0
    %3982 = vmatprep.subr.mxu0 0.0
    %3983 = vmatpush1.msra.mxu0 %v699
    %3984 = vmatprep.subr.mxu0 0.0
    %3985 = vmatpush1.msra.mxu0 %v700
    %3986 = vmatprep.subr.mxu0 0.0
    %3987 = vmatpush1.msra.mxu0 %v701
    %3988 = vmatprep.subr.mxu0 0.0
    %3989 = vmatpush1.msra.mxu0 %v702
    %3990 = vmatprep.subr.mxu0 0.0
    %3991 = vmatpush1.msra.mxu0 %v703
    %3992 = vmatprep.subr.mxu0 0.0
    %3993 = vmatpush1.msra.mxu0 %v704
    %3994 = vmatprep.subr.mxu0 0.0
    %3995 = vmatpush1.msra.mxu0 %v705
    %3996 = vmatprep.subr.mxu0 0.0
    %3997 = vmatpush1.msra.mxu0 %v706
    %3998 = vmatprep.subr.mxu0 0.0
    %3999 = vmatpush1.msra.mxu0 %v707
    %4000 = vmatprep.subr.mxu0 0.0
    %4001 = vmatpush1.msra.mxu0 %v708
    %4002 = vmatprep.subr.mxu0 0.0
    %4003 = vmatpush1.msra.mxu0 %v709
    %4004 = vmatprep.subr.mxu0 0.0
    %4005 = vmatpush1.msra.mxu0 %v710
    %4006 = vmatprep.subr.mxu0 0.0
    %4007 = vmatpush1.msra.mxu0 %v711
    %4008 = vmatprep.subr.mxu0 0.0
    %4009 = vmatpush1.msra.mxu0 %v712
    %4010 = vmatprep.subr.mxu0 0.0
    %4011 = vmatpush1.msra.mxu0 %v713
    %4012 = vmatprep.subr.mxu0 0.0
    %4013 = vmatpush1.msra.mxu0 %v714
    %4014 = vmatprep.subr.mxu0 0.0
    %4015 = vmatpush1.msra.mxu0 %v715
    %4016 = vmatprep.subr.mxu0 0.0
    %4017 = vmatpush1.msra.mxu0 %v716
    %4018 = vmatprep.subr.mxu0 0.0
    %4019 = vmatpush1.msra.mxu0 %v717
    %4020 = vmatprep.subr.mxu0 0.0
    %4021 = vmatpush1.msra.mxu0 %v718
    %4022 = vmatprep.subr.mxu0 0.0
    %4023 = vmatpush1.msra.mxu0 %v719
    %4024 = vmatprep.subr.mxu0 0.0
    %4025 = vmatpush1.msra.mxu0 %v720
    %4026 = vmatprep.subr.mxu0 0.0
    %4027 = vmatpush1.msra.mxu0 %v721
    %4028 = vmatprep.subr.mxu0 0.0
    %4029 = vmatpush1.msra.mxu0 %v722
    %4030 = vmatprep.subr.mxu0 0.0
    %4031 = vmatpush1.msra.mxu0 %v723
    %4032 = vmatprep.subr.mxu0 0.0
    %4033 = vmatpush1.msra.mxu0 %v724
    %4034 = vmatprep.subr.mxu0 0.0
    %4035 = vmatpush1.msra.mxu0 %v725
    %4036 = vmatprep.subr.mxu0 0.0
    %4037 = vmatpush1.msra.mxu0 %v726
    %4038 = vmatprep.subr.mxu0 0.0
    %4039 = vmatpush1.msra.mxu0 %v727
    %4040 = vmatprep.subr.mxu0 0.0
    %4041 = vmatpush1.msra.mxu0 %v728
    %4042 = vmatprep.subr.mxu0 0.0
    %4043 = vmatpush1.msra.mxu0 %v729
    %4044 = vmatprep.subr.mxu0 0.0
    %4045 = vmatpush1.msra.mxu0 %v730
    %4046 = vmatprep.mubr.f32.mxu0 %v2119
    %4047 = vmatmul.mubr.f32.gmra.mrb[0].mxu0 %v2118
    %v4048 = vpop.f32.mrb[0].mxu0
    %v4049 = vadd.f32 %v3979, %v4048
    %v4050 = vpop.f32.mrb[0].mxu0
    %4051 = vdwg.mxu0
    %4052 = vmatprep.subr.mxu0 0.0
    %4053 = vmatpush1.msra.mxu0 %v731
    %4054 = vmatprep.subr.mxu0 0.0
    %4055 = vmatpush1.msra.mxu0 %v732
    %4056 = vmatprep.subr.mxu0 0.0
    %4057 = vmatpush1.msra.mxu0 %v733
    %4058 = vmatprep.subr.mxu0 0.0
    %4059 = vmatpush1.msra.mxu0 %v734
    %4060 = vmatprep.subr.mxu0 0.0
    %4061 = vmatpush1.msra.mxu0 %v735
    %4062 = vmatprep.subr.mxu0 0.0
    %4063 = vmatpush1.msra.mxu0 %v736
    %4064 = vmatprep.subr.mxu0 0.0
    %4065 = vmatpush1.msra.mxu0 %v737
    %4066 = vmatprep.subr.mxu0 0.0
    %4067 = vmatpush1.msra.mxu0 %v738
    %4068 = vmatprep.subr.mxu0 0.0
    %4069 = vmatpush1.msra.mxu0 %v739
    %4070 = vmatprep.subr.mxu0 0.0
    %4071 = vmatpush1.msra.mxu0 %v740
    %4072 = vmatprep.subr.mxu0 0.0
    %4073 = vmatpush1.msra.mxu0 %v741
    %4074 = vmatprep.subr.mxu0 0.0
    %4075 = vmatpush1.msra.mxu0 %v742
    %4076 = vmatprep.subr.mxu0 0.0
    %4077 = vmatpush1.msra.mxu0 %v743
    %4078 = vmatprep.subr.mxu0 0.0
    %4079 = vmatpush1.msra.mxu0 %v744
    %4080 = vmatprep.subr.mxu0 0.0
    %4081 = vmatpush1.msra.mxu0 %v745
    %4082 = vmatprep.subr.mxu0 0.0
    %4083 = vmatpush1.msra.mxu0 %v746
    %4084 = vmatprep.subr.mxu0 0.0
    %4085 = vmatpush1.msra.mxu0 %v747
    %4086 = vmatprep.subr.mxu0 0.0
    %4087 = vmatpush1.msra.mxu0 %v748
    %4088 = vmatprep.subr.mxu0 0.0
    %4089 = vmatpush1.msra.mxu0 %v749
    %4090 = vmatprep.subr.mxu0 0.0
    %4091 = vmatpush1.msra.mxu0 %v750
    %4092 = vmatprep.subr.mxu0 0.0
    %4093 = vmatpush1.msra.mxu0 %v751
    %4094 = vmatprep.subr.mxu0 0.0
    %4095 = vmatpush1.msra.mxu0 %v752
    %4096 = vmatprep.subr.mxu0 0.0
    %4097 = vmatpush1.msra.mxu0 %v753
    %4098 = vmatprep.subr.mxu0 0.0
    %4099 = vmatpush1.msra.mxu0 %v754
    %4100 = vmatprep.subr.mxu0 0.0
    %4101 = vmatpush1.msra.mxu0 %v755
    %4102 = vmatprep.subr.mxu0 0.0
    %4103 = vmatpush1.msra.mxu0 %v756
    %4104 = vmatprep.subr.mxu0 0.0
    %4105 = vmatpush1.msra.mxu0 %v757
    %4106 = vmatprep.subr.mxu0 0.0
    %4107 = vmatpush1.msra.mxu0 %v758
    %4108 = vmatprep.subr.mxu0 0.0
    %4109 = vmatpush1.msra.mxu0 %v759
    %4110 = vmatprep.subr.mxu0 0.0
    %4111 = vmatpush1.msra.mxu0 %v760
    %4112 = vmatprep.subr.mxu0 0.0
    %4113 = vmatpush1.msra.mxu0 %v761
    %4114 = vmatprep.subr.mxu0 0.0
    %4115 = vmatpush1.msra.mxu0 %v762
    %4116 = vmatprep.mubr.f32.mxu0 %v2121
    %4117 = vmatmul.mubr.f32.gmra.mrb[0].mxu0 %v2120
    %v4118 = vpop.f32.mrb[0].mxu0
    %v4119 = vadd.f32 %v4049, %v4118
    %v4120 = vpop.f32.mrb[0].mxu0
    %4121 = vdwg.mxu0
    %4122 = vmatprep.subr.mxu0 0.0
    %4123 = vmatpush1.msra.mxu0 %v763
    %4124 = vmatprep.subr.mxu0 0.0
    %4125 = vmatpush1.msra.mxu0 %v764
    %4126 = vmatprep.subr.mxu0 0.0
    %4127 = vmatpush1.msra.mxu0 %v765
    %4128 = vmatprep.subr.mxu0 0.0
    %4129 = vmatpush1.msra.mxu0 %v766
    %4130 = vmatprep.subr.mxu0 0.0
    %4131 = vmatpush1.msra.mxu0 %v767
    %4132 = vmatprep.subr.mxu0 0.0
    %4133 = vmatpush1.msra.mxu0 %v768
    %4134 = vmatprep.subr.mxu0 0.0
    %4135 = vmatpush1.msra.mxu0 %v769
    %4136 = vmatprep.subr.mxu0 0.0
    %4137 = vmatpush1.msra.mxu0 %v770
    %4138 = vmatprep.subr.mxu0 0.0
    %4139 = vmatpush1.msra.mxu0 %v771
    %4140 = vmatprep.subr.mxu0 0.0
    %4141 = vmatpush1.msra.mxu0 %v772
    %4142 = vmatprep.subr.mxu0 0.0
    %4143 = vmatpush1.msra.mxu0 %v773
    %4144 = vmatprep.subr.mxu0 0.0
    %4145 = vmatpush1.msra.mxu0 %v774
    %4146 = vmatprep.subr.mxu0 0.0
    %4147 = vmatpush1.msra.mxu0 %v775
    %4148 = vmatprep.subr.mxu0 0.0
    %4149 = vmatpush1.msra.mxu0 %v776
    %4150 = vmatprep.subr.mxu0 0.0
    %4151 = vmatpush1.msra.mxu0 %v777
    %4152 = vmatprep.subr.mxu0 0.0
    %4153 = vmatpush1.msra.mxu0 %v778
    %4154 = vmatprep.subr.mxu0 0.0
    %4155 = vmatpush1.msra.mxu0 %v779
    %4156 = vmatprep.subr.mxu0 0.0
    %4157 = vmatpush1.msra.mxu0 %v780
    %4158 = vmatprep.subr.mxu0 0.0
    %4159 = vmatpush1.msra.mxu0 %v781
    %4160 = vmatprep.subr.mxu0 0.0
    %4161 = vmatpush1.msra.mxu0 %v782
    %4162 = vmatprep.subr.mxu0 0.0
    %4163 = vmatpush1.msra.mxu0 %v783
    %4164 = vmatprep.subr.mxu0 0.0
    %4165 = vmatpush1.msra.mxu0 %v784
    %4166 = vmatprep.subr.mxu0 0.0
    %4167 = vmatpush1.msra.mxu0 %v785
    %4168 = vmatprep.subr.mxu0 0.0
    %4169 = vmatpush1.msra.mxu0 %v786
    %4170 = vmatprep.subr.mxu0 0.0
    %4171 = vmatpush1.msra.mxu0 %v787
    %4172 = vmatprep.subr.mxu0 0.0
    %4173 = vmatpush1.msra.mxu0 %v788
    %4174 = vmatprep.subr.mxu0 0.0
    %4175 = vmatpush1.msra.mxu0 %v789
    %4176 = vmatprep.subr.mxu0 0.0
    %4177 = vmatpush1.msra.mxu0 %v790
    %4178 = vmatprep.subr.mxu0 0.0
    %4179 = vmatpush1.msra.mxu0 %v791
    %4180 = vmatprep.subr.mxu0 0.0
    %4181 = vmatpush1.msra.mxu0 %v792
    %4182 = vmatprep.subr.mxu0 0.0
    %4183 = vmatpush1.msra.mxu0 %v793
    %4184 = vmatprep.subr.mxu0 0.0
    %4185 = vmatpush1.msra.mxu0 %v794
    %4186 = vmatprep.mubr.f32.mxu0 %v2155
    %4187 = vmatmul.mubr.f32.gmra.mrb[0].mxu0 %v2154
    %v4188 = vpop.f32.mrb[0].mxu0
    %v4189 = vadd.f32 %v4119, %v4188
    %v4190 = vpop.f32.mrb[0].mxu0
    %4191 = vdwg.mxu0
    %4192 = vmatprep.subr.mxu0 0.0
    %4193 = vmatpush1.msra.mxu0 %v795
    %4194 = vmatprep.subr.mxu0 0.0
    %4195 = vmatpush1.msra.mxu0 %v796
    %4196 = vmatprep.subr.mxu0 0.0
    %4197 = vmatpush1.msra.mxu0 %v797
    %4198 = vmatprep.subr.mxu0 0.0
    %4199 = vmatpush1.msra.mxu0 %v798
    %4200 = vmatprep.subr.mxu0 0.0
    %4201 = vmatpush1.msra.mxu0 %v799
    %4202 = vmatprep.subr.mxu0 0.0
    %4203 = vmatpush1.msra.mxu0 %v800
    %4204 = vmatprep.subr.mxu0 0.0
    %4205 = vmatpush1.msra.mxu0 %v801
    %4206 = vmatprep.subr.mxu0 0.0
    %4207 = vmatpush1.msra.mxu0 %v802
    %4208 = vmatprep.subr.mxu0 0.0
    %4209 = vmatpush1.msra.mxu0 %v803
    %4210 = vmatprep.subr.mxu0 0.0
    %4211 = vmatpush1.msra.mxu0 %v804
    %4212 = vmatprep.subr.mxu0 0.0
    %4213 = vmatpush1.msra.mxu0 %v805
    %4214 = vmatprep.subr.mxu0 0.0
    %4215 = vmatpush1.msra.mxu0 %v806
    %4216 = vmatprep.subr.mxu0 0.0
    %4217 = vmatpush1.msra.mxu0 %v807
    %4218 = vmatprep.subr.mxu0 0.0
    %4219 = vmatpush1.msra.mxu0 %v808
    %4220 = vmatprep.subr.mxu0 0.0
    %4221 = vmatpush1.msra.mxu0 %v809
    %4222 = vmatprep.subr.mxu0 0.0
    %4223 = vmatpush1.msra.mxu0 %v810
    %4224 = vmatprep.subr.mxu0 0.0
    %4225 = vmatpush1.msra.mxu0 %v811
    %4226 = vmatprep.subr.mxu0 0.0
    %4227 = vmatpush1.msra.mxu0 %v812
    %4228 = vmatprep.subr.mxu0 0.0
    %4229 = vmatpush1.msra.mxu0 %v813
    %4230 = vmatprep.subr.mxu0 0.0
    %4231 = vmatpush1.msra.mxu0 %v814
    %4232 = vmatprep.subr.mxu0 0.0
    %4233 = vmatpush1.msra.mxu0 %v815
    %4234 = vmatprep.subr.mxu0 0.0
    %4235 = vmatpush1.msra.mxu0 %v816
    %4236 = vmatprep.subr.mxu0 0.0
    %4237 = vmatpush1.msra.mxu0 %v817
    %4238 = vmatprep.subr.mxu0 0.0
    %4239 = vmatpush1.msra.mxu0 %v818
    %4240 = vmatprep.subr.mxu0 0.0
    %4241 = vmatpush1.msra.mxu0 %v819
    %4242 = vmatprep.subr.mxu0 0.0
    %4243 = vmatpush1.msra.mxu0 %v820
    %4244 = vmatprep.subr.mxu0 0.0
    %4245 = vmatpush1.msra.mxu0 %v821
    %4246 = vmatprep.subr.mxu0 0.0
    %4247 = vmatpush1.msra.mxu0 %v822
    %4248 = vmatprep.subr.mxu0 0.0
    %4249 = vmatpush1.msra.mxu0 %v823
    %4250 = vmatprep.subr.mxu0 0.0
    %4251 = vmatpush1.msra.mxu0 %v824
    %4252 = vmatprep.subr.mxu0 0.0
    %4253 = vmatpush1.msra.mxu0 %v825
    %4254 = vmatprep.subr.mxu0 0.0
    %4255 = vmatpush1.msra.mxu0 %v826
    %4256 = vmatprep.mubr.f32.mxu0 %v2157
    %4257 = vmatmul.mubr.f32.gmra.mrb[0].mxu0 %v2156
    %v4258 = vpop.f32.mrb[0].mxu0
    %v4259 = vadd.f32 %v4189, %v4258
    %v4260 = vpop.f32.mrb[0].mxu0
    %4261 = vdwg.mxu0
    %4262 = vmatprep.subr.mxu0 0.0
    %4263 = vmatpush1.msra.mxu0 %v827
    %4264 = vmatprep.subr.mxu0 0.0
    %4265 = vmatpush1.msra.mxu0 %v828
    %4266 = vmatprep.subr.mxu0 0.0
    %4267 = vmatpush1.msra.mxu0 %v829
    %4268 = vmatprep.subr.mxu0 0.0
    %4269 = vmatpush1.msra.mxu0 %v830
    %4270 = vmatprep.subr.mxu0 0.0
    %4271 = vmatpush1.msra.mxu0 %v831
    %4272 = vmatprep.subr.mxu0 0.0
    %4273 = vmatpush1.msra.mxu0 %v832
    %4274 = vmatprep.subr.mxu0 0.0
    %4275 = vmatpush1.msra.mxu0 %v833
    %4276 = vmatprep.subr.mxu0 0.0
    %4277 = vmatpush1.msra.mxu0 %v834
    %4278 = vmatprep.subr.mxu0 0.0
    %4279 = vmatpush1.msra.mxu0 %v835
    %4280 = vmatprep.subr.mxu0 0.0
    %4281 = vmatpush1.msra.mxu0 %v836
    %4282 = vmatprep.subr.mxu0 0.0
    %4283 = vmatpush1.msra.mxu0 %v837
    %4284 = vmatprep.subr.mxu0 0.0
    %4285 = vmatpush1.msra.mxu0 %v838
    %4286 = vmatprep.subr.mxu0 0.0
    %4287 = vmatpush1.msra.mxu0 %v839
    %4288 = vmatprep.subr.mxu0 0.0
    %4289 = vmatpush1.msra.mxu0 %v840
    %4290 = vmatprep.subr.mxu0 0.0
    %4291 = vmatpush1.msra.mxu0 %v841
    %4292 = vmatprep.subr.mxu0 0.0
    %4293 = vmatpush1.msra.mxu0 %v842
    %4294 = vmatprep.subr.mxu0 0.0
    %4295 = vmatpush1.msra.mxu0 %v843
    %4296 = vmatprep.subr.mxu0 0.0
    %4297 = vmatpush1.msra.mxu0 %v844
    %4298 = vmatprep.subr.mxu0 0.0
    %4299 = vmatpush1.msra.mxu0 %v845
    %4300 = vmatprep.subr.mxu0 0.0
    %4301 = vmatpush1.msra.mxu0 %v846
    %4302 = vmatprep.subr.mxu0 0.0
    %4303 = vmatpush1.msra.mxu0 %v847
    %4304 = vmatprep.subr.mxu0 0.0
    %4305 = vmatpush1.msra.mxu0 %v848
    %4306 = vmatprep.subr.mxu0 0.0
    %4307 = vmatpush1.msra.mxu0 %v849
    %4308 = vmatprep.subr.mxu0 0.0
    %4309 = vmatpush1.msra.mxu0 %v850
    %4310 = vmatprep.subr.mxu0 0.0
    %4311 = vmatpush1.msra.mxu0 %v851
    %4312 = vmatprep.subr.mxu0 0.0
    %4313 = vmatpush1.msra.mxu0 %v852
    %4314 = vmatprep.subr.mxu0 0.0
    %4315 = vmatpush1.msra.mxu0 %v853
    %4316 = vmatprep.subr.mxu0 0.0
    %4317 = vmatpush1.msra.mxu0 %v854
    %4318 = vmatprep.subr.mxu0 0.0
    %4319 = vmatpush1.msra.mxu0 %v855
    %4320 = vmatprep.subr.mxu0 0.0
    %4321 = vmatpush1.msra.mxu0 %v856
    %4322 = vmatprep.subr.mxu0 0.0
    %4323 = vmatpush1.msra.mxu0 %v857
    %4324 = vmatprep.subr.mxu0 0.0
    %4325 = vmatpush1.msra.mxu0 %v858
    %4326 = vmatprep.mubr.f32.mxu0 %v2191
    %4327 = vmatmul.mubr.f32.gmra.mrb[0].mxu0 %v2190
    %v4328 = vpop.f32.mrb[0].mxu0
    %v4329 = vadd.f32 %v4259, %v4328
    %v4330 = vpop.f32.mrb[0].mxu0
    %4331 = vdwg.mxu0
    %4332 = vmatprep.subr.mxu0 0.0
    %4333 = vmatpush1.msra.mxu0 %v859
    %4334 = vmatprep.subr.mxu0 0.0
    %4335 = vmatpush1.msra.mxu0 %v860
    %4336 = vmatprep.subr.mxu0 0.0
    %4337 = vmatpush1.msra.mxu0 %v861
    %4338 = vmatprep.subr.mxu0 0.0
    %4339 = vmatpush1.msra.mxu0 %v862
    %4340 = vmatprep.subr.mxu0 0.0
    %4341 = vmatpush1.msra.mxu0 %v863
    %4342 = vmatprep.subr.mxu0 0.0
    %4343 = vmatpush1.msra.mxu0 %v864
    %4344 = vmatprep.subr.mxu0 0.0
    %4345 = vmatpush1.msra.mxu0 %v865
    %4346 = vmatprep.subr.mxu0 0.0
    %4347 = vmatpush1.msra.mxu0 %v866
    %4348 = vmatprep.subr.mxu0 0.0
    %4349 = vmatpush1.msra.mxu0 %v867
    %4350 = vmatprep.subr.mxu0 0.0
    %4351 = vmatpush1.msra.mxu0 %v868
    %4352 = vmatprep.subr.mxu0 0.0
    %4353 = vmatpush1.msra.mxu0 %v869
    %4354 = vmatprep.subr.mxu0 0.0
    %4355 = vmatpush1.msra.mxu0 %v870
    %4356 = vmatprep.subr.mxu0 0.0
    %4357 = vmatpush1.msra.mxu0 %v871
    %4358 = vmatprep.subr.mxu0 0.0
    %4359 = vmatpush1.msra.mxu0 %v872
    %4360 = vmatprep.subr.mxu0 0.0
    %4361 = vmatpush1.msra.mxu0 %v873
    %4362 = vmatprep.subr.mxu0 0.0
    %4363 = vmatpush1.msra.mxu0 %v874
    %4364 = vmatprep.subr.mxu0 0.0
    %4365 = vmatpush1.msra.mxu0 %v875
    %4366 = vmatprep.subr.mxu0 0.0
    %4367 = vmatpush1.msra.mxu0 %v876
    %4368 = vmatprep.subr.mxu0 0.0
    %4369 = vmatpush1.msra.mxu0 %v877
    %4370 = vmatprep.subr.mxu0 0.0
    %4371 = vmatpush1.msra.mxu0 %v878
    %4372 = vmatprep.subr.mxu0 0.0
    %4373 = vmatpush1.msra.mxu0 %v879
    %4374 = vmatprep.subr.mxu0 0.0
    %4375 = vmatpush1.msra.mxu0 %v880
    %4376 = vmatprep.subr.mxu0 0.0
    %4377 = vmatpush1.msra.mxu0 %v881
    %4378 = vmatprep.subr.mxu0 0.0
    %4379 = vmatpush1.msra.mxu0 %v882
    %4380 = vmatprep.subr.mxu0 0.0
    %4381 = vmatpush1.msra.mxu0 %v883
    %4382 = vmatprep.subr.mxu0 0.0
    %4383 = vmatpush1.msra.mxu0 %v884
    %4384 = vmatprep.subr.mxu0 0.0
    %4385 = vmatpush1.msra.mxu0 %v885
    %4386 = vmatprep.subr.mxu0 0.0
    %4387 = vmatpush1.msra.mxu0 %v886
    %4388 = vmatprep.subr.mxu0 0.0
    %4389 = vmatpush1.msra.mxu0 %v887
    %4390 = vmatprep.subr.mxu0 0.0
    %4391 = vmatpush1.msra.mxu0 %v888
    %4392 = vmatprep.subr.mxu0 0.0
    %4393 = vmatpush1.msra.mxu0 %v889
    %4394 = vmatprep.subr.mxu0 0.0
    %4395 = vmatpush1.msra.mxu0 %v890
    %4396 = vmatprep.mubr.f32.mxu0 %v2193
    %4397 = vmatmul.mubr.f32.gmra.mrb[0].mxu0 %v2192
    %v4398 = vpop.f32.mrb[0].mxu0
    %v4399 = vadd.f32 %v4329, %v4398
    %v4400 = vpop.f32.mrb[0].mxu0
    %4401 = vdwg.mxu0
    %4402 = vmatprep.subr.mxu0 0.0
    %4403 = vmatpush1.msra.mxu0 %v891
    %4404 = vmatprep.subr.mxu0 0.0
    %4405 = vmatpush1.msra.mxu0 %v892
    %4406 = vmatprep.subr.mxu0 0.0
    %4407 = vmatpush1.msra.mxu0 %v893
    %4408 = vmatprep.subr.mxu0 0.0
    %4409 = vmatpush1.msra.mxu0 %v894
    %4410 = vmatprep.subr.mxu0 0.0
    %4411 = vmatpush1.msra.mxu0 %v895
    %4412 = vmatprep.subr.mxu0 0.0
    %4413 = vmatpush1.msra.mxu0 %v896
    %4414 = vmatprep.subr.mxu0 0.0
    %4415 = vmatpush1.msra.mxu0 %v897
    %4416 = vmatprep.subr.mxu0 0.0
    %4417 = vmatpush1.msra.mxu0 %v898
    %4418 = vmatprep.subr.mxu0 0.0
    %4419 = vmatpush1.msra.mxu0 %v899
    %4420 = vmatprep.subr.mxu0 0.0
    %4421 = vmatpush1.msra.mxu0 %v900
    %4422 = vmatprep.subr.mxu0 0.0
    %4423 = vmatpush1.msra.mxu0 %v901
    %4424 = vmatprep.subr.mxu0 0.0
    %4425 = vmatpush1.msra.mxu0 %v902
    %4426 = vmatprep.subr.mxu0 0.0
    %4427 = vmatpush1.msra.mxu0 %v903
    %4428 = vmatprep.subr.mxu0 0.0
    %4429 = vmatpush1.msra.mxu0 %v904
    %4430 = vmatprep.subr.mxu0 0.0
    %4431 = vmatpush1.msra.mxu0 %v905
    %4432 = vmatprep.subr.mxu0 0.0
    %4433 = vmatpush1.msra.mxu0 %v906
    %4434 = vmatprep.subr.mxu0 0.0
    %4435 = vmatpush1.msra.mxu0 %v907
    %4436 = vmatprep.subr.mxu0 0.0
    %4437 = vmatpush1.msra.mxu0 %v908
    %4438 = vmatprep.subr.mxu0 0.0
    %4439 = vmatpush1.msra.mxu0 %v909
    %4440 = vmatprep.subr.mxu0 0.0
    %4441 = vmatpush1.msra.mxu0 %v910
    %4442 = vmatprep.subr.mxu0 0.0
    %4443 = vmatpush1.msra.mxu0 %v911
    %4444 = vmatprep.subr.mxu0 0.0
    %4445 = vmatpush1.msra.mxu0 %v912
    %4446 = vmatprep.subr.mxu0 0.0
    %4447 = vmatpush1.msra.mxu0 %v913
    %4448 = vmatprep.subr.mxu0 0.0
    %4449 = vmatpush1.msra.mxu0 %v914
    %4450 = vmatprep.subr.mxu0 0.0
    %4451 = vmatpush1.msra.mxu0 %v915
    %4452 = vmatprep.subr.mxu0 0.0
    %4453 = vmatpush1.msra.mxu0 %v916
    %4454 = vmatprep.subr.mxu0 0.0
    %4455 = vmatpush1.msra.mxu0 %v917
    %4456 = vmatprep.subr.mxu0 0.0
    %4457 = vmatpush1.msra.mxu0 %v918
    %4458 = vmatprep.subr.mxu0 0.0
    %4459 = vmatpush1.msra.mxu0 %v919
    %4460 = vmatprep.subr.mxu0 0.0
    %4461 = vmatpush1.msra.mxu0 %v920
    %4462 = vmatprep.subr.mxu0 0.0
    %4463 = vmatpush1.msra.mxu0 %v921
    %4464 = vmatprep.subr.mxu0 0.0
    %4465 = vmatpush1.msra.mxu0 %v922
    %4466 = vmatprep.mubr.f32.mxu0 %v2227
    %4467 = vmatmul.mubr.f32.gmra.mrb[0].mxu0 %v2226
    %v4468 = vpop.f32.mrb[0].mxu0
    %v4469 = vadd.f32 %v4399, %v4468
    %v4470 = vpop.f32.mrb[0].mxu0
    %4471 = vdwg.mxu0
    %4472 = vmatprep.subr.mxu0 0.0
    %4473 = vmatpush1.msra.mxu0 %v923
    %4474 = vmatprep.subr.mxu0 0.0
    %4475 = vmatpush1.msra.mxu0 %v924
    %4476 = vmatprep.subr.mxu0 0.0
    %4477 = vmatpush1.msra.mxu0 %v925
    %4478 = vmatprep.subr.mxu0 0.0
    %4479 = vmatpush1.msra.mxu0 %v926
    %4480 = vmatprep.subr.mxu0 0.0
    %4481 = vmatpush1.msra.mxu0 %v927
    %4482 = vmatprep.subr.mxu0 0.0
    %4483 = vmatpush1.msra.mxu0 %v928
    %4484 = vmatprep.subr.mxu0 0.0
    %4485 = vmatpush1.msra.mxu0 %v929
    %4486 = vmatprep.subr.mxu0 0.0
    %4487 = vmatpush1.msra.mxu0 %v930
    %4488 = vmatprep.subr.mxu0 0.0
    %4489 = vmatpush1.msra.mxu0 %v931
    %4490 = vmatprep.subr.mxu0 0.0
    %4491 = vmatpush1.msra.mxu0 %v932
    %4492 = vmatprep.subr.mxu0 0.0
    %4493 = vmatpush1.msra.mxu0 %v933
    %4494 = vmatprep.subr.mxu0 0.0
    %4495 = vmatpush1.msra.mxu0 %v934
    %4496 = vmatprep.subr.mxu0 0.0
    %4497 = vmatpush1.msra.mxu0 %v935
    %4498 = vmatprep.subr.mxu0 0.0
    %4499 = vmatpush1.msra.mxu0 %v936
    %4500 = vmatprep.subr.mxu0 0.0
    %4501 = vmatpush1.msra.mxu0 %v937
    %4502 = vmatprep.subr.mxu0 0.0
    %4503 = vmatpush1.msra.mxu0 %v938
    %4504 = vmatprep.subr.mxu0 0.0
    %4505 = vmatpush1.msra.mxu0 %v939
    %4506 = vmatprep.subr.mxu0 0.0
    %4507 = vmatpush1.msra.mxu0 %v940
    %4508 = vmatprep.subr.mxu0 0.0
    %4509 = vmatpush1.msra.mxu0 %v941
    %4510 = vmatprep.subr.mxu0 0.0
    %4511 = vmatpush1.msra.mxu0 %v942
    %4512 = vmatprep.subr.mxu0 0.0
    %4513 = vmatpush1.msra.mxu0 %v943
    %4514 = vmatprep.subr.mxu0 0.0
    %4515 = vmatpush1.msra.mxu0 %v944
    %4516 = vmatprep.subr.mxu0 0.0
    %4517 = vmatpush1.msra.mxu0 %v945
    %4518 = vmatprep.subr.mxu0 0.0
    %4519 = vmatpush1.msra.mxu0 %v946
    %4520 = vmatprep.subr.mxu0 0.0
    %4521 = vmatpush1.msra.mxu0 %v947
    %4522 = vmatprep.subr.mxu0 0.0
    %4523 = vmatpush1.msra.mxu0 %v948
    %4524 = vmatprep.subr.mxu0 0.0
    %4525 = vmatpush1.msra.mxu0 %v949
    %4526 = vmatprep.subr.mxu0 0.0
    %4527 = vmatpush1.msra.mxu0 %v950
    %4528 = vmatprep.subr.mxu0 0.0
    %4529 = vmatpush1.msra.mxu0 %v951
    %4530 = vmatprep.subr.mxu0 0.0
    %4531 = vmatpush1.msra.mxu0 %v952
    %4532 = vmatprep.subr.mxu0 0.0
    %4533 = vmatpush1.msra.mxu0 %v953
    %4534 = vmatprep.subr.mxu0 0.0
    %4535 = vmatpush1.msra.mxu0 %v954
    %4536 = vmatprep.mubr.f32.mxu0 %v2229
    %4537 = vmatmul.mubr.f32.gmra.mrb[0].mxu0 %v2228
    %v4538 = vpop.f32.mrb[0].mxu0
    %v4539 = vadd.f32 %v4469, %v4538
    %v4540 = vpop.f32.mrb[0].mxu0
    %4541 = vdwg.mxu0
    %4542 = vmatprep.subr.mxu0 0.0
    %4543 = vmatpush1.msra.mxu0 %v955
    %4544 = vmatprep.subr.mxu0 0.0
    %4545 = vmatpush1.msra.mxu0 %v956
    %4546 = vmatprep.subr.mxu0 0.0
    %4547 = vmatpush1.msra.mxu0 %v957
    %4548 = vmatprep.subr.mxu0 0.0
    %4549 = vmatpush1.msra.mxu0 %v958
    %4550 = vmatprep.subr.mxu0 0.0
    %4551 = vmatpush1.msra.mxu0 %v959
    %4552 = vmatprep.subr.mxu0 0.0
    %4553 = vmatpush1.msra.mxu0 %v960
    %4554 = vmatprep.subr.mxu0 0.0
    %4555 = vmatpush1.msra.mxu0 %v961
    %4556 = vmatprep.subr.mxu0 0.0
    %4557 = vmatpush1.msra.mxu0 %v962
    %4558 = vmatprep.subr.mxu0 0.0
    %4559 = vmatpush1.msra.mxu0 %v963
    %4560 = vmatprep.subr.mxu0 0.0
    %4561 = vmatpush1.msra.mxu0 %v964
    %4562 = vmatprep.subr.mxu0 0.0
    %4563 = vmatpush1.msra.mxu0 %v965
    %4564 = vmatprep.subr.mxu0 0.0
    %4565 = vmatpush1.msra.mxu0 %v966
    %4566 = vmatprep.subr.mxu0 0.0
    %4567 = vmatpush1.msra.mxu0 %v967
    %4568 = vmatprep.subr.mxu0 0.0
    %4569 = vmatpush1.msra.mxu0 %v968
    %4570 = vmatprep.subr.mxu0 0.0
    %4571 = vmatpush1.msra.mxu0 %v969
    %4572 = vmatprep.subr.mxu0 0.0
    %4573 = vmatpush1.msra.mxu0 %v970
    %4574 = vmatprep.subr.mxu0 0.0
    %4575 = vmatpush1.msra.mxu0 %v971
    %4576 = vmatprep.subr.mxu0 0.0
    %4577 = vmatpush1.msra.mxu0 %v972
    %4578 = vmatprep.subr.mxu0 0.0
    %4579 = vmatpush1.msra.mxu0 %v973
    %4580 = vmatprep.subr.mxu0 0.0
    %4581 = vmatpush1.msra.mxu0 %v974
    %4582 = vmatprep.subr.mxu0 0.0
    %4583 = vmatpush1.msra.mxu0 %v975
    %4584 = vmatprep.subr.mxu0 0.0
    %4585 = vmatpush1.msra.mxu0 %v976
    %4586 = vmatprep.subr.mxu0 0.0
    %4587 = vmatpush1.msra.mxu0 %v977
    %4588 = vmatprep.subr.mxu0 0.0
    %4589 = vmatpush1.msra.mxu0 %v978
    %4590 = vmatprep.subr.mxu0 0.0
    %4591 = vmatpush1.msra.mxu0 %v979
    %4592 = vmatprep.subr.mxu0 0.0
    %4593 = vmatpush1.msra.mxu0 %v980
    %4594 = vmatprep.subr.mxu0 0.0
    %4595 = vmatpush1.msra.mxu0 %v981
    %4596 = vmatprep.subr.mxu0 0.0
    %4597 = vmatpush1.msra.mxu0 %v982
    %4598 = vmatprep.subr.mxu0 0.0
    %4599 = vmatpush1.msra.mxu0 %v983
    %4600 = vmatprep.subr.mxu0 0.0
    %4601 = vmatpush1.msra.mxu0 %v984
    %4602 = vmatprep.subr.mxu0 0.0
    %4603 = vmatpush1.msra.mxu0 %v985
    %4604 = vmatprep.subr.mxu0 0.0
    %4605 = vmatpush1.msra.mxu0 %v986
    %4606 = vmatprep.mubr.f32.mxu0 %v2263
    %4607 = vmatmul.mubr.f32.gmra.mrb[0].mxu0 %v2262
    %v4608 = vpop.f32.mrb[0].mxu0
    %v4609 = vadd.f32 %v4539, %v4608
    %v4610 = vpop.f32.mrb[0].mxu0
    %4611 = vdwg.mxu0
    %4612 = vmatprep.subr.mxu0 0.0
    %4613 = vmatpush1.msra.mxu0 %v987
    %4614 = vmatprep.subr.mxu0 0.0
    %4615 = vmatpush1.msra.mxu0 %v988
    %4616 = vmatprep.subr.mxu0 0.0
    %4617 = vmatpush1.msra.mxu0 %v989
    %4618 = vmatprep.subr.mxu0 0.0
    %4619 = vmatpush1.msra.mxu0 %v990
    %4620 = vmatprep.subr.mxu0 0.0
    %4621 = vmatpush1.msra.mxu0 %v991
    %4622 = vmatprep.subr.mxu0 0.0
    %4623 = vmatpush1.msra.mxu0 %v992
    %4624 = vmatprep.subr.mxu0 0.0
    %4625 = vmatpush1.msra.mxu0 %v993
    %4626 = vmatprep.subr.mxu0 0.0
    %4627 = vmatpush1.msra.mxu0 %v994
    %4628 = vmatprep.subr.mxu0 0.0
    %4629 = vmatpush1.msra.mxu0 %v995
    %4630 = vmatprep.subr.mxu0 0.0
    %4631 = vmatpush1.msra.mxu0 %v996
    %4632 = vmatprep.subr.mxu0 0.0
    %4633 = vmatpush1.msra.mxu0 %v997
    %4634 = vmatprep.subr.mxu0 0.0
    %4635 = vmatpush1.msra.mxu0 %v998
    %4636 = vmatprep.subr.mxu0 0.0
    %4637 = vmatpush1.msra.mxu0 %v999
    %4638 = vmatprep.subr.mxu0 0.0
    %4639 = vmatpush1.msra.mxu0 %v1000
    %4640 = vmatprep.subr.mxu0 0.0
    %4641 = vmatpush1.msra.mxu0 %v1001
    %4642 = vmatprep.subr.mxu0 0.0
    %4643 = vmatpush1.msra.mxu0 %v1002
    %4644 = vmatprep.subr.mxu0 0.0
    %4645 = vmatpush1.msra.mxu0 %v1003
    %4646 = vmatprep.subr.mxu0 0.0
    %4647 = vmatpush1.msra.mxu0 %v1004
    %4648 = vmatprep.subr.mxu0 0.0
    %4649 = vmatpush1.msra.mxu0 %v1005
    %4650 = vmatprep.subr.mxu0 0.0
    %4651 = vmatpush1.msra.mxu0 %v1006
    %4652 = vmatprep.subr.mxu0 0.0
    %4653 = vmatpush1.msra.mxu0 %v1007
    %4654 = vmatprep.subr.mxu0 0.0
    %4655 = vmatpush1.msra.mxu0 %v1008
    %4656 = vmatprep.subr.mxu0 0.0
    %4657 = vmatpush1.msra.mxu0 %v1009
    %4658 = vmatprep.subr.mxu0 0.0
    %4659 = vmatpush1.msra.mxu0 %v1010
    %4660 = vmatprep.subr.mxu0 0.0
    %4661 = vmatpush1.msra.mxu0 %v1011
    %4662 = vmatprep.subr.mxu0 0.0
    %4663 = vmatpush1.msra.mxu0 %v1012
    %4664 = vmatprep.subr.mxu0 0.0
    %4665 = vmatpush1.msra.mxu0 %v1013
    %4666 = vmatprep.subr.mxu0 0.0
    %4667 = vmatpush1.msra.mxu0 %v1014
    %4668 = vmatprep.subr.mxu0 0.0
    %4669 = vmatpush1.msra.mxu0 %v1015
    %4670 = vmatprep.subr.mxu0 0.0
    %4671 = vmatpush1.msra.mxu0 %v1016
    %4672 = vmatprep.subr.mxu0 0.0
    %4673 = vmatpush1.msra.mxu0 %v1017
    %4674 = vmatprep.subr.mxu0 0.0
    %4675 = vmatpush1.msra.mxu0 %v1018
    %4676 = vmatprep.mubr.f32.mxu0 %v2265
    %4677 = vmatmul.mubr.f32.gmra.mrb[0].mxu0 %v2264
    %v4678 = vpop.f32.mrb[0].mxu0
    %v4679 = vadd.f32 %v4609, %v4678
    %v4680 = vpop.f32.mrb[0].mxu0
    %4681 = vdwg.mxu0
    %4682 = vmatprep.subr.mxu0 0.0
    %4683 = vmatpush1.msra.mxu0 %v1019
    %4684 = vmatprep.subr.mxu0 0.0
    %4685 = vmatpush1.msra.mxu0 %v1020
    %4686 = vmatprep.subr.mxu0 0.0
    %4687 = vmatpush1.msra.mxu0 %v1021
    %4688 = vmatprep.subr.mxu0 0.0
    %4689 = vmatpush1.msra.mxu0 %v1022
    %4690 = vmatprep.subr.mxu0 0.0
    %4691 = vmatpush1.msra.mxu0 %v1023
    %4692 = vmatprep.subr.mxu0 0.0
    %4693 = vmatpush1.msra.mxu0 %v1024
    %4694 = vmatprep.subr.mxu0 0.0
    %4695 = vmatpush1.msra.mxu0 %v1025
    %4696 = vmatprep.subr.mxu0 0.0
    %4697 = vmatpush1.msra.mxu0 %v1026
    %4698 = vmatprep.subr.mxu0 0.0
    %4699 = vmatpush1.msra.mxu0 %v1027
    %4700 = vmatprep.subr.mxu0 0.0
    %4701 = vmatpush1.msra.mxu0 %v1028
    %4702 = vmatprep.subr.mxu0 0.0
    %4703 = vmatpush1.msra.mxu0 %v1029
    %4704 = vmatprep.subr.mxu0 0.0
    %4705 = vmatpush1.msra.mxu0 %v1030
    %4706 = vmatprep.subr.mxu0 0.0
    %4707 = vmatpush1.msra.mxu0 %v1031
    %4708 = vmatprep.subr.mxu0 0.0
    %4709 = vmatpush1.msra.mxu0 %v1032
    %4710 = vmatprep.subr.mxu0 0.0
    %4711 = vmatpush1.msra.mxu0 %v1033
    %4712 = vmatprep.subr.mxu0 0.0
    %4713 = vmatpush1.msra.mxu0 %v1034
    %4714 = vmatprep.subr.mxu0 0.0
    %4715 = vmatpush1.msra.mxu0 %v1035
    %4716 = vmatprep.subr.mxu0 0.0
    %4717 = vmatpush1.msra.mxu0 %v1036
    %4718 = vmatprep.subr.mxu0 0.0
    %4719 = vmatpush1.msra.mxu0 %v1037
    %4720 = vmatprep.subr.mxu0 0.0
    %4721 = vmatpush1.msra.mxu0 %v1038
    %4722 = vmatprep.subr.mxu0 0.0
    %4723 = vmatpush1.msra.mxu0 %v1039
    %4724 = vmatprep.subr.mxu0 0.0
    %4725 = vmatpush1.msra.mxu0 %v1040
    %4726 = vmatprep.subr.mxu0 0.0
    %4727 = vmatpush1.msra.mxu0 %v1041
    %4728 = vmatprep.subr.mxu0 0.0
    %4729 = vmatpush1.msra.mxu0 %v1042
    %4730 = vmatprep.subr.mxu0 0.0
    %4731 = vmatpush1.msra.mxu0 %v1043
    %4732 = vmatprep.subr.mxu0 0.0
    %4733 = vmatpush1.msra.mxu0 %v1044
    %4734 = vmatprep.subr.mxu0 0.0
    %4735 = vmatpush1.msra.mxu0 %v1045
    %4736 = vmatprep.subr.mxu0 0.0
    %4737 = vmatpush1.msra.mxu0 %v1046
    %4738 = vmatprep.subr.mxu0 0.0
    %4739 = vmatpush1.msra.mxu0 %v1047
    %4740 = vmatprep.subr.mxu0 0.0
    %4741 = vmatpush1.msra.mxu0 %v1048
    %4742 = vmatprep.subr.mxu0 0.0
    %4743 = vmatpush1.msra.mxu0 %v1049
    %4744 = vmatprep.subr.mxu0 0.0
    %4745 = vmatpush1.msra.mxu0 %v1050
    %4746 = vmatprep.mubr.f32.mxu0 %v2299
    %4747 = vmatmul.mubr.f32.gmra.mrb[0].mxu0 %v2298
    %v4748 = vpop.f32.mrb[0].mxu0
    %v4749 = vadd.f32 %v4679, %v4748
    %v4750 = vpop.f32.mrb[0].mxu0
    %4751 = vdwg.mxu0
    %4752 = vmatprep.subr.mxu0 0.0
    %4753 = vmatpush1.msra.mxu0 %v1051
    %4754 = vmatprep.subr.mxu0 0.0
    %4755 = vmatpush1.msra.mxu0 %v1052
    %4756 = vmatprep.subr.mxu0 0.0
    %4757 = vmatpush1.msra.mxu0 %v1053
    %4758 = vmatprep.subr.mxu0 0.0
    %4759 = vmatpush1.msra.mxu0 %v1054
    %4760 = vmatprep.subr.mxu0 0.0
    %4761 = vmatpush1.msra.mxu0 %v1055
    %4762 = vmatprep.subr.mxu0 0.0
    %4763 = vmatpush1.msra.mxu0 %v1056
    %4764 = vmatprep.subr.mxu0 0.0
    %4765 = vmatpush1.msra.mxu0 %v1057
    %4766 = vmatprep.subr.mxu0 0.0
    %4767 = vmatpush1.msra.mxu0 %v1058
    %4768 = vmatprep.subr.mxu0 0.0
    %4769 = vmatpush1.msra.mxu0 %v1059
    %4770 = vmatprep.subr.mxu0 0.0
    %4771 = vmatpush1.msra.mxu0 %v1060
    %4772 = vmatprep.subr.mxu0 0.0
    %4773 = vmatpush1.msra.mxu0 %v1061
    %4774 = vmatprep.subr.mxu0 0.0
    %4775 = vmatpush1.msra.mxu0 %v1062
    %4776 = vmatprep.subr.mxu0 0.0
    %4777 = vmatpush1.msra.mxu0 %v1063
    %4778 = vmatprep.subr.mxu0 0.0
    %4779 = vmatpush1.msra.mxu0 %v1064
    %4780 = vmatprep.subr.mxu0 0.0
    %4781 = vmatpush1.msra.mxu0 %v1065
    %4782 = vmatprep.subr.mxu0 0.0
    %4783 = vmatpush1.msra.mxu0 %v1066
    %4784 = vmatprep.subr.mxu0 0.0
    %4785 = vmatpush1.msra.mxu0 %v1067
    %4786 = vmatprep.subr.mxu0 0.0
    %4787 = vmatpush1.msra.mxu0 %v1068
    %4788 = vmatprep.subr.mxu0 0.0
    %4789 = vmatpush1.msra.mxu0 %v1069
    %4790 = vmatprep.subr.mxu0 0.0
    %4791 = vmatpush1.msra.mxu0 %v1070
    %4792 = vmatprep.subr.mxu0 0.0
    %4793 = vmatpush1.msra.mxu0 %v1071
    %4794 = vmatprep.subr.mxu0 0.0
    %4795 = vmatpush1.msra.mxu0 %v1072
    %4796 = vmatprep.subr.mxu0 0.0
    %4797 = vmatpush1.msra.mxu0 %v1073
    %4798 = vmatprep.subr.mxu0 0.0
    %4799 = vmatpush1.msra.mxu0 %v1074
    %4800 = vmatprep.subr.mxu0 0.0
    %4801 = vmatpush1.msra.mxu0 %v1075
    %4802 = vmatprep.subr.mxu0 0.0
    %4803 = vmatpush1.msra.mxu0 %v1076
    %4804 = vmatprep.subr.mxu0 0.0
    %4805 = vmatpush1.msra.mxu0 %v1077
    %4806 = vmatprep.subr.mxu0 0.0
    %4807 = vmatpush1.msra.mxu0 %v1078
    %4808 = vmatprep.subr.mxu0 0.0
    %4809 = vmatpush1.msra.mxu0 %v1079
    %4810 = vmatprep.subr.mxu0 0.0
    %4811 = vmatpush1.msra.mxu0 %v1080
    %4812 = vmatprep.subr.mxu0 0.0
    %4813 = vmatpush1.msra.mxu0 %v1081
    %4814 = vmatprep.subr.mxu0 0.0
    %4815 = vmatpush1.msra.mxu0 %v1082
    %4816 = vmatprep.mubr.f32.mxu0 %v2301
    %4817 = vmatmul.mubr.f32.gmra.mrb[0].mxu0 %v2300
    %v4818 = vpop.f32.mrb[0].mxu0
    %v4819 = vadd.f32 %v4749, %v4818
    %v4820 = vpop.f32.mrb[0].mxu0
    %4821 = vdwg.mxu0
    %4822 = vmatprep.subr.mxu0 0.0
    %4823 = vmatpush1.msra.mxu0 %v1083
    %4824 = vmatprep.subr.mxu0 0.0
    %4825 = vmatpush1.msra.mxu0 %v1084
    %4826 = vmatprep.subr.mxu0 0.0
    %4827 = vmatpush1.msra.mxu0 %v1085
    %4828 = vmatprep.subr.mxu0 0.0
    %4829 = vmatpush1.msra.mxu0 %v1086
    %4830 = vmatprep.subr.mxu0 0.0
    %4831 = vmatpush1.msra.mxu0 %v1087
    %4832 = vmatprep.subr.mxu0 0.0
    %4833 = vmatpush1.msra.mxu0 %v1088
    %4834 = vmatprep.subr.mxu0 0.0
    %4835 = vmatpush1.msra.mxu0 %v1089
    %4836 = vmatprep.subr.mxu0 0.0
    %4837 = vmatpush1.msra.mxu0 %v1090
    %4838 = vmatprep.subr.mxu0 0.0
    %4839 = vmatpush1.msra.mxu0 %v1091
    %4840 = vmatprep.subr.mxu0 0.0
    %4841 = vmatpush1.msra.mxu0 %v1092
    %4842 = vmatprep.subr.mxu0 0.0
    %4843 = vmatpush1.msra.mxu0 %v1093
    %4844 = vmatprep.subr.mxu0 0.0
    %4845 = vmatpush1.msra.mxu0 %v1094
    %4846 = vmatprep.subr.mxu0 0.0
    %4847 = vmatpush1.msra.mxu0 %v1095
    %4848 = vmatprep.subr.mxu0 0.0
    %4849 = vmatpush1.msra.mxu0 %v1096
    %4850 = vmatprep.subr.mxu0 0.0
    %4851 = vmatpush1.msra.mxu0 %v1097
    %4852 = vmatprep.subr.mxu0 0.0
    %4853 = vmatpush1.msra.mxu0 %v1098
    %4854 = vmatprep.subr.mxu0 0.0
    %4855 = vmatpush1.msra.mxu0 %v1099
    %4856 = vmatprep.subr.mxu0 0.0
    %4857 = vmatpush1.msra.mxu0 %v1100
    %4858 = vmatprep.subr.mxu0 0.0
    %4859 = vmatpush1.msra.mxu0 %v1101
    %4860 = vmatprep.subr.mxu0 0.0
    %4861 = vmatpush1.msra.mxu0 %v1102
    %4862 = vmatprep.subr.mxu0 0.0
    %4863 = vmatpush1.msra.mxu0 %v1103
    %4864 = vmatprep.subr.mxu0 0.0
    %4865 = vmatpush1.msra.mxu0 %v1104
    %4866 = vmatprep.subr.mxu0 0.0
    %4867 = vmatpush1.msra.mxu0 %v1105
    %4868 = vmatprep.subr.mxu0 0.0
    %4869 = vmatpush1.msra.mxu0 %v1106
    %4870 = vmatprep.subr.mxu0 0.0
    %4871 = vmatpush1.msra.mxu0 %v1107
    %4872 = vmatprep.subr.mxu0 0.0
    %4873 = vmatpush1.msra.mxu0 %v1108
    %4874 = vmatprep.subr.mxu0 0.0
    %4875 = vmatpush1.msra.mxu0 %v1109
    %4876 = vmatprep.subr.mxu0 0.0
    %4877 = vmatpush1.msra.mxu0 %v1110
    %4878 = vmatprep.subr.mxu0 0.0
    %4879 = vmatpush1.msra.mxu0 %v1111
    %4880 = vmatprep.subr.mxu0 0.0
    %4881 = vmatpush1.msra.mxu0 %v1112
    %4882 = vmatprep.subr.mxu0 0.0
    %4883 = vmatpush1.msra.mxu0 %v1113
    %4884 = vmatprep.subr.mxu0 0.0
    %4885 = vmatpush1.msra.mxu0 %v1114
    %4886 = vmatprep.mubr.f32.mxu0 %v2335
    %4887 = vmatmul.mubr.f32.gmra.mrb[0].mxu0 %v2334
    %v4888 = vpop.f32.mrb[0].mxu0
    %v4889 = vadd.f32 %v4819, %v4888
    %v4890 = vpop.f32.mrb[0].mxu0
    %4891 = vdwg.mxu0
    %4892 = vmatprep.subr.mxu0 0.0
    %4893 = vmatpush1.msra.mxu0 %v1115
    %4894 = vmatprep.subr.mxu0 0.0
    %4895 = vmatpush1.msra.mxu0 %v1116
    %4896 = vmatprep.subr.mxu0 0.0
    %4897 = vmatpush1.msra.mxu0 %v1117
    %4898 = vmatprep.subr.mxu0 0.0
    %4899 = vmatpush1.msra.mxu0 %v1118
    %4900 = vmatprep.subr.mxu0 0.0
    %4901 = vmatpush1.msra.mxu0 %v1119
    %4902 = vmatprep.subr.mxu0 0.0
    %4903 = vmatpush1.msra.mxu0 %v1120
    %4904 = vmatprep.subr.mxu0 0.0
    %4905 = vmatpush1.msra.mxu0 %v1121
    %4906 = vmatprep.subr.mxu0 0.0
    %4907 = vmatpush1.msra.mxu0 %v1122
    %4908 = vmatprep.subr.mxu0 0.0
    %4909 = vmatpush1.msra.mxu0 %v1123
    %4910 = vmatprep.subr.mxu0 0.0
    %4911 = vmatpush1.msra.mxu0 %v1124
    %4912 = vmatprep.subr.mxu0 0.0
    %4913 = vmatpush1.msra.mxu0 %v1125
    %4914 = vmatprep.subr.mxu0 0.0
    %4915 = vmatpush1.msra.mxu0 %v1126
    %4916 = vmatprep.subr.mxu0 0.0
    %4917 = vmatpush1.msra.mxu0 %v1127
    %4918 = vmatprep.subr.mxu0 0.0
    %4919 = vmatpush1.msra.mxu0 %v1128
    %4920 = vmatprep.subr.mxu0 0.0
    %4921 = vmatpush1.msra.mxu0 %v1129
    %4922 = vmatprep.subr.mxu0 0.0
    %4923 = vmatpush1.msra.mxu0 %v1130
    %4924 = vmatprep.subr.mxu0 0.0
    %4925 = vmatpush1.msra.mxu0 %v1131
    %4926 = vmatprep.subr.mxu0 0.0
    %4927 = vmatpush1.msra.mxu0 %v1132
    %4928 = vmatprep.subr.mxu0 0.0
    %4929 = vmatpush1.msra.mxu0 %v1133
    %4930 = vmatprep.subr.mxu0 0.0
    %4931 = vmatpush1.msra.mxu0 %v1134
    %4932 = vmatprep.subr.mxu0 0.0
    %4933 = vmatpush1.msra.mxu0 %v1135
    %4934 = vmatprep.subr.mxu0 0.0
    %4935 = vmatpush1.msra.mxu0 %v1136
    %4936 = vmatprep.subr.mxu0 0.0
    %4937 = vmatpush1.msra.mxu0 %v1137
    %4938 = vmatprep.subr.mxu0 0.0
    %4939 = vmatpush1.msra.mxu0 %v1138
    %4940 = vmatprep.subr.mxu0 0.0
    %4941 = vmatpush1.msra.mxu0 %v1139
    %4942 = vmatprep.subr.mxu0 0.0
    %4943 = vmatpush1.msra.mxu0 %v1140
    %4944 = vmatprep.subr.mxu0 0.0
    %4945 = vmatpush1.msra.mxu0 %v1141
    %4946 = vmatprep.subr.mxu0 0.0
    %4947 = vmatpush1.msra.mxu0 %v1142
    %4948 = vmatprep.subr.mxu0 0.0
    %4949 = vmatpush1.msra.mxu0 %v1143
    %4950 = vmatprep.subr.mxu0 0.0
    %4951 = vmatpush1.msra.mxu0 %v1144
    %4952 = vmatprep.subr.mxu0 0.0
    %4953 = vmatpush1.msra.mxu0 %v1145
    %4954 = vmatprep.subr.mxu0 0.0
    %4955 = vmatpush1.msra.mxu0 %v1146
    %4956 = vmatprep.mubr.f32.mxu0 %v2337
    %4957 = vmatmul.mubr.f32.gmra.mrb[0].mxu0 %v2336
    %v4958 = vpop.f32.mrb[0].mxu0
    %v4959 = vadd.f32 %v4889, %v4958
    %v4960 = vpop.f32.mrb[0].mxu0
    %4961 = vdwg.mxu0
    %4962 = vmatprep.subr.mxu0 0.0
    %4963 = vmatpush1.msra.mxu0 %v1147
    %4964 = vmatprep.subr.mxu0 0.0
    %4965 = vmatpush1.msra.mxu0 %v1148
    %4966 = vmatprep.subr.mxu0 0.0
    %4967 = vmatpush1.msra.mxu0 %v1149
    %4968 = vmatprep.subr.mxu0 0.0
    %4969 = vmatpush1.msra.mxu0 %v1150
    %4970 = vmatprep.subr.mxu0 0.0
    %4971 = vmatpush1.msra.mxu0 %v1151
    %4972 = vmatprep.subr.mxu0 0.0
    %4973 = vmatpush1.msra.mxu0 %v1152
    %4974 = vmatprep.subr.mxu0 0.0
    %4975 = vmatpush1.msra.mxu0 %v1153
    %4976 = vmatprep.subr.mxu0 0.0
    %4977 = vmatpush1.msra.mxu0 %v1154
    %4978 = vmatprep.subr.mxu0 0.0
    %4979 = vmatpush1.msra.mxu0 %v1155
    %4980 = vmatprep.subr.mxu0 0.0
    %4981 = vmatpush1.msra.mxu0 %v1156
    %4982 = vmatprep.subr.mxu0 0.0
    %4983 = vmatpush1.msra.mxu0 %v1157
    %4984 = vmatprep.subr.mxu0 0.0
    %4985 = vmatpush1.msra.mxu0 %v1158
    %4986 = vmatprep.subr.mxu0 0.0
    %4987 = vmatpush1.msra.mxu0 %v1159
    %4988 = vmatprep.subr.mxu0 0.0
    %4989 = vmatpush1.msra.mxu0 %v1160
    %4990 = vmatprep.subr.mxu0 0.0
    %4991 = vmatpush1.msra.mxu0 %v1161
    %4992 = vmatprep.subr.mxu0 0.0
    %4993 = vmatpush1.msra.mxu0 %v1162
    %4994 = vmatprep.subr.mxu0 0.0
    %4995 = vmatpush1.msra.mxu0 %v1163
    %4996 = vmatprep.subr.mxu0 0.0
    %4997 = vmatpush1.msra.mxu0 %v1164
    %4998 = vmatprep.subr.mxu0 0.0
    %4999 = vmatpush1.msra.mxu0 %v1165
    %5000 = vmatprep.subr.mxu0 0.0
    %5001 = vmatpush1.msra.mxu0 %v1166
    %5002 = vmatprep.subr.mxu0 0.0
    %5003 = vmatpush1.msra.mxu0 %v1167
    %5004 = vmatprep.subr.mxu0 0.0
    %5005 = vmatpush1.msra.mxu0 %v1168
    %5006 = vmatprep.subr.mxu0 0.0
    %5007 = vmatpush1.msra.mxu0 %v1169
    %5008 = vmatprep.subr.mxu0 0.0
    %5009 = vmatpush1.msra.mxu0 %v1170
    %5010 = vmatprep.subr.mxu0 0.0
    %5011 = vmatpush1.msra.mxu0 %v1171
    %5012 = vmatprep.subr.mxu0 0.0
    %5013 = vmatpush1.msra.mxu0 %v1172
    %5014 = vmatprep.subr.mxu0 0.0
    %5015 = vmatpush1.msra.mxu0 %v1173
    %5016 = vmatprep.subr.mxu0 0.0
    %5017 = vmatpush1.msra.mxu0 %v1174
    %5018 = vmatprep.subr.mxu0 0.0
    %5019 = vmatpush1.msra.mxu0 %v1175
    %5020 = vmatprep.subr.mxu0 0.0
    %5021 = vmatpush1.msra.mxu0 %v1176
    %5022 = vmatprep.subr.mxu0 0.0
    %5023 = vmatpush1.msra.mxu0 %v1177
    %5024 = vmatprep.subr.mxu0 0.0
    %5025 = vmatpush1.msra.mxu0 %v1178
    %5026 = vmatprep.mubr.f32.mxu0 %v2371
    %5027 = vmatmul.mubr.f32.gmra.mrb[0].mxu0 %v2370
    %v5028 = vpop.f32.mrb[0].mxu0
    %v5029 = vadd.f32 %v4959, %v5028
    %v5030 = vpop.f32.mrb[0].mxu0
    %5031 = vdwg.mxu0
    %5032 = vmatprep.subr.mxu0 0.0
    %5033 = vmatpush1.msra.mxu0 %v1179
    %5034 = vmatprep.subr.mxu0 0.0
    %5035 = vmatpush1.msra.mxu0 %v1180
    %5036 = vmatprep.subr.mxu0 0.0
    %5037 = vmatpush1.msra.mxu0 %v1181
    %5038 = vmatprep.subr.mxu0 0.0
    %5039 = vmatpush1.msra.mxu0 %v1182
    %5040 = vmatprep.subr.mxu0 0.0
    %5041 = vmatpush1.msra.mxu0 %v1183
    %5042 = vmatprep.subr.mxu0 0.0
    %5043 = vmatpush1.msra.mxu0 %v1184
    %5044 = vmatprep.subr.mxu0 0.0
    %5045 = vmatpush1.msra.mxu0 %v1185
    %5046 = vmatprep.subr.mxu0 0.0
    %5047 = vmatpush1.msra.mxu0 %v1186
    %5048 = vmatprep.subr.mxu0 0.0
    %5049 = vmatpush1.msra.mxu0 %v1187
    %5050 = vmatprep.subr.mxu0 0.0
    %5051 = vmatpush1.msra.mxu0 %v1188
    %5052 = vmatprep.subr.mxu0 0.0
    %5053 = vmatpush1.msra.mxu0 %v1189
    %5054 = vmatprep.subr.mxu0 0.0
    %5055 = vmatpush1.msra.mxu0 %v1190
    %5056 = vmatprep.subr.mxu0 0.0
    %5057 = vmatpush1.msra.mxu0 %v1191
    %5058 = vmatprep.subr.mxu0 0.0
    %5059 = vmatpush1.msra.mxu0 %v1192
    %5060 = vmatprep.subr.mxu0 0.0
    %5061 = vmatpush1.msra.mxu0 %v1193
    %5062 = vmatprep.subr.mxu0 0.0
    %5063 = vmatpush1.msra.mxu0 %v1194
    %5064 = vmatprep.subr.mxu0 0.0
    %5065 = vmatpush1.msra.mxu0 %v1195
    %5066 = vmatprep.subr.mxu0 0.0
    %5067 = vmatpush1.msra.mxu0 %v1196
    %5068 = vmatprep.subr.mxu0 0.0
    %5069 = vmatpush1.msra.mxu0 %v1197
    %5070 = vmatprep.subr.mxu0 0.0
    %5071 = vmatpush1.msra.mxu0 %v1198
    %5072 = vmatprep.subr.mxu0 0.0
    %5073 = vmatpush1.msra.mxu0 %v1199
    %5074 = vmatprep.subr.mxu0 0.0
    %5075 = vmatpush1.msra.mxu0 %v1200
    %5076 = vmatprep.subr.mxu0 0.0
    %5077 = vmatpush1.msra.mxu0 %v1201
    %5078 = vmatprep.subr.mxu0 0.0
    %5079 = vmatpush1.msra.mxu0 %v1202
    %5080 = vmatprep.subr.mxu0 0.0
    %5081 = vmatpush1.msra.mxu0 %v1203
    %5082 = vmatprep.subr.mxu0 0.0
    %5083 = vmatpush1.msra.mxu0 %v1204
    %5084 = vmatprep.subr.mxu0 0.0
    %5085 = vmatpush1.msra.mxu0 %v1205
    %5086 = vmatprep.subr.mxu0 0.0
    %5087 = vmatpush1.msra.mxu0 %v1206
    %5088 = vmatprep.subr.mxu0 0.0
    %5089 = vmatpush1.msra.mxu0 %v1207
    %5090 = vmatprep.subr.mxu0 0.0
    %5091 = vmatpush1.msra.mxu0 %v1208
    %5092 = vmatprep.subr.mxu0 0.0
    %5093 = vmatpush1.msra.mxu0 %v1209
    %5094 = vmatprep.subr.mxu0 0.0
    %5095 = vmatpush1.msra.mxu0 %v1210
    %5096 = vmatprep.mubr.f32.mxu0 %v2373
    %5097 = vmatmul.mubr.f32.gmra.mrb[0].mxu0 %v2372
    %v5098 = vpop.f32.mrb[0].mxu0
    %v5099 = vadd.f32 %v5029, %v5098
    %v5100 = vpop.f32.mrb[0].mxu0
    %5101 = vdwg.mxu0
    %5102 = vmatprep.subr.mxu0 0.0
    %5103 = vmatpush1.msra.mxu0 %v1211
    %5104 = vmatprep.subr.mxu0 0.0
    %5105 = vmatpush1.msra.mxu0 %v1212
    %5106 = vmatprep.subr.mxu0 0.0
    %5107 = vmatpush1.msra.mxu0 %v1213
    %5108 = vmatprep.subr.mxu0 0.0
    %5109 = vmatpush1.msra.mxu0 %v1214
    %5110 = vmatprep.subr.mxu0 0.0
    %5111 = vmatpush1.msra.mxu0 %v1215
    %5112 = vmatprep.subr.mxu0 0.0
    %5113 = vmatpush1.msra.mxu0 %v1216
    %5114 = vmatprep.subr.mxu0 0.0
    %5115 = vmatpush1.msra.mxu0 %v1217
    %5116 = vmatprep.subr.mxu0 0.0
    %5117 = vmatpush1.msra.mxu0 %v1218
    %5118 = vmatprep.subr.mxu0 0.0
    %5119 = vmatpush1.msra.mxu0 %v1219
    %5120 = vmatprep.subr.mxu0 0.0
    %5121 = vmatpush1.msra.mxu0 %v1220
    %5122 = vmatprep.subr.mxu0 0.0
    %5123 = vmatpush1.msra.mxu0 %v1221
    %5124 = vmatprep.subr.mxu0 0.0
    %5125 = vmatpush1.msra.mxu0 %v1222
    %5126 = vmatprep.subr.mxu0 0.0
    %5127 = vmatpush1.msra.mxu0 %v1223
    %5128 = vmatprep.subr.mxu0 0.0
    %5129 = vmatpush1.msra.mxu0 %v1224
    %5130 = vmatprep.subr.mxu0 0.0
    %5131 = vmatpush1.msra.mxu0 %v1225
    %5132 = vmatprep.subr.mxu0 0.0
    %5133 = vmatpush1.msra.mxu0 %v1226
    %5134 = vmatprep.subr.mxu0 0.0
    %5135 = vmatpush1.msra.mxu0 %v1227
    %5136 = vmatprep.subr.mxu0 0.0
    %5137 = vmatpush1.msra.mxu0 %v1228
    %5138 = vmatprep.subr.mxu0 0.0
    %5139 = vmatpush1.msra.mxu0 %v1229
    %5140 = vmatprep.subr.mxu0 0.0
    %5141 = vmatpush1.msra.mxu0 %v1230
    %5142 = vmatprep.subr.mxu0 0.0
    %5143 = vmatpush1.msra.mxu0 %v1231
    %5144 = vmatprep.subr.mxu0 0.0
    %5145 = vmatpush1.msra.mxu0 %v1232
    %5146 = vmatprep.subr.mxu0 0.0
    %5147 = vmatpush1.msra.mxu0 %v1233
    %5148 = vmatprep.subr.mxu0 0.0
    %5149 = vmatpush1.msra.mxu0 %v1234
    %5150 = vmatprep.subr.mxu0 0.0
    %5151 = vmatpush1.msra.mxu0 %v1235
    %5152 = vmatprep.subr.mxu0 0.0
    %5153 = vmatpush1.msra.mxu0 %v1236
    %5154 = vmatprep.subr.mxu0 0.0
    %5155 = vmatpush1.msra.mxu0 %v1237
    %5156 = vmatprep.subr.mxu0 0.0
    %5157 = vmatpush1.msra.mxu0 %v1238
    %5158 = vmatprep.subr.mxu0 0.0
    %5159 = vmatpush1.msra.mxu0 %v1239
    %5160 = vmatprep.subr.mxu0 0.0
    %5161 = vmatpush1.msra.mxu0 %v1240
    %5162 = vmatprep.subr.mxu0 0.0
    %5163 = vmatpush1.msra.mxu0 %v1241
    %5164 = vmatprep.subr.mxu0 0.0
    %5165 = vmatpush1.msra.mxu0 %v1242
    %5166 = vmatprep.mubr.f32.mxu0 %v2407
    %5167 = vmatmul.mubr.f32.gmra.mrb[0].mxu0 %v2406
    %v5168 = vpop.f32.mrb[0].mxu0
    %v5169 = vadd.f32 %v5099, %v5168
    %v5170 = vpop.f32.mrb[0].mxu0
    %5171 = vdwg.mxu0
    %5172 = vmatprep.subr.mxu0 0.0
    %5173 = vmatpush1.msra.mxu0 %v1243
    %5174 = vmatprep.subr.mxu0 0.0
    %5175 = vmatpush1.msra.mxu0 %v1244
    %5176 = vmatprep.subr.mxu0 0.0
    %5177 = vmatpush1.msra.mxu0 %v1245
    %5178 = vmatprep.subr.mxu0 0.0
    %5179 = vmatpush1.msra.mxu0 %v1246
    %5180 = vmatprep.subr.mxu0 0.0
    %5181 = vmatpush1.msra.mxu0 %v1247
    %5182 = vmatprep.subr.mxu0 0.0
    %5183 = vmatpush1.msra.mxu0 %v1248
    %5184 = vmatprep.subr.mxu0 0.0
    %5185 = vmatpush1.msra.mxu0 %v1249
    %5186 = vmatprep.subr.mxu0 0.0
    %5187 = vmatpush1.msra.mxu0 %v1250
    %5188 = vmatprep.subr.mxu0 0.0
    %5189 = vmatpush1.msra.mxu0 %v1251
    %5190 = vmatprep.subr.mxu0 0.0
    %5191 = vmatpush1.msra.mxu0 %v1252
    %5192 = vmatprep.subr.mxu0 0.0
    %5193 = vmatpush1.msra.mxu0 %v1253
    %5194 = vmatprep.subr.mxu0 0.0
    %5195 = vmatpush1.msra.mxu0 %v1254
    %5196 = vmatprep.subr.mxu0 0.0
    %5197 = vmatpush1.msra.mxu0 %v1255
    %5198 = vmatprep.subr.mxu0 0.0
    %5199 = vmatpush1.msra.mxu0 %v1256
    %5200 = vmatprep.subr.mxu0 0.0
    %5201 = vmatpush1.msra.mxu0 %v1257
    %5202 = vmatprep.subr.mxu0 0.0
    %5203 = vmatpush1.msra.mxu0 %v1258
    %5204 = vmatprep.subr.mxu0 0.0
    %5205 = vmatpush1.msra.mxu0 %v1259
    %5206 = vmatprep.subr.mxu0 0.0
    %5207 = vmatpush1.msra.mxu0 %v1260
    %5208 = vmatprep.subr.mxu0 0.0
    %5209 = vmatpush1.msra.mxu0 %v1261
    %5210 = vmatprep.subr.mxu0 0.0
    %5211 = vmatpush1.msra.mxu0 %v1262
    %5212 = vmatprep.subr.mxu0 0.0
    %5213 = vmatpush1.msra.mxu0 %v1263
    %5214 = vmatprep.subr.mxu0 0.0
    %5215 = vmatpush1.msra.mxu0 %v1264
    %5216 = vmatprep.subr.mxu0 0.0
    %5217 = vmatpush1.msra.mxu0 %v1265
    %5218 = vmatprep.subr.mxu0 0.0
    %5219 = vmatpush1.msra.mxu0 %v1266
    %5220 = vmatprep.subr.mxu0 0.0
    %5221 = vmatpush1.msra.mxu0 %v1267
    %5222 = vmatprep.subr.mxu0 0.0
    %5223 = vmatpush1.msra.mxu0 %v1268
    %5224 = vmatprep.subr.mxu0 0.0
    %5225 = vmatpush1.msra.mxu0 %v1269
    %5226 = vmatprep.subr.mxu0 0.0
    %5227 = vmatpush1.msra.mxu0 %v1270
    %5228 = vmatprep.subr.mxu0 0.0
    %5229 = vmatpush1.msra.mxu0 %v1271
    %5230 = vmatprep.subr.mxu0 0.0
    %5231 = vmatpush1.msra.mxu0 %v1272
    %5232 = vmatprep.subr.mxu0 0.0
    %5233 = vmatpush1.msra.mxu0 %v1273
    %5234 = vmatprep.subr.mxu0 0.0
    %5235 = vmatpush1.msra.mxu0 %v1274
    %5236 = vmatprep.mubr.f32.mxu0 %v2409
    %5237 = vmatmul.mubr.f32.gmra.mrb[0].mxu0 %v2408
    %v5238 = vpop.f32.mrb[0].mxu0
    %v5239 = vadd.f32 %v5169, %v5238
    %v5240 = vpop.f32.mrb[0].mxu0
    %5241 = vdwg.mxu0
    %5242 = vmatprep.subr.mxu0 0.0
    %5243 = vmatpush1.msra.mxu0 %v1275
    %5244 = vmatprep.subr.mxu0 0.0
    %5245 = vmatpush1.msra.mxu0 %v1276
    %5246 = vmatprep.subr.mxu0 0.0
    %5247 = vmatpush1.msra.mxu0 %v1277
    %5248 = vmatprep.subr.mxu0 0.0
    %5249 = vmatpush1.msra.mxu0 %v1278
    %5250 = vmatprep.subr.mxu0 0.0
    %5251 = vmatpush1.msra.mxu0 %v1279
    %5252 = vmatprep.subr.mxu0 0.0
    %5253 = vmatpush1.msra.mxu0 %v1280
    %5254 = vmatprep.subr.mxu0 0.0
    %5255 = vmatpush1.msra.mxu0 %v1281
    %5256 = vmatprep.subr.mxu0 0.0
    %5257 = vmatpush1.msra.mxu0 %v1282
    %5258 = vmatprep.subr.mxu0 0.0
    %5259 = vmatpush1.msra.mxu0 %v1283
    %5260 = vmatprep.subr.mxu0 0.0
    %5261 = vmatpush1.msra.mxu0 %v1284
    %5262 = vmatprep.subr.mxu0 0.0
    %5263 = vmatpush1.msra.mxu0 %v1285
    %5264 = vmatprep.subr.mxu0 0.0
    %5265 = vmatpush1.msra.mxu0 %v1286
    %5266 = vmatprep.subr.mxu0 0.0
    %5267 = vmatpush1.msra.mxu0 %v1287
    %5268 = vmatprep.subr.mxu0 0.0
    %5269 = vmatpush1.msra.mxu0 %v1288
    %5270 = vmatprep.subr.mxu0 0.0
    %5271 = vmatpush1.msra.mxu0 %v1289
    %5272 = vmatprep.subr.mxu0 0.0
    %5273 = vmatpush1.msra.mxu0 %v1290
    %5274 = vmatprep.subr.mxu0 0.0
    %5275 = vmatpush1.msra.mxu0 %v1291
    %5276 = vmatprep.subr.mxu0 0.0
    %5277 = vmatpush1.msra.mxu0 %v1292
    %5278 = vmatprep.subr.mxu0 0.0
    %5279 = vmatpush1.msra.mxu0 %v1293
    %5280 = vmatprep.subr.mxu0 0.0
    %5281 = vmatpush1.msra.mxu0 %v1294
    %5282 = vmatprep.subr.mxu0 0.0
    %5283 = vmatpush1.msra.mxu0 %v1295
    %5284 = vmatprep.subr.mxu0 0.0
    %5285 = vmatpush1.msra.mxu0 %v1296
    %5286 = vmatprep.subr.mxu0 0.0
    %5287 = vmatpush1.msra.mxu0 %v1297
    %5288 = vmatprep.subr.mxu0 0.0
    %5289 = vmatpush1.msra.mxu0 %v1298
    %5290 = vmatprep.subr.mxu0 0.0
    %5291 = vmatpush1.msra.mxu0 %v1299
    %5292 = vmatprep.subr.mxu0 0.0
    %5293 = vmatpush1.msra.mxu0 %v1300
    %5294 = vmatprep.subr.mxu0 0.0
    %5295 = vmatpush1.msra.mxu0 %v1301
    %5296 = vmatprep.subr.mxu0 0.0
    %5297 = vmatpush1.msra.mxu0 %v1302
    %5298 = vmatprep.subr.mxu0 0.0
    %5299 = vmatpush1.msra.mxu0 %v1303
    %5300 = vmatprep.subr.mxu0 0.0
    %5301 = vmatpush1.msra.mxu0 %v1304
    %5302 = vmatprep.subr.mxu0 0.0
    %5303 = vmatpush1.msra.mxu0 %v1305
    %5304 = vmatprep.subr.mxu0 0.0
    %5305 = vmatpush1.msra.mxu0 %v1306
    %5306 = vmatprep.mubr.f32.mxu0 %v2443
    %5307 = vmatmul.mubr.f32.gmra.mrb[0].mxu0 %v2442
    %v5308 = vpop.f32.mrb[0].mxu0
    %v5309 = vadd.f32 %v5239, %v5308
    %v5310 = vpop.f32.mrb[0].mxu0
    %5311 = vdwg.mxu0
    %5312 = vmatprep.subr.mxu0 0.0
    %5313 = vmatpush1.msra.mxu0 %v1307
    %5314 = vmatprep.subr.mxu0 0.0
    %5315 = vmatpush1.msra.mxu0 %v1308
    %5316 = vmatprep.subr.mxu0 0.0
    %5317 = vmatpush1.msra.mxu0 %v1309
    %5318 = vmatprep.subr.mxu0 0.0
    %5319 = vmatpush1.msra.mxu0 %v1310
    %5320 = vmatprep.subr.mxu0 0.0
    %5321 = vmatpush1.msra.mxu0 %v1311
    %5322 = vmatprep.subr.mxu0 0.0
    %5323 = vmatpush1.msra.mxu0 %v1312
    %5324 = vmatprep.subr.mxu0 0.0
    %5325 = vmatpush1.msra.mxu0 %v1313
    %5326 = vmatprep.subr.mxu0 0.0
    %5327 = vmatpush1.msra.mxu0 %v1314
    %5328 = vmatprep.subr.mxu0 0.0
    %5329 = vmatpush1.msra.mxu0 %v1315
    %5330 = vmatprep.subr.mxu0 0.0
    %5331 = vmatpush1.msra.mxu0 %v1316
    %5332 = vmatprep.subr.mxu0 0.0
    %5333 = vmatpush1.msra.mxu0 %v1317
    %5334 = vmatprep.subr.mxu0 0.0
    %5335 = vmatpush1.msra.mxu0 %v1318
    %5336 = vmatprep.subr.mxu0 0.0
    %5337 = vmatpush1.msra.mxu0 %v1319
    %5338 = vmatprep.subr.mxu0 0.0
    %5339 = vmatpush1.msra.mxu0 %v1320
    %5340 = vmatprep.subr.mxu0 0.0
    %5341 = vmatpush1.msra.mxu0 %v1321
    %5342 = vmatprep.subr.mxu0 0.0
    %5343 = vmatpush1.msra.mxu0 %v1322
    %5344 = vmatprep.subr.mxu0 0.0
    %5345 = vmatpush1.msra.mxu0 %v1323
    %5346 = vmatprep.subr.mxu0 0.0
    %5347 = vmatpush1.msra.mxu0 %v1324
    %5348 = vmatprep.subr.mxu0 0.0
    %5349 = vmatpush1.msra.mxu0 %v1325
    %5350 = vmatprep.subr.mxu0 0.0
    %5351 = vmatpush1.msra.mxu0 %v1326
    %5352 = vmatprep.subr.mxu0 0.0
    %5353 = vmatpush1.msra.mxu0 %v1327
    %5354 = vmatprep.subr.mxu0 0.0
    %5355 = vmatpush1.msra.mxu0 %v1328
    %5356 = vmatprep.subr.mxu0 0.0
    %5357 = vmatpush1.msra.mxu0 %v1329
    %5358 = vmatprep.subr.mxu0 0.0
    %5359 = vmatpush1.msra.mxu0 %v1330
    %5360 = vmatprep.subr.mxu0 0.0
    %5361 = vmatpush1.msra.mxu0 %v1331
    %5362 = vmatprep.subr.mxu0 0.0
    %5363 = vmatpush1.msra.mxu0 %v1332
    %5364 = vmatprep.subr.mxu0 0.0
    %5365 = vmatpush1.msra.mxu0 %v1333
    %5366 = vmatprep.subr.mxu0 0.0
    %5367 = vmatpush1.msra.mxu0 %v1334
    %5368 = vmatprep.subr.mxu0 0.0
    %5369 = vmatpush1.msra.mxu0 %v1335
    %5370 = vmatprep.subr.mxu0 0.0
    %5371 = vmatpush1.msra.mxu0 %v1336
    %5372 = vmatprep.subr.mxu0 0.0
    %5373 = vmatpush1.msra.mxu0 %v1337
    %5374 = vmatprep.subr.mxu0 0.0
    %5375 = vmatpush1.msra.mxu0 %v1338
    %5376 = vmatprep.mubr.f32.mxu0 %v2445
    %5377 = vmatmul.mubr.f32.gmra.mrb[0].mxu0 %v2444
    %v5378 = vpop.f32.mrb[0].mxu0
    %v5379 = vadd.f32 %v5309, %v5378
    %v5380 = vpop.f32.mrb[0].mxu0
    %5381 = vdwg.mxu0
    %5382 = vmatprep.subr.mxu0 0.0
    %5383 = vmatpush1.msra.mxu0 %v1339
    %5384 = vmatprep.subr.mxu0 0.0
    %5385 = vmatpush1.msra.mxu0 %v1340
    %5386 = vmatprep.subr.mxu0 0.0
    %5387 = vmatpush1.msra.mxu0 %v1341
    %5388 = vmatprep.subr.mxu0 0.0
    %5389 = vmatpush1.msra.mxu0 %v1342
    %5390 = vmatprep.subr.mxu0 0.0
    %5391 = vmatpush1.msra.mxu0 %v1343
    %5392 = vmatprep.subr.mxu0 0.0
    %5393 = vmatpush1.msra.mxu0 %v1344
    %5394 = vmatprep.subr.mxu0 0.0
    %5395 = vmatpush1.msra.mxu0 %v1345
    %5396 = vmatprep.subr.mxu0 0.0
    %5397 = vmatpush1.msra.mxu0 %v1346
    %5398 = vmatprep.subr.mxu0 0.0
    %5399 = vmatpush1.msra.mxu0 %v1347
    %5400 = vmatprep.subr.mxu0 0.0
    %5401 = vmatpush1.msra.mxu0 %v1348
    %5402 = vmatprep.subr.mxu0 0.0
    %5403 = vmatpush1.msra.mxu0 %v1349
    %5404 = vmatprep.subr.mxu0 0.0
    %5405 = vmatpush1.msra.mxu0 %v1350
    %5406 = vmatprep.subr.mxu0 0.0
    %5407 = vmatpush1.msra.mxu0 %v1351
    %5408 = vmatprep.subr.mxu0 0.0
    %5409 = vmatpush1.msra.mxu0 %v1352
    %5410 = vmatprep.subr.mxu0 0.0
    %5411 = vmatpush1.msra.mxu0 %v1353
    %5412 = vmatprep.subr.mxu0 0.0
    %5413 = vmatpush1.msra.mxu0 %v1354
    %5414 = vmatprep.subr.mxu0 0.0
    %5415 = vmatpush1.msra.mxu0 %v1355
    %5416 = vmatprep.subr.mxu0 0.0
    %5417 = vmatpush1.msra.mxu0 %v1356
    %5418 = vmatprep.subr.mxu0 0.0
    %5419 = vmatpush1.msra.mxu0 %v1357
    %5420 = vmatprep.subr.mxu0 0.0
    %5421 = vmatpush1.msra.mxu0 %v1358
    %5422 = vmatprep.subr.mxu0 0.0
    %5423 = vmatpush1.msra.mxu0 %v1359
    %5424 = vmatprep.subr.mxu0 0.0
    %5425 = vmatpush1.msra.mxu0 %v1360
    %5426 = vmatprep.subr.mxu0 0.0
    %5427 = vmatpush1.msra.mxu0 %v1361
    %5428 = vmatprep.subr.mxu0 0.0
    %5429 = vmatpush1.msra.mxu0 %v1362
    %5430 = vmatprep.subr.mxu0 0.0
    %5431 = vmatpush1.msra.mxu0 %v1363
    %5432 = vmatprep.subr.mxu0 0.0
    %5433 = vmatpush1.msra.mxu0 %v1364
    %5434 = vmatprep.subr.mxu0 0.0
    %5435 = vmatpush1.msra.mxu0 %v1365
    %5436 = vmatprep.subr.mxu0 0.0
    %5437 = vmatpush1.msra.mxu0 %v1366
    %5438 = vmatprep.subr.mxu0 0.0
    %5439 = vmatpush1.msra.mxu0 %v1367
    %5440 = vmatprep.subr.mxu0 0.0
    %5441 = vmatpush1.msra.mxu0 %v1368
    %5442 = vmatprep.subr.mxu0 0.0
    %5443 = vmatpush1.msra.mxu0 %v1369
    %5444 = vmatprep.subr.mxu0 0.0
    %5445 = vmatpush1.msra.mxu0 %v1370
    %5446 = vmatprep.mubr.f32.mxu0 %v2479
    %5447 = vmatmul.mubr.f32.gmra.mrb[0].mxu0 %v2478
    %v5448 = vpop.f32.mrb[0].mxu0
    %v5449 = vadd.f32 %v5379, %v5448
    %v5450 = vpop.f32.mrb[0].mxu0
    %5451 = vdwg.mxu0
    %5452 = vmatprep.subr.mxu0 0.0
    %5453 = vmatpush1.msra.mxu0 %v1371
    %5454 = vmatprep.subr.mxu0 0.0
    %5455 = vmatpush1.msra.mxu0 %v1372
    %5456 = vmatprep.subr.mxu0 0.0
    %5457 = vmatpush1.msra.mxu0 %v1373
    %5458 = vmatprep.subr.mxu0 0.0
    %5459 = vmatpush1.msra.mxu0 %v1374
    %5460 = vmatprep.subr.mxu0 0.0
    %5461 = vmatpush1.msra.mxu0 %v1375
    %5462 = vmatprep.subr.mxu0 0.0
    %5463 = vmatpush1.msra.mxu0 %v1376
    %5464 = vmatprep.subr.mxu0 0.0
    %5465 = vmatpush1.msra.mxu0 %v1377
    %5466 = vmatprep.subr.mxu0 0.0
    %5467 = vmatpush1.msra.mxu0 %v1378
    %5468 = vmatprep.subr.mxu0 0.0
    %5469 = vmatpush1.msra.mxu0 %v1379
    %5470 = vmatprep.subr.mxu0 0.0
    %5471 = vmatpush1.msra.mxu0 %v1380
    %5472 = vmatprep.subr.mxu0 0.0
    %5473 = vmatpush1.msra.mxu0 %v1381
    %5474 = vmatprep.subr.mxu0 0.0
    %5475 = vmatpush1.msra.mxu0 %v1382
    %5476 = vmatprep.subr.mxu0 0.0
    %5477 = vmatpush1.msra.mxu0 %v1383
    %5478 = vmatprep.subr.mxu0 0.0
    %5479 = vmatpush1.msra.mxu0 %v1384
    %5480 = vmatprep.subr.mxu0 0.0
    %5481 = vmatpush1.msra.mxu0 %v1385
    %5482 = vmatprep.subr.mxu0 0.0
    %5483 = vmatpush1.msra.mxu0 %v1386
    %5484 = vmatprep.subr.mxu0 0.0
    %5485 = vmatpush1.msra.mxu0 %v1387
    %5486 = vmatprep.subr.mxu0 0.0
    %5487 = vmatpush1.msra.mxu0 %v1388
    %5488 = vmatprep.subr.mxu0 0.0
    %5489 = vmatpush1.msra.mxu0 %v1389
    %5490 = vmatprep.subr.mxu0 0.0
    %5491 = vmatpush1.msra.mxu0 %v1390
    %5492 = vmatprep.subr.mxu0 0.0
    %5493 = vmatpush1.msra.mxu0 %v1391
    %5494 = vmatprep.subr.mxu0 0.0
    %5495 = vmatpush1.msra.mxu0 %v1392
    %5496 = vmatprep.subr.mxu0 0.0
    %5497 = vmatpush1.msra.mxu0 %v1393
    %5498 = vmatprep.subr.mxu0 0.0
    %5499 = vmatpush1.msra.mxu0 %v1394
    %5500 = vmatprep.subr.mxu0 0.0
    %5501 = vmatpush1.msra.mxu0 %v1395
    %5502 = vmatprep.subr.mxu0 0.0
    %5503 = vmatpush1.msra.mxu0 %v1396
    %5504 = vmatprep.subr.mxu0 0.0
    %5505 = vmatpush1.msra.mxu0 %v1397
    %5506 = vmatprep.subr.mxu0 0.0
    %5507 = vmatpush1.msra.mxu0 %v1398
    %5508 = vmatprep.subr.mxu0 0.0
    %5509 = vmatpush1.msra.mxu0 %v1399
    %5510 = vmatprep.subr.mxu0 0.0
    %5511 = vmatpush1.msra.mxu0 %v1400
    %5512 = vmatprep.subr.mxu0 0.0
    %5513 = vmatpush1.msra.mxu0 %v1401
    %5514 = vmatprep.subr.mxu0 0.0
    %5515 = vmatpush1.msra.mxu0 %v1402
    %5516 = vmatprep.mubr.f32.mxu0 %v2481
    %5517 = vmatmul.mubr.f32.gmra.mrb[0].mxu0 %v2480
    %v5518 = vpop.f32.mrb[0].mxu0
    %v5519 = vadd.f32 %v5449, %v5518
    %v5520 = vpop.f32.mrb[0].mxu0
    %5521 = vdwg.mxu0
    %5522 = vmatprep.subr.mxu0 0.0
    %5523 = vmatpush1.msra.mxu0 %v1403
    %5524 = vmatprep.subr.mxu0 0.0
    %5525 = vmatpush1.msra.mxu0 %v1404
    %5526 = vmatprep.subr.mxu0 0.0
    %5527 = vmatpush1.msra.mxu0 %v1405
    %5528 = vmatprep.subr.mxu0 0.0
    %5529 = vmatpush1.msra.mxu0 %v1406
    %5530 = vmatprep.subr.mxu0 0.0
    %5531 = vmatpush1.msra.mxu0 %v1407
    %5532 = vmatprep.subr.mxu0 0.0
    %5533 = vmatpush1.msra.mxu0 %v1408
    %5534 = vmatprep.subr.mxu0 0.0
    %5535 = vmatpush1.msra.mxu0 %v1409
    %5536 = vmatprep.subr.mxu0 0.0
    %5537 = vmatpush1.msra.mxu0 %v1410
    %5538 = vmatprep.subr.mxu0 0.0
    %5539 = vmatpush1.msra.mxu0 %v1411
    %5540 = vmatprep.subr.mxu0 0.0
    %5541 = vmatpush1.msra.mxu0 %v1412
    %5542 = vmatprep.subr.mxu0 0.0
    %5543 = vmatpush1.msra.mxu0 %v1413
    %5544 = vmatprep.subr.mxu0 0.0
    %5545 = vmatpush1.msra.mxu0 %v1414
    %5546 = vmatprep.subr.mxu0 0.0
    %5547 = vmatpush1.msra.mxu0 %v1415
    %5548 = vmatprep.subr.mxu0 0.0
    %5549 = vmatpush1.msra.mxu0 %v1416
    %5550 = vmatprep.subr.mxu0 0.0
    %5551 = vmatpush1.msra.mxu0 %v1417
    %5552 = vmatprep.subr.mxu0 0.0
    %5553 = vmatpush1.msra.mxu0 %v1418
    %5554 = vmatprep.subr.mxu0 0.0
    %5555 = vmatpush1.msra.mxu0 %v1419
    %5556 = vmatprep.subr.mxu0 0.0
    %5557 = vmatpush1.msra.mxu0 %v1420
    %5558 = vmatprep.subr.mxu0 0.0
    %5559 = vmatpush1.msra.mxu0 %v1421
    %5560 = vmatprep.subr.mxu0 0.0
    %5561 = vmatpush1.msra.mxu0 %v1422
    %5562 = vmatprep.subr.mxu0 0.0
    %5563 = vmatpush1.msra.mxu0 %v1423
    %5564 = vmatprep.subr.mxu0 0.0
    %5565 = vmatpush1.msra.mxu0 %v1424
    %5566 = vmatprep.subr.mxu0 0.0
    %5567 = vmatpush1.msra.mxu0 %v1425
    %5568 = vmatprep.subr.mxu0 0.0
    %5569 = vmatpush1.msra.mxu0 %v1426
    %5570 = vmatprep.subr.mxu0 0.0
    %5571 = vmatpush1.msra.mxu0 %v1427
    %5572 = vmatprep.subr.mxu0 0.0
    %5573 = vmatpush1.msra.mxu0 %v1428
    %5574 = vmatprep.subr.mxu0 0.0
    %5575 = vmatpush1.msra.mxu0 %v1429
    %5576 = vmatprep.subr.mxu0 0.0
    %5577 = vmatpush1.msra.mxu0 %v1430
    %5578 = vmatprep.subr.mxu0 0.0
    %5579 = vmatpush1.msra.mxu0 %v1431
    %5580 = vmatprep.subr.mxu0 0.0
    %5581 = vmatpush1.msra.mxu0 %v1432
    %5582 = vmatprep.subr.mxu0 0.0
    %5583 = vmatpush1.msra.mxu0 %v1433
    %5584 = vmatprep.subr.mxu0 0.0
    %5585 = vmatpush1.msra.mxu0 %v1434
    %5586 = vmatprep.mubr.f32.mxu0 %v2515
    %5587 = vmatmul.mubr.f32.gmra.mrb[0].mxu0 %v2514
    %v5588 = vpop.f32.mrb[0].mxu0
    %v5589 = vadd.f32 %v5519, %v5588
    %v5590 = vpop.f32.mrb[0].mxu0
    %5591 = vdwg.mxu0
    %5592 = vmatprep.subr.mxu0 0.0
    %5593 = vmatpush1.msra.mxu0 %v1435
    %5594 = vmatprep.subr.mxu0 0.0
    %5595 = vmatpush1.msra.mxu0 %v1436
    %5596 = vmatprep.subr.mxu0 0.0
    %5597 = vmatpush1.msra.mxu0 %v1437
    %5598 = vmatprep.subr.mxu0 0.0
    %5599 = vmatpush1.msra.mxu0 %v1438
    %5600 = vmatprep.subr.mxu0 0.0
    %5601 = vmatpush1.msra.mxu0 %v1439
    %5602 = vmatprep.subr.mxu0 0.0
    %5603 = vmatpush1.msra.mxu0 %v1440
    %5604 = vmatprep.subr.mxu0 0.0
    %5605 = vmatpush1.msra.mxu0 %v1441
    %5606 = vmatprep.subr.mxu0 0.0
    %5607 = vmatpush1.msra.mxu0 %v1442
    %5608 = vmatprep.subr.mxu0 0.0
    %5609 = vmatpush1.msra.mxu0 %v1443
    %5610 = vmatprep.subr.mxu0 0.0
    %5611 = vmatpush1.msra.mxu0 %v1444
    %5612 = vmatprep.subr.mxu0 0.0
    %5613 = vmatpush1.msra.mxu0 %v1445
    %5614 = vmatprep.subr.mxu0 0.0
    %5615 = vmatpush1.msra.mxu0 %v1446
    %5616 = vmatprep.subr.mxu0 0.0
    %5617 = vmatpush1.msra.mxu0 %v1447
    %5618 = vmatprep.subr.mxu0 0.0
    %5619 = vmatpush1.msra.mxu0 %v1448
    %5620 = vmatprep.subr.mxu0 0.0
    %5621 = vmatpush1.msra.mxu0 %v1449
    %5622 = vmatprep.subr.mxu0 0.0
    %5623 = vmatpush1.msra.mxu0 %v1450
    %5624 = vmatprep.subr.mxu0 0.0
    %5625 = vmatpush1.msra.mxu0 %v1451
    %5626 = vmatprep.subr.mxu0 0.0
    %5627 = vmatpush1.msra.mxu0 %v1452
    %5628 = vmatprep.subr.mxu0 0.0
    %5629 = vmatpush1.msra.mxu0 %v1453
    %5630 = vmatprep.subr.mxu0 0.0
    %5631 = vmatpush1.msra.mxu0 %v1454
    %5632 = vmatprep.subr.mxu0 0.0
    %5633 = vmatpush1.msra.mxu0 %v1455
    %5634 = vmatprep.subr.mxu0 0.0
    %5635 = vmatpush1.msra.mxu0 %v1456
    %5636 = vmatprep.subr.mxu0 0.0
    %5637 = vmatpush1.msra.mxu0 %v1457
    %5638 = vmatprep.subr.mxu0 0.0
    %5639 = vmatpush1.msra.mxu0 %v1458
    %5640 = vmatprep.subr.mxu0 0.0
    %5641 = vmatpush1.msra.mxu0 %v1459
    %5642 = vmatprep.subr.mxu0 0.0
    %5643 = vmatpush1.msra.mxu0 %v1460
    %5644 = vmatprep.subr.mxu0 0.0
    %5645 = vmatpush1.msra.mxu0 %v1461
    %5646 = vmatprep.subr.mxu0 0.0
    %5647 = vmatpush1.msra.mxu0 %v1462
    %5648 = vmatprep.subr.mxu0 0.0
    %5649 = vmatpush1.msra.mxu0 %v1463
    %5650 = vmatprep.subr.mxu0 0.0
    %5651 = vmatpush1.msra.mxu0 %v1464
    %5652 = vmatprep.subr.mxu0 0.0
    %5653 = vmatpush1.msra.mxu0 %v1465
    %5654 = vmatprep.subr.mxu0 0.0
    %5655 = vmatpush1.msra.mxu0 %v1466
    %5656 = vmatprep.mubr.f32.mxu0 %v2517
    %5657 = vmatmul.mubr.f32.gmra.mrb[0].mxu0 %v2516
    %v5658 = vpop.f32.mrb[0].mxu0
    %v5659 = vadd.f32 %v5589, %v5658
    %v5660 = vpop.f32.mrb[0].mxu0
    %5661 = vdwg.mxu0
    %5662 = vmatprep.subr.mxu0 0.0
    %5663 = vmatpush1.msra.mxu0 %v1467
    %5664 = vmatprep.subr.mxu0 0.0
    %5665 = vmatpush1.msra.mxu0 %v1468
    %5666 = vmatprep.subr.mxu0 0.0
    %5667 = vmatpush1.msra.mxu0 %v1469
    %5668 = vmatprep.subr.mxu0 0.0
    %5669 = vmatpush1.msra.mxu0 %v1470
    %5670 = vmatprep.subr.mxu0 0.0
    %5671 = vmatpush1.msra.mxu0 %v1471
    %5672 = vmatprep.subr.mxu0 0.0
    %5673 = vmatpush1.msra.mxu0 %v1472
    %5674 = vmatprep.subr.mxu0 0.0
    %5675 = vmatpush1.msra.mxu0 %v1473
    %5676 = vmatprep.subr.mxu0 0.0
    %5677 = vmatpush1.msra.mxu0 %v1474
    %5678 = vmatprep.subr.mxu0 0.0
    %5679 = vmatpush1.msra.mxu0 %v1475
    %5680 = vmatprep.subr.mxu0 0.0
    %5681 = vmatpush1.msra.mxu0 %v1476
    %5682 = vmatprep.subr.mxu0 0.0
    %5683 = vmatpush1.msra.mxu0 %v1477
    %5684 = vmatprep.subr.mxu0 0.0
    %5685 = vmatpush1.msra.mxu0 %v1478
    %5686 = vmatprep.subr.mxu0 0.0
    %5687 = vmatpush1.msra.mxu0 %v1479
    %5688 = vmatprep.subr.mxu0 0.0
    %5689 = vmatpush1.msra.mxu0 %v1480
    %5690 = vmatprep.subr.mxu0 0.0
    %5691 = vmatpush1.msra.mxu0 %v1481
    %5692 = vmatprep.subr.mxu0 0.0
    %5693 = vmatpush1.msra.mxu0 %v1482
    %5694 = vmatprep.subr.mxu0 0.0
    %5695 = vmatpush1.msra.mxu0 %v1483
    %5696 = vmatprep.subr.mxu0 0.0
    %5697 = vmatpush1.msra.mxu0 %v1484
    %5698 = vmatprep.subr.mxu0 0.0
    %5699 = vmatpush1.msra.mxu0 %v1485
    %5700 = vmatprep.subr.mxu0 0.0
    %5701 = vmatpush1.msra.mxu0 %v1486
    %5702 = vmatprep.subr.mxu0 0.0
    %5703 = vmatpush1.msra.mxu0 %v1487
    %5704 = vmatprep.subr.mxu0 0.0
    %5705 = vmatpush1.msra.mxu0 %v1488
    %5706 = vmatprep.subr.mxu0 0.0
    %5707 = vmatpush1.msra.mxu0 %v1489
    %5708 = vmatprep.subr.mxu0 0.0
    %5709 = vmatpush1.msra.mxu0 %v1490
    %5710 = vmatprep.subr.mxu0 0.0
    %5711 = vmatpush1.msra.mxu0 %v1491
    %5712 = vmatprep.subr.mxu0 0.0
    %5713 = vmatpush1.msra.mxu0 %v1492
    %5714 = vmatprep.subr.mxu0 0.0
    %5715 = vmatpush1.msra.mxu0 %v1493
    %5716 = vmatprep.subr.mxu0 0.0
    %5717 = vmatpush1.msra.mxu0 %v1494
    %5718 = vmatprep.subr.mxu0 0.0
    %5719 = vmatpush1.msra.mxu0 %v1495
    %5720 = vmatprep.subr.mxu0 0.0
    %5721 = vmatpush1.msra.mxu0 %v1496
    %5722 = vmatprep.subr.mxu0 0.0
    %5723 = vmatpush1.msra.mxu0 %v1497
    %5724 = vmatprep.subr.mxu0 0.0
    %5725 = vmatpush1.msra.mxu0 %v1498
    %5726 = vmatprep.mubr.f32.mxu0 %v2551
    %5727 = vmatmul.mubr.f32.gmra.mrb[0].mxu0 %v2550
    %v5728 = vpop.f32.mrb[0].mxu0
    %v5729 = vadd.f32 %v5659, %v5728
    %v5730 = vpop.f32.mrb[0].mxu0
    %5731 = vdwg.mxu0
    %5732 = vmatprep.subr.mxu0 0.0
    %5733 = vmatpush1.msra.mxu0 %v1499
    %5734 = vmatprep.subr.mxu0 0.0
    %5735 = vmatpush1.msra.mxu0 %v1500
    %5736 = vmatprep.subr.mxu0 0.0
    %5737 = vmatpush1.msra.mxu0 %v1501
    %5738 = vmatprep.subr.mxu0 0.0
    %5739 = vmatpush1.msra.mxu0 %v1502
    %5740 = vmatprep.subr.mxu0 0.0
    %5741 = vmatpush1.msra.mxu0 %v1503
    %5742 = vmatprep.subr.mxu0 0.0
    %5743 = vmatpush1.msra.mxu0 %v1504
    %5744 = vmatprep.subr.mxu0 0.0
    %5745 = vmatpush1.msra.mxu0 %v1505
    %5746 = vmatprep.subr.mxu0 0.0
    %5747 = vmatpush1.msra.mxu0 %v1506
    %5748 = vmatprep.subr.mxu0 0.0
    %5749 = vmatpush1.msra.mxu0 %v1507
    %5750 = vmatprep.subr.mxu0 0.0
    %5751 = vmatpush1.msra.mxu0 %v1508
    %5752 = vmatprep.subr.mxu0 0.0
    %5753 = vmatpush1.msra.mxu0 %v1509
    %5754 = vmatprep.subr.mxu0 0.0
    %5755 = vmatpush1.msra.mxu0 %v1510
    %5756 = vmatprep.subr.mxu0 0.0
    %5757 = vmatpush1.msra.mxu0 %v1511
    %5758 = vmatprep.subr.mxu0 0.0
    %5759 = vmatpush1.msra.mxu0 %v1512
    %5760 = vmatprep.subr.mxu0 0.0
    %5761 = vmatpush1.msra.mxu0 %v1513
    %5762 = vmatprep.subr.mxu0 0.0
    %5763 = vmatpush1.msra.mxu0 %v1514
    %5764 = vmatprep.subr.mxu0 0.0
    %5765 = vmatpush1.msra.mxu0 %v1515
    %5766 = vmatprep.subr.mxu0 0.0
    %5767 = vmatpush1.msra.mxu0 %v1516
    %5768 = vmatprep.subr.mxu0 0.0
    %5769 = vmatpush1.msra.mxu0 %v1517
    %5770 = vmatprep.subr.mxu0 0.0
    %5771 = vmatpush1.msra.mxu0 %v1518
    %5772 = vmatprep.subr.mxu0 0.0
    %5773 = vmatpush1.msra.mxu0 %v1519
    %5774 = vmatprep.subr.mxu0 0.0
    %5775 = vmatpush1.msra.mxu0 %v1520
    %5776 = vmatprep.subr.mxu0 0.0
    %5777 = vmatpush1.msra.mxu0 %v1521
    %5778 = vmatprep.subr.mxu0 0.0
    %5779 = vmatpush1.msra.mxu0 %v1522
    %5780 = vmatprep.subr.mxu0 0.0
    %5781 = vmatpush1.msra.mxu0 %v1523
    %5782 = vmatprep.subr.mxu0 0.0
    %5783 = vmatpush1.msra.mxu0 %v1524
    %5784 = vmatprep.subr.mxu0 0.0
    %5785 = vmatpush1.msra.mxu0 %v1525
    %5786 = vmatprep.subr.mxu0 0.0
    %5787 = vmatpush1.msra.mxu0 %v1526
    %5788 = vmatprep.subr.mxu0 0.0
    %5789 = vmatpush1.msra.mxu0 %v1527
    %5790 = vmatprep.subr.mxu0 0.0
    %5791 = vmatpush1.msra.mxu0 %v1528
    %5792 = vmatprep.subr.mxu0 0.0
    %5793 = vmatpush1.msra.mxu0 %v1529
    %5794 = vmatprep.subr.mxu0 0.0
    %5795 = vmatpush1.msra.mxu0 %v1530
    %5796 = vmatprep.mubr.f32.mxu0 %v2553
    %5797 = vmatmul.mubr.f32.gmra.mrb[0].mxu0 %v2552
    %v5798 = vpop.f32.mrb[0].mxu0
    %v5799 = vadd.f32 %v5729, %v5798
    %v5800 = vpop.f32.mrb[0].mxu0
    %5801 = vdwg.mxu0
    %5802 = vmatprep.subr.mxu0 0.0
    %5803 = vmatpush1.msra.mxu0 %v1531
    %5804 = vmatprep.subr.mxu0 0.0
    %5805 = vmatpush1.msra.mxu0 %v1532
    %5806 = vmatprep.subr.mxu0 0.0
    %5807 = vmatpush1.msra.mxu0 %v1533
    %5808 = vmatprep.subr.mxu0 0.0
    %5809 = vmatpush1.msra.mxu0 %v1534
    %5810 = vmatprep.subr.mxu0 0.0
    %5811 = vmatpush1.msra.mxu0 %v1535
    %5812 = vmatprep.subr.mxu0 0.0
    %5813 = vmatpush1.msra.mxu0 %v1536
    %5814 = vmatprep.subr.mxu0 0.0
    %5815 = vmatpush1.msra.mxu0 %v1537
    %5816 = vmatprep.subr.mxu0 0.0
    %5817 = vmatpush1.msra.mxu0 %v1538
    %5818 = vmatprep.subr.mxu0 0.0
    %5819 = vmatpush1.msra.mxu0 %v1539
    %5820 = vmatprep.subr.mxu0 0.0
    %5821 = vmatpush1.msra.mxu0 %v1540
    %5822 = vmatprep.subr.mxu0 0.0
    %5823 = vmatpush1.msra.mxu0 %v1541
    %5824 = vmatprep.subr.mxu0 0.0
    %5825 = vmatpush1.msra.mxu0 %v1542
    %5826 = vmatprep.subr.mxu0 0.0
    %5827 = vmatpush1.msra.mxu0 %v1543
    %5828 = vmatprep.subr.mxu0 0.0
    %5829 = vmatpush1.msra.mxu0 %v1544
    %5830 = vmatprep.subr.mxu0 0.0
    %5831 = vmatpush1.msra.mxu0 %v1545
    %5832 = vmatprep.subr.mxu0 0.0
    %5833 = vmatpush1.msra.mxu0 %v1546
    %5834 = vmatprep.subr.mxu0 0.0
    %5835 = vmatpush1.msra.mxu0 %v1547
    %5836 = vmatprep.subr.mxu0 0.0
    %5837 = vmatpush1.msra.mxu0 %v1548
    %5838 = vmatprep.subr.mxu0 0.0
    %5839 = vmatpush1.msra.mxu0 %v1549
    %5840 = vmatprep.subr.mxu0 0.0
    %5841 = vmatpush1.msra.mxu0 %v1550
    %5842 = vmatprep.subr.mxu0 0.0
    %5843 = vmatpush1.msra.mxu0 %v1551
    %5844 = vmatprep.subr.mxu0 0.0
    %5845 = vmatpush1.msra.mxu0 %v1552
    %5846 = vmatprep.subr.mxu0 0.0
    %5847 = vmatpush1.msra.mxu0 %v1553
    %5848 = vmatprep.subr.mxu0 0.0
    %5849 = vmatpush1.msra.mxu0 %v1554
    %5850 = vmatprep.subr.mxu0 0.0
    %5851 = vmatpush1.msra.mxu0 %v1555
    %5852 = vmatprep.subr.mxu0 0.0
    %5853 = vmatpush1.msra.mxu0 %v1556
    %5854 = vmatprep.subr.mxu0 0.0
    %5855 = vmatpush1.msra.mxu0 %v1557
    %5856 = vmatprep.subr.mxu0 0.0
    %5857 = vmatpush1.msra.mxu0 %v1558
    %5858 = vmatprep.subr.mxu0 0.0
    %5859 = vmatpush1.msra.mxu0 %v1559
    %5860 = vmatprep.subr.mxu0 0.0
    %5861 = vmatpush1.msra.mxu0 %v1560
    %5862 = vmatprep.subr.mxu0 0.0
    %5863 = vmatpush1.msra.mxu0 %v1561
    %5864 = vmatprep.subr.mxu0 0.0
    %5865 = vmatpush1.msra.mxu0 %v1562
    %5866 = vmatprep.mubr.f32.mxu0 %v2587
    %5867 = vmatmul.mubr.f32.gmra.mrb[0].mxu0 %v2586
    %v5868 = vpop.f32.mrb[0].mxu0
    %v5869 = vadd.f32 %v5799, %v5868
    %v5870 = vpop.f32.mrb[0].mxu0
    %5871 = vdwg.mxu0
    %5872 = vmatprep.subr.mxu0 0.0
    %5873 = vmatpush1.msra.mxu0 %v1563
    %5874 = vmatprep.subr.mxu0 0.0
    %5875 = vmatpush1.msra.mxu0 %v1564
    %5876 = vmatprep.subr.mxu0 0.0
    %5877 = vmatpush1.msra.mxu0 %v1565
    %5878 = vmatprep.subr.mxu0 0.0
    %5879 = vmatpush1.msra.mxu0 %v1566
    %5880 = vmatprep.subr.mxu0 0.0
    %5881 = vmatpush1.msra.mxu0 %v1567
    %5882 = vmatprep.subr.mxu0 0.0
    %5883 = vmatpush1.msra.mxu0 %v1568
    %5884 = vmatprep.subr.mxu0 0.0
    %5885 = vmatpush1.msra.mxu0 %v1569
    %5886 = vmatprep.subr.mxu0 0.0
    %5887 = vmatpush1.msra.mxu0 %v1570
    %5888 = vmatprep.subr.mxu0 0.0
    %5889 = vmatpush1.msra.mxu0 %v1571
    %5890 = vmatprep.subr.mxu0 0.0
    %5891 = vmatpush1.msra.mxu0 %v1572
    %5892 = vmatprep.subr.mxu0 0.0
    %5893 = vmatpush1.msra.mxu0 %v1573
    %5894 = vmatprep.subr.mxu0 0.0
    %5895 = vmatpush1.msra.mxu0 %v1574
    %5896 = vmatprep.subr.mxu0 0.0
    %5897 = vmatpush1.msra.mxu0 %v1575
    %5898 = vmatprep.subr.mxu0 0.0
    %5899 = vmatpush1.msra.mxu0 %v1576
    %5900 = vmatprep.subr.mxu0 0.0
    %5901 = vmatpush1.msra.mxu0 %v1577
    %5902 = vmatprep.subr.mxu0 0.0
    %5903 = vmatpush1.msra.mxu0 %v1578
    %5904 = vmatprep.subr.mxu0 0.0
    %5905 = vmatpush1.msra.mxu0 %v1579
    %5906 = vmatprep.subr.mxu0 0.0
    %5907 = vmatpush1.msra.mxu0 %v1580
    %5908 = vmatprep.subr.mxu0 0.0
    %5909 = vmatpush1.msra.mxu0 %v1581
    %5910 = vmatprep.subr.mxu0 0.0
    %5911 = vmatpush1.msra.mxu0 %v1582
    %5912 = vmatprep.subr.mxu0 0.0
    %5913 = vmatpush1.msra.mxu0 %v1583
    %5914 = vmatprep.subr.mxu0 0.0
    %5915 = vmatpush1.msra.mxu0 %v1584
    %5916 = vmatprep.subr.mxu0 0.0
    %5917 = vmatpush1.msra.mxu0 %v1585
    %5918 = vmatprep.subr.mxu0 0.0
    %5919 = vmatpush1.msra.mxu0 %v1586
    %5920 = vmatprep.subr.mxu0 0.0
    %5921 = vmatpush1.msra.mxu0 %v1587
    %5922 = vmatprep.subr.mxu0 0.0
    %5923 = vmatpush1.msra.mxu0 %v1588
    %5924 = vmatprep.subr.mxu0 0.0
    %5925 = vmatpush1.msra.mxu0 %v1589
    %5926 = vmatprep.subr.mxu0 0.0
    %5927 = vmatpush1.msra.mxu0 %v1590
    %5928 = vmatprep.subr.mxu0 0.0
    %5929 = vmatpush1.msra.mxu0 %v1591
    %5930 = vmatprep.subr.mxu0 0.0
    %5931 = vmatpush1.msra.mxu0 %v1592
    %5932 = vmatprep.subr.mxu0 0.0
    %5933 = vmatpush1.msra.mxu0 %v1593
    %5934 = vmatprep.subr.mxu0 0.0
    %5935 = vmatpush1.msra.mxu0 %v1594
    %5936 = vmatprep.mubr.f32.mxu0 %v2589
    %5937 = vmatmul.mubr.f32.gmra.mrb[0].mxu0 %v2588
    %v5938 = vpop.f32.mrb[0].mxu0
    %v5939 = vadd.f32 %v5869, %v5938
    %v5940 = vpop.f32.mrb[0].mxu0
    %5941 = vdwg.mxu0
    %5942 = vmatprep.subr.mxu0 0.0
    %5943 = vmatpush1.msra.mxu0 %v1595
    %5944 = vmatprep.subr.mxu0 0.0
    %5945 = vmatpush1.msra.mxu0 %v1596
    %5946 = vmatprep.subr.mxu0 0.0
    %5947 = vmatpush1.msra.mxu0 %v1597
    %5948 = vmatprep.subr.mxu0 0.0
    %5949 = vmatpush1.msra.mxu0 %v1598
    %5950 = vmatprep.subr.mxu0 0.0
    %5951 = vmatpush1.msra.mxu0 %v1599
    %5952 = vmatprep.subr.mxu0 0.0
    %5953 = vmatpush1.msra.mxu0 %v1600
    %5954 = vmatprep.subr.mxu0 0.0
    %5955 = vmatpush1.msra.mxu0 %v1601
    %5956 = vmatprep.subr.mxu0 0.0
    %5957 = vmatpush1.msra.mxu0 %v1602
    %5958 = vmatprep.subr.mxu0 0.0
    %5959 = vmatpush1.msra.mxu0 %v1603
    %5960 = vmatprep.subr.mxu0 0.0
    %5961 = vmatpush1.msra.mxu0 %v1604
    %5962 = vmatprep.subr.mxu0 0.0
    %5963 = vmatpush1.msra.mxu0 %v1605
    %5964 = vmatprep.subr.mxu0 0.0
    %5965 = vmatpush1.msra.mxu0 %v1606
    %5966 = vmatprep.subr.mxu0 0.0
    %5967 = vmatpush1.msra.mxu0 %v1607
    %5968 = vmatprep.subr.mxu0 0.0
    %5969 = vmatpush1.msra.mxu0 %v1608
    %5970 = vmatprep.subr.mxu0 0.0
    %5971 = vmatpush1.msra.mxu0 %v1609
    %5972 = vmatprep.subr.mxu0 0.0
    %5973 = vmatpush1.msra.mxu0 %v1610
    %5974 = vmatprep.subr.mxu0 0.0
    %5975 = vmatpush1.msra.mxu0 %v1611
    %5976 = vmatprep.subr.mxu0 0.0
    %5977 = vmatpush1.msra.mxu0 %v1612
    %5978 = vmatprep.subr.mxu0 0.0
    %5979 = vmatpush1.msra.mxu0 %v1613
    %5980 = vmatprep.subr.mxu0 0.0
    %5981 = vmatpush1.msra.mxu0 %v1614
    %5982 = vmatprep.subr.mxu0 0.0
    %5983 = vmatpush1.msra.mxu0 %v1615
    %5984 = vmatprep.subr.mxu0 0.0
    %5985 = vmatpush1.msra.mxu0 %v1616
    %5986 = vmatprep.subr.mxu0 0.0
    %5987 = vmatpush1.msra.mxu0 %v1617
    %5988 = vmatprep.subr.mxu0 0.0
    %5989 = vmatpush1.msra.mxu0 %v1618
    %5990 = vmatprep.subr.mxu0 0.0
    %5991 = vmatpush1.msra.mxu0 %v1619
    %5992 = vmatprep.subr.mxu0 0.0
    %5993 = vmatpush1.msra.mxu0 %v1620
    %5994 = vmatprep.subr.mxu0 0.0
    %5995 = vmatpush1.msra.mxu0 %v1621
    %5996 = vmatprep.subr.mxu0 0.0
    %5997 = vmatpush1.msra.mxu0 %v1622
    %5998 = vmatprep.subr.mxu0 0.0
    %5999 = vmatpush1.msra.mxu0 %v1623
    %6000 = vmatprep.subr.mxu0 0.0
    %6001 = vmatpush1.msra.mxu0 %v1624
    %6002 = vmatprep.subr.mxu0 0.0
    %6003 = vmatpush1.msra.mxu0 %v1625
    %6004 = vmatprep.subr.mxu0 0.0
    %6005 = vmatpush1.msra.mxu0 %v1626
    %6006 = vmatprep.mubr.f32.mxu0 %v2623
    %6007 = vmatmul.mubr.f32.gmra.mrb[0].mxu0 %v2622
    %v6008 = vpop.f32.mrb[0].mxu0
    %v6009 = vadd.f32 %v5939, %v6008
    %v6010 = vpop.f32.mrb[0].mxu0
    %6011 = vdwg.mxu0
    %6012 = vmatprep.subr.mxu0 0.0
    %6013 = vmatpush1.msra.mxu0 %v1627
    %6014 = vmatprep.subr.mxu0 0.0
    %6015 = vmatpush1.msra.mxu0 %v1628
    %6016 = vmatprep.subr.mxu0 0.0
    %6017 = vmatpush1.msra.mxu0 %v1629
    %6018 = vmatprep.subr.mxu0 0.0
    %6019 = vmatpush1.msra.mxu0 %v1630
    %6020 = vmatprep.subr.mxu0 0.0
    %6021 = vmatpush1.msra.mxu0 %v1631
    %6022 = vmatprep.subr.mxu0 0.0
    %6023 = vmatpush1.msra.mxu0 %v1632
    %6024 = vmatprep.subr.mxu0 0.0
    %6025 = vmatpush1.msra.mxu0 %v1633
    %6026 = vmatprep.subr.mxu0 0.0
    %6027 = vmatpush1.msra.mxu0 %v1634
    %6028 = vmatprep.subr.mxu0 0.0
    %6029 = vmatpush1.msra.mxu0 %v1635
    %6030 = vmatprep.subr.mxu0 0.0
    %6031 = vmatpush1.msra.mxu0 %v1636
    %6032 = vmatprep.subr.mxu0 0.0
    %6033 = vmatpush1.msra.mxu0 %v1637
    %6034 = vmatprep.subr.mxu0 0.0
    %6035 = vmatpush1.msra.mxu0 %v1638
    %6036 = vmatprep.subr.mxu0 0.0
    %6037 = vmatpush1.msra.mxu0 %v1639
    %6038 = vmatprep.subr.mxu0 0.0
    %6039 = vmatpush1.msra.mxu0 %v1640
    %6040 = vmatprep.subr.mxu0 0.0
    %6041 = vmatpush1.msra.mxu0 %v1641
    %6042 = vmatprep.subr.mxu0 0.0
    %6043 = vmatpush1.msra.mxu0 %v1642
    %6044 = vmatprep.subr.mxu0 0.0
    %6045 = vmatpush1.msra.mxu0 %v1643
    %6046 = vmatprep.subr.mxu0 0.0
    %6047 = vmatpush1.msra.mxu0 %v1644
    %6048 = vmatprep.subr.mxu0 0.0
    %6049 = vmatpush1.msra.mxu0 %v1645
    %6050 = vmatprep.subr.mxu0 0.0
    %6051 = vmatpush1.msra.mxu0 %v1646
    %6052 = vmatprep.subr.mxu0 0.0
    %6053 = vmatpush1.msra.mxu0 %v1647
    %6054 = vmatprep.subr.mxu0 0.0
    %6055 = vmatpush1.msra.mxu0 %v1648
    %6056 = vmatprep.subr.mxu0 0.0
    %6057 = vmatpush1.msra.mxu0 %v1649
    %6058 = vmatprep.subr.mxu0 0.0
    %6059 = vmatpush1.msra.mxu0 %v1650
    %6060 = vmatprep.subr.mxu0 0.0
    %6061 = vmatpush1.msra.mxu0 %v1651
    %6062 = vmatprep.subr.mxu0 0.0
    %6063 = vmatpush1.msra.mxu0 %v1652
    %6064 = vmatprep.subr.mxu0 0.0
    %6065 = vmatpush1.msra.mxu0 %v1653
    %6066 = vmatprep.subr.mxu0 0.0
    %6067 = vmatpush1.msra.mxu0 %v1654
    %6068 = vmatprep.subr.mxu0 0.0
    %6069 = vmatpush1.msra.mxu0 %v1655
    %6070 = vmatprep.subr.mxu0 0.0
    %6071 = vmatpush1.msra.mxu0 %v1656
    %6072 = vmatprep.subr.mxu0 0.0
    %6073 = vmatpush1.msra.mxu0 %v1657
    %6074 = vmatprep.subr.mxu0 0.0
    %6075 = vmatpush1.msra.mxu0 %v1658
    %6076 = vmatprep.mubr.f32.mxu0 %v2625
    %6077 = vmatmul.mubr.f32.gmra.mrb[0].mxu0 %v2624
    %v6078 = vpop.f32.mrb[0].mxu0
    %v6079 = vadd.f32 %v6009, %v6078
    %v6080 = vpop.f32.mrb[0].mxu0
    %6081 = vdwg.mxu0
    %v6082 = vmax.f32 %v6079, 0.0
    %v6083 = vld [vmem:[%s3] sm:$0xff]
    %v6084 = vld [vmem:[%s3 + $0x8] sm:$0xff]
    %v6085 = vld [vmem:[%s3 + $0x10] sm:$0xff]
    %v6086 = vld [vmem:[%s3 + $0x18] sm:$0xff]
    %v6087 = vld [vmem:[%s3 + $0x20] sm:$0xff]
    %v6088 = vld [vmem:[%s3 + $0x28] sm:$0xff]
    %v6089 = vld [vmem:[%s3 + $0x30] sm:$0xff]
    %v6090 = vld [vmem:[%s3 + $0x38] sm:$0xff]
    %v6091 = vld [vmem:[%s3 + $0x40] sm:$0xff]
    %v6092 = vld [vmem:[%s3 + $0x48] sm:$0xff]
    %v6093 = vld [vmem:[%s3 + $0x50] sm:$0xf]
    %v6094 = vld [vmem:[%s4] sm:$0x1]
    %v6096 = vlaneseq
    %v6097 = vshrl.u32 %v6096, 7
    %v6098 = vsub.s32 0, %v6097
    %v6099 = vrot.slane %v6094, %v6098
    %vm6101 = vcmask 687104
    %v6103 = vsel %vm6101, %v6082, 0
    %vm6105 = vcmask 1043456
    %v6107 = vsel %vm6105, %v6093, 0
    %6109 = vmatprep.subr.mxu0 0.0
    %6110 = vmatpush1.msra.mxu0 %v6083
    %6111 = vmatprep.subr.mxu0 0.0
    %6112 = vmatpush1.msra.mxu0 %v6084
    %6113 = vmatprep.subr.mxu0 0.0
    %6114 = vmatpush1.msra.mxu0 %v6085
    %6115 = vmatprep.subr.mxu0 0.0
    %6116 = vmatpush1.msra.mxu0 %v6086
    %6117 = vmatprep.subr.mxu0 0.0
    %6118 = vmatpush1.msra.mxu0 %v6087
    %6119 = vmatprep.subr.mxu0 0.0
    %6120 = vmatpush1.msra.mxu0 %v6088
    %6121 = vmatprep.subr.mxu0 0.0
    %6122 = vmatpush1.msra.mxu0 %v6089
    %6123 = vmatprep.subr.mxu0 0.0
    %6124 = vmatpush1.msra.mxu0 %v6090
    %6125 = vmatprep.subr.mxu0 0.0
    %6126 = vmatpush1.msra.mxu0 %v6091
    %6127 = vmatprep.subr.mxu0 0.0
    %6128 = vmatpush1.msra.mxu0 %v6092
    %6129 = vmatprep.subr.mxu0 0.0
    %6130 = vmatpush1.msra.mxu0 %v6107
    %6131 = vmatprep.subr.mxu0 0.0
    %6132 = vmatpush1.msra.mxu0 0.0
    %6133 = vmatprep.subr.mxu0 0.0
    %6134 = vmatpush1.msra.mxu0 0.0
    %6135 = vmatprep.subr.mxu0 0.0
    %6136 = vmatpush1.msra.mxu0 0.0
    %6137 = vmatprep.subr.mxu0 0.0
    %6138 = vmatpush1.msra.mxu0 0.0
    %6139 = vmatprep.subr.mxu0 0.0
    %6140 = vmatpush1.msra.mxu0 0.0
    %6141 = vmatprep.subr.mxu0 0.0
    %6142 = vmatpush1.msra.mxu0 0.0
    %6143 = vmatprep.subr.mxu0 0.0
    %6144 = vmatpush1.msra.mxu0 0.0
    %6145 = vmatprep.subr.mxu0 0.0
    %6146 = vmatpush1.msra.mxu0 0.0
    %6147 = vmatprep.subr.mxu0 0.0
    %6148 = vmatpush1.msra.mxu0 0.0
    %6149 = vmatprep.subr.mxu0 0.0
    %6150 = vmatpush1.msra.mxu0 0.0
    %6151 = vmatprep.subr.mxu0 0.0
    %6152 = vmatpush1.msra.mxu0 0.0
    %6153 = vmatprep.subr.mxu0 0.0
    %6154 = vmatpush1.msra.mxu0 0.0
    %6155 = vmatprep.subr.mxu0 0.0
    %6156 = vmatpush1.msra.mxu0 0.0
    %6157 = vmatprep.subr.mxu0 0.0
    %6158 = vmatpush1.msra.mxu0 0.0
    %6159 = vmatprep.subr.mxu0 0.0
    %6160 = vmatpush1.msra.mxu0 0.0
    %6161 = vmatprep.subr.mxu0 0.0
    %6162 = vmatpush1.msra.mxu0 0.0
    %6163 = vmatprep.subr.mxu0 0.0
    %6164 = vmatpush1.msra.mxu0 0.0
    %6165 = vmatprep.subr.mxu0 0.0
    %6166 = vmatpush1.msra.mxu0 0.0
    %6167 = vmatprep.subr.mxu0 0.0
    %6168 = vmatpush1.msra.mxu0 0.0
    %6169 = vmatprep.subr.mxu0 0.0
    %6170 = vmatpush1.msra.mxu0 0.0
    %6171 = vmatprep.subr.mxu0 0.0
    %6172 = vmatpush1.msra.mxu0 0.0
    %6173 = vmatprep.mubr.f32.mxu0 0.0
    %6174 = vmatmul.mubr.f32.gmra.mrb[0].mxu0 %v6103
    %v6175 = vpop.f32.mrb[0].mxu0
    %v6176 = vadd.f32 %v6099, %v6175
    %v6177 = vpop.f32.mrb[0].mxu0
    %6178 = vdwg.mxu0
    %v6179 = vmax.f32 %v6176, 0.0
    %v6180 = vld [vmem:[%s5] sm:$0xff]
    %v6181 = vld [vmem:[%s5 + $0x8] sm:$0xff]
    %v6182 = vld [vmem:[%s5 + $0x10] sm:$0xff]
    %v6183 = vld [vmem:[%s5 + $0x18] sm:$0xff]
    %v6184 = vld [vmem:[%s5 + $0x20] sm:$0xff]
    %v6185 = vld [vmem:[%s5 + $0x28] sm:$0xff]
    %v6186 = vld [vmem:[%s5 + $0x30] sm:$0x3]
    %v6187 = vld [vmem:[%s6] sm:$0x1]
    %v6189 = vlaneseq
    %v6190 = vshrl.u32 %v6189, 7
    %v6191 = vsub.s32 0, %v6190
    %v6192 = vrot.slane %v6187, %v6191
    %vm6194 = vcmask 408576
    %v6196 = vsel %vm6194, %v6179, 0
    %vm6198 = vcmask 1041408
    %v6200 = vsel %vm6198, %v6186, 0
    %6202 = vmatprep.subr.mxu0 0.0
    %6203 = vmatpush1.msra.mxu0 %v6180
    %6204 = vmatprep.subr.mxu0 0.0
    %6205 = vmatpush1.msra.mxu0 %v6181
    %6206 = vmatprep.subr.mxu0 0.0
    %6207 = vmatpush1.msra.mxu0 %v6182
    %6208 = vmatprep.subr.mxu0 0.0
    %6209 = vmatpush1.msra.mxu0 %v6183
    %6210 = vmatprep.subr.mxu0 0.0
    %6211 = vmatpush1.msra.mxu0 %v6184
    %6212 = vmatprep.subr.mxu0 0.0
    %6213 = vmatpush1.msra.mxu0 %v6185
    %6214 = vmatprep.subr.mxu0 0.0
    %6215 = vmatpush1.msra.mxu0 %v6200
    %6216 = vmatprep.subr.mxu0 0.0
    %6217 = vmatpush1.msra.mxu0 0.0
    %6218 = vmatprep.subr.mxu0 0.0
    %6219 = vmatpush1.msra.mxu0 0.0
    %6220 = vmatprep.subr.mxu0 0.0
    %6221 = vmatpush1.msra.mxu0 0.0
    %6222 = vmatprep.subr.mxu0 0.0
    %6223 = vmatpush1.msra.mxu0 0.0
    %6224 = vmatprep.subr.mxu0 0.0
    %6225 = vmatpush1.msra.mxu0 0.0
    %6226 = vmatprep.subr.mxu0 0.0
    %6227 = vmatpush1.msra.mxu0 0.0
    %6228 = vmatprep.subr.mxu0 0.0
    %6229 = vmatpush1.msra.mxu0 0.0
    %6230 = vmatprep.subr.mxu0 0.0
    %6231 = vmatpush1.msra.mxu0 0.0
    %6232 = vmatprep.subr.mxu0 0.0
    %6233 = vmatpush1.msra.mxu0 0.0
    %6234 = vmatprep.subr.mxu0 0.0
    %6235 = vmatpush1.msra.mxu0 0.0
    %6236 = vmatprep.subr.mxu0 0.0
    %6237 = vmatpush1.msra.mxu0 0.0
    %6238 = vmatprep.subr.mxu0 0.0
    %6239 = vmatpush1.msra.mxu0 0.0
    %6240 = vmatprep.subr.mxu0 0.0
    %6241 = vmatpush1.msra.mxu0 0.0
    %6242 = vmatprep.subr.mxu0 0.0
    %6243 = vmatpush1.msra.mxu0 0.0
    %6244 = vmatprep.subr.mxu0 0.0
    %6245 = vmatpush1.msra.mxu0 0.0
    %6246 = vmatprep.subr.mxu0 0.0
    %6247 = vmatpush1.msra.mxu0 0.0
    %6248 = vmatprep.subr.mxu0 0.0
    %6249 = vmatpush1.msra.mxu0 0.0
    %6250 = vmatprep.subr.mxu0 0.0
    %6251 = vmatpush1.msra.mxu0 0.0
    %6252 = vmatprep.subr.mxu0 0.0
    %6253 = vmatpush1.msra.mxu0 0.0
    %6254 = vmatprep.subr.mxu0 0.0
    %6255 = vmatpush1.msra.mxu0 0.0
    %6256 = vmatprep.subr.mxu0 0.0
    %6257 = vmatpush1.msra.mxu0 0.0
    %6258 = vmatprep.subr.mxu0 0.0
    %6259 = vmatpush1.msra.mxu0 0.0
    %6260 = vmatprep.subr.mxu0 0.0
    %6261 = vmatpush1.msra.mxu0 0.0
    %6262 = vmatprep.subr.mxu0 0.0
    %6263 = vmatpush1.msra.mxu0 0.0
    %6264 = vmatprep.subr.mxu0 0.0
    %6265 = vmatpush1.msra.mxu0 0.0
    %6266 = vmatprep.mubr.f32.mxu0 0.0
    %6267 = vmatmul.mubr.f32.gmra.mrb[0].mxu0 %v6196
    %v6268 = vpop.f32.mrb[0].mxu0
    %v6269 = vadd.f32 %v6192, %v6268
    %v6270 = vpop.f32.mrb[0].mxu0
    %6271 = vdwg.mxu0
    %vm6272 = vcmask 15360
    %6273 = vst.msk [vmem:[#allocation2] sm:$0xff] %vm6272, %v6269
    // Predicated region
    $region30: #{tpu_custom_call.1} parent=1 // pred_check
      _
    $region31: #{tpu_custom_call.1} parent=1 // pred_check_branch
      %6275 = sbr.rel (0) target = $region33
    $region32: #{tpu_custom_call.1} parent=1 // pred_region
      %s6277 = ssub.s32 128, 32
      %6278 = vsyncadd [#allocation3], %s6277
      %s6279 = sshll.u32 [#allocation2], 4
      %s6280 = int_to_ptr.vmem [resolvable:$true] %s6279
      %6285 = dma.vmem_to_hbm [thread:$0]  %s6280, 32, %s7, [#allocation3], 32, 32, 2
    $region33: #{tpu_custom_call.1} parent=1 // pred_fallthru
      _
    // Predicated region
    $region34: #{tpu_custom_call.1} parent=1 // pred_check
      _
    $region35: #{tpu_custom_call.1} parent=1 // pred_check_branch
      %6287 = sbr.rel (0) target = $region37
    $region36: #{tpu_custom_call.1} parent=1 // pred_region
      %6288 = dma.done [#allocation3], 128
    $region37: #{tpu_custom_call.1} parent=1 // pred_fallthru
      _
    %6289 = vsyncpa [#allocation3], 1

</llo_original>
